<compile_context>
chip_gen: v7x
topology: tpu7x:2x2x1
jax: 0.10.0
libtpu: 0.0.40
codegen_flags: <defaults>
</compile_context>

<pallas_src>
import jax
import jax.numpy as jnp
from jax.experimental import pallas as pl
from jax.experimental.pallas import tpu as pltpu


# --------------------------------------------------------------------------
# helpers
# --------------------------------------------------------------------------

def _pe_selection_matrix(viewpe, dtype=jnp.float32):
    """S with S[d, d*viewpe + f] = 2**f, so (view @ S)[:, d*viewpe + f]
    == view[:, d] * 2**f  -- exactly the PyTorch positional_encoding layout."""
    freqs = 2.0 ** jnp.arange(viewpe, dtype=dtype)          # (F,)
    eye3 = jnp.eye(3, dtype=dtype)                          # (3, 3)
    return (eye3[:, :, None] * freqs[None, None, :]).reshape(3, 3 * viewpe)


def _pe_selection_matrix_packed(inChanel, viewpe):
    """(inChanel+3, 6*viewpe) bf16 matrix: zero rows for the feature lanes,
    [S | S] for the viewdir lanes, so  x_packed @ S2  duplicates the PE
    argument over [sin-lanes | cos-lanes].  Entries are 0 / 2**f -> exact
    in bf16."""
    pe_w = 3 * viewpe
    S = _pe_selection_matrix(viewpe)                        # (3, pe_w)
    S2 = jnp.zeros((inChanel + 3, 2 * pe_w), jnp.float32)
    S2 = S2.at[inChanel:].set(jnp.concatenate([S, S], axis=-1))
    return S2.astype(jnp.bfloat16)


# --------------------------------------------------------------------------
# Pallas kernel
# --------------------------------------------------------------------------

def mlp_render_kernel(x_ref, s2_ref, w1a_ref, w1b_ref, b1_ref,
                      w2_ref, b2_ref, w3_ref, b3_ref, o_ref):
    f32 = jnp.float32
    bf16 = jnp.bfloat16

    x = x_ref[...]                                     # (T, inC+3) bf16 [feat|view]

    # --- fused positional encoding (single bf16 MXU pass, exact w.r.t. S2) --
    pe2 = jnp.dot(x, s2_ref[...], preferred_element_type=f32)      # (T, 2*pe_w)
    half = pe2.shape[-1] // 2
    lane = jax.lax.broadcasted_iota(jnp.int32, pe2.shape, 1)
    # sin on the first pe_w lanes, cos on the second -> ONE layer-1 operand.
    sincos = jnp.where(lane < half, jnp.sin(pe2), jnp.cos(pe2))    # f32, EUP

    # --- layer 1: two fused matmuls over [feat|view] and [sin|cos] ----------
    h = jnp.dot(x, w1a_ref[...], preferred_element_type=f32)
    h += jnp.dot(sincos.astype(bf16), w1b_ref[...], preferred_element_type=f32)
    h = jnp.maximum(h + b1_ref[...], 0.0).astype(bf16)             # ReLU

    # --- layer 2 -------------------------------------------------------------
    h = jnp.dot(h, w2_ref[...], preferred_element_type=f32)
    h = jnp.maximum(h + b2_ref[...], 0.0).astype(bf16)             # ReLU

    # --- layer 3 + sigmoid ---------------------------------------------------
    out = jnp.dot(h, w3_ref[...], preferred_element_type=f32)
    o_ref[...] = jax.nn.sigmoid(out + b3_ref[...])                 # (T, 3) f32


# --------------------------------------------------------------------------
# wrapper
# --------------------------------------------------------------------------

def mlp_render_forward(pts, viewdirs, features, params, viewpe=6, tile_n=4096):
    """Pallas implementation of MLPRender.forward (pts unused, as in PyTorch)."""
    del pts
    w1, b1, w2, b2, w3, b3 = params
    inC = features.shape[-1]
    featureC = w1.shape[1]
    pe_w = 3 * viewpe
    in_a = inC + 3                       # width of the packed [feat|view] operand
    assert w1.shape[0] == in_a + 2 * pe_w

    bf16, f32 = jnp.bfloat16, jnp.float32

    # One packed bf16 streaming operand (halves the HBM read stream).
    x = jnp.concatenate([features, viewdirs], axis=-1).astype(bf16)   # (N, inC+3)

    # Resident (constant-index BlockSpec) operands: bf16 weights, f32 biases.
    w1a = w1[:in_a].astype(bf16)                          # rows for [feat | view]
    w1b = w1[in_a:].astype(bf16)                          # rows for [sin | cos]
    w2b = w2.astype(bf16)
    w3b = w3.astype(bf16)
    b1f = b1.astype(f32).reshape(1, featureC)
    b2f = b2.astype(f32).reshape(1, featureC)
    b3f = b3.astype(f32).reshape(1, 3)
    S2 = _pe_selection_matrix_packed(inC, viewpe)          # (inC+3, 2*pe_w) bf16

    N = x.shape[0]
    # Only sublane-align N (<= 7 extra rows).  Tile raggedness is handled by
    # Pallas partial-last-block masking -- no full host-side pad pass.
    pad = (-N) % 8
    if pad:
        x = jnp.pad(x, ((0, pad), (0, 0)))
    n_rows = N + pad

    tile_n = max(8, (int(tile_n) // 8) * 8)
    tile_n = min(tile_n, n_rows)
    if n_rows > 16 and tile_n == n_rows:
        # Keep >= 2 grid steps so the "parallel" axis feeds both TensorCores
        # on v7x (and megacore sharding in general).
        tile_n = max(8, ((n_rows // 2 + 7) // 8) * 8)
    n_tiles = pl.cdiv(n_rows, tile_n)

    def full2d(arr):                                       # resident operand spec
        return pl.BlockSpec(arr.shape, lambda i: (0, 0))

    flops = 2 * n_rows * (in_a * 2 * pe_w            # PE selection matmul
                          + in_a * featureC          # layer-1 part A
                          + 2 * pe_w * featureC      # layer-1 part B
                          + featureC * featureC      # layer 2
                          + featureC * 3)            # layer 3
    transcendentals = n_rows * (4 * pe_w + 3)        # sin+cos over 2*pe_w, sigmoid
    weight_bytes = sum(int(a.size) * a.dtype.itemsize
                       for a in (S2, w1a, w1b, b1f, w2b, b2f, w3b, b3f))
    bytes_accessed = int(x.size) * 2 + n_rows * 3 * 4 + weight_bytes

    out = pl.pallas_call(
        mlp_render_kernel,
        out_shape=jax.ShapeDtypeStruct((n_rows, 3), f32),
        grid_spec=pltpu.PrefetchScalarGridSpec(
            num_scalar_prefetch=0,
            grid=(n_tiles,),
            in_specs=[
                pl.BlockSpec((tile_n, in_a), lambda i: (i, 0)),   # packed samples
                full2d(S2),
                full2d(w1a), full2d(w1b), full2d(b1f),
                full2d(w2b), full2d(b2f),
                full2d(w3b), full2d(b3f),
            ],
            out_specs=pl.BlockSpec((tile_n, 3), lambda i: (i, 0)),
        ),
        compiler_params=pltpu.CompilerParams(
            dimension_semantics=("parallel",),
            vmem_limit_bytes=48 * 1024 * 1024),
        cost_estimate=pl.CostEstimate(
            flops=int(flops),
            transcendentals=int(transcendentals),
            bytes_accessed=int(bytes_accessed)),
    )(x, S2, w1a, w1b, b1f, w2b, b2f, w3b, b3f)

    return out[:N] if pad else out


# --------------------------------------------------------------------------
# deterministic param init (matches torch.nn.Linear default ranges)
# --------------------------------------------------------------------------

def init_params(key, inChanel, viewpe=6, featureC=128):
    in_mlpC = 3 + 2 * viewpe * 3 + inChanel
    k1, k2, k3, k4, k5 = jax.random.split(key, 5)
    s1 = 1.0 / jnp.sqrt(in_mlpC)
    s2 = 1.0 / jnp.sqrt(featureC)
    w1 = jax.random.uniform(k1, (in_mlpC, featureC), jnp.float32, -s1, s1)
    b1 = jax.random.uniform(k2, (featureC,), jnp.float32, -s1, s1)
    w2 = jax.random.uniform(k3, (featureC, featureC), jnp.float32, -s2, s2)
    b2 = jax.random.uniform(k4, (featureC,), jnp.float32, -s2, s2)
    w3 = jax.random.uniform(k5, (featureC, 3), jnp.float32, -s2, s2)
    b3 = jnp.zeros((3,), jnp.float32)            # torch.nn.init.constant_(bias, 0)
    return (w1, b1, w2, b2, w3, b3)


# --------------------------------------------------------------------------
# references
# --------------------------------------------------------------------------

def reference_f32(viewdirs, features, params, viewpe):
    """Pure f32 PyTorch-semantics reference."""
    w1, b1, w2, b2, w3, b3 = params
    freq = 2.0 ** jnp.arange(viewpe, dtype=jnp.float32)
    pts = (viewdirs[..., None] * freq).reshape(viewdirs.shape[:-1] + (viewpe * 3,))
    pe = jnp.concatenate([jnp.sin(pts), jnp.cos(pts)], axis=-1)
    x = jnp.concatenate([features, viewdirs, pe], axis=-1)
    h = jnp.maximum(x @ w1 + b1, 0.0)
    h = jnp.maximum(h @ w2 + b2, 0.0)
    return jax.nn.sigmoid(h @ w3 + b3)


def reference_bf16(viewdirs, features, params, viewpe):
    """Reference that mirrors the kernel's bf16-matmul / f32-accumulate math."""
    w1, b1, w2, b2, w3, b3 = params
    inC = features.shape[-1]
    pe_w = 3 * viewpe
    in_a = inC + 3
    f32, bf = jnp.float32, jnp.bfloat16
    x = jnp.concatenate([features, viewdirs], axis=-1).astype(bf)
    S2 = _pe_selection_matrix_packed(inC, viewpe)
    pe2 = jnp.dot(x, S2, preferred_element_type=f32)
    sincos = jnp.concatenate(
        [jnp.sin(pe2[:, :pe_w]), jnp.cos(pe2[:, pe_w:])], axis=-1)
    h = jnp.dot(x, w1[:in_a].astype(bf), preferred_element_type=f32)
    h += jnp.dot(sincos.astype(bf), w1[in_a:].astype(bf),
                 preferred_element_type=f32)
    h = jnp.maximum(h + b1, 0.0).astype(bf)
    h = jnp.maximum(
        jnp.dot(h, w2.astype(bf), preferred_element_type=f32) + b2, 0.0).astype(bf)
    out = jnp.dot(h, w3.astype(bf), preferred_element_type=f32) + b3
    return jax.nn.sigmoid(out)


# --------------------------------------------------------------------------
# main
# --------------------------------------------------------------------------

if __name__ == "__main__":
    viewpe = 6
    inChanel = 27        # typical TensoRF appearance-feature width
    featureC = 128
    N = 1000             # NOT a multiple of the tile (tests partial last block)
    demo_tile = 256      # small tile so the demo grid has several steps
                         # (production default is tile_n=4096)

    key = jax.random.PRNGKey(0)
    kp, kv, kf, kw = jax.random.split(key, 4)

    pts = jax.random.normal(kp, (N, 3), jnp.float32)
    viewdirs = jax.random.normal(kv, (N, 3), jnp.float32)
    viewdirs = viewdirs / jnp.linalg.norm(viewdirs, axis=-1, keepdims=True)
    features = jax.random.normal(kf, (N, inChanel), jnp.float32)

    params = init_params(kw, inChanel, viewpe, featureC)

    fwd = jax.jit(lambda p, v, f: mlp_render_forward(
        p, v, f, params, viewpe=viewpe, tile_n=demo_tile))
    rgb = jax.block_until_ready(fwd(pts, viewdirs, features))

    assert rgb.shape == (N, 3)
    ref_b = reference_bf16(viewdirs, features, params, viewpe)
    ref_f = reference_f32(viewdirs, features, params, viewpe)
    # tight check against the bf16-matched reference ...
    assert jnp.allclose(rgb, ref_b, atol=2e-3, rtol=0.0)
    # ... loose sanity check against the pure-f32 PyTorch-semantics reference
    # (bf16 view rounding is amplified by 2**(viewpe-1) inside sin/cos of the
    #  highest PE frequency, so the bound is intentionally generous).
    assert jnp.allclose(rgb, ref_f, atol=1e-1, rtol=0.0)

    print("KERNEL_OK")
</pallas_src>

<mosaic_0001>
module attributes {stable_mosaic.version = 11 : i64} {
  func.func @mlp_render_kernel(%arg0: i32, %arg1: memref<256x30xbf16, #tpu.memory_space<vmem>>, %arg2: memref<30x36xbf16, #tpu.memory_space<vmem>>, %arg3: memref<30x128xbf16, #tpu.memory_space<vmem>>, %arg4: memref<36x128xbf16, #tpu.memory_space<vmem>>, %arg5: memref<1x128xf32, #tpu.memory_space<vmem>>, %arg6: memref<128x128xbf16, #tpu.memory_space<vmem>>, %arg7: memref<1x128xf32, #tpu.memory_space<vmem>>, %arg8: memref<128x3xbf16, #tpu.memory_space<vmem>>, %arg9: memref<1x3xf32, #tpu.memory_space<vmem>>, %arg10: memref<256x3xf32, #tpu.memory_space<vmem>>) attributes {dimension_semantics = [#tpu.dimension_semantics<parallel>], iteration_bounds = array<i64: 4>, scalar_prefetch = 0 : i64, scratch_operands = 0 : i64, tpu.core_type = #tpu.core_type<tc>, window_params = [{transform_indices = @transform_0, window_bounds = array<i64: 256, 30>}, {pipeline_mode = #tpu.pipeline_mode<synchronous>, transform_indices = @transform_1, window_bounds = array<i64: 30, 36>}, {pipeline_mode = #tpu.pipeline_mode<synchronous>, transform_indices = @transform_2, window_bounds = array<i64: 30, 128>}, {pipeline_mode = #tpu.pipeline_mode<synchronous>, transform_indices = @transform_3, window_bounds = array<i64: 36, 128>}, {pipeline_mode = #tpu.pipeline_mode<synchronous>, transform_indices = @transform_4, window_bounds = array<i64: 1, 128>}, {pipeline_mode = #tpu.pipeline_mode<synchronous>, transform_indices = @transform_5, window_bounds = array<i64: 128, 128>}, {pipeline_mode = #tpu.pipeline_mode<synchronous>, transform_indices = @transform_6, window_bounds = array<i64: 1, 128>}, {pipeline_mode = #tpu.pipeline_mode<synchronous>, transform_indices = @transform_7, window_bounds = array<i64: 128, 3>}, {pipeline_mode = #tpu.pipeline_mode<synchronous>, transform_indices = @transform_8, window_bounds = array<i64: 1, 3>}, {transform_indices = @transform_9, window_bounds = array<i64: 256, 3>}]} {
    %c0 = arith.constant 0 : index
    %c0_0 = arith.constant 0 : index
    %0 = vector.load %arg1[%c0, %c0_0] : memref<256x30xbf16, #tpu.memory_space<vmem>>, vector<256x30xbf16>
    %c0_1 = arith.constant 0 : index
    %c0_2 = arith.constant 0 : index
    %1 = vector.load %arg2[%c0_1, %c0_2] : memref<30x36xbf16, #tpu.memory_space<vmem>>, vector<30x36xbf16>
    %cst = arith.constant dense<0.000000e+00> : vector<256x36xf32>
    %2 = tpu.matmul %0, %1, %cst {dimension_numbers = #tpu.dot_dimension_numbers<[1], [0], [0], [1], [0, 0, 1, 1], [], []>} : vector<256x30xbf16>, vector<30x36xbf16>, vector<256x36xf32> -> vector<256x36xf32>
    %3 = tpu.iota {dimensions = array<i32: 1>} : vector<256x36xi32>
    %c18_i32 = arith.constant 18 : i32
    %4 = vector.broadcast %c18_i32 : i32 to vector<256x36xi32>
    %5 = arith.cmpi slt, %3, %4 : vector<256x36xi32>
    %6 = math.sin %2 : vector<256x36xf32>
    %7 = math.cos %2 : vector<256x36xf32>
    %8 = arith.select %5, %6, %7 : vector<256x36xi1>, vector<256x36xf32>
    %c0_3 = arith.constant 0 : index
    %c0_4 = arith.constant 0 : index
    %9 = vector.load %arg3[%c0_3, %c0_4] : memref<30x128xbf16, #tpu.memory_space<vmem>>, vector<30x128xbf16>
    %cst_5 = arith.constant dense<0.000000e+00> : vector<256x128xf32>
    %10 = tpu.matmul %0, %9, %cst_5 {dimension_numbers = #tpu.dot_dimension_numbers<[1], [0], [0], [1], [0, 0, 1, 1], [], []>} : vector<256x30xbf16>, vector<30x128xbf16>, vector<256x128xf32> -> vector<256x128xf32>
    %11 = arith.truncf %8 : vector<256x36xf32> to vector<256x36xbf16>
    %c0_6 = arith.constant 0 : index
    %c0_7 = arith.constant 0 : index
    %12 = vector.load %arg4[%c0_6, %c0_7] : memref<36x128xbf16, #tpu.memory_space<vmem>>, vector<36x128xbf16>
    %cst_8 = arith.constant dense<0.000000e+00> : vector<256x128xf32>
    %13 = tpu.matmul %11, %12, %cst_8 {dimension_numbers = #tpu.dot_dimension_numbers<[1], [0], [0], [1], [0, 0, 1, 1], [], []>} : vector<256x36xbf16>, vector<36x128xbf16>, vector<256x128xf32> -> vector<256x128xf32>
    %14 = arith.addf %10, %13 : vector<256x128xf32>
    %c0_9 = arith.constant 0 : index
    %c0_10 = arith.constant 0 : index
    %15 = vector.load %arg5[%c0_9, %c0_10] : memref<1x128xf32, #tpu.memory_space<vmem>>, vector<1x128xf32>
    %16 = vector.broadcast %15 : vector<1x128xf32> to vector<256x128xf32>
    %17 = arith.addf %14, %16 : vector<256x128xf32>
    %cst_11 = arith.constant 0.000000e+00 : f32
    %18 = vector.broadcast %cst_11 : f32 to vector<256x128xf32>
    %19 = arith.maximumf %17, %18 : vector<256x128xf32>
    %20 = arith.truncf %19 : vector<256x128xf32> to vector<256x128xbf16>
    %c0_12 = arith.constant 0 : index
    %c0_13 = arith.constant 0 : index
    %21 = vector.load %arg6[%c0_12, %c0_13] : memref<128x128xbf16, #tpu.memory_space<vmem>>, vector<128x128xbf16>
    %cst_14 = arith.constant dense<0.000000e+00> : vector<256x128xf32>
    %22 = tpu.matmul %20, %21, %cst_14 {dimension_numbers = #tpu.dot_dimension_numbers<[1], [0], [0], [1], [0, 0, 1, 1], [], []>} : vector<256x128xbf16>, vector<128x128xbf16>, vector<256x128xf32> -> vector<256x128xf32>
    %c0_15 = arith.constant 0 : index
    %c0_16 = arith.constant 0 : index
    %23 = vector.load %arg7[%c0_15, %c0_16] : memref<1x128xf32, #tpu.memory_space<vmem>>, vector<1x128xf32>
    %24 = vector.broadcast %23 : vector<1x128xf32> to vector<256x128xf32>
    %25 = arith.addf %22, %24 : vector<256x128xf32>
    %cst_17 = arith.constant 0.000000e+00 : f32
    %26 = vector.broadcast %cst_17 : f32 to vector<256x128xf32>
    %27 = arith.maximumf %25, %26 : vector<256x128xf32>
    %28 = arith.truncf %27 : vector<256x128xf32> to vector<256x128xbf16>
    %c0_18 = arith.constant 0 : index
    %c0_19 = arith.constant 0 : index
    %29 = vector.load %arg8[%c0_18, %c0_19] : memref<128x3xbf16, #tpu.memory_space<vmem>>, vector<128x3xbf16>
    %cst_20 = arith.constant dense<0.000000e+00> : vector<256x3xf32>
    %30 = tpu.matmul %28, %29, %cst_20 {dimension_numbers = #tpu.dot_dimension_numbers<[1], [0], [0], [1], [0, 0, 1, 1], [], []>} : vector<256x128xbf16>, vector<128x3xbf16>, vector<256x3xf32> -> vector<256x3xf32>
    %c0_21 = arith.constant 0 : index
    %c0_22 = arith.constant 0 : index
    %31 = vector.load %arg9[%c0_21, %c0_22] : memref<1x3xf32, #tpu.memory_space<vmem>>, vector<1x3xf32>
    %32 = vector.broadcast %31 : vector<1x3xf32> to vector<256x3xf32>
    %33 = arith.addf %30, %32 : vector<256x3xf32>
    %34 = arith.negf %33 : vector<256x3xf32>
    %35 = math.exp %34 : vector<256x3xf32>
    %cst_23 = arith.constant 1.000000e+00 : f32
    %36 = vector.broadcast %cst_23 : f32 to vector<256x3xf32>
    %37 = arith.addf %36, %35 : vector<256x3xf32>
    %38 = arith.divf %36, %37 : vector<256x3xf32>
    %c0_24 = arith.constant 0 : index
    %c0_25 = arith.constant 0 : index
    %39 = vector.load %arg10[%c0_24, %c0_25] : memref<256x3xf32, #tpu.memory_space<vmem>>, vector<256x3xf32>
    tpu.vector_store %arg10[%c0_24, %c0_25], %38 {strides = array<i32>} : memref<256x3xf32, #tpu.memory_space<vmem>>, vector<256x3xf32>,
    return
  }
  func.func @transform_0(%arg0: i32) -> (i32, i32) {
    %c0_i32 = arith.constant 0 : i32
    %c0_i32_0 = arith.constant 0 : i32
    return %arg0, %c0_i32 : i32, i32
  }
  func.func @transform_1(%arg0: i32) -> (i32, i32) {
    %c0_i32 = arith.constant 0 : i32
    %c0_i32_0 = arith.constant 0 : i32
    %c0_i32_1 = arith.constant 0 : i32
    return %c0_i32, %c0_i32_0 : i32, i32
  }
  func.func @transform_2(%arg0: i32) -> (i32, i32) {
    %c0_i32 = arith.constant 0 : i32
    %c0_i32_0 = arith.constant 0 : i32
    %c0_i32_1 = arith.constant 0 : i32
    return %c0_i32, %c0_i32_0 : i32, i32
  }
  func.func @transform_3(%arg0: i32) -> (i32, i32) {
    %c0_i32 = arith.constant 0 : i32
    %c0_i32_0 = arith.constant 0 : i32
    %c0_i32_1 = arith.constant 0 : i32
    return %c0_i32, %c0_i32_0 : i32, i32
  }
  func.func @transform_4(%arg0: i32) -> (i32, i32) {
    %c0_i32 = arith.constant 0 : i32
    %c0_i32_0 = arith.constant 0 : i32
    %c0_i32_1 = arith.constant 0 : i32
    return %c0_i32, %c0_i32_0 : i32, i32
  }
  func.func @transform_5(%arg0: i32) -> (i32, i32) {
    %c0_i32 = arith.constant 0 : i32
    %c0_i32_0 = arith.constant 0 : i32
    %c0_i32_1 = arith.constant 0 : i32
    return %c0_i32, %c0_i32_0 : i32, i32
  }
  func.func @transform_6(%arg0: i32) -> (i32, i32) {
    %c0_i32 = arith.constant 0 : i32
    %c0_i32_0 = arith.constant 0 : i32
    %c0_i32_1 = arith.constant 0 : i32
    return %c0_i32, %c0_i32_0 : i32, i32
  }
  func.func @transform_7(%arg0: i32) -> (i32, i32) {
    %c0_i32 = arith.constant 0 : i32
    %c0_i32_0 = arith.constant 0 : i32
    %c0_i32_1 = arith.constant 0 : i32
    return %c0_i32, %c0_i32_0 : i32, i32
  }
  func.func @transform_8(%arg0: i32) -> (i32, i32) {
    %c0_i32 = arith.constant 0 : i32
    %c0_i32_0 = arith.constant 0 : i32
    %c0_i32_1 = arith.constant 0 : i32
    return %c0_i32, %c0_i32_0 : i32, i32
  }
  func.func @transform_9(%arg0: i32) -> (i32, i32) {
    %c0_i32 = arith.constant 0 : i32
    %c0_i32_0 = arith.constant 0 : i32
    return %arg0, %c0_i32 : i32, i32
  }
}

</mosaic_0001>

<llo_original>
// kernel: _lambda_.1
$region0: #{_lambda_.1}
  #allocation0 [shape = 'u32[]', space=smem, size = 0x4, offset = 0x4, fixed_abs, tag = 'smem constant byte address 0x4 - core index']
  #allocation1 [shape = 'u32[144,128]{1,0:T(1,128)}', space=vmem, size = 0x12000, scoped, tag = 'internal scratch']
  %s0 = inlined_call_operand.vmem [shape: bf16[1000,30], index: 0, kind: input, shape index: {}]
  %s1 = inlined_call_operand.vmem [shape: bf16[30,36], index: 1, kind: input, shape index: {}]
  %s2 = inlined_call_operand.vmem [shape: bf16[30,128], index: 2, kind: input, shape index: {}]
  %s3 = inlined_call_operand.vmem [shape: bf16[36,128], index: 3, kind: input, shape index: {}]
  %s4 = inlined_call_operand.vmem [shape: f32[1,128], index: 4, kind: input, shape index: {}]
  %s5 = inlined_call_operand.vmem [shape: bf16[128,128], index: 5, kind: input, shape index: {}]
  %s6 = inlined_call_operand.vmem [shape: f32[1,128], index: 6, kind: input, shape index: {}]
  %s7 = inlined_call_operand.vmem [shape: bf16[128,3], index: 7, kind: input, shape index: {}]
  %s8 = inlined_call_operand.vmem [shape: f32[1,3], index: 8, kind: input, shape index: {}]
  %s9 = inlined_call_operand.vmem [shape: f32[1000,3], index: 9, kind: output, shape index: {}]
  %s10 = sld [smem:[#allocation0]]
  $region117: #{_lambda_.1} parent=0
    _
  %s12 = ssub.s32 1, %s10
  %s13 = scalar_select 0, %s12, %s10
  $region1: #{_lambda_.1} parent=0
    #allocation2 [shape = 'u8[262144]{0}', space=vmem, size = 0x40000, scoped, tag = 'output window, operand 0']
    loop: start=0, step=1, limit=6
    $region2: #{_lambda_.1} parent=1 // loop_pre_header
      _
    $region3: #{_lambda_.1} parent=1 // loop_header
      %s15 = sphi 0, %s19
      %p16 = scmp.ge.s32.totalorder %s15, 6
      %s25 = sphi 0, %s27
      %s28 = sphi 0, %s25
      %s29 = sphi 0, %s28
      %s45 = sphi 0, %s29
      %s49 = sphi 0, %s49
      %s51 = sphi 0, %s49
      %s52 = sphi 0, %s51
      %s66 = sphi 0, %s52
      %s70 = sphi 0, %s70
      %s72 = sphi 0, %s70
      %s73 = sphi 0, %s72
      %s87 = sphi 0, %s73
      %s91 = sphi 0, %s91
      %s93 = sphi 0, %s91
      %s94 = sphi 0, %s93
      %s108 = sphi 0, %s94
      %s112 = sphi 0, %s112
      %s114 = sphi 0, %s112
      %s115 = sphi 0, %s114
      %s129 = sphi 0, %s115
      %s133 = sphi 0, %s133
      %s135 = sphi 0, %s133
      %s136 = sphi 0, %s135
      %s150 = sphi 0, %s136
      %s154 = sphi 0, %s154
      %s156 = sphi 0, %s154
      %s157 = sphi 0, %s156
      %s171 = sphi 0, %s157
      %s175 = sphi 0, %s175
      %s177 = sphi 0, %s175
      %s178 = sphi 0, %s177
      %s192 = sphi 0, %s178
      %s196 = sphi 0, %s196
      %s198 = sphi 0, %s196
      %s199 = sphi 0, %s198
      %s213 = sphi 0, %s199
      %s219 = sphi 0, %s221
      %s222 = sphi 0, %s219
      %s223 = sphi 0, %s222
      %s239 = sphi 0, %s223
    $region4: #{_lambda_.1} parent=1 // loop_header_branch
      %18 = sbr.rel (%p16) target = $region8
    $region5: #{_lambda_.1} parent=1 // loop_body
      %s20 = ssub.s32 %s15, 1
      %s21 = ssub.s32 %s15, 2
      %s22 = sadd.s32 %s15, 1
      %s23 = ssub.s32 %s15, %s22
      %p24 = scmp.eq.s32.totalorder %s23, 0
      %s26 = sadd.s32 %s25, 1
      %s27 = scalar_select %p24, %s25, %s26
      %p30 = pneg %p24
      %p31 = scmp.eq.s32.totalorder %s15, 3
      %p32 = por %p30, %p31
      %p33 = scmp.ne.s32.totalorder %s25, %s28
      %p34 = scmp.eq.s32.totalorder %s15, 0
      %p35 = por %p33, %p34
      %p36 = scmp.ne.s32.totalorder %s25, %s28
      %p37 = scmp.eq.s32.totalorder %s20, 3
      %p38 = por %p36, %p37
      %p39 = scmp.ne.s32.totalorder %s28, %s29
      %p40 = scmp.eq.s32.totalorder %s20, 0
      %p41 = por %p39, %p40
      %p42 = scmp.ne.s32.totalorder %s28, %s29
      %p43 = scmp.eq.s32.totalorder %s21, 3
      %p44 = por %p42, %p43
      %p46 = scmp.ne.s32.totalorder %s29, %s45
      %p47 = scmp.eq.s32.totalorder %s21, 0
      %p48 = por %p46, %p47
      %s50 = sadd.s32 %s49, 1
      %p53 = scmp.eq.s32.totalorder %s15, 3
      %p54 = scmp.ne.s32.totalorder %s49, %s51
      %p55 = scmp.eq.s32.totalorder %s15, 0
      %p56 = por %p54, %p55
      %p57 = scmp.ne.s32.totalorder %s49, %s51
      %p58 = scmp.eq.s32.totalorder %s20, 3
      %p59 = por %p57, %p58
      %p60 = scmp.ne.s32.totalorder %s51, %s52
      %p61 = scmp.eq.s32.totalorder %s20, 0
      %p62 = por %p60, %p61
      %p63 = scmp.ne.s32.totalorder %s51, %s52
      %p64 = scmp.eq.s32.totalorder %s21, 3
      %p65 = por %p63, %p64
      %p67 = scmp.ne.s32.totalorder %s52, %s66
      %p68 = scmp.eq.s32.totalorder %s21, 0
      %p69 = por %p67, %p68
      %s71 = sadd.s32 %s70, 1
      %p74 = scmp.eq.s32.totalorder %s15, 3
      %p75 = scmp.ne.s32.totalorder %s70, %s72
      %p76 = scmp.eq.s32.totalorder %s15, 0
      %p77 = por %p75, %p76
      %p78 = scmp.ne.s32.totalorder %s70, %s72
      %p79 = scmp.eq.s32.totalorder %s20, 3
      %p80 = por %p78, %p79
      %p81 = scmp.ne.s32.totalorder %s72, %s73
      %p82 = scmp.eq.s32.totalorder %s20, 0
      %p83 = por %p81, %p82
      %p84 = scmp.ne.s32.totalorder %s72, %s73
      %p85 = scmp.eq.s32.totalorder %s21, 3
      %p86 = por %p84, %p85
      %p88 = scmp.ne.s32.totalorder %s73, %s87
      %p89 = scmp.eq.s32.totalorder %s21, 0
      %p90 = por %p88, %p89
      %s92 = sadd.s32 %s91, 1
      %p95 = scmp.eq.s32.totalorder %s15, 3
      %p96 = scmp.ne.s32.totalorder %s91, %s93
      %p97 = scmp.eq.s32.totalorder %s15, 0
      %p98 = por %p96, %p97
      %p99 = scmp.ne.s32.totalorder %s91, %s93
      %p100 = scmp.eq.s32.totalorder %s20, 3
      %p101 = por %p99, %p100
      %p102 = scmp.ne.s32.totalorder %s93, %s94
      %p103 = scmp.eq.s32.totalorder %s20, 0
      %p104 = por %p102, %p103
      %p105 = scmp.ne.s32.totalorder %s93, %s94
      %p106 = scmp.eq.s32.totalorder %s21, 3
      %p107 = por %p105, %p106
      %p109 = scmp.ne.s32.totalorder %s94, %s108
      %p110 = scmp.eq.s32.totalorder %s21, 0
      %p111 = por %p109, %p110
      %s113 = sadd.s32 %s112, 1
      %p116 = scmp.eq.s32.totalorder %s15, 3
      %p117 = scmp.ne.s32.totalorder %s112, %s114
      %p118 = scmp.eq.s32.totalorder %s15, 0
      %p119 = por %p117, %p118
      %p120 = scmp.ne.s32.totalorder %s112, %s114
      %p121 = scmp.eq.s32.totalorder %s20, 3
      %p122 = por %p120, %p121
      %p123 = scmp.ne.s32.totalorder %s114, %s115
      %p124 = scmp.eq.s32.totalorder %s20, 0
      %p125 = por %p123, %p124
      %p126 = scmp.ne.s32.totalorder %s114, %s115
      %p127 = scmp.eq.s32.totalorder %s21, 3
      %p128 = por %p126, %p127
      %p130 = scmp.ne.s32.totalorder %s115, %s129
      %p131 = scmp.eq.s32.totalorder %s21, 0
      %p132 = por %p130, %p131
      %s134 = sadd.s32 %s133, 1
      %p137 = scmp.eq.s32.totalorder %s15, 3
      %p138 = scmp.ne.s32.totalorder %s133, %s135
      %p139 = scmp.eq.s32.totalorder %s15, 0
      %p140 = por %p138, %p139
      %p141 = scmp.ne.s32.totalorder %s133, %s135
      %p142 = scmp.eq.s32.totalorder %s20, 3
      %p143 = por %p141, %p142
      %p144 = scmp.ne.s32.totalorder %s135, %s136
      %p145 = scmp.eq.s32.totalorder %s20, 0
      %p146 = por %p144, %p145
      %p147 = scmp.ne.s32.totalorder %s135, %s136
      %p148 = scmp.eq.s32.totalorder %s21, 3
      %p149 = por %p147, %p148
      %p151 = scmp.ne.s32.totalorder %s136, %s150
      %p152 = scmp.eq.s32.totalorder %s21, 0
      %p153 = por %p151, %p152
      %s155 = sadd.s32 %s154, 1
      %p158 = scmp.eq.s32.totalorder %s15, 3
      %p159 = scmp.ne.s32.totalorder %s154, %s156
      %p160 = scmp.eq.s32.totalorder %s15, 0
      %p161 = por %p159, %p160
      %p162 = scmp.ne.s32.totalorder %s154, %s156
      %p163 = scmp.eq.s32.totalorder %s20, 3
      %p164 = por %p162, %p163
      %p165 = scmp.ne.s32.totalorder %s156, %s157
      %p166 = scmp.eq.s32.totalorder %s20, 0
      %p167 = por %p165, %p166
      %p168 = scmp.ne.s32.totalorder %s156, %s157
      %p169 = scmp.eq.s32.totalorder %s21, 3
      %p170 = por %p168, %p169
      %p172 = scmp.ne.s32.totalorder %s157, %s171
      %p173 = scmp.eq.s32.totalorder %s21, 0
      %p174 = por %p172, %p173
      %s176 = sadd.s32 %s175, 1
      %p179 = scmp.eq.s32.totalorder %s15, 3
      %p180 = scmp.ne.s32.totalorder %s175, %s177
      %p181 = scmp.eq.s32.totalorder %s15, 0
      %p182 = por %p180, %p181
      %p183 = scmp.ne.s32.totalorder %s175, %s177
      %p184 = scmp.eq.s32.totalorder %s20, 3
      %p185 = por %p183, %p184
      %p186 = scmp.ne.s32.totalorder %s177, %s178
      %p187 = scmp.eq.s32.totalorder %s20, 0
      %p188 = por %p186, %p187
      %p189 = scmp.ne.s32.totalorder %s177, %s178
      %p190 = scmp.eq.s32.totalorder %s21, 3
      %p191 = por %p189, %p190
      %p193 = scmp.ne.s32.totalorder %s178, %s192
      %p194 = scmp.eq.s32.totalorder %s21, 0
      %p195 = por %p193, %p194
      %s197 = sadd.s32 %s196, 1
      %p200 = scmp.eq.s32.totalorder %s15, 3
      %p201 = scmp.ne.s32.totalorder %s196, %s198
      %p202 = scmp.eq.s32.totalorder %s15, 0
      %p203 = por %p201, %p202
      %p204 = scmp.ne.s32.totalorder %s196, %s198
      %p205 = scmp.eq.s32.totalorder %s20, 3
      %p206 = por %p204, %p205
      %p207 = scmp.ne.s32.totalorder %s198, %s199
      %p208 = scmp.eq.s32.totalorder %s20, 0
      %p209 = por %p207, %p208
      %p210 = scmp.ne.s32.totalorder %s198, %s199
      %p211 = scmp.eq.s32.totalorder %s21, 3
      %p212 = por %p210, %p211
      %p214 = scmp.ne.s32.totalorder %s199, %s213
      %p215 = scmp.eq.s32.totalorder %s21, 0
      %p216 = por %p214, %p215
      %s217 = ssub.s32 %s15, %s22
      %p218 = scmp.eq.s32.totalorder %s217, 0
      %s220 = sadd.s32 %s219, 1
      %s221 = scalar_select %p218, %s219, %s220
      %p224 = pneg %p218
      %p225 = scmp.eq.s32.totalorder %s15, 3
      %p226 = por %p224, %p225
      %p227 = scmp.ne.s32.totalorder %s219, %s222
      %p228 = scmp.eq.s32.totalorder %s15, 0
      %p229 = por %p227, %p228
      %p230 = scmp.ne.s32.totalorder %s219, %s222
      %p231 = scmp.eq.s32.totalorder %s20, 3
      %p232 = por %p230, %p231
      %p233 = scmp.ne.s32.totalorder %s222, %s223
      %p234 = scmp.eq.s32.totalorder %s20, 0
      %p235 = por %p233, %p234
      %p236 = scmp.ne.s32.totalorder %s222, %s223
      %p237 = scmp.eq.s32.totalorder %s21, 3
      %p238 = por %p236, %p237
      %p240 = scmp.ne.s32.totalorder %s223, %s239
      %p241 = scmp.eq.s32.totalorder %s21, 0
      %p242 = por %p240, %p241
      %p243 = scmp.le.s32.totalorder 1, %s15
      %p244 = scmp.lt.s32.totalorder %s15, 5
      %p245 = pnand %p243, %p244
      %p246 = pneg %p245
      // Predicated region
      $region9: #{_lambda_.1} parent=5 // pred_check
        _
      $region10: #{_lambda_.1} parent=5 // pred_check_branch
        %248 = sbr.rel (%p245) target = $region12
      $region11: #{_lambda_.1} parent=5 // pred_region
        %s249 = ssub.s32 %s15, 1
        // Predicated region
        $region13: #{_lambda_.1} parent=11 // pred_check
          %p250 = pneg %p62
        $region14: #{_lambda_.1} parent=11 // pred_check_branch
          %252 = sbr.rel (%p250) target = $region16
        $region15: #{_lambda_.1} parent=11 // pred_region
          _
        $region16: #{_lambda_.1} parent=11 // pred_fallthru
          _
        // Predicated region
        $region17: #{_lambda_.1} parent=11 // pred_check
          %p253 = pneg %p83
        $region18: #{_lambda_.1} parent=11 // pred_check_branch
          %255 = sbr.rel (%p253) target = $region20
        $region19: #{_lambda_.1} parent=11 // pred_region
          _
        $region20: #{_lambda_.1} parent=11 // pred_fallthru
          _
        // Predicated region
        $region21: #{_lambda_.1} parent=11 // pred_check
          %p256 = pneg %p104
        $region22: #{_lambda_.1} parent=11 // pred_check_branch
          %258 = sbr.rel (%p256) target = $region24
        $region23: #{_lambda_.1} parent=11 // pred_region
          _
        $region24: #{_lambda_.1} parent=11 // pred_fallthru
          _
        // Predicated region
        $region25: #{_lambda_.1} parent=11 // pred_check
          %p259 = pneg %p125
        $region26: #{_lambda_.1} parent=11 // pred_check_branch
          %261 = sbr.rel (%p259) target = $region28
        $region27: #{_lambda_.1} parent=11 // pred_region
          _
        $region28: #{_lambda_.1} parent=11 // pred_fallthru
          _
        // Predicated region
        $region29: #{_lambda_.1} parent=11 // pred_check
          %p262 = pneg %p146
        $region30: #{_lambda_.1} parent=11 // pred_check_branch
          %264 = sbr.rel (%p262) target = $region32
        $region31: #{_lambda_.1} parent=11 // pred_region
          _
        $region32: #{_lambda_.1} parent=11 // pred_fallthru
          _
        // Predicated region
        $region33: #{_lambda_.1} parent=11 // pred_check
          %p265 = pneg %p167
        $region34: #{_lambda_.1} parent=11 // pred_check_branch
          %267 = sbr.rel (%p265) target = $region36
        $region35: #{_lambda_.1} parent=11 // pred_region
          _
        $region36: #{_lambda_.1} parent=11 // pred_fallthru
          _
        // Predicated region
        $region37: #{_lambda_.1} parent=11 // pred_check
          %p268 = pneg %p188
        $region38: #{_lambda_.1} parent=11 // pred_check_branch
          %270 = sbr.rel (%p268) target = $region40
        $region39: #{_lambda_.1} parent=11 // pred_region
          _
        $region40: #{_lambda_.1} parent=11 // pred_fallthru
          _
        // Predicated region
        $region41: #{_lambda_.1} parent=11 // pred_check
          %p271 = pneg %p209
        $region42: #{_lambda_.1} parent=11 // pred_check_branch
          %273 = sbr.rel (%p271) target = $region44
        $region43: #{_lambda_.1} parent=11 // pred_region
          _
        $region44: #{_lambda_.1} parent=11 // pred_fallthru
          _
      $region12: #{_lambda_.1} parent=5 // pred_fallthru
        _
      %p274 = scmp.lt.s32.totalorder %s15, 4
      // Predicated region
      $region45: #{_lambda_.1} parent=5 // pred_check
        %p275 = pneg %p274
      $region46: #{_lambda_.1} parent=5 // pred_check_branch
        %277 = sbr.rel (%p275) target = $region48
      $region47: #{_lambda_.1} parent=5 // pred_region
        // Predicated region
        $region49: #{_lambda_.1} parent=47 // pred_check
          %p278 = pneg %p35
        $region50: #{_lambda_.1} parent=47 // pred_check_branch
          %280 = sbr.rel (%p278) target = $region52
        $region51: #{_lambda_.1} parent=47 // pred_region
          %s281 = smul.u32 32, %s15
          %s282 = ssub.s32 125, %s281
          %p283 = scmp.lt.s32.totalorder %s282, 32
          %s284 = scalar_select %p283, %s282, 32
          %s285 = smul.u32 64, %s284
          %p286 = scmp.lt.s32.totalorder %s281, 124
          %s287 = scalar_select %p286, %s281, 124
          %s288 = smul.addr %s287, 4
          %s289 = scalar_lea.vmem %s0, %s288
          %s290 = smul.u32 32, %s15
          %s291 = ssub.s32 125, %s290
          %p292 = scmp.lt.s32.totalorder %s291, 32
          %s293 = scalar_select %p292, %s291, 32
          %s294 = smul.u32 64, %s293
        $region52: #{_lambda_.1} parent=47 // pred_fallthru
          _
      $region48: #{_lambda_.1} parent=5 // pred_fallthru
        _
      %p295 = scmp.le.s32.totalorder 1, %s15
      %p296 = scmp.lt.s32.totalorder %s15, 5
      %p297 = pnand %p295, %p296
      %p298 = pneg %p297
      // Predicated region
      $region53: #{_lambda_.1} parent=5 // pred_check
        _
      $region54: #{_lambda_.1} parent=5 // pred_check_branch
        %300 = sbr.rel (%p297) target = $region56
      $region55: #{_lambda_.1} parent=5 // pred_region
        %s301 = ssub.s32 %s15, 1
        %s302 = smul.u32 32, %s20
        %s303 = ssub.s32 125, %s302
        %p304 = scmp.lt.s32.totalorder %s303, 32
        %s305 = scalar_select %p304, %s303, 32
        %s306 = smul.u32 64, %s305
        %p307 = scmp.lt.s32.totalorder %s302, 124
        %s308 = scalar_select %p307, %s302, 124
        %s309 = smul.addr %s308, 4
        %s310 = scalar_lea.vmem %s0, %s309
        %p311 = pneg %p41
        %p312 = pneg %p38
        %p313 = pneg %p62
        %p314 = pneg %p59
        %p315 = pneg %p83
        %p316 = pneg %p80
        %p317 = pneg %p104
        %p318 = pneg %p101
        %p319 = pneg %p125
        %p320 = pneg %p122
        %p321 = pneg %p146
        %p322 = pneg %p143
        %p323 = pneg %p167
        %p324 = pneg %p164
        %p325 = pneg %p188
        %p326 = pneg %p185
        %p327 = pneg %p209
        %p328 = pneg %p206
        %p329 = pneg %p235
        %p330 = pneg %p232
        %s331 = sand.u32 %s222, 1
        %s332 = sand.u32 %s222, 1
        %s333 = smul.addr %s332, 256
        %s334 = scalar_lea.vmem [#allocation2], %s333
        %s335 = smul.u32 32, %s20
        %s336 = ssub.s32 125, %s335
        %p337 = scmp.lt.s32.totalorder %s336, 32
        %s338 = scalar_select %p337, %s336, 32
        %s339 = smul.u32 64, %s338
        %p340 = scmp.lt.s32.totalorder %s335, 124
        %s341 = scalar_select %p340, %s335, 124
        %s342 = smul.addr %s341, 4
        %s343 = scalar_lea.vmem %s0, %s342
        %s344 = smul.u32 32, %s20
        %s345 = ssub.s32 125, %s344
        %p346 = scmp.lt.s32.totalorder %s345, 32
        %s347 = scalar_select %p346, %s345, 32
        %s348 = smul.u32 64, %s347
        %s349 = smul.u32 32, %s20
        %s350 = ssub.s32 125, %s349
        %p351 = scmp.lt.s32.totalorder %s350, 32
        %s352 = scalar_select %p351, %s350, 32
        %s353 = smul.u32 128, %s352
        %v355 = vld [vmem:[%s343] sm:$0xf]
        %v356 = vld [vmem:[%s343 + $0x4] sm:$0xf]
        %v357 = vld [vmem:[%s343 + $0x8] sm:$0xf]
        %v358 = vld [vmem:[%s343 + $0xc] sm:$0xf]
        %v359 = vld [vmem:[%s343 + $0x10] sm:$0xf]
        %v360 = vld [vmem:[%s343 + $0x14] sm:$0xf]
        %v361 = vld [vmem:[%s343 + $0x18] sm:$0xf]
        %v362 = vld [vmem:[%s343 + $0x1c] sm:$0xf]
        %v363 = vld [vmem:[%s343 + $0x20] sm:$0xf]
        %v364 = vld [vmem:[%s343 + $0x24] sm:$0xf]
        %v365 = vld [vmem:[%s343 + $0x28] sm:$0xf]
        %v366 = vld [vmem:[%s343 + $0x2c] sm:$0xf]
        %v367 = vld [vmem:[%s343 + $0x30] sm:$0xf]
        %v368 = vld [vmem:[%s343 + $0x34] sm:$0xf]
        %v369 = vld [vmem:[%s343 + $0x38] sm:$0xf]
        %v370 = vld [vmem:[%s343 + $0x3c] sm:$0xf]
        %v371 = vld [vmem:[%s343 + $0x40] sm:$0xf]
        %v372 = vld [vmem:[%s343 + $0x44] sm:$0xf]
        %v373 = vld [vmem:[%s343 + $0x48] sm:$0xf]
        %v374 = vld [vmem:[%s343 + $0x4c] sm:$0xf]
        %v375 = vld [vmem:[%s343 + $0x50] sm:$0xf]
        %v376 = vld [vmem:[%s343 + $0x54] sm:$0xf]
        %v377 = vld [vmem:[%s343 + $0x58] sm:$0xf]
        %v378 = vld [vmem:[%s343 + $0x5c] sm:$0xf]
        %v379 = vld [vmem:[%s343 + $0x60] sm:$0xf]
        %v380 = vld [vmem:[%s343 + $0x64] sm:$0xf]
        %v381 = vld [vmem:[%s343 + $0x68] sm:$0xf]
        %v382 = vld [vmem:[%s343 + $0x6c] sm:$0xf]
        %v383 = vld [vmem:[%s343 + $0x70] sm:$0xf]
        %v384 = vld [vmem:[%s343 + $0x74] sm:$0xf]
        %v385 = vld [vmem:[%s343 + $0x78] sm:$0xf]
        %v386 = vld [vmem:[%s343 + $0x7c] sm:$0xf]
        %v387 = vld [vmem:[%s1] sm:$0xf]
        %v388 = vld [vmem:[%s1 + $0x4] sm:$0xf]
        %v389 = vld [vmem:[%s1 + $0x8] sm:$0xf]
        %v390 = vld [vmem:[%s1 + $0xc] sm:$0x7]
        %v423 = vunpack.c.l.b16 %v355
        %v424 = vunpack.c.l.b16 %v356
        %v425 = vunpack.c.l.b16 %v357
        %v426 = vunpack.c.l.b16 %v358
        %v427 = vunpack.c.l.b16 %v359
        %v428 = vunpack.c.l.b16 %v360
        %v429 = vunpack.c.l.b16 %v361
        %v430 = vunpack.c.l.b16 %v362
        %v431 = vunpack.c.l.b16 %v363
        %v432 = vunpack.c.l.b16 %v364
        %v433 = vunpack.c.l.b16 %v365
        %v434 = vunpack.c.l.b16 %v366
        %v435 = vunpack.c.l.b16 %v367
        %v436 = vunpack.c.l.b16 %v368
        %v437 = vunpack.c.l.b16 %v369
        %v438 = vunpack.c.l.b16 %v370
        %v439 = vunpack.c.l.b16 %v371
        %v440 = vunpack.c.l.b16 %v372
        %v441 = vunpack.c.l.b16 %v373
        %v442 = vunpack.c.l.b16 %v374
        %v443 = vunpack.c.l.b16 %v375
        %v444 = vunpack.c.l.b16 %v376
        %v445 = vunpack.c.l.b16 %v377
        %v446 = vunpack.c.l.b16 %v378
        %v447 = vunpack.c.l.b16 %v379
        %v448 = vunpack.c.l.b16 %v380
        %v449 = vunpack.c.l.b16 %v381
        %v450 = vunpack.c.l.b16 %v382
        %v451 = vunpack.c.l.b16 %v383
        %v452 = vunpack.c.l.b16 %v384
        %v453 = vunpack.c.l.b16 %v385
        %v454 = vunpack.c.l.b16 %v386
        %v455 = vpack.c.b16 %v424, %v423
        %v456 = vpack.c.b16 %v426, %v425
        %v457 = vpack.c.b16 %v428, %v427
        %v458 = vpack.c.b16 %v430, %v429
        %v459 = vpack.c.b16 %v432, %v431
        %v460 = vpack.c.b16 %v434, %v433
        %v461 = vpack.c.b16 %v436, %v435
        %v462 = vpack.c.b16 %v438, %v437
        %v463 = vpack.c.b16 %v440, %v439
        %v464 = vpack.c.b16 %v442, %v441
        %v465 = vpack.c.b16 %v444, %v443
        %v466 = vpack.c.b16 %v446, %v445
        %v467 = vpack.c.b16 %v448, %v447
        %v468 = vpack.c.b16 %v450, %v449
        %v469 = vpack.c.b16 %v452, %v451
        %v470 = vpack.c.b16 %v454, %v453
        %v475 = vunpack.c.l.b16 %v387
        %v476 = vunpack.c.l.b16 %v388
        %v477 = vunpack.c.l.b16 %v389
        %v478 = vunpack.c.l.b16 %v390
        %v479 = vpack.c.b16 %v476, %v475
        %v480 = vpack.c.b16 %v478, %v477
        %vm482 = vcmask 244736
        %v484 = vsel %vm482, %v455, 0
        %v487 = vsel %vm482, %v456, 0
        %v490 = vsel %vm482, %v457, 0
        %v493 = vsel %vm482, %v458, 0
        %v496 = vsel %vm482, %v459, 0
        %v499 = vsel %vm482, %v460, 0
        %v502 = vsel %vm482, %v461, 0
        %v505 = vsel %vm482, %v462, 0
        %v508 = vsel %vm482, %v463, 0
        %v511 = vsel %vm482, %v464, 0
        %v514 = vsel %vm482, %v465, 0
        %v517 = vsel %vm482, %v466, 0
        %v520 = vsel %vm482, %v467, 0
        %v523 = vsel %vm482, %v468, 0
        %v526 = vsel %vm482, %v469, 0
        %v529 = vsel %vm482, %v470, 0
        %vm531 = vcmask 1046528
        %v533 = vsel %vm531, %v480, 0
        %535 = vmatprep.subr.bf16.mxu0 0
        %536 = vmatpush1.bf16.msra.mxu0 %v479
        %537 = vmatprep.subr.bf16.mxu0 0
        %538 = vmatpush1.bf16.msra.mxu0 %v533
        %539 = vmatprep.subr.bf16.mxu0 0
        %540 = vmatpush1.bf16.msra.mxu0 0
        %541 = vmatprep.subr.bf16.mxu0 0
        %542 = vmatpush1.bf16.msra.mxu0 0
        %543 = vmatprep.subr.bf16.mxu0 0
        %544 = vmatpush1.bf16.msra.mxu0 0
        %545 = vmatprep.subr.bf16.mxu0 0
        %546 = vmatpush1.bf16.msra.mxu0 0
        %547 = vmatprep.subr.bf16.mxu0 0
        %548 = vmatpush1.bf16.msra.mxu0 0
        %549 = vmatprep.subr.bf16.mxu0 0
        %550 = vmatpush1.bf16.msra.mxu0 0
        %551 = vmatprep.subr.bf16.mxu0 0
        %552 = vmatpush1.bf16.msra.mxu0 0
        %553 = vmatprep.subr.bf16.mxu0 0
        %554 = vmatpush1.bf16.msra.mxu0 0
        %555 = vmatprep.subr.bf16.mxu0 0
        %556 = vmatpush1.bf16.msra.mxu0 0
        %557 = vmatprep.subr.bf16.mxu0 0
        %558 = vmatpush1.bf16.msra.mxu0 0
        %559 = vmatprep.subr.bf16.mxu0 0
        %560 = vmatpush1.bf16.msra.mxu0 0
        %561 = vmatprep.subr.bf16.mxu0 0
        %562 = vmatpush1.bf16.msra.mxu0 0
        %563 = vmatprep.subr.bf16.mxu0 0
        %564 = vmatpush1.bf16.msra.mxu0 0
        %565 = vmatprep.subr.bf16.mxu0 0
        %566 = vmatpush1.bf16.msra.mxu0 0
        %567 = vmatprep.mubr.bf16.mxu0 0
        %568 = vmatmul.mubr.bf16.gmra.mrb[0].mxu0 %v484
        %v569 = vpop.f32.mrb[0].mxu0
        %v570 = vadd.f32 0.0, %v569
        %v571 = vpop.f32.mrb[0].mxu0
        %v572 = vpop.f32.mrb[0].mxu0
        %v573 = vadd.f32 0.0, %v572
        %v574 = vpop.f32.mrb[0].mxu0
        %575 = vmatprep.mubr.bf16.mxu0 0
        %576 = vmatmul.mubr.bf16.gmra.mrb[0].mxu0 %v487
        %v577 = vpop.f32.mrb[0].mxu0
        %v578 = vadd.f32 0.0, %v577
        %v579 = vpop.f32.mrb[0].mxu0
        %v580 = vpop.f32.mrb[0].mxu0
        %v581 = vadd.f32 0.0, %v580
        %v582 = vpop.f32.mrb[0].mxu0
        %583 = vmatprep.mubr.bf16.mxu0 0
        %584 = vmatmul.mubr.bf16.gmra.mrb[0].mxu0 %v490
        %v585 = vpop.f32.mrb[0].mxu0
        %v586 = vadd.f32 0.0, %v585
        %v587 = vpop.f32.mrb[0].mxu0
        %v588 = vpop.f32.mrb[0].mxu0
        %v589 = vadd.f32 0.0, %v588
        %v590 = vpop.f32.mrb[0].mxu0
        %591 = vmatprep.mubr.bf16.mxu0 0
        %592 = vmatmul.mubr.bf16.gmra.mrb[0].mxu0 %v493
        %v593 = vpop.f32.mrb[0].mxu0
        %v594 = vadd.f32 0.0, %v593
        %v595 = vpop.f32.mrb[0].mxu0
        %v596 = vpop.f32.mrb[0].mxu0
        %v597 = vadd.f32 0.0, %v596
        %v598 = vpop.f32.mrb[0].mxu0
        %599 = vmatprep.mubr.bf16.mxu0 0
        %600 = vmatmul.mubr.bf16.gmra.mrb[0].mxu0 %v496
        %v601 = vpop.f32.mrb[0].mxu0
        %v602 = vadd.f32 0.0, %v601
        %v603 = vpop.f32.mrb[0].mxu0
        %v604 = vpop.f32.mrb[0].mxu0
        %v605 = vadd.f32 0.0, %v604
        %v606 = vpop.f32.mrb[0].mxu0
        %607 = vmatprep.mubr.bf16.mxu0 0
        %608 = vmatmul.mubr.bf16.gmra.mrb[0].mxu0 %v499
        %v609 = vpop.f32.mrb[0].mxu0
        %v610 = vadd.f32 0.0, %v609
        %v611 = vpop.f32.mrb[0].mxu0
        %v612 = vpop.f32.mrb[0].mxu0
        %v613 = vadd.f32 0.0, %v612
        %v614 = vpop.f32.mrb[0].mxu0
        %615 = vmatprep.mubr.bf16.mxu0 0
        %616 = vmatmul.mubr.bf16.gmra.mrb[0].mxu0 %v502
        %v617 = vpop.f32.mrb[0].mxu0
        %v618 = vadd.f32 0.0, %v617
        %v619 = vpop.f32.mrb[0].mxu0
        %v620 = vpop.f32.mrb[0].mxu0
        %v621 = vadd.f32 0.0, %v620
        %v622 = vpop.f32.mrb[0].mxu0
        %623 = vmatprep.mubr.bf16.mxu0 0
        %624 = vmatmul.mubr.bf16.gmra.mrb[0].mxu0 %v505
        %v625 = vpop.f32.mrb[0].mxu0
        %v626 = vadd.f32 0.0, %v625
        %v627 = vpop.f32.mrb[0].mxu0
        %v628 = vpop.f32.mrb[0].mxu0
        %v629 = vadd.f32 0.0, %v628
        %v630 = vpop.f32.mrb[0].mxu0
        %631 = vmatprep.mubr.bf16.mxu0 0
        %632 = vmatmul.mubr.bf16.gmra.mrb[0].mxu0 %v508
        %v633 = vpop.f32.mrb[0].mxu0
        %v634 = vadd.f32 0.0, %v633
        %v635 = vpop.f32.mrb[0].mxu0
        %v636 = vpop.f32.mrb[0].mxu0
        %v637 = vadd.f32 0.0, %v636
        %v638 = vpop.f32.mrb[0].mxu0
        %639 = vmatprep.mubr.bf16.mxu0 0
        %640 = vmatmul.mubr.bf16.gmra.mrb[0].mxu0 %v511
        %v641 = vpop.f32.mrb[0].mxu0
        %v642 = vadd.f32 0.0, %v641
        %v643 = vpop.f32.mrb[0].mxu0
        %v644 = vpop.f32.mrb[0].mxu0
        %v645 = vadd.f32 0.0, %v644
        %v646 = vpop.f32.mrb[0].mxu0
        %647 = vmatprep.mubr.bf16.mxu0 0
        %648 = vmatmul.mubr.bf16.gmra.mrb[0].mxu0 %v514
        %v649 = vpop.f32.mrb[0].mxu0
        %v650 = vadd.f32 0.0, %v649
        %v651 = vpop.f32.mrb[0].mxu0
        %v652 = vpop.f32.mrb[0].mxu0
        %v653 = vadd.f32 0.0, %v652
        %v654 = vpop.f32.mrb[0].mxu0
        %655 = vmatprep.mubr.bf16.mxu0 0
        %656 = vmatmul.mubr.bf16.gmra.mrb[0].mxu0 %v517
        %v657 = vpop.f32.mrb[0].mxu0
        %v658 = vadd.f32 0.0, %v657
        %v659 = vpop.f32.mrb[0].mxu0
        %v660 = vpop.f32.mrb[0].mxu0
        %v661 = vadd.f32 0.0, %v660
        %v662 = vpop.f32.mrb[0].mxu0
        %663 = vmatprep.mubr.bf16.mxu0 0
        %664 = vmatmul.mubr.bf16.gmra.mrb[0].mxu0 %v520
        %v665 = vpop.f32.mrb[0].mxu0
        %v666 = vadd.f32 0.0, %v665
        %v667 = vpop.f32.mrb[0].mxu0
        %v668 = vpop.f32.mrb[0].mxu0
        %v669 = vadd.f32 0.0, %v668
        %v670 = vpop.f32.mrb[0].mxu0
        %671 = vmatprep.mubr.bf16.mxu0 0
        %672 = vmatmul.mubr.bf16.gmra.mrb[0].mxu0 %v523
        %v673 = vpop.f32.mrb[0].mxu0
        %v674 = vadd.f32 0.0, %v673
        %v675 = vpop.f32.mrb[0].mxu0
        %v676 = vpop.f32.mrb[0].mxu0
        %v677 = vadd.f32 0.0, %v676
        %v678 = vpop.f32.mrb[0].mxu0
        %679 = vmatprep.mubr.bf16.mxu0 0
        %680 = vmatmul.mubr.bf16.gmra.mrb[0].mxu0 %v526
        %v681 = vpop.f32.mrb[0].mxu0
        %v682 = vadd.f32 0.0, %v681
        %v683 = vpop.f32.mrb[0].mxu0
        %v684 = vpop.f32.mrb[0].mxu0
        %v685 = vadd.f32 0.0, %v684
        %v686 = vpop.f32.mrb[0].mxu0
        %687 = vmatprep.mubr.bf16.mxu0 0
        %688 = vmatmul.mubr.bf16.gmra.mrb[0].mxu0 %v529
        %v689 = vpop.f32.mrb[0].mxu0
        %v690 = vadd.f32 0.0, %v689
        %v691 = vpop.f32.mrb[0].mxu0
        %v692 = vpop.f32.mrb[0].mxu0
        %v693 = vadd.f32 0.0, %v692
        %v694 = vpop.f32.mrb[0].mxu0
        %695 = vdwg.mxu0
        %v696 = vlaneseq
        %v697 = vand.u32 %v696, 127
        %vm698 = vcmp.lt.s32.totalorder %v697, 18
        %v699 = vand.u32 2147483647, %v570
        %vm700 = vcmp.le.f32.partialorder %v699, 0.7853982
        %vm701 = vcmp.lt.s32.totalorder %v570, 0
        %v702 = vand.u32 %v570, 2139095040
        %v703 = vshrl.u32 %v702, 23
        %v704 = vsub.s32 %v703, 127
        %v705 = vand.u32 2147483647, %v570
        %v706 = vand.u32 %v705, 8388607
        %v707 = vor.u32 %v706, 8388608
        %v708 = vsub.s32 0, %v707
        %v709 = vadd.s32 %v704, 1
        %vm710 = vcmp.gt.s32.totalorder %v709, 0
        %v711 = vsel %vm710, %v709, 0
        %v712 = vshrl.u32 %v711, 5
        %v713 = vand.u32 %v711, 31
        %v714 = vsub.s32 32, %v713
        %v715 = vshrl.u32 683565275, %v714
        %v716 = vshll.u32 683565275, %v713
        %v717 = vshrl.u32 2475754826, %v714
        %v718 = vor.u32 %v716, %v717
        %v719 = vshll.u32 2475754826, %v713
        %v720 = vshrl.u32 2131351028, %v714
        %v721 = vor.u32 %v719, %v720
        %v722 = vshll.u32 2131351028, %v713
        %v723 = vshrl.u32 2102212464, %v714
        %v724 = vor.u32 %v722, %v723
        %v725 = vshll.u32 2102212464, %v713
        %v726 = vshrl.u32 920167782, %v714
        %v727 = vor.u32 %v725, %v726
        %v728 = vshll.u32 920167782, %v713
        %v729 = vshrl.u32 1326507024, %v714
        %v730 = vor.u32 %v728, %v729
        %vm731 = vcmp.lt.s32.totalorder %v712, 1
        %vm732 = vcmp.lt.s32.totalorder %v712, 2
        %vm733 = vcmp.lt.s32.totalorder %v712, 3
        %vm734 = vcmp.lt.s32.totalorder %v712, 4
        %v735 = vsel %vm731, %v715, %v718
        %v736 = vsel %vm734, %v724, 2102212464
        %v737 = vsel %vm733, %v721, %v736
        %v738 = vsel %vm732, %v735, %v737
        %v739 = vsel %vm731, %v718, %v721
        %v740 = vsel %vm734, %v727, 920167782
        %v741 = vsel %vm733, %v724, %v740
        %v742 = vsel %vm732, %v739, %v741
        %v743 = vsel %vm731, %v721, %v724
        %v744 = vsel %vm734, %v730, 1326507024
        %v745 = vsel %vm733, %v727, %v744
        %v746 = vsel %vm732, %v743, %v745
        %v747 = vshll.u32 %v707, 8
        %v748 = vmul.u32.u64.compose %v747, %v746
        %v749 = vextract.low.u32 %v748
        %v750 = vextract.high.u32 %v748
        %v751 = vmul.u32.u64.compose %v747, %v742
        %v752 = vextract.low.u32 %v751
        %v753 = vextract.high.u32 %v751
        %v754 = vmul.u32 %v747, %v738
        %v755 = vadd.s32 %v750, %v752
        %vm756 = vc.u32 %v750, %v752
        %v757 = vadd.s32 %v753, 1
        %v758 = vsel %vm756, %v757, %v753
        %v759 = vadd.s32 %v754, %v758
        %v760 = vadd.s32 %v759, 536870912
        %v761 = vshrl.u32 %v760, 30
        %v762 = vshll.u32 %v761, 30
        %v763 = vsub.s32 %v759, %v762
        %vm764 = vcmp.lt.s32.totalorder %v763, 0
        %v765 = vsub.s32 0, %v763
        %v766 = vsel %vm764, %v765, %v763
        %v767 = vclz %v766
        %v768 = vsub.s32 %v767, 2
        %vm769 = vcmp.gt.s32.totalorder 0, %v768
        %v770 = vsel %vm769, 0, %v768
        %v771 = vsub.s32 32, %v770
        %v772 = vshll.u32 %v763, %v770
        %v773 = vshrl.u32 %v755, %v771
        %v774 = vor.u32 %v772, %v773
        %v775 = vsub.s32 4294967266, %v770
        %v776 = vadd.s32 %v775, 127
        %v777 = vshll.u32 %v776, 23
        %v778 = vor.u32 4788187, %v777
        %v779 = vand.u32 2147483647, %v778
        %v781 = vcvt.s32.f32 %v774
        %v782 = vmul.f32 %v781, %v779
        %v783 = vxor.u32 %v782, 2147483648
        %v784 = vsel %vm701, %v783, %v782
        %v785 = vsub.s32 4, %v761
        %v786 = vsel %vm701, %v785, %v761
        %v787 = vsel %vm700, %v570, %v784
        %v788 = vsel %vm700, 0, %v786
        %v789 = vcosq.f32.pop %v787
        %v790 = vsinq.f32.pop %v787
        %vm791 = vweird.f32 %v570
        %v792 = vadd.s32 %v788, 3
        %v793 = vand.u32 %v792, 3
        %vm794 = vcmp.lt.s32.totalorder %v793, 2
        %vm795 = vcmp.eq.s32.totalorder %v793, 0
        %v796 = vxor.u32 %v790, 2147483648
        %v797 = vsel %vm795, %v789, %v796
        %vm798 = vcmp.eq.s32.totalorder %v793, 2
        %v799 = vxor.u32 %v789, 2147483648
        %v800 = vsel %vm798, %v799, %v790
        %v801 = vsel %vm794, %v797, %v800
        %v802 = vsel %vm791, nan, %v801
        %v803 = vand.u32 2147483647, %v573
        %vm804 = vcmp.le.f32.partialorder %v803, 0.7853982
        %vm805 = vcmp.lt.s32.totalorder %v573, 0
        %v806 = vand.u32 %v573, 2139095040
        %v807 = vshrl.u32 %v806, 23
        %v808 = vsub.s32 %v807, 127
        %v809 = vand.u32 2147483647, %v573
        %v810 = vand.u32 %v809, 8388607
        %v811 = vor.u32 %v810, 8388608
        %v812 = vsub.s32 0, %v811
        %v813 = vadd.s32 %v808, 1
        %vm814 = vcmp.gt.s32.totalorder %v813, 0
        %v815 = vsel %vm814, %v813, 0
        %v816 = vshrl.u32 %v815, 5
        %v817 = vand.u32 %v815, 31
        %v818 = vsub.s32 32, %v817
        %v819 = vshrl.u32 683565275, %v818
        %v820 = vshll.u32 683565275, %v817
        %v821 = vshrl.u32 2475754826, %v818
        %v822 = vor.u32 %v820, %v821
        %v823 = vshll.u32 2475754826, %v817
        %v824 = vshrl.u32 2131351028, %v818
        %v825 = vor.u32 %v823, %v824
        %v826 = vshll.u32 2131351028, %v817
        %v827 = vshrl.u32 2102212464, %v818
        %v828 = vor.u32 %v826, %v827
        %v829 = vshll.u32 2102212464, %v817
        %v830 = vshrl.u32 920167782, %v818
        %v831 = vor.u32 %v829, %v830
        %v832 = vshll.u32 920167782, %v817
        %v833 = vshrl.u32 1326507024, %v818
        %v834 = vor.u32 %v832, %v833
        %vm835 = vcmp.lt.s32.totalorder %v816, 1
        %vm836 = vcmp.lt.s32.totalorder %v816, 2
        %vm837 = vcmp.lt.s32.totalorder %v816, 3
        %vm838 = vcmp.lt.s32.totalorder %v816, 4
        %v839 = vsel %vm835, %v819, %v822
        %v840 = vsel %vm838, %v828, 2102212464
        %v841 = vsel %vm837, %v825, %v840
        %v842 = vsel %vm836, %v839, %v841
        %v843 = vsel %vm835, %v822, %v825
        %v844 = vsel %vm838, %v831, 920167782
        %v845 = vsel %vm837, %v828, %v844
        %v846 = vsel %vm836, %v843, %v845
        %v847 = vsel %vm835, %v825, %v828
        %v848 = vsel %vm838, %v834, 1326507024
        %v849 = vsel %vm837, %v831, %v848
        %v850 = vsel %vm836, %v847, %v849
        %v851 = vshll.u32 %v811, 8
        %v852 = vmul.u32.u64.compose %v851, %v850
        %v853 = vextract.low.u32 %v852
        %v854 = vextract.high.u32 %v852
        %v855 = vmul.u32.u64.compose %v851, %v846
        %v856 = vextract.low.u32 %v855
        %v857 = vextract.high.u32 %v855
        %v858 = vmul.u32 %v851, %v842
        %v859 = vadd.s32 %v854, %v856
        %vm860 = vc.u32 %v854, %v856
        %v861 = vadd.s32 %v857, 1
        %v862 = vsel %vm860, %v861, %v857
        %v863 = vadd.s32 %v858, %v862
        %v864 = vadd.s32 %v863, 536870912
        %v865 = vshrl.u32 %v864, 30
        %v866 = vshll.u32 %v865, 30
        %v867 = vsub.s32 %v863, %v866
        %vm868 = vcmp.lt.s32.totalorder %v867, 0
        %v869 = vsub.s32 0, %v867
        %v870 = vsel %vm868, %v869, %v867
        %v871 = vclz %v870
        %v872 = vsub.s32 %v871, 2
        %vm873 = vcmp.gt.s32.totalorder 0, %v872
        %v874 = vsel %vm873, 0, %v872
        %v875 = vsub.s32 32, %v874
        %v876 = vshll.u32 %v867, %v874
        %v877 = vshrl.u32 %v859, %v875
        %v878 = vor.u32 %v876, %v877
        %v879 = vsub.s32 4294967266, %v874
        %v880 = vadd.s32 %v879, 127
        %v881 = vshll.u32 %v880, 23
        %v882 = vor.u32 4788187, %v881
        %v883 = vand.u32 2147483647, %v882
        %v885 = vcvt.s32.f32 %v878
        %v886 = vmul.f32 %v885, %v883
        %v887 = vxor.u32 %v886, 2147483648
        %v888 = vsel %vm805, %v887, %v886
        %v889 = vsub.s32 4, %v865
        %v890 = vsel %vm805, %v889, %v865
        %v891 = vsel %vm804, %v573, %v888
        %v892 = vsel %vm804, 0, %v890
        %v893 = vcosq.f32.pop %v891
        %v894 = vsinq.f32.pop %v891
        %vm895 = vweird.f32 %v573
        %v896 = vadd.s32 %v892, 3
        %v897 = vand.u32 %v896, 3
        %vm898 = vcmp.lt.s32.totalorder %v897, 2
        %vm899 = vcmp.eq.s32.totalorder %v897, 0
        %v900 = vxor.u32 %v894, 2147483648
        %v901 = vsel %vm899, %v893, %v900
        %vm902 = vcmp.eq.s32.totalorder %v897, 2
        %v903 = vxor.u32 %v893, 2147483648
        %v904 = vsel %vm902, %v903, %v894
        %v905 = vsel %vm898, %v901, %v904
        %v906 = vsel %vm895, nan, %v905
        %v907 = vand.u32 2147483647, %v578
        %vm908 = vcmp.le.f32.partialorder %v907, 0.7853982
        %vm909 = vcmp.lt.s32.totalorder %v578, 0
        %v910 = vand.u32 %v578, 2139095040
        %v911 = vshrl.u32 %v910, 23
        %v912 = vsub.s32 %v911, 127
        %v913 = vand.u32 2147483647, %v578
        %v914 = vand.u32 %v913, 8388607
        %v915 = vor.u32 %v914, 8388608
        %v916 = vsub.s32 0, %v915
        %v917 = vadd.s32 %v912, 1
        %vm918 = vcmp.gt.s32.totalorder %v917, 0
        %v919 = vsel %vm918, %v917, 0
        %v920 = vshrl.u32 %v919, 5
        %v921 = vand.u32 %v919, 31
        %v922 = vsub.s32 32, %v921
        %v923 = vshrl.u32 683565275, %v922
        %v924 = vshll.u32 683565275, %v921
        %v925 = vshrl.u32 2475754826, %v922
        %v926 = vor.u32 %v924, %v925
        %v927 = vshll.u32 2475754826, %v921
        %v928 = vshrl.u32 2131351028, %v922
        %v929 = vor.u32 %v927, %v928
        %v930 = vshll.u32 2131351028, %v921
        %v931 = vshrl.u32 2102212464, %v922
        %v932 = vor.u32 %v930, %v931
        %v933 = vshll.u32 2102212464, %v921
        %v934 = vshrl.u32 920167782, %v922
        %v935 = vor.u32 %v933, %v934
        %v936 = vshll.u32 920167782, %v921
        %v937 = vshrl.u32 1326507024, %v922
        %v938 = vor.u32 %v936, %v937
        %vm939 = vcmp.lt.s32.totalorder %v920, 1
        %vm940 = vcmp.lt.s32.totalorder %v920, 2
        %vm941 = vcmp.lt.s32.totalorder %v920, 3
        %vm942 = vcmp.lt.s32.totalorder %v920, 4
        %v943 = vsel %vm939, %v923, %v926
        %v944 = vsel %vm942, %v932, 2102212464
        %v945 = vsel %vm941, %v929, %v944
        %v946 = vsel %vm940, %v943, %v945
        %v947 = vsel %vm939, %v926, %v929
        %v948 = vsel %vm942, %v935, 920167782
        %v949 = vsel %vm941, %v932, %v948
        %v950 = vsel %vm940, %v947, %v949
        %v951 = vsel %vm939, %v929, %v932
        %v952 = vsel %vm942, %v938, 1326507024
        %v953 = vsel %vm941, %v935, %v952
        %v954 = vsel %vm940, %v951, %v953
        %v955 = vshll.u32 %v915, 8
        %v956 = vmul.u32.u64.compose %v955, %v954
        %v957 = vextract.low.u32 %v956
        %v958 = vextract.high.u32 %v956
        %v959 = vmul.u32.u64.compose %v955, %v950
        %v960 = vextract.low.u32 %v959
        %v961 = vextract.high.u32 %v959
        %v962 = vmul.u32 %v955, %v946
        %v963 = vadd.s32 %v958, %v960
        %vm964 = vc.u32 %v958, %v960
        %v965 = vadd.s32 %v961, 1
        %v966 = vsel %vm964, %v965, %v961
        %v967 = vadd.s32 %v962, %v966
        %v968 = vadd.s32 %v967, 536870912
        %v969 = vshrl.u32 %v968, 30
        %v970 = vshll.u32 %v969, 30
        %v971 = vsub.s32 %v967, %v970
        %vm972 = vcmp.lt.s32.totalorder %v971, 0
        %v973 = vsub.s32 0, %v971
        %v974 = vsel %vm972, %v973, %v971
        %v975 = vclz %v974
        %v976 = vsub.s32 %v975, 2
        %vm977 = vcmp.gt.s32.totalorder 0, %v976
        %v978 = vsel %vm977, 0, %v976
        %v979 = vsub.s32 32, %v978
        %v980 = vshll.u32 %v971, %v978
        %v981 = vshrl.u32 %v963, %v979
        %v982 = vor.u32 %v980, %v981
        %v983 = vsub.s32 4294967266, %v978
        %v984 = vadd.s32 %v983, 127
        %v985 = vshll.u32 %v984, 23
        %v986 = vor.u32 4788187, %v985
        %v987 = vand.u32 2147483647, %v986
        %v989 = vcvt.s32.f32 %v982
        %v990 = vmul.f32 %v989, %v987
        %v991 = vxor.u32 %v990, 2147483648
        %v992 = vsel %vm909, %v991, %v990
        %v993 = vsub.s32 4, %v969
        %v994 = vsel %vm909, %v993, %v969
        %v995 = vsel %vm908, %v578, %v992
        %v996 = vsel %vm908, 0, %v994
        %v997 = vcosq.f32.pop %v995
        %v998 = vsinq.f32.pop %v995
        %vm999 = vweird.f32 %v578
        %v1000 = vadd.s32 %v996, 3
        %v1001 = vand.u32 %v1000, 3
        %vm1002 = vcmp.lt.s32.totalorder %v1001, 2
        %vm1003 = vcmp.eq.s32.totalorder %v1001, 0
        %v1004 = vxor.u32 %v998, 2147483648
        %v1005 = vsel %vm1003, %v997, %v1004
        %vm1006 = vcmp.eq.s32.totalorder %v1001, 2
        %v1007 = vxor.u32 %v997, 2147483648
        %v1008 = vsel %vm1006, %v1007, %v998
        %v1009 = vsel %vm1002, %v1005, %v1008
        %v1010 = vsel %vm999, nan, %v1009
        %v1011 = vand.u32 2147483647, %v581
        %vm1012 = vcmp.le.f32.partialorder %v1011, 0.7853982
        %vm1013 = vcmp.lt.s32.totalorder %v581, 0
        %v1014 = vand.u32 %v581, 2139095040
        %v1015 = vshrl.u32 %v1014, 23
        %v1016 = vsub.s32 %v1015, 127
        %v1017 = vand.u32 2147483647, %v581
        %v1018 = vand.u32 %v1017, 8388607
        %v1019 = vor.u32 %v1018, 8388608
        %v1020 = vsub.s32 0, %v1019
        %v1021 = vadd.s32 %v1016, 1
        %vm1022 = vcmp.gt.s32.totalorder %v1021, 0
        %v1023 = vsel %vm1022, %v1021, 0
        %v1024 = vshrl.u32 %v1023, 5
        %v1025 = vand.u32 %v1023, 31
        %v1026 = vsub.s32 32, %v1025
        %v1027 = vshrl.u32 683565275, %v1026
        %v1028 = vshll.u32 683565275, %v1025
        %v1029 = vshrl.u32 2475754826, %v1026
        %v1030 = vor.u32 %v1028, %v1029
        %v1031 = vshll.u32 2475754826, %v1025
        %v1032 = vshrl.u32 2131351028, %v1026
        %v1033 = vor.u32 %v1031, %v1032
        %v1034 = vshll.u32 2131351028, %v1025
        %v1035 = vshrl.u32 2102212464, %v1026
        %v1036 = vor.u32 %v1034, %v1035
        %v1037 = vshll.u32 2102212464, %v1025
        %v1038 = vshrl.u32 920167782, %v1026
        %v1039 = vor.u32 %v1037, %v1038
        %v1040 = vshll.u32 920167782, %v1025
        %v1041 = vshrl.u32 1326507024, %v1026
        %v1042 = vor.u32 %v1040, %v1041
        %vm1043 = vcmp.lt.s32.totalorder %v1024, 1
        %vm1044 = vcmp.lt.s32.totalorder %v1024, 2
        %vm1045 = vcmp.lt.s32.totalorder %v1024, 3
        %vm1046 = vcmp.lt.s32.totalorder %v1024, 4
        %v1047 = vsel %vm1043, %v1027, %v1030
        %v1048 = vsel %vm1046, %v1036, 2102212464
        %v1049 = vsel %vm1045, %v1033, %v1048
        %v1050 = vsel %vm1044, %v1047, %v1049
        %v1051 = vsel %vm1043, %v1030, %v1033
        %v1052 = vsel %vm1046, %v1039, 920167782
        %v1053 = vsel %vm1045, %v1036, %v1052
        %v1054 = vsel %vm1044, %v1051, %v1053
        %v1055 = vsel %vm1043, %v1033, %v1036
        %v1056 = vsel %vm1046, %v1042, 1326507024
        %v1057 = vsel %vm1045, %v1039, %v1056
        %v1058 = vsel %vm1044, %v1055, %v1057
        %v1059 = vshll.u32 %v1019, 8
        %v1060 = vmul.u32.u64.compose %v1059, %v1058
        %v1061 = vextract.low.u32 %v1060
        %v1062 = vextract.high.u32 %v1060
        %v1063 = vmul.u32.u64.compose %v1059, %v1054
        %v1064 = vextract.low.u32 %v1063
        %v1065 = vextract.high.u32 %v1063
        %v1066 = vmul.u32 %v1059, %v1050
        %v1067 = vadd.s32 %v1062, %v1064
        %vm1068 = vc.u32 %v1062, %v1064
        %v1069 = vadd.s32 %v1065, 1
        %v1070 = vsel %vm1068, %v1069, %v1065
        %v1071 = vadd.s32 %v1066, %v1070
        %v1072 = vadd.s32 %v1071, 536870912
        %v1073 = vshrl.u32 %v1072, 30
        %v1074 = vshll.u32 %v1073, 30
        %v1075 = vsub.s32 %v1071, %v1074
        %vm1076 = vcmp.lt.s32.totalorder %v1075, 0
        %v1077 = vsub.s32 0, %v1075
        %v1078 = vsel %vm1076, %v1077, %v1075
        %v1079 = vclz %v1078
        %v1080 = vsub.s32 %v1079, 2
        %vm1081 = vcmp.gt.s32.totalorder 0, %v1080
        %v1082 = vsel %vm1081, 0, %v1080
        %v1083 = vsub.s32 32, %v1082
        %v1084 = vshll.u32 %v1075, %v1082
        %v1085 = vshrl.u32 %v1067, %v1083
        %v1086 = vor.u32 %v1084, %v1085
        %v1087 = vsub.s32 4294967266, %v1082
        %v1088 = vadd.s32 %v1087, 127
        %v1089 = vshll.u32 %v1088, 23
        %v1090 = vor.u32 4788187, %v1089
        %v1091 = vand.u32 2147483647, %v1090
        %v1093 = vcvt.s32.f32 %v1086
        %v1094 = vmul.f32 %v1093, %v1091
        %v1095 = vxor.u32 %v1094, 2147483648
        %v1096 = vsel %vm1013, %v1095, %v1094
        %v1097 = vsub.s32 4, %v1073
        %v1098 = vsel %vm1013, %v1097, %v1073
        %v1099 = vsel %vm1012, %v581, %v1096
        %v1100 = vsel %vm1012, 0, %v1098
        %v1101 = vcosq.f32.pop %v1099
        %v1102 = vsinq.f32.pop %v1099
        %vm1103 = vweird.f32 %v581
        %v1104 = vadd.s32 %v1100, 3
        %v1105 = vand.u32 %v1104, 3
        %vm1106 = vcmp.lt.s32.totalorder %v1105, 2
        %vm1107 = vcmp.eq.s32.totalorder %v1105, 0
        %v1108 = vxor.u32 %v1102, 2147483648
        %v1109 = vsel %vm1107, %v1101, %v1108
        %vm1110 = vcmp.eq.s32.totalorder %v1105, 2
        %v1111 = vxor.u32 %v1101, 2147483648
        %v1112 = vsel %vm1110, %v1111, %v1102
        %v1113 = vsel %vm1106, %v1109, %v1112
        %v1114 = vsel %vm1103, nan, %v1113
        %v1115 = vand.u32 2147483647, %v586
        %vm1116 = vcmp.le.f32.partialorder %v1115, 0.7853982
        %vm1117 = vcmp.lt.s32.totalorder %v586, 0
        %v1118 = vand.u32 %v586, 2139095040
        %v1119 = vshrl.u32 %v1118, 23
        %v1120 = vsub.s32 %v1119, 127
        %v1121 = vand.u32 2147483647, %v586
        %v1122 = vand.u32 %v1121, 8388607
        %v1123 = vor.u32 %v1122, 8388608
        %v1124 = vsub.s32 0, %v1123
        %v1125 = vadd.s32 %v1120, 1
        %vm1126 = vcmp.gt.s32.totalorder %v1125, 0
        %v1127 = vsel %vm1126, %v1125, 0
        %v1128 = vshrl.u32 %v1127, 5
        %v1129 = vand.u32 %v1127, 31
        %v1130 = vsub.s32 32, %v1129
        %v1131 = vshrl.u32 683565275, %v1130
        %v1132 = vshll.u32 683565275, %v1129
        %v1133 = vshrl.u32 2475754826, %v1130
        %v1134 = vor.u32 %v1132, %v1133
        %v1135 = vshll.u32 2475754826, %v1129
        %v1136 = vshrl.u32 2131351028, %v1130
        %v1137 = vor.u32 %v1135, %v1136
        %v1138 = vshll.u32 2131351028, %v1129
        %v1139 = vshrl.u32 2102212464, %v1130
        %v1140 = vor.u32 %v1138, %v1139
        %v1141 = vshll.u32 2102212464, %v1129
        %v1142 = vshrl.u32 920167782, %v1130
        %v1143 = vor.u32 %v1141, %v1142
        %v1144 = vshll.u32 920167782, %v1129
        %v1145 = vshrl.u32 1326507024, %v1130
        %v1146 = vor.u32 %v1144, %v1145
        %vm1147 = vcmp.lt.s32.totalorder %v1128, 1
        %vm1148 = vcmp.lt.s32.totalorder %v1128, 2
        %vm1149 = vcmp.lt.s32.totalorder %v1128, 3
        %vm1150 = vcmp.lt.s32.totalorder %v1128, 4
        %v1151 = vsel %vm1147, %v1131, %v1134
        %v1152 = vsel %vm1150, %v1140, 2102212464
        %v1153 = vsel %vm1149, %v1137, %v1152
        %v1154 = vsel %vm1148, %v1151, %v1153
        %v1155 = vsel %vm1147, %v1134, %v1137
        %v1156 = vsel %vm1150, %v1143, 920167782
        %v1157 = vsel %vm1149, %v1140, %v1156
        %v1158 = vsel %vm1148, %v1155, %v1157
        %v1159 = vsel %vm1147, %v1137, %v1140
        %v1160 = vsel %vm1150, %v1146, 1326507024
        %v1161 = vsel %vm1149, %v1143, %v1160
        %v1162 = vsel %vm1148, %v1159, %v1161
        %v1163 = vshll.u32 %v1123, 8
        %v1164 = vmul.u32.u64.compose %v1163, %v1162
        %v1165 = vextract.low.u32 %v1164
        %v1166 = vextract.high.u32 %v1164
        %v1167 = vmul.u32.u64.compose %v1163, %v1158
        %v1168 = vextract.low.u32 %v1167
        %v1169 = vextract.high.u32 %v1167
        %v1170 = vmul.u32 %v1163, %v1154
        %v1171 = vadd.s32 %v1166, %v1168
        %vm1172 = vc.u32 %v1166, %v1168
        %v1173 = vadd.s32 %v1169, 1
        %v1174 = vsel %vm1172, %v1173, %v1169
        %v1175 = vadd.s32 %v1170, %v1174
        %v1176 = vadd.s32 %v1175, 536870912
        %v1177 = vshrl.u32 %v1176, 30
        %v1178 = vshll.u32 %v1177, 30
        %v1179 = vsub.s32 %v1175, %v1178
        %vm1180 = vcmp.lt.s32.totalorder %v1179, 0
        %v1181 = vsub.s32 0, %v1179
        %v1182 = vsel %vm1180, %v1181, %v1179
        %v1183 = vclz %v1182
        %v1184 = vsub.s32 %v1183, 2
        %vm1185 = vcmp.gt.s32.totalorder 0, %v1184
        %v1186 = vsel %vm1185, 0, %v1184
        %v1187 = vsub.s32 32, %v1186
        %v1188 = vshll.u32 %v1179, %v1186
        %v1189 = vshrl.u32 %v1171, %v1187
        %v1190 = vor.u32 %v1188, %v1189
        %v1191 = vsub.s32 4294967266, %v1186
        %v1192 = vadd.s32 %v1191, 127
        %v1193 = vshll.u32 %v1192, 23
        %v1194 = vor.u32 4788187, %v1193
        %v1195 = vand.u32 2147483647, %v1194
        %v1197 = vcvt.s32.f32 %v1190
        %v1198 = vmul.f32 %v1197, %v1195
        %v1199 = vxor.u32 %v1198, 2147483648
        %v1200 = vsel %vm1117, %v1199, %v1198
        %v1201 = vsub.s32 4, %v1177
        %v1202 = vsel %vm1117, %v1201, %v1177
        %v1203 = vsel %vm1116, %v586, %v1200
        %v1204 = vsel %vm1116, 0, %v1202
        %v1205 = vcosq.f32.pop %v1203
        %v1206 = vsinq.f32.pop %v1203
        %vm1207 = vweird.f32 %v586
        %v1208 = vadd.s32 %v1204, 3
        %v1209 = vand.u32 %v1208, 3
        %vm1210 = vcmp.lt.s32.totalorder %v1209, 2
        %vm1211 = vcmp.eq.s32.totalorder %v1209, 0
        %v1212 = vxor.u32 %v1206, 2147483648
        %v1213 = vsel %vm1211, %v1205, %v1212
        %vm1214 = vcmp.eq.s32.totalorder %v1209, 2
        %v1215 = vxor.u32 %v1205, 2147483648
        %v1216 = vsel %vm1214, %v1215, %v1206
        %v1217 = vsel %vm1210, %v1213, %v1216
        %v1218 = vsel %vm1207, nan, %v1217
        %v1219 = vand.u32 2147483647, %v589
        %vm1220 = vcmp.le.f32.partialorder %v1219, 0.7853982
        %vm1221 = vcmp.lt.s32.totalorder %v589, 0
        %v1222 = vand.u32 %v589, 2139095040
        %v1223 = vshrl.u32 %v1222, 23
        %v1224 = vsub.s32 %v1223, 127
        %v1225 = vand.u32 2147483647, %v589
        %v1226 = vand.u32 %v1225, 8388607
        %v1227 = vor.u32 %v1226, 8388608
        %v1228 = vsub.s32 0, %v1227
        %v1229 = vadd.s32 %v1224, 1
        %vm1230 = vcmp.gt.s32.totalorder %v1229, 0
        %v1231 = vsel %vm1230, %v1229, 0
        %v1232 = vshrl.u32 %v1231, 5
        %v1233 = vand.u32 %v1231, 31
        %v1234 = vsub.s32 32, %v1233
        %v1235 = vshrl.u32 683565275, %v1234
        %v1236 = vshll.u32 683565275, %v1233
        %v1237 = vshrl.u32 2475754826, %v1234
        %v1238 = vor.u32 %v1236, %v1237
        %v1239 = vshll.u32 2475754826, %v1233
        %v1240 = vshrl.u32 2131351028, %v1234
        %v1241 = vor.u32 %v1239, %v1240
        %v1242 = vshll.u32 2131351028, %v1233
        %v1243 = vshrl.u32 2102212464, %v1234
        %v1244 = vor.u32 %v1242, %v1243
        %v1245 = vshll.u32 2102212464, %v1233
        %v1246 = vshrl.u32 920167782, %v1234
        %v1247 = vor.u32 %v1245, %v1246
        %v1248 = vshll.u32 920167782, %v1233
        %v1249 = vshrl.u32 1326507024, %v1234
        %v1250 = vor.u32 %v1248, %v1249
        %vm1251 = vcmp.lt.s32.totalorder %v1232, 1
        %vm1252 = vcmp.lt.s32.totalorder %v1232, 2
        %vm1253 = vcmp.lt.s32.totalorder %v1232, 3
        %vm1254 = vcmp.lt.s32.totalorder %v1232, 4
        %v1255 = vsel %vm1251, %v1235, %v1238
        %v1256 = vsel %vm1254, %v1244, 2102212464
        %v1257 = vsel %vm1253, %v1241, %v1256
        %v1258 = vsel %vm1252, %v1255, %v1257
        %v1259 = vsel %vm1251, %v1238, %v1241
        %v1260 = vsel %vm1254, %v1247, 920167782
        %v1261 = vsel %vm1253, %v1244, %v1260
        %v1262 = vsel %vm1252, %v1259, %v1261
        %v1263 = vsel %vm1251, %v1241, %v1244
        %v1264 = vsel %vm1254, %v1250, 1326507024
        %v1265 = vsel %vm1253, %v1247, %v1264
        %v1266 = vsel %vm1252, %v1263, %v1265
        %v1267 = vshll.u32 %v1227, 8
        %v1268 = vmul.u32.u64.compose %v1267, %v1266
        %v1269 = vextract.low.u32 %v1268
        %v1270 = vextract.high.u32 %v1268
        %v1271 = vmul.u32.u64.compose %v1267, %v1262
        %v1272 = vextract.low.u32 %v1271
        %v1273 = vextract.high.u32 %v1271
        %v1274 = vmul.u32 %v1267, %v1258
        %v1275 = vadd.s32 %v1270, %v1272
        %vm1276 = vc.u32 %v1270, %v1272
        %v1277 = vadd.s32 %v1273, 1
        %v1278 = vsel %vm1276, %v1277, %v1273
        %v1279 = vadd.s32 %v1274, %v1278
        %v1280 = vadd.s32 %v1279, 536870912
        %v1281 = vshrl.u32 %v1280, 30
        %v1282 = vshll.u32 %v1281, 30
        %v1283 = vsub.s32 %v1279, %v1282
        %vm1284 = vcmp.lt.s32.totalorder %v1283, 0
        %v1285 = vsub.s32 0, %v1283
        %v1286 = vsel %vm1284, %v1285, %v1283
        %v1287 = vclz %v1286
        %v1288 = vsub.s32 %v1287, 2
        %vm1289 = vcmp.gt.s32.totalorder 0, %v1288
        %v1290 = vsel %vm1289, 0, %v1288
        %v1291 = vsub.s32 32, %v1290
        %v1292 = vshll.u32 %v1283, %v1290
        %v1293 = vshrl.u32 %v1275, %v1291
        %v1294 = vor.u32 %v1292, %v1293
        %v1295 = vsub.s32 4294967266, %v1290
        %v1296 = vadd.s32 %v1295, 127
        %v1297 = vshll.u32 %v1296, 23
        %v1298 = vor.u32 4788187, %v1297
        %v1299 = vand.u32 2147483647, %v1298
        %v1301 = vcvt.s32.f32 %v1294
        %v1302 = vmul.f32 %v1301, %v1299
        %v1303 = vxor.u32 %v1302, 2147483648
        %v1304 = vsel %vm1221, %v1303, %v1302
        %v1305 = vsub.s32 4, %v1281
        %v1306 = vsel %vm1221, %v1305, %v1281
        %v1307 = vsel %vm1220, %v589, %v1304
        %v1308 = vsel %vm1220, 0, %v1306
        %v1309 = vcosq.f32.pop %v1307
        %v1310 = vsinq.f32.pop %v1307
        %vm1311 = vweird.f32 %v589
        %v1312 = vadd.s32 %v1308, 3
        %v1313 = vand.u32 %v1312, 3
        %vm1314 = vcmp.lt.s32.totalorder %v1313, 2
        %vm1315 = vcmp.eq.s32.totalorder %v1313, 0
        %v1316 = vxor.u32 %v1310, 2147483648
        %v1317 = vsel %vm1315, %v1309, %v1316
        %vm1318 = vcmp.eq.s32.totalorder %v1313, 2
        %v1319 = vxor.u32 %v1309, 2147483648
        %v1320 = vsel %vm1318, %v1319, %v1310
        %v1321 = vsel %vm1314, %v1317, %v1320
        %v1322 = vsel %vm1311, nan, %v1321
        %v1323 = vand.u32 2147483647, %v594
        %vm1324 = vcmp.le.f32.partialorder %v1323, 0.7853982
        %vm1325 = vcmp.lt.s32.totalorder %v594, 0
        %v1326 = vand.u32 %v594, 2139095040
        %v1327 = vshrl.u32 %v1326, 23
        %v1328 = vsub.s32 %v1327, 127
        %v1329 = vand.u32 2147483647, %v594
        %v1330 = vand.u32 %v1329, 8388607
        %v1331 = vor.u32 %v1330, 8388608
        %v1332 = vsub.s32 0, %v1331
        %v1333 = vadd.s32 %v1328, 1
        %vm1334 = vcmp.gt.s32.totalorder %v1333, 0
        %v1335 = vsel %vm1334, %v1333, 0
        %v1336 = vshrl.u32 %v1335, 5
        %v1337 = vand.u32 %v1335, 31
        %v1338 = vsub.s32 32, %v1337
        %v1339 = vshrl.u32 683565275, %v1338
        %v1340 = vshll.u32 683565275, %v1337
        %v1341 = vshrl.u32 2475754826, %v1338
        %v1342 = vor.u32 %v1340, %v1341
        %v1343 = vshll.u32 2475754826, %v1337
        %v1344 = vshrl.u32 2131351028, %v1338
        %v1345 = vor.u32 %v1343, %v1344
        %v1346 = vshll.u32 2131351028, %v1337
        %v1347 = vshrl.u32 2102212464, %v1338
        %v1348 = vor.u32 %v1346, %v1347
        %v1349 = vshll.u32 2102212464, %v1337
        %v1350 = vshrl.u32 920167782, %v1338
        %v1351 = vor.u32 %v1349, %v1350
        %v1352 = vshll.u32 920167782, %v1337
        %v1353 = vshrl.u32 1326507024, %v1338
        %v1354 = vor.u32 %v1352, %v1353
        %vm1355 = vcmp.lt.s32.totalorder %v1336, 1
        %vm1356 = vcmp.lt.s32.totalorder %v1336, 2
        %vm1357 = vcmp.lt.s32.totalorder %v1336, 3
        %vm1358 = vcmp.lt.s32.totalorder %v1336, 4
        %v1359 = vsel %vm1355, %v1339, %v1342
        %v1360 = vsel %vm1358, %v1348, 2102212464
        %v1361 = vsel %vm1357, %v1345, %v1360
        %v1362 = vsel %vm1356, %v1359, %v1361
        %v1363 = vsel %vm1355, %v1342, %v1345
        %v1364 = vsel %vm1358, %v1351, 920167782
        %v1365 = vsel %vm1357, %v1348, %v1364
        %v1366 = vsel %vm1356, %v1363, %v1365
        %v1367 = vsel %vm1355, %v1345, %v1348
        %v1368 = vsel %vm1358, %v1354, 1326507024
        %v1369 = vsel %vm1357, %v1351, %v1368
        %v1370 = vsel %vm1356, %v1367, %v1369
        %v1371 = vshll.u32 %v1331, 8
        %v1372 = vmul.u32.u64.compose %v1371, %v1370
        %v1373 = vextract.low.u32 %v1372
        %v1374 = vextract.high.u32 %v1372
        %v1375 = vmul.u32.u64.compose %v1371, %v1366
        %v1376 = vextract.low.u32 %v1375
        %v1377 = vextract.high.u32 %v1375
        %v1378 = vmul.u32 %v1371, %v1362
        %v1379 = vadd.s32 %v1374, %v1376
        %vm1380 = vc.u32 %v1374, %v1376
        %v1381 = vadd.s32 %v1377, 1
        %v1382 = vsel %vm1380, %v1381, %v1377
        %v1383 = vadd.s32 %v1378, %v1382
        %v1384 = vadd.s32 %v1383, 536870912
        %v1385 = vshrl.u32 %v1384, 30
        %v1386 = vshll.u32 %v1385, 30
        %v1387 = vsub.s32 %v1383, %v1386
        %vm1388 = vcmp.lt.s32.totalorder %v1387, 0
        %v1389 = vsub.s32 0, %v1387
        %v1390 = vsel %vm1388, %v1389, %v1387
        %v1391 = vclz %v1390
        %v1392 = vsub.s32 %v1391, 2
        %vm1393 = vcmp.gt.s32.totalorder 0, %v1392
        %v1394 = vsel %vm1393, 0, %v1392
        %v1395 = vsub.s32 32, %v1394
        %v1396 = vshll.u32 %v1387, %v1394
        %v1397 = vshrl.u32 %v1379, %v1395
        %v1398 = vor.u32 %v1396, %v1397
        %v1399 = vsub.s32 4294967266, %v1394
        %v1400 = vadd.s32 %v1399, 127
        %v1401 = vshll.u32 %v1400, 23
        %v1402 = vor.u32 4788187, %v1401
        %v1403 = vand.u32 2147483647, %v1402
        %v1405 = vcvt.s32.f32 %v1398
        %v1406 = vmul.f32 %v1405, %v1403
        %v1407 = vxor.u32 %v1406, 2147483648
        %v1408 = vsel %vm1325, %v1407, %v1406
        %v1409 = vsub.s32 4, %v1385
        %v1410 = vsel %vm1325, %v1409, %v1385
        %v1411 = vsel %vm1324, %v594, %v1408
        %v1412 = vsel %vm1324, 0, %v1410
        %v1413 = vcosq.f32.pop %v1411
        %v1414 = vsinq.f32.pop %v1411
        %vm1415 = vweird.f32 %v594
        %v1416 = vadd.s32 %v1412, 3
        %v1417 = vand.u32 %v1416, 3
        %vm1418 = vcmp.lt.s32.totalorder %v1417, 2
        %vm1419 = vcmp.eq.s32.totalorder %v1417, 0
        %v1420 = vxor.u32 %v1414, 2147483648
        %v1421 = vsel %vm1419, %v1413, %v1420
        %vm1422 = vcmp.eq.s32.totalorder %v1417, 2
        %v1423 = vxor.u32 %v1413, 2147483648
        %v1424 = vsel %vm1422, %v1423, %v1414
        %v1425 = vsel %vm1418, %v1421, %v1424
        %v1426 = vsel %vm1415, nan, %v1425
        %v1427 = vand.u32 2147483647, %v597
        %vm1428 = vcmp.le.f32.partialorder %v1427, 0.7853982
        %vm1429 = vcmp.lt.s32.totalorder %v597, 0
        %v1430 = vand.u32 %v597, 2139095040
        %v1431 = vshrl.u32 %v1430, 23
        %v1432 = vsub.s32 %v1431, 127
        %v1433 = vand.u32 2147483647, %v597
        %v1434 = vand.u32 %v1433, 8388607
        %v1435 = vor.u32 %v1434, 8388608
        %v1436 = vsub.s32 0, %v1435
        %v1437 = vadd.s32 %v1432, 1
        %vm1438 = vcmp.gt.s32.totalorder %v1437, 0
        %v1439 = vsel %vm1438, %v1437, 0
        %v1440 = vshrl.u32 %v1439, 5
        %v1441 = vand.u32 %v1439, 31
        %v1442 = vsub.s32 32, %v1441
        %v1443 = vshrl.u32 683565275, %v1442
        %v1444 = vshll.u32 683565275, %v1441
        %v1445 = vshrl.u32 2475754826, %v1442
        %v1446 = vor.u32 %v1444, %v1445
        %v1447 = vshll.u32 2475754826, %v1441
        %v1448 = vshrl.u32 2131351028, %v1442
        %v1449 = vor.u32 %v1447, %v1448
        %v1450 = vshll.u32 2131351028, %v1441
        %v1451 = vshrl.u32 2102212464, %v1442
        %v1452 = vor.u32 %v1450, %v1451
        %v1453 = vshll.u32 2102212464, %v1441
        %v1454 = vshrl.u32 920167782, %v1442
        %v1455 = vor.u32 %v1453, %v1454
        %v1456 = vshll.u32 920167782, %v1441
        %v1457 = vshrl.u32 1326507024, %v1442
        %v1458 = vor.u32 %v1456, %v1457
        %vm1459 = vcmp.lt.s32.totalorder %v1440, 1
        %vm1460 = vcmp.lt.s32.totalorder %v1440, 2
        %vm1461 = vcmp.lt.s32.totalorder %v1440, 3
        %vm1462 = vcmp.lt.s32.totalorder %v1440, 4
        %v1463 = vsel %vm1459, %v1443, %v1446
        %v1464 = vsel %vm1462, %v1452, 2102212464
        %v1465 = vsel %vm1461, %v1449, %v1464
        %v1466 = vsel %vm1460, %v1463, %v1465
        %v1467 = vsel %vm1459, %v1446, %v1449
        %v1468 = vsel %vm1462, %v1455, 920167782
        %v1469 = vsel %vm1461, %v1452, %v1468
        %v1470 = vsel %vm1460, %v1467, %v1469
        %v1471 = vsel %vm1459, %v1449, %v1452
        %v1472 = vsel %vm1462, %v1458, 1326507024
        %v1473 = vsel %vm1461, %v1455, %v1472
        %v1474 = vsel %vm1460, %v1471, %v1473
        %v1475 = vshll.u32 %v1435, 8
        %v1476 = vmul.u32.u64.compose %v1475, %v1474
        %v1477 = vextract.low.u32 %v1476
        %v1478 = vextract.high.u32 %v1476
        %v1479 = vmul.u32.u64.compose %v1475, %v1470
        %v1480 = vextract.low.u32 %v1479
        %v1481 = vextract.high.u32 %v1479
        %v1482 = vmul.u32 %v1475, %v1466
        %v1483 = vadd.s32 %v1478, %v1480
        %vm1484 = vc.u32 %v1478, %v1480
        %v1485 = vadd.s32 %v1481, 1
        %v1486 = vsel %vm1484, %v1485, %v1481
        %v1487 = vadd.s32 %v1482, %v1486
        %v1488 = vadd.s32 %v1487, 536870912
        %v1489 = vshrl.u32 %v1488, 30
        %v1490 = vshll.u32 %v1489, 30
        %v1491 = vsub.s32 %v1487, %v1490
        %vm1492 = vcmp.lt.s32.totalorder %v1491, 0
        %v1493 = vsub.s32 0, %v1491
        %v1494 = vsel %vm1492, %v1493, %v1491
        %v1495 = vclz %v1494
        %v1496 = vsub.s32 %v1495, 2
        %vm1497 = vcmp.gt.s32.totalorder 0, %v1496
        %v1498 = vsel %vm1497, 0, %v1496
        %v1499 = vsub.s32 32, %v1498
        %v1500 = vshll.u32 %v1491, %v1498
        %v1501 = vshrl.u32 %v1483, %v1499
        %v1502 = vor.u32 %v1500, %v1501
        %v1503 = vsub.s32 4294967266, %v1498
        %v1504 = vadd.s32 %v1503, 127
        %v1505 = vshll.u32 %v1504, 23
        %v1506 = vor.u32 4788187, %v1505
        %v1507 = vand.u32 2147483647, %v1506
        %v1509 = vcvt.s32.f32 %v1502
        %v1510 = vmul.f32 %v1509, %v1507
        %v1511 = vxor.u32 %v1510, 2147483648
        %v1512 = vsel %vm1429, %v1511, %v1510
        %v1513 = vsub.s32 4, %v1489
        %v1514 = vsel %vm1429, %v1513, %v1489
        %v1515 = vsel %vm1428, %v597, %v1512
        %v1516 = vsel %vm1428, 0, %v1514
        %v1517 = vcosq.f32.pop %v1515
        %v1518 = vsinq.f32.pop %v1515
        %vm1519 = vweird.f32 %v597
        %v1520 = vadd.s32 %v1516, 3
        %v1521 = vand.u32 %v1520, 3
        %vm1522 = vcmp.lt.s32.totalorder %v1521, 2
        %vm1523 = vcmp.eq.s32.totalorder %v1521, 0
        %v1524 = vxor.u32 %v1518, 2147483648
        %v1525 = vsel %vm1523, %v1517, %v1524
        %vm1526 = vcmp.eq.s32.totalorder %v1521, 2
        %v1527 = vxor.u32 %v1517, 2147483648
        %v1528 = vsel %vm1526, %v1527, %v1518
        %v1529 = vsel %vm1522, %v1525, %v1528
        %v1530 = vsel %vm1519, nan, %v1529
        %v1531 = vand.u32 2147483647, %v602
        %vm1532 = vcmp.le.f32.partialorder %v1531, 0.7853982
        %vm1533 = vcmp.lt.s32.totalorder %v602, 0
        %v1534 = vand.u32 %v602, 2139095040
        %v1535 = vshrl.u32 %v1534, 23
        %v1536 = vsub.s32 %v1535, 127
        %v1537 = vand.u32 2147483647, %v602
        %v1538 = vand.u32 %v1537, 8388607
        %v1539 = vor.u32 %v1538, 8388608
        %v1540 = vsub.s32 0, %v1539
        %v1541 = vadd.s32 %v1536, 1
        %vm1542 = vcmp.gt.s32.totalorder %v1541, 0
        %v1543 = vsel %vm1542, %v1541, 0
        %v1544 = vshrl.u32 %v1543, 5
        %v1545 = vand.u32 %v1543, 31
        %v1546 = vsub.s32 32, %v1545
        %v1547 = vshrl.u32 683565275, %v1546
        %v1548 = vshll.u32 683565275, %v1545
        %v1549 = vshrl.u32 2475754826, %v1546
        %v1550 = vor.u32 %v1548, %v1549
        %v1551 = vshll.u32 2475754826, %v1545
        %v1552 = vshrl.u32 2131351028, %v1546
        %v1553 = vor.u32 %v1551, %v1552
        %v1554 = vshll.u32 2131351028, %v1545
        %v1555 = vshrl.u32 2102212464, %v1546
        %v1556 = vor.u32 %v1554, %v1555
        %v1557 = vshll.u32 2102212464, %v1545
        %v1558 = vshrl.u32 920167782, %v1546
        %v1559 = vor.u32 %v1557, %v1558
        %v1560 = vshll.u32 920167782, %v1545
        %v1561 = vshrl.u32 1326507024, %v1546
        %v1562 = vor.u32 %v1560, %v1561
        %vm1563 = vcmp.lt.s32.totalorder %v1544, 1
        %vm1564 = vcmp.lt.s32.totalorder %v1544, 2
        %vm1565 = vcmp.lt.s32.totalorder %v1544, 3
        %vm1566 = vcmp.lt.s32.totalorder %v1544, 4
        %v1567 = vsel %vm1563, %v1547, %v1550
        %v1568 = vsel %vm1566, %v1556, 2102212464
        %v1569 = vsel %vm1565, %v1553, %v1568
        %v1570 = vsel %vm1564, %v1567, %v1569
        %v1571 = vsel %vm1563, %v1550, %v1553
        %v1572 = vsel %vm1566, %v1559, 920167782
        %v1573 = vsel %vm1565, %v1556, %v1572
        %v1574 = vsel %vm1564, %v1571, %v1573
        %v1575 = vsel %vm1563, %v1553, %v1556
        %v1576 = vsel %vm1566, %v1562, 1326507024
        %v1577 = vsel %vm1565, %v1559, %v1576
        %v1578 = vsel %vm1564, %v1575, %v1577
        %v1579 = vshll.u32 %v1539, 8
        %v1580 = vmul.u32.u64.compose %v1579, %v1578
        %v1581 = vextract.low.u32 %v1580
        %v1582 = vextract.high.u32 %v1580
        %v1583 = vmul.u32.u64.compose %v1579, %v1574
        %v1584 = vextract.low.u32 %v1583
        %v1585 = vextract.high.u32 %v1583
        %v1586 = vmul.u32 %v1579, %v1570
        %v1587 = vadd.s32 %v1582, %v1584
        %vm1588 = vc.u32 %v1582, %v1584
        %v1589 = vadd.s32 %v1585, 1
        %v1590 = vsel %vm1588, %v1589, %v1585
        %v1591 = vadd.s32 %v1586, %v1590
        %v1592 = vadd.s32 %v1591, 536870912
        %v1593 = vshrl.u32 %v1592, 30
        %v1594 = vshll.u32 %v1593, 30
        %v1595 = vsub.s32 %v1591, %v1594
        %vm1596 = vcmp.lt.s32.totalorder %v1595, 0
        %v1597 = vsub.s32 0, %v1595
        %v1598 = vsel %vm1596, %v1597, %v1595
        %v1599 = vclz %v1598
        %v1600 = vsub.s32 %v1599, 2
        %vm1601 = vcmp.gt.s32.totalorder 0, %v1600
        %v1602 = vsel %vm1601, 0, %v1600
        %v1603 = vsub.s32 32, %v1602
        %v1604 = vshll.u32 %v1595, %v1602
        %v1605 = vshrl.u32 %v1587, %v1603
        %v1606 = vor.u32 %v1604, %v1605
        %v1607 = vsub.s32 4294967266, %v1602
        %v1608 = vadd.s32 %v1607, 127
        %v1609 = vshll.u32 %v1608, 23
        %v1610 = vor.u32 4788187, %v1609
        %v1611 = vand.u32 2147483647, %v1610
        %v1613 = vcvt.s32.f32 %v1606
        %v1614 = vmul.f32 %v1613, %v1611
        %v1615 = vxor.u32 %v1614, 2147483648
        %v1616 = vsel %vm1533, %v1615, %v1614
        %v1617 = vsub.s32 4, %v1593
        %v1618 = vsel %vm1533, %v1617, %v1593
        %v1619 = vsel %vm1532, %v602, %v1616
        %v1620 = vsel %vm1532, 0, %v1618
        %v1621 = vcosq.f32.pop %v1619
        %v1622 = vsinq.f32.pop %v1619
        %vm1623 = vweird.f32 %v602
        %v1624 = vadd.s32 %v1620, 3
        %v1625 = vand.u32 %v1624, 3
        %vm1626 = vcmp.lt.s32.totalorder %v1625, 2
        %vm1627 = vcmp.eq.s32.totalorder %v1625, 0
        %v1628 = vxor.u32 %v1622, 2147483648
        %v1629 = vsel %vm1627, %v1621, %v1628
        %vm1630 = vcmp.eq.s32.totalorder %v1625, 2
        %v1631 = vxor.u32 %v1621, 2147483648
        %v1632 = vsel %vm1630, %v1631, %v1622
        %v1633 = vsel %vm1626, %v1629, %v1632
        %v1634 = vsel %vm1623, nan, %v1633
        %v1635 = vand.u32 2147483647, %v605
        %vm1636 = vcmp.le.f32.partialorder %v1635, 0.7853982
        %vm1637 = vcmp.lt.s32.totalorder %v605, 0
        %v1638 = vand.u32 %v605, 2139095040
        %v1639 = vshrl.u32 %v1638, 23
        %v1640 = vsub.s32 %v1639, 127
        %v1641 = vand.u32 2147483647, %v605
        %v1642 = vand.u32 %v1641, 8388607
        %v1643 = vor.u32 %v1642, 8388608
        %v1644 = vsub.s32 0, %v1643
        %v1645 = vadd.s32 %v1640, 1
        %vm1646 = vcmp.gt.s32.totalorder %v1645, 0
        %v1647 = vsel %vm1646, %v1645, 0
        %v1648 = vshrl.u32 %v1647, 5
        %v1649 = vand.u32 %v1647, 31
        %v1650 = vsub.s32 32, %v1649
        %v1651 = vshrl.u32 683565275, %v1650
        %v1652 = vshll.u32 683565275, %v1649
        %v1653 = vshrl.u32 2475754826, %v1650
        %v1654 = vor.u32 %v1652, %v1653
        %v1655 = vshll.u32 2475754826, %v1649
        %v1656 = vshrl.u32 2131351028, %v1650
        %v1657 = vor.u32 %v1655, %v1656
        %v1658 = vshll.u32 2131351028, %v1649
        %v1659 = vshrl.u32 2102212464, %v1650
        %v1660 = vor.u32 %v1658, %v1659
        %v1661 = vshll.u32 2102212464, %v1649
        %v1662 = vshrl.u32 920167782, %v1650
        %v1663 = vor.u32 %v1661, %v1662
        %v1664 = vshll.u32 920167782, %v1649
        %v1665 = vshrl.u32 1326507024, %v1650
        %v1666 = vor.u32 %v1664, %v1665
        %vm1667 = vcmp.lt.s32.totalorder %v1648, 1
        %vm1668 = vcmp.lt.s32.totalorder %v1648, 2
        %vm1669 = vcmp.lt.s32.totalorder %v1648, 3
        %vm1670 = vcmp.lt.s32.totalorder %v1648, 4
        %v1671 = vsel %vm1667, %v1651, %v1654
        %v1672 = vsel %vm1670, %v1660, 2102212464
        %v1673 = vsel %vm1669, %v1657, %v1672
        %v1674 = vsel %vm1668, %v1671, %v1673
        %v1675 = vsel %vm1667, %v1654, %v1657
        %v1676 = vsel %vm1670, %v1663, 920167782
        %v1677 = vsel %vm1669, %v1660, %v1676
        %v1678 = vsel %vm1668, %v1675, %v1677
        %v1679 = vsel %vm1667, %v1657, %v1660
        %v1680 = vsel %vm1670, %v1666, 1326507024
        %v1681 = vsel %vm1669, %v1663, %v1680
        %v1682 = vsel %vm1668, %v1679, %v1681
        %v1683 = vshll.u32 %v1643, 8
        %v1684 = vmul.u32.u64.compose %v1683, %v1682
        %v1685 = vextract.low.u32 %v1684
        %v1686 = vextract.high.u32 %v1684
        %v1687 = vmul.u32.u64.compose %v1683, %v1678
        %v1688 = vextract.low.u32 %v1687
        %v1689 = vextract.high.u32 %v1687
        %v1690 = vmul.u32 %v1683, %v1674
        %v1691 = vadd.s32 %v1686, %v1688
        %vm1692 = vc.u32 %v1686, %v1688
        %v1693 = vadd.s32 %v1689, 1
        %v1694 = vsel %vm1692, %v1693, %v1689
        %v1695 = vadd.s32 %v1690, %v1694
        %v1696 = vadd.s32 %v1695, 536870912
        %v1697 = vshrl.u32 %v1696, 30
        %v1698 = vshll.u32 %v1697, 30
        %v1699 = vsub.s32 %v1695, %v1698
        %vm1700 = vcmp.lt.s32.totalorder %v1699, 0
        %v1701 = vsub.s32 0, %v1699
        %v1702 = vsel %vm1700, %v1701, %v1699
        %v1703 = vclz %v1702
        %v1704 = vsub.s32 %v1703, 2
        %vm1705 = vcmp.gt.s32.totalorder 0, %v1704
        %v1706 = vsel %vm1705, 0, %v1704
        %v1707 = vsub.s32 32, %v1706
        %v1708 = vshll.u32 %v1699, %v1706
        %v1709 = vshrl.u32 %v1691, %v1707
        %v1710 = vor.u32 %v1708, %v1709
        %v1711 = vsub.s32 4294967266, %v1706
        %v1712 = vadd.s32 %v1711, 127
        %v1713 = vshll.u32 %v1712, 23
        %v1714 = vor.u32 4788187, %v1713
        %v1715 = vand.u32 2147483647, %v1714
        %v1717 = vcvt.s32.f32 %v1710
        %v1718 = vmul.f32 %v1717, %v1715
        %v1719 = vxor.u32 %v1718, 2147483648
        %v1720 = vsel %vm1637, %v1719, %v1718
        %v1721 = vsub.s32 4, %v1697
        %v1722 = vsel %vm1637, %v1721, %v1697
        %v1723 = vsel %vm1636, %v605, %v1720
        %v1724 = vsel %vm1636, 0, %v1722
        %v1725 = vcosq.f32.pop %v1723
        %v1726 = vsinq.f32.pop %v1723
        %vm1727 = vweird.f32 %v605
        %v1728 = vadd.s32 %v1724, 3
        %v1729 = vand.u32 %v1728, 3
        %vm1730 = vcmp.lt.s32.totalorder %v1729, 2
        %vm1731 = vcmp.eq.s32.totalorder %v1729, 0
        %v1732 = vxor.u32 %v1726, 2147483648
        %v1733 = vsel %vm1731, %v1725, %v1732
        %vm1734 = vcmp.eq.s32.totalorder %v1729, 2
        %v1735 = vxor.u32 %v1725, 2147483648
        %v1736 = vsel %vm1734, %v1735, %v1726
        %v1737 = vsel %vm1730, %v1733, %v1736
        %v1738 = vsel %vm1727, nan, %v1737
        %v1739 = vand.u32 2147483647, %v610
        %vm1740 = vcmp.le.f32.partialorder %v1739, 0.7853982
        %vm1741 = vcmp.lt.s32.totalorder %v610, 0
        %v1742 = vand.u32 %v610, 2139095040
        %v1743 = vshrl.u32 %v1742, 23
        %v1744 = vsub.s32 %v1743, 127
        %v1745 = vand.u32 2147483647, %v610
        %v1746 = vand.u32 %v1745, 8388607
        %v1747 = vor.u32 %v1746, 8388608
        %v1748 = vsub.s32 0, %v1747
        %v1749 = vadd.s32 %v1744, 1
        %vm1750 = vcmp.gt.s32.totalorder %v1749, 0
        %v1751 = vsel %vm1750, %v1749, 0
        %v1752 = vshrl.u32 %v1751, 5
        %v1753 = vand.u32 %v1751, 31
        %v1754 = vsub.s32 32, %v1753
        %v1755 = vshrl.u32 683565275, %v1754
        %v1756 = vshll.u32 683565275, %v1753
        %v1757 = vshrl.u32 2475754826, %v1754
        %v1758 = vor.u32 %v1756, %v1757
        %v1759 = vshll.u32 2475754826, %v1753
        %v1760 = vshrl.u32 2131351028, %v1754
        %v1761 = vor.u32 %v1759, %v1760
        %v1762 = vshll.u32 2131351028, %v1753
        %v1763 = vshrl.u32 2102212464, %v1754
        %v1764 = vor.u32 %v1762, %v1763
        %v1765 = vshll.u32 2102212464, %v1753
        %v1766 = vshrl.u32 920167782, %v1754
        %v1767 = vor.u32 %v1765, %v1766
        %v1768 = vshll.u32 920167782, %v1753
        %v1769 = vshrl.u32 1326507024, %v1754
        %v1770 = vor.u32 %v1768, %v1769
        %vm1771 = vcmp.lt.s32.totalorder %v1752, 1
        %vm1772 = vcmp.lt.s32.totalorder %v1752, 2
        %vm1773 = vcmp.lt.s32.totalorder %v1752, 3
        %vm1774 = vcmp.lt.s32.totalorder %v1752, 4
        %v1775 = vsel %vm1771, %v1755, %v1758
        %v1776 = vsel %vm1774, %v1764, 2102212464
        %v1777 = vsel %vm1773, %v1761, %v1776
        %v1778 = vsel %vm1772, %v1775, %v1777
        %v1779 = vsel %vm1771, %v1758, %v1761
        %v1780 = vsel %vm1774, %v1767, 920167782
        %v1781 = vsel %vm1773, %v1764, %v1780
        %v1782 = vsel %vm1772, %v1779, %v1781
        %v1783 = vsel %vm1771, %v1761, %v1764
        %v1784 = vsel %vm1774, %v1770, 1326507024
        %v1785 = vsel %vm1773, %v1767, %v1784
        %v1786 = vsel %vm1772, %v1783, %v1785
        %v1787 = vshll.u32 %v1747, 8
        %v1788 = vmul.u32.u64.compose %v1787, %v1786
        %v1789 = vextract.low.u32 %v1788
        %v1790 = vextract.high.u32 %v1788
        %v1791 = vmul.u32.u64.compose %v1787, %v1782
        %v1792 = vextract.low.u32 %v1791
        %v1793 = vextract.high.u32 %v1791
        %v1794 = vmul.u32 %v1787, %v1778
        %v1795 = vadd.s32 %v1790, %v1792
        %vm1796 = vc.u32 %v1790, %v1792
        %v1797 = vadd.s32 %v1793, 1
        %v1798 = vsel %vm1796, %v1797, %v1793
        %v1799 = vadd.s32 %v1794, %v1798
        %v1800 = vadd.s32 %v1799, 536870912
        %v1801 = vshrl.u32 %v1800, 30
        %v1802 = vshll.u32 %v1801, 30
        %v1803 = vsub.s32 %v1799, %v1802
        %vm1804 = vcmp.lt.s32.totalorder %v1803, 0
        %v1805 = vsub.s32 0, %v1803
        %v1806 = vsel %vm1804, %v1805, %v1803
        %v1807 = vclz %v1806
        %v1808 = vsub.s32 %v1807, 2
        %vm1809 = vcmp.gt.s32.totalorder 0, %v1808
        %v1810 = vsel %vm1809, 0, %v1808
        %v1811 = vsub.s32 32, %v1810
        %v1812 = vshll.u32 %v1803, %v1810
        %v1813 = vshrl.u32 %v1795, %v1811
        %v1814 = vor.u32 %v1812, %v1813
        %v1815 = vsub.s32 4294967266, %v1810
        %v1816 = vadd.s32 %v1815, 127
        %v1817 = vshll.u32 %v1816, 23
        %v1818 = vor.u32 4788187, %v1817
        %v1819 = vand.u32 2147483647, %v1818
        %v1821 = vcvt.s32.f32 %v1814
        %v1822 = vmul.f32 %v1821, %v1819
        %v1823 = vxor.u32 %v1822, 2147483648
        %v1824 = vsel %vm1741, %v1823, %v1822
        %v1825 = vsub.s32 4, %v1801
        %v1826 = vsel %vm1741, %v1825, %v1801
        %v1827 = vsel %vm1740, %v610, %v1824
        %v1828 = vsel %vm1740, 0, %v1826
        %v1829 = vcosq.f32.pop %v1827
        %v1830 = vsinq.f32.pop %v1827
        %vm1831 = vweird.f32 %v610
        %v1832 = vadd.s32 %v1828, 3
        %v1833 = vand.u32 %v1832, 3
        %vm1834 = vcmp.lt.s32.totalorder %v1833, 2
        %vm1835 = vcmp.eq.s32.totalorder %v1833, 0
        %v1836 = vxor.u32 %v1830, 2147483648
        %v1837 = vsel %vm1835, %v1829, %v1836
        %vm1838 = vcmp.eq.s32.totalorder %v1833, 2
        %v1839 = vxor.u32 %v1829, 2147483648
        %v1840 = vsel %vm1838, %v1839, %v1830
        %v1841 = vsel %vm1834, %v1837, %v1840
        %v1842 = vsel %vm1831, nan, %v1841
        %v1843 = vand.u32 2147483647, %v613
        %vm1844 = vcmp.le.f32.partialorder %v1843, 0.7853982
        %vm1845 = vcmp.lt.s32.totalorder %v613, 0
        %v1846 = vand.u32 %v613, 2139095040
        %v1847 = vshrl.u32 %v1846, 23
        %v1848 = vsub.s32 %v1847, 127
        %v1849 = vand.u32 2147483647, %v613
        %v1850 = vand.u32 %v1849, 8388607
        %v1851 = vor.u32 %v1850, 8388608
        %v1852 = vsub.s32 0, %v1851
        %v1853 = vadd.s32 %v1848, 1
        %vm1854 = vcmp.gt.s32.totalorder %v1853, 0
        %v1855 = vsel %vm1854, %v1853, 0
        %v1856 = vshrl.u32 %v1855, 5
        %v1857 = vand.u32 %v1855, 31
        %v1858 = vsub.s32 32, %v1857
        %v1859 = vshrl.u32 683565275, %v1858
        %v1860 = vshll.u32 683565275, %v1857
        %v1861 = vshrl.u32 2475754826, %v1858
        %v1862 = vor.u32 %v1860, %v1861
        %v1863 = vshll.u32 2475754826, %v1857
        %v1864 = vshrl.u32 2131351028, %v1858
        %v1865 = vor.u32 %v1863, %v1864
        %v1866 = vshll.u32 2131351028, %v1857
        %v1867 = vshrl.u32 2102212464, %v1858
        %v1868 = vor.u32 %v1866, %v1867
        %v1869 = vshll.u32 2102212464, %v1857
        %v1870 = vshrl.u32 920167782, %v1858
        %v1871 = vor.u32 %v1869, %v1870
        %v1872 = vshll.u32 920167782, %v1857
        %v1873 = vshrl.u32 1326507024, %v1858
        %v1874 = vor.u32 %v1872, %v1873
        %vm1875 = vcmp.lt.s32.totalorder %v1856, 1
        %vm1876 = vcmp.lt.s32.totalorder %v1856, 2
        %vm1877 = vcmp.lt.s32.totalorder %v1856, 3
        %vm1878 = vcmp.lt.s32.totalorder %v1856, 4
        %v1879 = vsel %vm1875, %v1859, %v1862
        %v1880 = vsel %vm1878, %v1868, 2102212464
        %v1881 = vsel %vm1877, %v1865, %v1880
        %v1882 = vsel %vm1876, %v1879, %v1881
        %v1883 = vsel %vm1875, %v1862, %v1865
        %v1884 = vsel %vm1878, %v1871, 920167782
        %v1885 = vsel %vm1877, %v1868, %v1884
        %v1886 = vsel %vm1876, %v1883, %v1885
        %v1887 = vsel %vm1875, %v1865, %v1868
        %v1888 = vsel %vm1878, %v1874, 1326507024
        %v1889 = vsel %vm1877, %v1871, %v1888
        %v1890 = vsel %vm1876, %v1887, %v1889
        %v1891 = vshll.u32 %v1851, 8
        %v1892 = vmul.u32.u64.compose %v1891, %v1890
        %v1893 = vextract.low.u32 %v1892
        %v1894 = vextract.high.u32 %v1892
        %v1895 = vmul.u32.u64.compose %v1891, %v1886
        %v1896 = vextract.low.u32 %v1895
        %v1897 = vextract.high.u32 %v1895
        %v1898 = vmul.u32 %v1891, %v1882
        %v1899 = vadd.s32 %v1894, %v1896
        %vm1900 = vc.u32 %v1894, %v1896
        %v1901 = vadd.s32 %v1897, 1
        %v1902 = vsel %vm1900, %v1901, %v1897
        %v1903 = vadd.s32 %v1898, %v1902
        %v1904 = vadd.s32 %v1903, 536870912
        %v1905 = vshrl.u32 %v1904, 30
        %v1906 = vshll.u32 %v1905, 30
        %v1907 = vsub.s32 %v1903, %v1906
        %vm1908 = vcmp.lt.s32.totalorder %v1907, 0
        %v1909 = vsub.s32 0, %v1907
        %v1910 = vsel %vm1908, %v1909, %v1907
        %v1911 = vclz %v1910
        %v1912 = vsub.s32 %v1911, 2
        %vm1913 = vcmp.gt.s32.totalorder 0, %v1912
        %v1914 = vsel %vm1913, 0, %v1912
        %v1915 = vsub.s32 32, %v1914
        %v1916 = vshll.u32 %v1907, %v1914
        %v1917 = vshrl.u32 %v1899, %v1915
        %v1918 = vor.u32 %v1916, %v1917
        %v1919 = vsub.s32 4294967266, %v1914
        %v1920 = vadd.s32 %v1919, 127
        %v1921 = vshll.u32 %v1920, 23
        %v1922 = vor.u32 4788187, %v1921
        %v1923 = vand.u32 2147483647, %v1922
        %v1925 = vcvt.s32.f32 %v1918
        %v1926 = vmul.f32 %v1925, %v1923
        %v1927 = vxor.u32 %v1926, 2147483648
        %v1928 = vsel %vm1845, %v1927, %v1926
        %v1929 = vsub.s32 4, %v1905
        %v1930 = vsel %vm1845, %v1929, %v1905
        %v1931 = vsel %vm1844, %v613, %v1928
        %v1932 = vsel %vm1844, 0, %v1930
        %v1933 = vcosq.f32.pop %v1931
        %v1934 = vsinq.f32.pop %v1931
        %vm1935 = vweird.f32 %v613
        %v1936 = vadd.s32 %v1932, 3
        %v1937 = vand.u32 %v1936, 3
        %vm1938 = vcmp.lt.s32.totalorder %v1937, 2
        %vm1939 = vcmp.eq.s32.totalorder %v1937, 0
        %v1940 = vxor.u32 %v1934, 2147483648
        %v1941 = vsel %vm1939, %v1933, %v1940
        %vm1942 = vcmp.eq.s32.totalorder %v1937, 2
        %v1943 = vxor.u32 %v1933, 2147483648
        %v1944 = vsel %vm1942, %v1943, %v1934
        %v1945 = vsel %vm1938, %v1941, %v1944
        %v1946 = vsel %vm1935, nan, %v1945
        %v1947 = vand.u32 2147483647, %v618
        %vm1948 = vcmp.le.f32.partialorder %v1947, 0.7853982
        %vm1949 = vcmp.lt.s32.totalorder %v618, 0
        %v1950 = vand.u32 %v618, 2139095040
        %v1951 = vshrl.u32 %v1950, 23
        %v1952 = vsub.s32 %v1951, 127
        %v1953 = vand.u32 2147483647, %v618
        %v1954 = vand.u32 %v1953, 8388607
        %v1955 = vor.u32 %v1954, 8388608
        %v1956 = vsub.s32 0, %v1955
        %v1957 = vadd.s32 %v1952, 1
        %vm1958 = vcmp.gt.s32.totalorder %v1957, 0
        %v1959 = vsel %vm1958, %v1957, 0
        %v1960 = vshrl.u32 %v1959, 5
        %v1961 = vand.u32 %v1959, 31
        %v1962 = vsub.s32 32, %v1961
        %v1963 = vshrl.u32 683565275, %v1962
        %v1964 = vshll.u32 683565275, %v1961
        %v1965 = vshrl.u32 2475754826, %v1962
        %v1966 = vor.u32 %v1964, %v1965
        %v1967 = vshll.u32 2475754826, %v1961
        %v1968 = vshrl.u32 2131351028, %v1962
        %v1969 = vor.u32 %v1967, %v1968
        %v1970 = vshll.u32 2131351028, %v1961
        %v1971 = vshrl.u32 2102212464, %v1962
        %v1972 = vor.u32 %v1970, %v1971
        %v1973 = vshll.u32 2102212464, %v1961
        %v1974 = vshrl.u32 920167782, %v1962
        %v1975 = vor.u32 %v1973, %v1974
        %v1976 = vshll.u32 920167782, %v1961
        %v1977 = vshrl.u32 1326507024, %v1962
        %v1978 = vor.u32 %v1976, %v1977
        %vm1979 = vcmp.lt.s32.totalorder %v1960, 1
        %vm1980 = vcmp.lt.s32.totalorder %v1960, 2
        %vm1981 = vcmp.lt.s32.totalorder %v1960, 3
        %vm1982 = vcmp.lt.s32.totalorder %v1960, 4
        %v1983 = vsel %vm1979, %v1963, %v1966
        %v1984 = vsel %vm1982, %v1972, 2102212464
        %v1985 = vsel %vm1981, %v1969, %v1984
        %v1986 = vsel %vm1980, %v1983, %v1985
        %v1987 = vsel %vm1979, %v1966, %v1969
        %v1988 = vsel %vm1982, %v1975, 920167782
        %v1989 = vsel %vm1981, %v1972, %v1988
        %v1990 = vsel %vm1980, %v1987, %v1989
        %v1991 = vsel %vm1979, %v1969, %v1972
        %v1992 = vsel %vm1982, %v1978, 1326507024
        %v1993 = vsel %vm1981, %v1975, %v1992
        %v1994 = vsel %vm1980, %v1991, %v1993
        %v1995 = vshll.u32 %v1955, 8
        %v1996 = vmul.u32.u64.compose %v1995, %v1994
        %v1997 = vextract.low.u32 %v1996
        %v1998 = vextract.high.u32 %v1996
        %v1999 = vmul.u32.u64.compose %v1995, %v1990
        %v2000 = vextract.low.u32 %v1999
        %v2001 = vextract.high.u32 %v1999
        %v2002 = vmul.u32 %v1995, %v1986
        %v2003 = vadd.s32 %v1998, %v2000
        %vm2004 = vc.u32 %v1998, %v2000
        %v2005 = vadd.s32 %v2001, 1
        %v2006 = vsel %vm2004, %v2005, %v2001
        %v2007 = vadd.s32 %v2002, %v2006
        %v2008 = vadd.s32 %v2007, 536870912
        %v2009 = vshrl.u32 %v2008, 30
        %v2010 = vshll.u32 %v2009, 30
        %v2011 = vsub.s32 %v2007, %v2010
        %vm2012 = vcmp.lt.s32.totalorder %v2011, 0
        %v2013 = vsub.s32 0, %v2011
        %v2014 = vsel %vm2012, %v2013, %v2011
        %v2015 = vclz %v2014
        %v2016 = vsub.s32 %v2015, 2
        %vm2017 = vcmp.gt.s32.totalorder 0, %v2016
        %v2018 = vsel %vm2017, 0, %v2016
        %v2019 = vsub.s32 32, %v2018
        %v2020 = vshll.u32 %v2011, %v2018
        %v2021 = vshrl.u32 %v2003, %v2019
        %v2022 = vor.u32 %v2020, %v2021
        %v2023 = vsub.s32 4294967266, %v2018
        %v2024 = vadd.s32 %v2023, 127
        %v2025 = vshll.u32 %v2024, 23
        %v2026 = vor.u32 4788187, %v2025
        %v2027 = vand.u32 2147483647, %v2026
        %v2029 = vcvt.s32.f32 %v2022
        %v2030 = vmul.f32 %v2029, %v2027
        %v2031 = vxor.u32 %v2030, 2147483648
        %v2032 = vsel %vm1949, %v2031, %v2030
        %v2033 = vsub.s32 4, %v2009
        %v2034 = vsel %vm1949, %v2033, %v2009
        %v2035 = vsel %vm1948, %v618, %v2032
        %v2036 = vsel %vm1948, 0, %v2034
        %v2037 = vcosq.f32.pop %v2035
        %v2038 = vsinq.f32.pop %v2035
        %vm2039 = vweird.f32 %v618
        %v2040 = vadd.s32 %v2036, 3
        %v2041 = vand.u32 %v2040, 3
        %vm2042 = vcmp.lt.s32.totalorder %v2041, 2
        %vm2043 = vcmp.eq.s32.totalorder %v2041, 0
        %v2044 = vxor.u32 %v2038, 2147483648
        %v2045 = vsel %vm2043, %v2037, %v2044
        %vm2046 = vcmp.eq.s32.totalorder %v2041, 2
        %v2047 = vxor.u32 %v2037, 2147483648
        %v2048 = vsel %vm2046, %v2047, %v2038
        %v2049 = vsel %vm2042, %v2045, %v2048
        %v2050 = vsel %vm2039, nan, %v2049
        %v2051 = vand.u32 2147483647, %v621
        %vm2052 = vcmp.le.f32.partialorder %v2051, 0.7853982
        %vm2053 = vcmp.lt.s32.totalorder %v621, 0
        %v2054 = vand.u32 %v621, 2139095040
        %v2055 = vshrl.u32 %v2054, 23
        %v2056 = vsub.s32 %v2055, 127
        %v2057 = vand.u32 2147483647, %v621
        %v2058 = vand.u32 %v2057, 8388607
        %v2059 = vor.u32 %v2058, 8388608
        %v2060 = vsub.s32 0, %v2059
        %v2061 = vadd.s32 %v2056, 1
        %vm2062 = vcmp.gt.s32.totalorder %v2061, 0
        %v2063 = vsel %vm2062, %v2061, 0
        %v2064 = vshrl.u32 %v2063, 5
        %v2065 = vand.u32 %v2063, 31
        %v2066 = vsub.s32 32, %v2065
        %v2067 = vshrl.u32 683565275, %v2066
        %v2068 = vshll.u32 683565275, %v2065
        %v2069 = vshrl.u32 2475754826, %v2066
        %v2070 = vor.u32 %v2068, %v2069
        %v2071 = vshll.u32 2475754826, %v2065
        %v2072 = vshrl.u32 2131351028, %v2066
        %v2073 = vor.u32 %v2071, %v2072
        %v2074 = vshll.u32 2131351028, %v2065
        %v2075 = vshrl.u32 2102212464, %v2066
        %v2076 = vor.u32 %v2074, %v2075
        %v2077 = vshll.u32 2102212464, %v2065
        %v2078 = vshrl.u32 920167782, %v2066
        %v2079 = vor.u32 %v2077, %v2078
        %v2080 = vshll.u32 920167782, %v2065
        %v2081 = vshrl.u32 1326507024, %v2066
        %v2082 = vor.u32 %v2080, %v2081
        %vm2083 = vcmp.lt.s32.totalorder %v2064, 1
        %vm2084 = vcmp.lt.s32.totalorder %v2064, 2
        %vm2085 = vcmp.lt.s32.totalorder %v2064, 3
        %vm2086 = vcmp.lt.s32.totalorder %v2064, 4
        %v2087 = vsel %vm2083, %v2067, %v2070
        %v2088 = vsel %vm2086, %v2076, 2102212464
        %v2089 = vsel %vm2085, %v2073, %v2088
        %v2090 = vsel %vm2084, %v2087, %v2089
        %v2091 = vsel %vm2083, %v2070, %v2073
        %v2092 = vsel %vm2086, %v2079, 920167782
        %v2093 = vsel %vm2085, %v2076, %v2092
        %v2094 = vsel %vm2084, %v2091, %v2093
        %v2095 = vsel %vm2083, %v2073, %v2076
        %v2096 = vsel %vm2086, %v2082, 1326507024
        %v2097 = vsel %vm2085, %v2079, %v2096
        %v2098 = vsel %vm2084, %v2095, %v2097
        %v2099 = vshll.u32 %v2059, 8
        %v2100 = vmul.u32.u64.compose %v2099, %v2098
        %v2101 = vextract.low.u32 %v2100
        %v2102 = vextract.high.u32 %v2100
        %v2103 = vmul.u32.u64.compose %v2099, %v2094
        %v2104 = vextract.low.u32 %v2103
        %v2105 = vextract.high.u32 %v2103
        %v2106 = vmul.u32 %v2099, %v2090
        %v2107 = vadd.s32 %v2102, %v2104
        %vm2108 = vc.u32 %v2102, %v2104
        %v2109 = vadd.s32 %v2105, 1
        %v2110 = vsel %vm2108, %v2109, %v2105
        %v2111 = vadd.s32 %v2106, %v2110
        %v2112 = vadd.s32 %v2111, 536870912
        %v2113 = vshrl.u32 %v2112, 30
        %v2114 = vshll.u32 %v2113, 30
        %v2115 = vsub.s32 %v2111, %v2114
        %vm2116 = vcmp.lt.s32.totalorder %v2115, 0
        %v2117 = vsub.s32 0, %v2115
        %v2118 = vsel %vm2116, %v2117, %v2115
        %v2119 = vclz %v2118
        %v2120 = vsub.s32 %v2119, 2
        %vm2121 = vcmp.gt.s32.totalorder 0, %v2120
        %v2122 = vsel %vm2121, 0, %v2120
        %v2123 = vsub.s32 32, %v2122
        %v2124 = vshll.u32 %v2115, %v2122
        %v2125 = vshrl.u32 %v2107, %v2123
        %v2126 = vor.u32 %v2124, %v2125
        %v2127 = vsub.s32 4294967266, %v2122
        %v2128 = vadd.s32 %v2127, 127
        %v2129 = vshll.u32 %v2128, 23
        %v2130 = vor.u32 4788187, %v2129
        %v2131 = vand.u32 2147483647, %v2130
        %v2133 = vcvt.s32.f32 %v2126
        %v2134 = vmul.f32 %v2133, %v2131
        %v2135 = vxor.u32 %v2134, 2147483648
        %v2136 = vsel %vm2053, %v2135, %v2134
        %v2137 = vsub.s32 4, %v2113
        %v2138 = vsel %vm2053, %v2137, %v2113
        %v2139 = vsel %vm2052, %v621, %v2136
        %v2140 = vsel %vm2052, 0, %v2138
        %v2141 = vcosq.f32.pop %v2139
        %v2142 = vsinq.f32.pop %v2139
        %vm2143 = vweird.f32 %v621
        %v2144 = vadd.s32 %v2140, 3
        %v2145 = vand.u32 %v2144, 3
        %vm2146 = vcmp.lt.s32.totalorder %v2145, 2
        %vm2147 = vcmp.eq.s32.totalorder %v2145, 0
        %v2148 = vxor.u32 %v2142, 2147483648
        %v2149 = vsel %vm2147, %v2141, %v2148
        %vm2150 = vcmp.eq.s32.totalorder %v2145, 2
        %v2151 = vxor.u32 %v2141, 2147483648
        %v2152 = vsel %vm2150, %v2151, %v2142
        %v2153 = vsel %vm2146, %v2149, %v2152
        %v2154 = vsel %vm2143, nan, %v2153
        %v2155 = vand.u32 2147483647, %v626
        %vm2156 = vcmp.le.f32.partialorder %v2155, 0.7853982
        %vm2157 = vcmp.lt.s32.totalorder %v626, 0
        %v2158 = vand.u32 %v626, 2139095040
        %v2159 = vshrl.u32 %v2158, 23
        %v2160 = vsub.s32 %v2159, 127
        %v2161 = vand.u32 2147483647, %v626
        %v2162 = vand.u32 %v2161, 8388607
        %v2163 = vor.u32 %v2162, 8388608
        %v2164 = vsub.s32 0, %v2163
        %v2165 = vadd.s32 %v2160, 1
        %vm2166 = vcmp.gt.s32.totalorder %v2165, 0
        %v2167 = vsel %vm2166, %v2165, 0
        %v2168 = vshrl.u32 %v2167, 5
        %v2169 = vand.u32 %v2167, 31
        %v2170 = vsub.s32 32, %v2169
        %v2171 = vshrl.u32 683565275, %v2170
        %v2172 = vshll.u32 683565275, %v2169
        %v2173 = vshrl.u32 2475754826, %v2170
        %v2174 = vor.u32 %v2172, %v2173
        %v2175 = vshll.u32 2475754826, %v2169
        %v2176 = vshrl.u32 2131351028, %v2170
        %v2177 = vor.u32 %v2175, %v2176
        %v2178 = vshll.u32 2131351028, %v2169
        %v2179 = vshrl.u32 2102212464, %v2170
        %v2180 = vor.u32 %v2178, %v2179
        %v2181 = vshll.u32 2102212464, %v2169
        %v2182 = vshrl.u32 920167782, %v2170
        %v2183 = vor.u32 %v2181, %v2182
        %v2184 = vshll.u32 920167782, %v2169
        %v2185 = vshrl.u32 1326507024, %v2170
        %v2186 = vor.u32 %v2184, %v2185
        %vm2187 = vcmp.lt.s32.totalorder %v2168, 1
        %vm2188 = vcmp.lt.s32.totalorder %v2168, 2
        %vm2189 = vcmp.lt.s32.totalorder %v2168, 3
        %vm2190 = vcmp.lt.s32.totalorder %v2168, 4
        %v2191 = vsel %vm2187, %v2171, %v2174
        %v2192 = vsel %vm2190, %v2180, 2102212464
        %v2193 = vsel %vm2189, %v2177, %v2192
        %v2194 = vsel %vm2188, %v2191, %v2193
        %v2195 = vsel %vm2187, %v2174, %v2177
        %v2196 = vsel %vm2190, %v2183, 920167782
        %v2197 = vsel %vm2189, %v2180, %v2196
        %v2198 = vsel %vm2188, %v2195, %v2197
        %v2199 = vsel %vm2187, %v2177, %v2180
        %v2200 = vsel %vm2190, %v2186, 1326507024
        %v2201 = vsel %vm2189, %v2183, %v2200
        %v2202 = vsel %vm2188, %v2199, %v2201
        %v2203 = vshll.u32 %v2163, 8
        %v2204 = vmul.u32.u64.compose %v2203, %v2202
        %v2205 = vextract.low.u32 %v2204
        %v2206 = vextract.high.u32 %v2204
        %v2207 = vmul.u32.u64.compose %v2203, %v2198
        %v2208 = vextract.low.u32 %v2207
        %v2209 = vextract.high.u32 %v2207
        %v2210 = vmul.u32 %v2203, %v2194
        %v2211 = vadd.s32 %v2206, %v2208
        %vm2212 = vc.u32 %v2206, %v2208
        %v2213 = vadd.s32 %v2209, 1
        %v2214 = vsel %vm2212, %v2213, %v2209
        %v2215 = vadd.s32 %v2210, %v2214
        %v2216 = vadd.s32 %v2215, 536870912
        %v2217 = vshrl.u32 %v2216, 30
        %v2218 = vshll.u32 %v2217, 30
        %v2219 = vsub.s32 %v2215, %v2218
        %vm2220 = vcmp.lt.s32.totalorder %v2219, 0
        %v2221 = vsub.s32 0, %v2219
        %v2222 = vsel %vm2220, %v2221, %v2219
        %v2223 = vclz %v2222
        %v2224 = vsub.s32 %v2223, 2
        %vm2225 = vcmp.gt.s32.totalorder 0, %v2224
        %v2226 = vsel %vm2225, 0, %v2224
        %v2227 = vsub.s32 32, %v2226
        %v2228 = vshll.u32 %v2219, %v2226
        %v2229 = vshrl.u32 %v2211, %v2227
        %v2230 = vor.u32 %v2228, %v2229
        %v2231 = vsub.s32 4294967266, %v2226
        %v2232 = vadd.s32 %v2231, 127
        %v2233 = vshll.u32 %v2232, 23
        %v2234 = vor.u32 4788187, %v2233
        %v2235 = vand.u32 2147483647, %v2234
        %v2237 = vcvt.s32.f32 %v2230
        %v2238 = vmul.f32 %v2237, %v2235
        %v2239 = vxor.u32 %v2238, 2147483648
        %v2240 = vsel %vm2157, %v2239, %v2238
        %v2241 = vsub.s32 4, %v2217
        %v2242 = vsel %vm2157, %v2241, %v2217
        %v2243 = vsel %vm2156, %v626, %v2240
        %v2244 = vsel %vm2156, 0, %v2242
        %v2245 = vcosq.f32.pop %v2243
        %v2246 = vsinq.f32.pop %v2243
        %vm2247 = vweird.f32 %v626
        %v2248 = vadd.s32 %v2244, 3
        %v2249 = vand.u32 %v2248, 3
        %vm2250 = vcmp.lt.s32.totalorder %v2249, 2
        %vm2251 = vcmp.eq.s32.totalorder %v2249, 0
        %v2252 = vxor.u32 %v2246, 2147483648
        %v2253 = vsel %vm2251, %v2245, %v2252
        %vm2254 = vcmp.eq.s32.totalorder %v2249, 2
        %v2255 = vxor.u32 %v2245, 2147483648
        %v2256 = vsel %vm2254, %v2255, %v2246
        %v2257 = vsel %vm2250, %v2253, %v2256
        %v2258 = vsel %vm2247, nan, %v2257
        %v2259 = vand.u32 2147483647, %v629
        %vm2260 = vcmp.le.f32.partialorder %v2259, 0.7853982
        %vm2261 = vcmp.lt.s32.totalorder %v629, 0
        %v2262 = vand.u32 %v629, 2139095040
        %v2263 = vshrl.u32 %v2262, 23
        %v2264 = vsub.s32 %v2263, 127
        %v2265 = vand.u32 2147483647, %v629
        %v2266 = vand.u32 %v2265, 8388607
        %v2267 = vor.u32 %v2266, 8388608
        %v2268 = vsub.s32 0, %v2267
        %v2269 = vadd.s32 %v2264, 1
        %vm2270 = vcmp.gt.s32.totalorder %v2269, 0
        %v2271 = vsel %vm2270, %v2269, 0
        %v2272 = vshrl.u32 %v2271, 5
        %v2273 = vand.u32 %v2271, 31
        %v2274 = vsub.s32 32, %v2273
        %v2275 = vshrl.u32 683565275, %v2274
        %v2276 = vshll.u32 683565275, %v2273
        %v2277 = vshrl.u32 2475754826, %v2274
        %v2278 = vor.u32 %v2276, %v2277
        %v2279 = vshll.u32 2475754826, %v2273
        %v2280 = vshrl.u32 2131351028, %v2274
        %v2281 = vor.u32 %v2279, %v2280
        %v2282 = vshll.u32 2131351028, %v2273
        %v2283 = vshrl.u32 2102212464, %v2274
        %v2284 = vor.u32 %v2282, %v2283
        %v2285 = vshll.u32 2102212464, %v2273
        %v2286 = vshrl.u32 920167782, %v2274
        %v2287 = vor.u32 %v2285, %v2286
        %v2288 = vshll.u32 920167782, %v2273
        %v2289 = vshrl.u32 1326507024, %v2274
        %v2290 = vor.u32 %v2288, %v2289
        %vm2291 = vcmp.lt.s32.totalorder %v2272, 1
        %vm2292 = vcmp.lt.s32.totalorder %v2272, 2
        %vm2293 = vcmp.lt.s32.totalorder %v2272, 3
        %vm2294 = vcmp.lt.s32.totalorder %v2272, 4
        %v2295 = vsel %vm2291, %v2275, %v2278
        %v2296 = vsel %vm2294, %v2284, 2102212464
        %v2297 = vsel %vm2293, %v2281, %v2296
        %v2298 = vsel %vm2292, %v2295, %v2297
        %v2299 = vsel %vm2291, %v2278, %v2281
        %v2300 = vsel %vm2294, %v2287, 920167782
        %v2301 = vsel %vm2293, %v2284, %v2300
        %v2302 = vsel %vm2292, %v2299, %v2301
        %v2303 = vsel %vm2291, %v2281, %v2284
        %v2304 = vsel %vm2294, %v2290, 1326507024
        %v2305 = vsel %vm2293, %v2287, %v2304
        %v2306 = vsel %vm2292, %v2303, %v2305
        %v2307 = vshll.u32 %v2267, 8
        %v2308 = vmul.u32.u64.compose %v2307, %v2306
        %v2309 = vextract.low.u32 %v2308
        %v2310 = vextract.high.u32 %v2308
        %v2311 = vmul.u32.u64.compose %v2307, %v2302
        %v2312 = vextract.low.u32 %v2311
        %v2313 = vextract.high.u32 %v2311
        %v2314 = vmul.u32 %v2307, %v2298
        %v2315 = vadd.s32 %v2310, %v2312
        %vm2316 = vc.u32 %v2310, %v2312
        %v2317 = vadd.s32 %v2313, 1
        %v2318 = vsel %vm2316, %v2317, %v2313
        %v2319 = vadd.s32 %v2314, %v2318
        %v2320 = vadd.s32 %v2319, 536870912
        %v2321 = vshrl.u32 %v2320, 30
        %v2322 = vshll.u32 %v2321, 30
        %v2323 = vsub.s32 %v2319, %v2322
        %vm2324 = vcmp.lt.s32.totalorder %v2323, 0
        %v2325 = vsub.s32 0, %v2323
        %v2326 = vsel %vm2324, %v2325, %v2323
        %v2327 = vclz %v2326
        %v2328 = vsub.s32 %v2327, 2
        %vm2329 = vcmp.gt.s32.totalorder 0, %v2328
        %v2330 = vsel %vm2329, 0, %v2328
        %v2331 = vsub.s32 32, %v2330
        %v2332 = vshll.u32 %v2323, %v2330
        %v2333 = vshrl.u32 %v2315, %v2331
        %v2334 = vor.u32 %v2332, %v2333
        %v2335 = vsub.s32 4294967266, %v2330
        %v2336 = vadd.s32 %v2335, 127
        %v2337 = vshll.u32 %v2336, 23
        %v2338 = vor.u32 4788187, %v2337
        %v2339 = vand.u32 2147483647, %v2338
        %v2341 = vcvt.s32.f32 %v2334
        %v2342 = vmul.f32 %v2341, %v2339
        %v2343 = vxor.u32 %v2342, 2147483648
        %v2344 = vsel %vm2261, %v2343, %v2342
        %v2345 = vsub.s32 4, %v2321
        %v2346 = vsel %vm2261, %v2345, %v2321
        %v2347 = vsel %vm2260, %v629, %v2344
        %v2348 = vsel %vm2260, 0, %v2346
        %v2349 = vcosq.f32.pop %v2347
        %v2350 = vsinq.f32.pop %v2347
        %vm2351 = vweird.f32 %v629
        %v2352 = vadd.s32 %v2348, 3
        %v2353 = vand.u32 %v2352, 3
        %vm2354 = vcmp.lt.s32.totalorder %v2353, 2
        %vm2355 = vcmp.eq.s32.totalorder %v2353, 0
        %v2356 = vxor.u32 %v2350, 2147483648
        %v2357 = vsel %vm2355, %v2349, %v2356
        %vm2358 = vcmp.eq.s32.totalorder %v2353, 2
        %v2359 = vxor.u32 %v2349, 2147483648
        %v2360 = vsel %vm2358, %v2359, %v2350
        %v2361 = vsel %vm2354, %v2357, %v2360
        %v2362 = vsel %vm2351, nan, %v2361
        %v2363 = vand.u32 2147483647, %v634
        %vm2364 = vcmp.le.f32.partialorder %v2363, 0.7853982
        %vm2365 = vcmp.lt.s32.totalorder %v634, 0
        %v2366 = vand.u32 %v634, 2139095040
        %v2367 = vshrl.u32 %v2366, 23
        %v2368 = vsub.s32 %v2367, 127
        %v2369 = vand.u32 2147483647, %v634
        %v2370 = vand.u32 %v2369, 8388607
        %v2371 = vor.u32 %v2370, 8388608
        %v2372 = vsub.s32 0, %v2371
        %v2373 = vadd.s32 %v2368, 1
        %vm2374 = vcmp.gt.s32.totalorder %v2373, 0
        %v2375 = vsel %vm2374, %v2373, 0
        %v2376 = vshrl.u32 %v2375, 5
        %v2377 = vand.u32 %v2375, 31
        %v2378 = vsub.s32 32, %v2377
        %v2379 = vshrl.u32 683565275, %v2378
        %v2380 = vshll.u32 683565275, %v2377
        %v2381 = vshrl.u32 2475754826, %v2378
        %v2382 = vor.u32 %v2380, %v2381
        %v2383 = vshll.u32 2475754826, %v2377
        %v2384 = vshrl.u32 2131351028, %v2378
        %v2385 = vor.u32 %v2383, %v2384
        %v2386 = vshll.u32 2131351028, %v2377
        %v2387 = vshrl.u32 2102212464, %v2378
        %v2388 = vor.u32 %v2386, %v2387
        %v2389 = vshll.u32 2102212464, %v2377
        %v2390 = vshrl.u32 920167782, %v2378
        %v2391 = vor.u32 %v2389, %v2390
        %v2392 = vshll.u32 920167782, %v2377
        %v2393 = vshrl.u32 1326507024, %v2378
        %v2394 = vor.u32 %v2392, %v2393
        %vm2395 = vcmp.lt.s32.totalorder %v2376, 1
        %vm2396 = vcmp.lt.s32.totalorder %v2376, 2
        %vm2397 = vcmp.lt.s32.totalorder %v2376, 3
        %vm2398 = vcmp.lt.s32.totalorder %v2376, 4
        %v2399 = vsel %vm2395, %v2379, %v2382
        %v2400 = vsel %vm2398, %v2388, 2102212464
        %v2401 = vsel %vm2397, %v2385, %v2400
        %v2402 = vsel %vm2396, %v2399, %v2401
        %v2403 = vsel %vm2395, %v2382, %v2385
        %v2404 = vsel %vm2398, %v2391, 920167782
        %v2405 = vsel %vm2397, %v2388, %v2404
        %v2406 = vsel %vm2396, %v2403, %v2405
        %v2407 = vsel %vm2395, %v2385, %v2388
        %v2408 = vsel %vm2398, %v2394, 1326507024
        %v2409 = vsel %vm2397, %v2391, %v2408
        %v2410 = vsel %vm2396, %v2407, %v2409
        %v2411 = vshll.u32 %v2371, 8
        %v2412 = vmul.u32.u64.compose %v2411, %v2410
        %v2413 = vextract.low.u32 %v2412
        %v2414 = vextract.high.u32 %v2412
        %v2415 = vmul.u32.u64.compose %v2411, %v2406
        %v2416 = vextract.low.u32 %v2415
        %v2417 = vextract.high.u32 %v2415
        %v2418 = vmul.u32 %v2411, %v2402
        %v2419 = vadd.s32 %v2414, %v2416
        %vm2420 = vc.u32 %v2414, %v2416
        %v2421 = vadd.s32 %v2417, 1
        %v2422 = vsel %vm2420, %v2421, %v2417
        %v2423 = vadd.s32 %v2418, %v2422
        %v2424 = vadd.s32 %v2423, 536870912
        %v2425 = vshrl.u32 %v2424, 30
        %v2426 = vshll.u32 %v2425, 30
        %v2427 = vsub.s32 %v2423, %v2426
        %vm2428 = vcmp.lt.s32.totalorder %v2427, 0
        %v2429 = vsub.s32 0, %v2427
        %v2430 = vsel %vm2428, %v2429, %v2427
        %v2431 = vclz %v2430
        %v2432 = vsub.s32 %v2431, 2
        %vm2433 = vcmp.gt.s32.totalorder 0, %v2432
        %v2434 = vsel %vm2433, 0, %v2432
        %v2435 = vsub.s32 32, %v2434
        %v2436 = vshll.u32 %v2427, %v2434
        %v2437 = vshrl.u32 %v2419, %v2435
        %v2438 = vor.u32 %v2436, %v2437
        %v2439 = vsub.s32 4294967266, %v2434
        %v2440 = vadd.s32 %v2439, 127
        %v2441 = vshll.u32 %v2440, 23
        %v2442 = vor.u32 4788187, %v2441
        %v2443 = vand.u32 2147483647, %v2442
        %v2445 = vcvt.s32.f32 %v2438
        %v2446 = vmul.f32 %v2445, %v2443
        %v2447 = vxor.u32 %v2446, 2147483648
        %v2448 = vsel %vm2365, %v2447, %v2446
        %v2449 = vsub.s32 4, %v2425
        %v2450 = vsel %vm2365, %v2449, %v2425
        %v2451 = vsel %vm2364, %v634, %v2448
        %v2452 = vsel %vm2364, 0, %v2450
        %v2453 = vcosq.f32.pop %v2451
        %v2454 = vsinq.f32.pop %v2451
        %vm2455 = vweird.f32 %v634
        %v2456 = vadd.s32 %v2452, 3
        %v2457 = vand.u32 %v2456, 3
        %vm2458 = vcmp.lt.s32.totalorder %v2457, 2
        %vm2459 = vcmp.eq.s32.totalorder %v2457, 0
        %v2460 = vxor.u32 %v2454, 2147483648
        %v2461 = vsel %vm2459, %v2453, %v2460
        %vm2462 = vcmp.eq.s32.totalorder %v2457, 2
        %v2463 = vxor.u32 %v2453, 2147483648
        %v2464 = vsel %vm2462, %v2463, %v2454
        %v2465 = vsel %vm2458, %v2461, %v2464
        %v2466 = vsel %vm2455, nan, %v2465
        %v2467 = vand.u32 2147483647, %v637
        %vm2468 = vcmp.le.f32.partialorder %v2467, 0.7853982
        %vm2469 = vcmp.lt.s32.totalorder %v637, 0
        %v2470 = vand.u32 %v637, 2139095040
        %v2471 = vshrl.u32 %v2470, 23
        %v2472 = vsub.s32 %v2471, 127
        %v2473 = vand.u32 2147483647, %v637
        %v2474 = vand.u32 %v2473, 8388607
        %v2475 = vor.u32 %v2474, 8388608
        %v2476 = vsub.s32 0, %v2475
        %v2477 = vadd.s32 %v2472, 1
        %vm2478 = vcmp.gt.s32.totalorder %v2477, 0
        %v2479 = vsel %vm2478, %v2477, 0
        %v2480 = vshrl.u32 %v2479, 5
        %v2481 = vand.u32 %v2479, 31
        %v2482 = vsub.s32 32, %v2481
        %v2483 = vshrl.u32 683565275, %v2482
        %v2484 = vshll.u32 683565275, %v2481
        %v2485 = vshrl.u32 2475754826, %v2482
        %v2486 = vor.u32 %v2484, %v2485
        %v2487 = vshll.u32 2475754826, %v2481
        %v2488 = vshrl.u32 2131351028, %v2482
        %v2489 = vor.u32 %v2487, %v2488
        %v2490 = vshll.u32 2131351028, %v2481
        %v2491 = vshrl.u32 2102212464, %v2482
        %v2492 = vor.u32 %v2490, %v2491
        %v2493 = vshll.u32 2102212464, %v2481
        %v2494 = vshrl.u32 920167782, %v2482
        %v2495 = vor.u32 %v2493, %v2494
        %v2496 = vshll.u32 920167782, %v2481
        %v2497 = vshrl.u32 1326507024, %v2482
        %v2498 = vor.u32 %v2496, %v2497
        %vm2499 = vcmp.lt.s32.totalorder %v2480, 1
        %vm2500 = vcmp.lt.s32.totalorder %v2480, 2
        %vm2501 = vcmp.lt.s32.totalorder %v2480, 3
        %vm2502 = vcmp.lt.s32.totalorder %v2480, 4
        %v2503 = vsel %vm2499, %v2483, %v2486
        %v2504 = vsel %vm2502, %v2492, 2102212464
        %v2505 = vsel %vm2501, %v2489, %v2504
        %v2506 = vsel %vm2500, %v2503, %v2505
        %v2507 = vsel %vm2499, %v2486, %v2489
        %v2508 = vsel %vm2502, %v2495, 920167782
        %v2509 = vsel %vm2501, %v2492, %v2508
        %v2510 = vsel %vm2500, %v2507, %v2509
        %v2511 = vsel %vm2499, %v2489, %v2492
        %v2512 = vsel %vm2502, %v2498, 1326507024
        %v2513 = vsel %vm2501, %v2495, %v2512
        %v2514 = vsel %vm2500, %v2511, %v2513
        %v2515 = vshll.u32 %v2475, 8
        %v2516 = vmul.u32.u64.compose %v2515, %v2514
        %v2517 = vextract.low.u32 %v2516
        %v2518 = vextract.high.u32 %v2516
        %v2519 = vmul.u32.u64.compose %v2515, %v2510
        %v2520 = vextract.low.u32 %v2519
        %v2521 = vextract.high.u32 %v2519
        %v2522 = vmul.u32 %v2515, %v2506
        %v2523 = vadd.s32 %v2518, %v2520
        %vm2524 = vc.u32 %v2518, %v2520
        %v2525 = vadd.s32 %v2521, 1
        %v2526 = vsel %vm2524, %v2525, %v2521
        %v2527 = vadd.s32 %v2522, %v2526
        %v2528 = vadd.s32 %v2527, 536870912
        %v2529 = vshrl.u32 %v2528, 30
        %v2530 = vshll.u32 %v2529, 30
        %v2531 = vsub.s32 %v2527, %v2530
        %vm2532 = vcmp.lt.s32.totalorder %v2531, 0
        %v2533 = vsub.s32 0, %v2531
        %v2534 = vsel %vm2532, %v2533, %v2531
        %v2535 = vclz %v2534
        %v2536 = vsub.s32 %v2535, 2
        %vm2537 = vcmp.gt.s32.totalorder 0, %v2536
        %v2538 = vsel %vm2537, 0, %v2536
        %v2539 = vsub.s32 32, %v2538
        %v2540 = vshll.u32 %v2531, %v2538
        %v2541 = vshrl.u32 %v2523, %v2539
        %v2542 = vor.u32 %v2540, %v2541
        %v2543 = vsub.s32 4294967266, %v2538
        %v2544 = vadd.s32 %v2543, 127
        %v2545 = vshll.u32 %v2544, 23
        %v2546 = vor.u32 4788187, %v2545
        %v2547 = vand.u32 2147483647, %v2546
        %v2549 = vcvt.s32.f32 %v2542
        %v2550 = vmul.f32 %v2549, %v2547
        %v2551 = vxor.u32 %v2550, 2147483648
        %v2552 = vsel %vm2469, %v2551, %v2550
        %v2553 = vsub.s32 4, %v2529
        %v2554 = vsel %vm2469, %v2553, %v2529
        %v2555 = vsel %vm2468, %v637, %v2552
        %v2556 = vsel %vm2468, 0, %v2554
        %v2557 = vcosq.f32.pop %v2555
        %v2558 = vsinq.f32.pop %v2555
        %vm2559 = vweird.f32 %v637
        %v2560 = vadd.s32 %v2556, 3
        %v2561 = vand.u32 %v2560, 3
        %vm2562 = vcmp.lt.s32.totalorder %v2561, 2
        %vm2563 = vcmp.eq.s32.totalorder %v2561, 0
        %v2564 = vxor.u32 %v2558, 2147483648
        %v2565 = vsel %vm2563, %v2557, %v2564
        %vm2566 = vcmp.eq.s32.totalorder %v2561, 2
        %v2567 = vxor.u32 %v2557, 2147483648
        %v2568 = vsel %vm2566, %v2567, %v2558
        %v2569 = vsel %vm2562, %v2565, %v2568
        %v2570 = vsel %vm2559, nan, %v2569
        %v2571 = vand.u32 2147483647, %v642
        %vm2572 = vcmp.le.f32.partialorder %v2571, 0.7853982
        %vm2573 = vcmp.lt.s32.totalorder %v642, 0
        %v2574 = vand.u32 %v642, 2139095040
        %v2575 = vshrl.u32 %v2574, 23
        %v2576 = vsub.s32 %v2575, 127
        %v2577 = vand.u32 2147483647, %v642
        %v2578 = vand.u32 %v2577, 8388607
        %v2579 = vor.u32 %v2578, 8388608
        %v2580 = vsub.s32 0, %v2579
        %v2581 = vadd.s32 %v2576, 1
        %vm2582 = vcmp.gt.s32.totalorder %v2581, 0
        %v2583 = vsel %vm2582, %v2581, 0
        %v2584 = vshrl.u32 %v2583, 5
        %v2585 = vand.u32 %v2583, 31
        %v2586 = vsub.s32 32, %v2585
        %v2587 = vshrl.u32 683565275, %v2586
        %v2588 = vshll.u32 683565275, %v2585
        %v2589 = vshrl.u32 2475754826, %v2586
        %v2590 = vor.u32 %v2588, %v2589
        %v2591 = vshll.u32 2475754826, %v2585
        %v2592 = vshrl.u32 2131351028, %v2586
        %v2593 = vor.u32 %v2591, %v2592
        %v2594 = vshll.u32 2131351028, %v2585
        %v2595 = vshrl.u32 2102212464, %v2586
        %v2596 = vor.u32 %v2594, %v2595
        %v2597 = vshll.u32 2102212464, %v2585
        %v2598 = vshrl.u32 920167782, %v2586
        %v2599 = vor.u32 %v2597, %v2598
        %v2600 = vshll.u32 920167782, %v2585
        %v2601 = vshrl.u32 1326507024, %v2586
        %v2602 = vor.u32 %v2600, %v2601
        %vm2603 = vcmp.lt.s32.totalorder %v2584, 1
        %vm2604 = vcmp.lt.s32.totalorder %v2584, 2
        %vm2605 = vcmp.lt.s32.totalorder %v2584, 3
        %vm2606 = vcmp.lt.s32.totalorder %v2584, 4
        %v2607 = vsel %vm2603, %v2587, %v2590
        %v2608 = vsel %vm2606, %v2596, 2102212464
        %v2609 = vsel %vm2605, %v2593, %v2608
        %v2610 = vsel %vm2604, %v2607, %v2609
        %v2611 = vsel %vm2603, %v2590, %v2593
        %v2612 = vsel %vm2606, %v2599, 920167782
        %v2613 = vsel %vm2605, %v2596, %v2612
        %v2614 = vsel %vm2604, %v2611, %v2613
        %v2615 = vsel %vm2603, %v2593, %v2596
        %v2616 = vsel %vm2606, %v2602, 1326507024
        %v2617 = vsel %vm2605, %v2599, %v2616
        %v2618 = vsel %vm2604, %v2615, %v2617
        %v2619 = vshll.u32 %v2579, 8
        %v2620 = vmul.u32.u64.compose %v2619, %v2618
        %v2621 = vextract.low.u32 %v2620
        %v2622 = vextract.high.u32 %v2620
        %v2623 = vmul.u32.u64.compose %v2619, %v2614
        %v2624 = vextract.low.u32 %v2623
        %v2625 = vextract.high.u32 %v2623
        %v2626 = vmul.u32 %v2619, %v2610
        %v2627 = vadd.s32 %v2622, %v2624
        %vm2628 = vc.u32 %v2622, %v2624
        %v2629 = vadd.s32 %v2625, 1
        %v2630 = vsel %vm2628, %v2629, %v2625
        %v2631 = vadd.s32 %v2626, %v2630
        %v2632 = vadd.s32 %v2631, 536870912
        %v2633 = vshrl.u32 %v2632, 30
        %v2634 = vshll.u32 %v2633, 30
        %v2635 = vsub.s32 %v2631, %v2634
        %vm2636 = vcmp.lt.s32.totalorder %v2635, 0
        %v2637 = vsub.s32 0, %v2635
        %v2638 = vsel %vm2636, %v2637, %v2635
        %v2639 = vclz %v2638
        %v2640 = vsub.s32 %v2639, 2
        %vm2641 = vcmp.gt.s32.totalorder 0, %v2640
        %v2642 = vsel %vm2641, 0, %v2640
        %v2643 = vsub.s32 32, %v2642
        %v2644 = vshll.u32 %v2635, %v2642
        %v2645 = vshrl.u32 %v2627, %v2643
        %v2646 = vor.u32 %v2644, %v2645
        %v2647 = vsub.s32 4294967266, %v2642
        %v2648 = vadd.s32 %v2647, 127
        %v2649 = vshll.u32 %v2648, 23
        %v2650 = vor.u32 4788187, %v2649
        %v2651 = vand.u32 2147483647, %v2650
        %v2653 = vcvt.s32.f32 %v2646
        %v2654 = vmul.f32 %v2653, %v2651
        %v2655 = vxor.u32 %v2654, 2147483648
        %v2656 = vsel %vm2573, %v2655, %v2654
        %v2657 = vsub.s32 4, %v2633
        %v2658 = vsel %vm2573, %v2657, %v2633
        %v2659 = vsel %vm2572, %v642, %v2656
        %v2660 = vsel %vm2572, 0, %v2658
        %v2661 = vcosq.f32.pop %v2659
        %v2662 = vsinq.f32.pop %v2659
        %vm2663 = vweird.f32 %v642
        %v2664 = vadd.s32 %v2660, 3
        %v2665 = vand.u32 %v2664, 3
        %vm2666 = vcmp.lt.s32.totalorder %v2665, 2
        %vm2667 = vcmp.eq.s32.totalorder %v2665, 0
        %v2668 = vxor.u32 %v2662, 2147483648
        %v2669 = vsel %vm2667, %v2661, %v2668
        %vm2670 = vcmp.eq.s32.totalorder %v2665, 2
        %v2671 = vxor.u32 %v2661, 2147483648
        %v2672 = vsel %vm2670, %v2671, %v2662
        %v2673 = vsel %vm2666, %v2669, %v2672
        %v2674 = vsel %vm2663, nan, %v2673
        %v2675 = vand.u32 2147483647, %v645
        %vm2676 = vcmp.le.f32.partialorder %v2675, 0.7853982
        %vm2677 = vcmp.lt.s32.totalorder %v645, 0
        %v2678 = vand.u32 %v645, 2139095040
        %v2679 = vshrl.u32 %v2678, 23
        %v2680 = vsub.s32 %v2679, 127
        %v2681 = vand.u32 2147483647, %v645
        %v2682 = vand.u32 %v2681, 8388607
        %v2683 = vor.u32 %v2682, 8388608
        %v2684 = vsub.s32 0, %v2683
        %v2685 = vadd.s32 %v2680, 1
        %vm2686 = vcmp.gt.s32.totalorder %v2685, 0
        %v2687 = vsel %vm2686, %v2685, 0
        %v2688 = vshrl.u32 %v2687, 5
        %v2689 = vand.u32 %v2687, 31
        %v2690 = vsub.s32 32, %v2689
        %v2691 = vshrl.u32 683565275, %v2690
        %v2692 = vshll.u32 683565275, %v2689
        %v2693 = vshrl.u32 2475754826, %v2690
        %v2694 = vor.u32 %v2692, %v2693
        %v2695 = vshll.u32 2475754826, %v2689
        %v2696 = vshrl.u32 2131351028, %v2690
        %v2697 = vor.u32 %v2695, %v2696
        %v2698 = vshll.u32 2131351028, %v2689
        %v2699 = vshrl.u32 2102212464, %v2690
        %v2700 = vor.u32 %v2698, %v2699
        %v2701 = vshll.u32 2102212464, %v2689
        %v2702 = vshrl.u32 920167782, %v2690
        %v2703 = vor.u32 %v2701, %v2702
        %v2704 = vshll.u32 920167782, %v2689
        %v2705 = vshrl.u32 1326507024, %v2690
        %v2706 = vor.u32 %v2704, %v2705
        %vm2707 = vcmp.lt.s32.totalorder %v2688, 1
        %vm2708 = vcmp.lt.s32.totalorder %v2688, 2
        %vm2709 = vcmp.lt.s32.totalorder %v2688, 3
        %vm2710 = vcmp.lt.s32.totalorder %v2688, 4
        %v2711 = vsel %vm2707, %v2691, %v2694
        %v2712 = vsel %vm2710, %v2700, 2102212464
        %v2713 = vsel %vm2709, %v2697, %v2712
        %v2714 = vsel %vm2708, %v2711, %v2713
        %v2715 = vsel %vm2707, %v2694, %v2697
        %v2716 = vsel %vm2710, %v2703, 920167782
        %v2717 = vsel %vm2709, %v2700, %v2716
        %v2718 = vsel %vm2708, %v2715, %v2717
        %v2719 = vsel %vm2707, %v2697, %v2700
        %v2720 = vsel %vm2710, %v2706, 1326507024
        %v2721 = vsel %vm2709, %v2703, %v2720
        %v2722 = vsel %vm2708, %v2719, %v2721
        %v2723 = vshll.u32 %v2683, 8
        %v2724 = vmul.u32.u64.compose %v2723, %v2722
        %v2725 = vextract.low.u32 %v2724
        %v2726 = vextract.high.u32 %v2724
        %v2727 = vmul.u32.u64.compose %v2723, %v2718
        %v2728 = vextract.low.u32 %v2727
        %v2729 = vextract.high.u32 %v2727
        %v2730 = vmul.u32 %v2723, %v2714
        %v2731 = vadd.s32 %v2726, %v2728
        %vm2732 = vc.u32 %v2726, %v2728
        %v2733 = vadd.s32 %v2729, 1
        %v2734 = vsel %vm2732, %v2733, %v2729
        %v2735 = vadd.s32 %v2730, %v2734
        %v2736 = vadd.s32 %v2735, 536870912
        %v2737 = vshrl.u32 %v2736, 30
        %v2738 = vshll.u32 %v2737, 30
        %v2739 = vsub.s32 %v2735, %v2738
        %vm2740 = vcmp.lt.s32.totalorder %v2739, 0
        %v2741 = vsub.s32 0, %v2739
        %v2742 = vsel %vm2740, %v2741, %v2739
        %v2743 = vclz %v2742
        %v2744 = vsub.s32 %v2743, 2
        %vm2745 = vcmp.gt.s32.totalorder 0, %v2744
        %v2746 = vsel %vm2745, 0, %v2744
        %v2747 = vsub.s32 32, %v2746
        %v2748 = vshll.u32 %v2739, %v2746
        %v2749 = vshrl.u32 %v2731, %v2747
        %v2750 = vor.u32 %v2748, %v2749
        %v2751 = vsub.s32 4294967266, %v2746
        %v2752 = vadd.s32 %v2751, 127
        %v2753 = vshll.u32 %v2752, 23
        %v2754 = vor.u32 4788187, %v2753
        %v2755 = vand.u32 2147483647, %v2754
        %v2757 = vcvt.s32.f32 %v2750
        %v2758 = vmul.f32 %v2757, %v2755
        %v2759 = vxor.u32 %v2758, 2147483648
        %v2760 = vsel %vm2677, %v2759, %v2758
        %v2761 = vsub.s32 4, %v2737
        %v2762 = vsel %vm2677, %v2761, %v2737
        %v2763 = vsel %vm2676, %v645, %v2760
        %v2764 = vsel %vm2676, 0, %v2762
        %v2765 = vcosq.f32.pop %v2763
        %v2766 = vsinq.f32.pop %v2763
        %vm2767 = vweird.f32 %v645
        %v2768 = vadd.s32 %v2764, 3
        %v2769 = vand.u32 %v2768, 3
        %vm2770 = vcmp.lt.s32.totalorder %v2769, 2
        %vm2771 = vcmp.eq.s32.totalorder %v2769, 0
        %v2772 = vxor.u32 %v2766, 2147483648
        %v2773 = vsel %vm2771, %v2765, %v2772
        %vm2774 = vcmp.eq.s32.totalorder %v2769, 2
        %v2775 = vxor.u32 %v2765, 2147483648
        %v2776 = vsel %vm2774, %v2775, %v2766
        %v2777 = vsel %vm2770, %v2773, %v2776
        %v2778 = vsel %vm2767, nan, %v2777
        %v2779 = vand.u32 2147483647, %v650
        %vm2780 = vcmp.le.f32.partialorder %v2779, 0.7853982
        %vm2781 = vcmp.lt.s32.totalorder %v650, 0
        %v2782 = vand.u32 %v650, 2139095040
        %v2783 = vshrl.u32 %v2782, 23
        %v2784 = vsub.s32 %v2783, 127
        %v2785 = vand.u32 2147483647, %v650
        %v2786 = vand.u32 %v2785, 8388607
        %v2787 = vor.u32 %v2786, 8388608
        %v2788 = vsub.s32 0, %v2787
        %v2789 = vadd.s32 %v2784, 1
        %vm2790 = vcmp.gt.s32.totalorder %v2789, 0
        %v2791 = vsel %vm2790, %v2789, 0
        %v2792 = vshrl.u32 %v2791, 5
        %v2793 = vand.u32 %v2791, 31
        %v2794 = vsub.s32 32, %v2793
        %v2795 = vshrl.u32 683565275, %v2794
        %v2796 = vshll.u32 683565275, %v2793
        %v2797 = vshrl.u32 2475754826, %v2794
        %v2798 = vor.u32 %v2796, %v2797
        %v2799 = vshll.u32 2475754826, %v2793
        %v2800 = vshrl.u32 2131351028, %v2794
        %v2801 = vor.u32 %v2799, %v2800
        %v2802 = vshll.u32 2131351028, %v2793
        %v2803 = vshrl.u32 2102212464, %v2794
        %v2804 = vor.u32 %v2802, %v2803
        %v2805 = vshll.u32 2102212464, %v2793
        %v2806 = vshrl.u32 920167782, %v2794
        %v2807 = vor.u32 %v2805, %v2806
        %v2808 = vshll.u32 920167782, %v2793
        %v2809 = vshrl.u32 1326507024, %v2794
        %v2810 = vor.u32 %v2808, %v2809
        %vm2811 = vcmp.lt.s32.totalorder %v2792, 1
        %vm2812 = vcmp.lt.s32.totalorder %v2792, 2
        %vm2813 = vcmp.lt.s32.totalorder %v2792, 3
        %vm2814 = vcmp.lt.s32.totalorder %v2792, 4
        %v2815 = vsel %vm2811, %v2795, %v2798
        %v2816 = vsel %vm2814, %v2804, 2102212464
        %v2817 = vsel %vm2813, %v2801, %v2816
        %v2818 = vsel %vm2812, %v2815, %v2817
        %v2819 = vsel %vm2811, %v2798, %v2801
        %v2820 = vsel %vm2814, %v2807, 920167782
        %v2821 = vsel %vm2813, %v2804, %v2820
        %v2822 = vsel %vm2812, %v2819, %v2821
        %v2823 = vsel %vm2811, %v2801, %v2804
        %v2824 = vsel %vm2814, %v2810, 1326507024
        %v2825 = vsel %vm2813, %v2807, %v2824
        %v2826 = vsel %vm2812, %v2823, %v2825
        %v2827 = vshll.u32 %v2787, 8
        %v2828 = vmul.u32.u64.compose %v2827, %v2826
        %v2829 = vextract.low.u32 %v2828
        %v2830 = vextract.high.u32 %v2828
        %v2831 = vmul.u32.u64.compose %v2827, %v2822
        %v2832 = vextract.low.u32 %v2831
        %v2833 = vextract.high.u32 %v2831
        %v2834 = vmul.u32 %v2827, %v2818
        %v2835 = vadd.s32 %v2830, %v2832
        %vm2836 = vc.u32 %v2830, %v2832
        %v2837 = vadd.s32 %v2833, 1
        %v2838 = vsel %vm2836, %v2837, %v2833
        %v2839 = vadd.s32 %v2834, %v2838
        %v2840 = vadd.s32 %v2839, 536870912
        %v2841 = vshrl.u32 %v2840, 30
        %v2842 = vshll.u32 %v2841, 30
        %v2843 = vsub.s32 %v2839, %v2842
        %vm2844 = vcmp.lt.s32.totalorder %v2843, 0
        %v2845 = vsub.s32 0, %v2843
        %v2846 = vsel %vm2844, %v2845, %v2843
        %v2847 = vclz %v2846
        %v2848 = vsub.s32 %v2847, 2
        %vm2849 = vcmp.gt.s32.totalorder 0, %v2848
        %v2850 = vsel %vm2849, 0, %v2848
        %v2851 = vsub.s32 32, %v2850
        %v2852 = vshll.u32 %v2843, %v2850
        %v2853 = vshrl.u32 %v2835, %v2851
        %v2854 = vor.u32 %v2852, %v2853
        %v2855 = vsub.s32 4294967266, %v2850
        %v2856 = vadd.s32 %v2855, 127
        %v2857 = vshll.u32 %v2856, 23
        %v2858 = vor.u32 4788187, %v2857
        %v2859 = vand.u32 2147483647, %v2858
        %v2861 = vcvt.s32.f32 %v2854
        %v2862 = vmul.f32 %v2861, %v2859
        %v2863 = vxor.u32 %v2862, 2147483648
        %v2864 = vsel %vm2781, %v2863, %v2862
        %v2865 = vsub.s32 4, %v2841
        %v2866 = vsel %vm2781, %v2865, %v2841
        %v2867 = vsel %vm2780, %v650, %v2864
        %v2868 = vsel %vm2780, 0, %v2866
        %v2869 = vcosq.f32.pop %v2867
        %v2870 = vsinq.f32.pop %v2867
        %vm2871 = vweird.f32 %v650
        %v2872 = vadd.s32 %v2868, 3
        %v2873 = vand.u32 %v2872, 3
        %vm2874 = vcmp.lt.s32.totalorder %v2873, 2
        %vm2875 = vcmp.eq.s32.totalorder %v2873, 0
        %v2876 = vxor.u32 %v2870, 2147483648
        %v2877 = vsel %vm2875, %v2869, %v2876
        %vm2878 = vcmp.eq.s32.totalorder %v2873, 2
        %v2879 = vxor.u32 %v2869, 2147483648
        %v2880 = vsel %vm2878, %v2879, %v2870
        %v2881 = vsel %vm2874, %v2877, %v2880
        %v2882 = vsel %vm2871, nan, %v2881
        %v2883 = vand.u32 2147483647, %v653
        %vm2884 = vcmp.le.f32.partialorder %v2883, 0.7853982
        %vm2885 = vcmp.lt.s32.totalorder %v653, 0
        %v2886 = vand.u32 %v653, 2139095040
        %v2887 = vshrl.u32 %v2886, 23
        %v2888 = vsub.s32 %v2887, 127
        %v2889 = vand.u32 2147483647, %v653
        %v2890 = vand.u32 %v2889, 8388607
        %v2891 = vor.u32 %v2890, 8388608
        %v2892 = vsub.s32 0, %v2891
        %v2893 = vadd.s32 %v2888, 1
        %vm2894 = vcmp.gt.s32.totalorder %v2893, 0
        %v2895 = vsel %vm2894, %v2893, 0
        %v2896 = vshrl.u32 %v2895, 5
        %v2897 = vand.u32 %v2895, 31
        %v2898 = vsub.s32 32, %v2897
        %v2899 = vshrl.u32 683565275, %v2898
        %v2900 = vshll.u32 683565275, %v2897
        %v2901 = vshrl.u32 2475754826, %v2898
        %v2902 = vor.u32 %v2900, %v2901
        %v2903 = vshll.u32 2475754826, %v2897
        %v2904 = vshrl.u32 2131351028, %v2898
        %v2905 = vor.u32 %v2903, %v2904
        %v2906 = vshll.u32 2131351028, %v2897
        %v2907 = vshrl.u32 2102212464, %v2898
        %v2908 = vor.u32 %v2906, %v2907
        %v2909 = vshll.u32 2102212464, %v2897
        %v2910 = vshrl.u32 920167782, %v2898
        %v2911 = vor.u32 %v2909, %v2910
        %v2912 = vshll.u32 920167782, %v2897
        %v2913 = vshrl.u32 1326507024, %v2898
        %v2914 = vor.u32 %v2912, %v2913
        %vm2915 = vcmp.lt.s32.totalorder %v2896, 1
        %vm2916 = vcmp.lt.s32.totalorder %v2896, 2
        %vm2917 = vcmp.lt.s32.totalorder %v2896, 3
        %vm2918 = vcmp.lt.s32.totalorder %v2896, 4
        %v2919 = vsel %vm2915, %v2899, %v2902
        %v2920 = vsel %vm2918, %v2908, 2102212464
        %v2921 = vsel %vm2917, %v2905, %v2920
        %v2922 = vsel %vm2916, %v2919, %v2921
        %v2923 = vsel %vm2915, %v2902, %v2905
        %v2924 = vsel %vm2918, %v2911, 920167782
        %v2925 = vsel %vm2917, %v2908, %v2924
        %v2926 = vsel %vm2916, %v2923, %v2925
        %v2927 = vsel %vm2915, %v2905, %v2908
        %v2928 = vsel %vm2918, %v2914, 1326507024
        %v2929 = vsel %vm2917, %v2911, %v2928
        %v2930 = vsel %vm2916, %v2927, %v2929
        %v2931 = vshll.u32 %v2891, 8
        %v2932 = vmul.u32.u64.compose %v2931, %v2930
        %v2933 = vextract.low.u32 %v2932
        %v2934 = vextract.high.u32 %v2932
        %v2935 = vmul.u32.u64.compose %v2931, %v2926
        %v2936 = vextract.low.u32 %v2935
        %v2937 = vextract.high.u32 %v2935
        %v2938 = vmul.u32 %v2931, %v2922
        %v2939 = vadd.s32 %v2934, %v2936
        %vm2940 = vc.u32 %v2934, %v2936
        %v2941 = vadd.s32 %v2937, 1
        %v2942 = vsel %vm2940, %v2941, %v2937
        %v2943 = vadd.s32 %v2938, %v2942
        %v2944 = vadd.s32 %v2943, 536870912
        %v2945 = vshrl.u32 %v2944, 30
        %v2946 = vshll.u32 %v2945, 30
        %v2947 = vsub.s32 %v2943, %v2946
        %vm2948 = vcmp.lt.s32.totalorder %v2947, 0
        %v2949 = vsub.s32 0, %v2947
        %v2950 = vsel %vm2948, %v2949, %v2947
        %v2951 = vclz %v2950
        %v2952 = vsub.s32 %v2951, 2
        %vm2953 = vcmp.gt.s32.totalorder 0, %v2952
        %v2954 = vsel %vm2953, 0, %v2952
        %v2955 = vsub.s32 32, %v2954
        %v2956 = vshll.u32 %v2947, %v2954
        %v2957 = vshrl.u32 %v2939, %v2955
        %v2958 = vor.u32 %v2956, %v2957
        %v2959 = vsub.s32 4294967266, %v2954
        %v2960 = vadd.s32 %v2959, 127
        %v2961 = vshll.u32 %v2960, 23
        %v2962 = vor.u32 4788187, %v2961
        %v2963 = vand.u32 2147483647, %v2962
        %v2965 = vcvt.s32.f32 %v2958
        %v2966 = vmul.f32 %v2965, %v2963
        %v2967 = vxor.u32 %v2966, 2147483648
        %v2968 = vsel %vm2885, %v2967, %v2966
        %v2969 = vsub.s32 4, %v2945
        %v2970 = vsel %vm2885, %v2969, %v2945
        %v2971 = vsel %vm2884, %v653, %v2968
        %v2972 = vsel %vm2884, 0, %v2970
        %v2973 = vcosq.f32.pop %v2971
        %v2974 = vsinq.f32.pop %v2971
        %vm2975 = vweird.f32 %v653
        %v2976 = vadd.s32 %v2972, 3
        %v2977 = vand.u32 %v2976, 3
        %vm2978 = vcmp.lt.s32.totalorder %v2977, 2
        %vm2979 = vcmp.eq.s32.totalorder %v2977, 0
        %v2980 = vxor.u32 %v2974, 2147483648
        %v2981 = vsel %vm2979, %v2973, %v2980
        %vm2982 = vcmp.eq.s32.totalorder %v2977, 2
        %v2983 = vxor.u32 %v2973, 2147483648
        %v2984 = vsel %vm2982, %v2983, %v2974
        %v2985 = vsel %vm2978, %v2981, %v2984
        %v2986 = vsel %vm2975, nan, %v2985
        %v2987 = vand.u32 2147483647, %v658
        %vm2988 = vcmp.le.f32.partialorder %v2987, 0.7853982
        %vm2989 = vcmp.lt.s32.totalorder %v658, 0
        %v2990 = vand.u32 %v658, 2139095040
        %v2991 = vshrl.u32 %v2990, 23
        %v2992 = vsub.s32 %v2991, 127
        %v2993 = vand.u32 2147483647, %v658
        %v2994 = vand.u32 %v2993, 8388607
        %v2995 = vor.u32 %v2994, 8388608
        %v2996 = vsub.s32 0, %v2995
        %v2997 = vadd.s32 %v2992, 1
        %vm2998 = vcmp.gt.s32.totalorder %v2997, 0
        %v2999 = vsel %vm2998, %v2997, 0
        %v3000 = vshrl.u32 %v2999, 5
        %v3001 = vand.u32 %v2999, 31
        %v3002 = vsub.s32 32, %v3001
        %v3003 = vshrl.u32 683565275, %v3002
        %v3004 = vshll.u32 683565275, %v3001
        %v3005 = vshrl.u32 2475754826, %v3002
        %v3006 = vor.u32 %v3004, %v3005
        %v3007 = vshll.u32 2475754826, %v3001
        %v3008 = vshrl.u32 2131351028, %v3002
        %v3009 = vor.u32 %v3007, %v3008
        %v3010 = vshll.u32 2131351028, %v3001
        %v3011 = vshrl.u32 2102212464, %v3002
        %v3012 = vor.u32 %v3010, %v3011
        %v3013 = vshll.u32 2102212464, %v3001
        %v3014 = vshrl.u32 920167782, %v3002
        %v3015 = vor.u32 %v3013, %v3014
        %v3016 = vshll.u32 920167782, %v3001
        %v3017 = vshrl.u32 1326507024, %v3002
        %v3018 = vor.u32 %v3016, %v3017
        %vm3019 = vcmp.lt.s32.totalorder %v3000, 1
        %vm3020 = vcmp.lt.s32.totalorder %v3000, 2
        %vm3021 = vcmp.lt.s32.totalorder %v3000, 3
        %vm3022 = vcmp.lt.s32.totalorder %v3000, 4
        %v3023 = vsel %vm3019, %v3003, %v3006
        %v3024 = vsel %vm3022, %v3012, 2102212464
        %v3025 = vsel %vm3021, %v3009, %v3024
        %v3026 = vsel %vm3020, %v3023, %v3025
        %v3027 = vsel %vm3019, %v3006, %v3009
        %v3028 = vsel %vm3022, %v3015, 920167782
        %v3029 = vsel %vm3021, %v3012, %v3028
        %v3030 = vsel %vm3020, %v3027, %v3029
        %v3031 = vsel %vm3019, %v3009, %v3012
        %v3032 = vsel %vm3022, %v3018, 1326507024
        %v3033 = vsel %vm3021, %v3015, %v3032
        %v3034 = vsel %vm3020, %v3031, %v3033
        %v3035 = vshll.u32 %v2995, 8
        %v3036 = vmul.u32.u64.compose %v3035, %v3034
        %v3037 = vextract.low.u32 %v3036
        %v3038 = vextract.high.u32 %v3036
        %v3039 = vmul.u32.u64.compose %v3035, %v3030
        %v3040 = vextract.low.u32 %v3039
        %v3041 = vextract.high.u32 %v3039
        %v3042 = vmul.u32 %v3035, %v3026
        %v3043 = vadd.s32 %v3038, %v3040
        %vm3044 = vc.u32 %v3038, %v3040
        %v3045 = vadd.s32 %v3041, 1
        %v3046 = vsel %vm3044, %v3045, %v3041
        %v3047 = vadd.s32 %v3042, %v3046
        %v3048 = vadd.s32 %v3047, 536870912
        %v3049 = vshrl.u32 %v3048, 30
        %v3050 = vshll.u32 %v3049, 30
        %v3051 = vsub.s32 %v3047, %v3050
        %vm3052 = vcmp.lt.s32.totalorder %v3051, 0
        %v3053 = vsub.s32 0, %v3051
        %v3054 = vsel %vm3052, %v3053, %v3051
        %v3055 = vclz %v3054
        %v3056 = vsub.s32 %v3055, 2
        %vm3057 = vcmp.gt.s32.totalorder 0, %v3056
        %v3058 = vsel %vm3057, 0, %v3056
        %v3059 = vsub.s32 32, %v3058
        %v3060 = vshll.u32 %v3051, %v3058
        %v3061 = vshrl.u32 %v3043, %v3059
        %v3062 = vor.u32 %v3060, %v3061
        %v3063 = vsub.s32 4294967266, %v3058
        %v3064 = vadd.s32 %v3063, 127
        %v3065 = vshll.u32 %v3064, 23
        %v3066 = vor.u32 4788187, %v3065
        %v3067 = vand.u32 2147483647, %v3066
        %v3069 = vcvt.s32.f32 %v3062
        %v3070 = vmul.f32 %v3069, %v3067
        %v3071 = vxor.u32 %v3070, 2147483648
        %v3072 = vsel %vm2989, %v3071, %v3070
        %v3073 = vsub.s32 4, %v3049
        %v3074 = vsel %vm2989, %v3073, %v3049
        %v3075 = vsel %vm2988, %v658, %v3072
        %v3076 = vsel %vm2988, 0, %v3074
        %v3077 = vcosq.f32.pop %v3075
        %v3078 = vsinq.f32.pop %v3075
        %vm3079 = vweird.f32 %v658
        %v3080 = vadd.s32 %v3076, 3
        %v3081 = vand.u32 %v3080, 3
        %vm3082 = vcmp.lt.s32.totalorder %v3081, 2
        %vm3083 = vcmp.eq.s32.totalorder %v3081, 0
        %v3084 = vxor.u32 %v3078, 2147483648
        %v3085 = vsel %vm3083, %v3077, %v3084
        %vm3086 = vcmp.eq.s32.totalorder %v3081, 2
        %v3087 = vxor.u32 %v3077, 2147483648
        %v3088 = vsel %vm3086, %v3087, %v3078
        %v3089 = vsel %vm3082, %v3085, %v3088
        %v3090 = vsel %vm3079, nan, %v3089
        %v3091 = vand.u32 2147483647, %v661
        %vm3092 = vcmp.le.f32.partialorder %v3091, 0.7853982
        %vm3093 = vcmp.lt.s32.totalorder %v661, 0
        %v3094 = vand.u32 %v661, 2139095040
        %v3095 = vshrl.u32 %v3094, 23
        %v3096 = vsub.s32 %v3095, 127
        %v3097 = vand.u32 2147483647, %v661
        %v3098 = vand.u32 %v3097, 8388607
        %v3099 = vor.u32 %v3098, 8388608
        %v3100 = vsub.s32 0, %v3099
        %v3101 = vadd.s32 %v3096, 1
        %vm3102 = vcmp.gt.s32.totalorder %v3101, 0
        %v3103 = vsel %vm3102, %v3101, 0
        %v3104 = vshrl.u32 %v3103, 5
        %v3105 = vand.u32 %v3103, 31
        %v3106 = vsub.s32 32, %v3105
        %v3107 = vshrl.u32 683565275, %v3106
        %v3108 = vshll.u32 683565275, %v3105
        %v3109 = vshrl.u32 2475754826, %v3106
        %v3110 = vor.u32 %v3108, %v3109
        %v3111 = vshll.u32 2475754826, %v3105
        %v3112 = vshrl.u32 2131351028, %v3106
        %v3113 = vor.u32 %v3111, %v3112
        %v3114 = vshll.u32 2131351028, %v3105
        %v3115 = vshrl.u32 2102212464, %v3106
        %v3116 = vor.u32 %v3114, %v3115
        %v3117 = vshll.u32 2102212464, %v3105
        %v3118 = vshrl.u32 920167782, %v3106
        %v3119 = vor.u32 %v3117, %v3118
        %v3120 = vshll.u32 920167782, %v3105
        %v3121 = vshrl.u32 1326507024, %v3106
        %v3122 = vor.u32 %v3120, %v3121
        %vm3123 = vcmp.lt.s32.totalorder %v3104, 1
        %vm3124 = vcmp.lt.s32.totalorder %v3104, 2
        %vm3125 = vcmp.lt.s32.totalorder %v3104, 3
        %vm3126 = vcmp.lt.s32.totalorder %v3104, 4
        %v3127 = vsel %vm3123, %v3107, %v3110
        %v3128 = vsel %vm3126, %v3116, 2102212464
        %v3129 = vsel %vm3125, %v3113, %v3128
        %v3130 = vsel %vm3124, %v3127, %v3129
        %v3131 = vsel %vm3123, %v3110, %v3113
        %v3132 = vsel %vm3126, %v3119, 920167782
        %v3133 = vsel %vm3125, %v3116, %v3132
        %v3134 = vsel %vm3124, %v3131, %v3133
        %v3135 = vsel %vm3123, %v3113, %v3116
        %v3136 = vsel %vm3126, %v3122, 1326507024
        %v3137 = vsel %vm3125, %v3119, %v3136
        %v3138 = vsel %vm3124, %v3135, %v3137
        %v3139 = vshll.u32 %v3099, 8
        %v3140 = vmul.u32.u64.compose %v3139, %v3138
        %v3141 = vextract.low.u32 %v3140
        %v3142 = vextract.high.u32 %v3140
        %v3143 = vmul.u32.u64.compose %v3139, %v3134
        %v3144 = vextract.low.u32 %v3143
        %v3145 = vextract.high.u32 %v3143
        %v3146 = vmul.u32 %v3139, %v3130
        %v3147 = vadd.s32 %v3142, %v3144
        %vm3148 = vc.u32 %v3142, %v3144
        %v3149 = vadd.s32 %v3145, 1
        %v3150 = vsel %vm3148, %v3149, %v3145
        %v3151 = vadd.s32 %v3146, %v3150
        %v3152 = vadd.s32 %v3151, 536870912
        %v3153 = vshrl.u32 %v3152, 30
        %v3154 = vshll.u32 %v3153, 30
        %v3155 = vsub.s32 %v3151, %v3154
        %vm3156 = vcmp.lt.s32.totalorder %v3155, 0
        %v3157 = vsub.s32 0, %v3155
        %v3158 = vsel %vm3156, %v3157, %v3155
        %v3159 = vclz %v3158
        %v3160 = vsub.s32 %v3159, 2
        %vm3161 = vcmp.gt.s32.totalorder 0, %v3160
        %v3162 = vsel %vm3161, 0, %v3160
        %v3163 = vsub.s32 32, %v3162
        %v3164 = vshll.u32 %v3155, %v3162
        %v3165 = vshrl.u32 %v3147, %v3163
        %v3166 = vor.u32 %v3164, %v3165
        %v3167 = vsub.s32 4294967266, %v3162
        %v3168 = vadd.s32 %v3167, 127
        %v3169 = vshll.u32 %v3168, 23
        %v3170 = vor.u32 4788187, %v3169
        %v3171 = vand.u32 2147483647, %v3170
        %v3173 = vcvt.s32.f32 %v3166
        %v3174 = vmul.f32 %v3173, %v3171
        %v3175 = vxor.u32 %v3174, 2147483648
        %v3176 = vsel %vm3093, %v3175, %v3174
        %v3177 = vsub.s32 4, %v3153
        %v3178 = vsel %vm3093, %v3177, %v3153
        %v3179 = vsel %vm3092, %v661, %v3176
        %v3180 = vsel %vm3092, 0, %v3178
        %v3181 = vcosq.f32.pop %v3179
        %v3182 = vsinq.f32.pop %v3179
        %vm3183 = vweird.f32 %v661
        %v3184 = vadd.s32 %v3180, 3
        %v3185 = vand.u32 %v3184, 3
        %vm3186 = vcmp.lt.s32.totalorder %v3185, 2
        %vm3187 = vcmp.eq.s32.totalorder %v3185, 0
        %v3188 = vxor.u32 %v3182, 2147483648
        %v3189 = vsel %vm3187, %v3181, %v3188
        %vm3190 = vcmp.eq.s32.totalorder %v3185, 2
        %v3191 = vxor.u32 %v3181, 2147483648
        %v3192 = vsel %vm3190, %v3191, %v3182
        %v3193 = vsel %vm3186, %v3189, %v3192
        %v3194 = vsel %vm3183, nan, %v3193
        %v3195 = vand.u32 2147483647, %v666
        %vm3196 = vcmp.le.f32.partialorder %v3195, 0.7853982
        %vm3197 = vcmp.lt.s32.totalorder %v666, 0
        %v3198 = vand.u32 %v666, 2139095040
        %v3199 = vshrl.u32 %v3198, 23
        %v3200 = vsub.s32 %v3199, 127
        %v3201 = vand.u32 2147483647, %v666
        %v3202 = vand.u32 %v3201, 8388607
        %v3203 = vor.u32 %v3202, 8388608
        %v3204 = vsub.s32 0, %v3203
        %v3205 = vadd.s32 %v3200, 1
        %vm3206 = vcmp.gt.s32.totalorder %v3205, 0
        %v3207 = vsel %vm3206, %v3205, 0
        %v3208 = vshrl.u32 %v3207, 5
        %v3209 = vand.u32 %v3207, 31
        %v3210 = vsub.s32 32, %v3209
        %v3211 = vshrl.u32 683565275, %v3210
        %v3212 = vshll.u32 683565275, %v3209
        %v3213 = vshrl.u32 2475754826, %v3210
        %v3214 = vor.u32 %v3212, %v3213
        %v3215 = vshll.u32 2475754826, %v3209
        %v3216 = vshrl.u32 2131351028, %v3210
        %v3217 = vor.u32 %v3215, %v3216
        %v3218 = vshll.u32 2131351028, %v3209
        %v3219 = vshrl.u32 2102212464, %v3210
        %v3220 = vor.u32 %v3218, %v3219
        %v3221 = vshll.u32 2102212464, %v3209
        %v3222 = vshrl.u32 920167782, %v3210
        %v3223 = vor.u32 %v3221, %v3222
        %v3224 = vshll.u32 920167782, %v3209
        %v3225 = vshrl.u32 1326507024, %v3210
        %v3226 = vor.u32 %v3224, %v3225
        %vm3227 = vcmp.lt.s32.totalorder %v3208, 1
        %vm3228 = vcmp.lt.s32.totalorder %v3208, 2
        %vm3229 = vcmp.lt.s32.totalorder %v3208, 3
        %vm3230 = vcmp.lt.s32.totalorder %v3208, 4
        %v3231 = vsel %vm3227, %v3211, %v3214
        %v3232 = vsel %vm3230, %v3220, 2102212464
        %v3233 = vsel %vm3229, %v3217, %v3232
        %v3234 = vsel %vm3228, %v3231, %v3233
        %v3235 = vsel %vm3227, %v3214, %v3217
        %v3236 = vsel %vm3230, %v3223, 920167782
        %v3237 = vsel %vm3229, %v3220, %v3236
        %v3238 = vsel %vm3228, %v3235, %v3237
        %v3239 = vsel %vm3227, %v3217, %v3220
        %v3240 = vsel %vm3230, %v3226, 1326507024
        %v3241 = vsel %vm3229, %v3223, %v3240
        %v3242 = vsel %vm3228, %v3239, %v3241
        %v3243 = vshll.u32 %v3203, 8
        %v3244 = vmul.u32.u64.compose %v3243, %v3242
        %v3245 = vextract.low.u32 %v3244
        %v3246 = vextract.high.u32 %v3244
        %v3247 = vmul.u32.u64.compose %v3243, %v3238
        %v3248 = vextract.low.u32 %v3247
        %v3249 = vextract.high.u32 %v3247
        %v3250 = vmul.u32 %v3243, %v3234
        %v3251 = vadd.s32 %v3246, %v3248
        %vm3252 = vc.u32 %v3246, %v3248
        %v3253 = vadd.s32 %v3249, 1
        %v3254 = vsel %vm3252, %v3253, %v3249
        %v3255 = vadd.s32 %v3250, %v3254
        %v3256 = vadd.s32 %v3255, 536870912
        %v3257 = vshrl.u32 %v3256, 30
        %v3258 = vshll.u32 %v3257, 30
        %v3259 = vsub.s32 %v3255, %v3258
        %vm3260 = vcmp.lt.s32.totalorder %v3259, 0
        %v3261 = vsub.s32 0, %v3259
        %v3262 = vsel %vm3260, %v3261, %v3259
        %v3263 = vclz %v3262
        %v3264 = vsub.s32 %v3263, 2
        %vm3265 = vcmp.gt.s32.totalorder 0, %v3264
        %v3266 = vsel %vm3265, 0, %v3264
        %v3267 = vsub.s32 32, %v3266
        %v3268 = vshll.u32 %v3259, %v3266
        %v3269 = vshrl.u32 %v3251, %v3267
        %v3270 = vor.u32 %v3268, %v3269
        %v3271 = vsub.s32 4294967266, %v3266
        %v3272 = vadd.s32 %v3271, 127
        %v3273 = vshll.u32 %v3272, 23
        %v3274 = vor.u32 4788187, %v3273
        %v3275 = vand.u32 2147483647, %v3274
        %v3277 = vcvt.s32.f32 %v3270
        %v3278 = vmul.f32 %v3277, %v3275
        %v3279 = vxor.u32 %v3278, 2147483648
        %v3280 = vsel %vm3197, %v3279, %v3278
        %v3281 = vsub.s32 4, %v3257
        %v3282 = vsel %vm3197, %v3281, %v3257
        %v3283 = vsel %vm3196, %v666, %v3280
        %v3284 = vsel %vm3196, 0, %v3282
        %v3285 = vcosq.f32.pop %v3283
        %v3286 = vsinq.f32.pop %v3283
        %vm3287 = vweird.f32 %v666
        %v3288 = vadd.s32 %v3284, 3
        %v3289 = vand.u32 %v3288, 3
        %vm3290 = vcmp.lt.s32.totalorder %v3289, 2
        %vm3291 = vcmp.eq.s32.totalorder %v3289, 0
        %v3292 = vxor.u32 %v3286, 2147483648
        %v3293 = vsel %vm3291, %v3285, %v3292
        %vm3294 = vcmp.eq.s32.totalorder %v3289, 2
        %v3295 = vxor.u32 %v3285, 2147483648
        %v3296 = vsel %vm3294, %v3295, %v3286
        %v3297 = vsel %vm3290, %v3293, %v3296
        %v3298 = vsel %vm3287, nan, %v3297
        %v3299 = vand.u32 2147483647, %v669
        %vm3300 = vcmp.le.f32.partialorder %v3299, 0.7853982
        %vm3301 = vcmp.lt.s32.totalorder %v669, 0
        %v3302 = vand.u32 %v669, 2139095040
        %v3303 = vshrl.u32 %v3302, 23
        %v3304 = vsub.s32 %v3303, 127
        %v3305 = vand.u32 2147483647, %v669
        %v3306 = vand.u32 %v3305, 8388607
        %v3307 = vor.u32 %v3306, 8388608
        %v3308 = vsub.s32 0, %v3307
        %v3309 = vadd.s32 %v3304, 1
        %vm3310 = vcmp.gt.s32.totalorder %v3309, 0
        %v3311 = vsel %vm3310, %v3309, 0
        %v3312 = vshrl.u32 %v3311, 5
        %v3313 = vand.u32 %v3311, 31
        %v3314 = vsub.s32 32, %v3313
        %v3315 = vshrl.u32 683565275, %v3314
        %v3316 = vshll.u32 683565275, %v3313
        %v3317 = vshrl.u32 2475754826, %v3314
        %v3318 = vor.u32 %v3316, %v3317
        %v3319 = vshll.u32 2475754826, %v3313
        %v3320 = vshrl.u32 2131351028, %v3314
        %v3321 = vor.u32 %v3319, %v3320
        %v3322 = vshll.u32 2131351028, %v3313
        %v3323 = vshrl.u32 2102212464, %v3314
        %v3324 = vor.u32 %v3322, %v3323
        %v3325 = vshll.u32 2102212464, %v3313
        %v3326 = vshrl.u32 920167782, %v3314
        %v3327 = vor.u32 %v3325, %v3326
        %v3328 = vshll.u32 920167782, %v3313
        %v3329 = vshrl.u32 1326507024, %v3314
        %v3330 = vor.u32 %v3328, %v3329
        %vm3331 = vcmp.lt.s32.totalorder %v3312, 1
        %vm3332 = vcmp.lt.s32.totalorder %v3312, 2
        %vm3333 = vcmp.lt.s32.totalorder %v3312, 3
        %vm3334 = vcmp.lt.s32.totalorder %v3312, 4
        %v3335 = vsel %vm3331, %v3315, %v3318
        %v3336 = vsel %vm3334, %v3324, 2102212464
        %v3337 = vsel %vm3333, %v3321, %v3336
        %v3338 = vsel %vm3332, %v3335, %v3337
        %v3339 = vsel %vm3331, %v3318, %v3321
        %v3340 = vsel %vm3334, %v3327, 920167782
        %v3341 = vsel %vm3333, %v3324, %v3340
        %v3342 = vsel %vm3332, %v3339, %v3341
        %v3343 = vsel %vm3331, %v3321, %v3324
        %v3344 = vsel %vm3334, %v3330, 1326507024
        %v3345 = vsel %vm3333, %v3327, %v3344
        %v3346 = vsel %vm3332, %v3343, %v3345
        %v3347 = vshll.u32 %v3307, 8
        %v3348 = vmul.u32.u64.compose %v3347, %v3346
        %v3349 = vextract.low.u32 %v3348
        %v3350 = vextract.high.u32 %v3348
        %v3351 = vmul.u32.u64.compose %v3347, %v3342
        %v3352 = vextract.low.u32 %v3351
        %v3353 = vextract.high.u32 %v3351
        %v3354 = vmul.u32 %v3347, %v3338
        %v3355 = vadd.s32 %v3350, %v3352
        %vm3356 = vc.u32 %v3350, %v3352
        %v3357 = vadd.s32 %v3353, 1
        %v3358 = vsel %vm3356, %v3357, %v3353
        %v3359 = vadd.s32 %v3354, %v3358
        %v3360 = vadd.s32 %v3359, 536870912
        %v3361 = vshrl.u32 %v3360, 30
        %v3362 = vshll.u32 %v3361, 30
        %v3363 = vsub.s32 %v3359, %v3362
        %vm3364 = vcmp.lt.s32.totalorder %v3363, 0
        %v3365 = vsub.s32 0, %v3363
        %v3366 = vsel %vm3364, %v3365, %v3363
        %v3367 = vclz %v3366
        %v3368 = vsub.s32 %v3367, 2
        %vm3369 = vcmp.gt.s32.totalorder 0, %v3368
        %v3370 = vsel %vm3369, 0, %v3368
        %v3371 = vsub.s32 32, %v3370
        %v3372 = vshll.u32 %v3363, %v3370
        %v3373 = vshrl.u32 %v3355, %v3371
        %v3374 = vor.u32 %v3372, %v3373
        %v3375 = vsub.s32 4294967266, %v3370
        %v3376 = vadd.s32 %v3375, 127
        %v3377 = vshll.u32 %v3376, 23
        %v3378 = vor.u32 4788187, %v3377
        %v3379 = vand.u32 2147483647, %v3378
        %v3381 = vcvt.s32.f32 %v3374
        %v3382 = vmul.f32 %v3381, %v3379
        %v3383 = vxor.u32 %v3382, 2147483648
        %v3384 = vsel %vm3301, %v3383, %v3382
        %v3385 = vsub.s32 4, %v3361
        %v3386 = vsel %vm3301, %v3385, %v3361
        %v3387 = vsel %vm3300, %v669, %v3384
        %v3388 = vsel %vm3300, 0, %v3386
        %v3389 = vcosq.f32.pop %v3387
        %v3390 = vsinq.f32.pop %v3387
        %vm3391 = vweird.f32 %v669
        %v3392 = vadd.s32 %v3388, 3
        %v3393 = vand.u32 %v3392, 3
        %vm3394 = vcmp.lt.s32.totalorder %v3393, 2
        %vm3395 = vcmp.eq.s32.totalorder %v3393, 0
        %v3396 = vxor.u32 %v3390, 2147483648
        %v3397 = vsel %vm3395, %v3389, %v3396
        %vm3398 = vcmp.eq.s32.totalorder %v3393, 2
        %v3399 = vxor.u32 %v3389, 2147483648
        %v3400 = vsel %vm3398, %v3399, %v3390
        %v3401 = vsel %vm3394, %v3397, %v3400
        %v3402 = vsel %vm3391, nan, %v3401
        %v3403 = vand.u32 2147483647, %v674
        %vm3404 = vcmp.le.f32.partialorder %v3403, 0.7853982
        %vm3405 = vcmp.lt.s32.totalorder %v674, 0
        %v3406 = vand.u32 %v674, 2139095040
        %v3407 = vshrl.u32 %v3406, 23
        %v3408 = vsub.s32 %v3407, 127
        %v3409 = vand.u32 2147483647, %v674
        %v3410 = vand.u32 %v3409, 8388607
        %v3411 = vor.u32 %v3410, 8388608
        %v3412 = vsub.s32 0, %v3411
        %v3413 = vadd.s32 %v3408, 1
        %vm3414 = vcmp.gt.s32.totalorder %v3413, 0
        %v3415 = vsel %vm3414, %v3413, 0
        %v3416 = vshrl.u32 %v3415, 5
        %v3417 = vand.u32 %v3415, 31
        %v3418 = vsub.s32 32, %v3417
        %v3419 = vshrl.u32 683565275, %v3418
        %v3420 = vshll.u32 683565275, %v3417
        %v3421 = vshrl.u32 2475754826, %v3418
        %v3422 = vor.u32 %v3420, %v3421
        %v3423 = vshll.u32 2475754826, %v3417
        %v3424 = vshrl.u32 2131351028, %v3418
        %v3425 = vor.u32 %v3423, %v3424
        %v3426 = vshll.u32 2131351028, %v3417
        %v3427 = vshrl.u32 2102212464, %v3418
        %v3428 = vor.u32 %v3426, %v3427
        %v3429 = vshll.u32 2102212464, %v3417
        %v3430 = vshrl.u32 920167782, %v3418
        %v3431 = vor.u32 %v3429, %v3430
        %v3432 = vshll.u32 920167782, %v3417
        %v3433 = vshrl.u32 1326507024, %v3418
        %v3434 = vor.u32 %v3432, %v3433
        %vm3435 = vcmp.lt.s32.totalorder %v3416, 1
        %vm3436 = vcmp.lt.s32.totalorder %v3416, 2
        %vm3437 = vcmp.lt.s32.totalorder %v3416, 3
        %vm3438 = vcmp.lt.s32.totalorder %v3416, 4
        %v3439 = vsel %vm3435, %v3419, %v3422
        %v3440 = vsel %vm3438, %v3428, 2102212464
        %v3441 = vsel %vm3437, %v3425, %v3440
        %v3442 = vsel %vm3436, %v3439, %v3441
        %v3443 = vsel %vm3435, %v3422, %v3425
        %v3444 = vsel %vm3438, %v3431, 920167782
        %v3445 = vsel %vm3437, %v3428, %v3444
        %v3446 = vsel %vm3436, %v3443, %v3445
        %v3447 = vsel %vm3435, %v3425, %v3428
        %v3448 = vsel %vm3438, %v3434, 1326507024
        %v3449 = vsel %vm3437, %v3431, %v3448
        %v3450 = vsel %vm3436, %v3447, %v3449
        %v3451 = vshll.u32 %v3411, 8
        %v3452 = vmul.u32.u64.compose %v3451, %v3450
        %v3453 = vextract.low.u32 %v3452
        %v3454 = vextract.high.u32 %v3452
        %v3455 = vmul.u32.u64.compose %v3451, %v3446
        %v3456 = vextract.low.u32 %v3455
        %v3457 = vextract.high.u32 %v3455
        %v3458 = vmul.u32 %v3451, %v3442
        %v3459 = vadd.s32 %v3454, %v3456
        %vm3460 = vc.u32 %v3454, %v3456
        %v3461 = vadd.s32 %v3457, 1
        %v3462 = vsel %vm3460, %v3461, %v3457
        %v3463 = vadd.s32 %v3458, %v3462
        %v3464 = vadd.s32 %v3463, 536870912
        %v3465 = vshrl.u32 %v3464, 30
        %v3466 = vshll.u32 %v3465, 30
        %v3467 = vsub.s32 %v3463, %v3466
        %vm3468 = vcmp.lt.s32.totalorder %v3467, 0
        %v3469 = vsub.s32 0, %v3467
        %v3470 = vsel %vm3468, %v3469, %v3467
        %v3471 = vclz %v3470
        %v3472 = vsub.s32 %v3471, 2
        %vm3473 = vcmp.gt.s32.totalorder 0, %v3472
        %v3474 = vsel %vm3473, 0, %v3472
        %v3475 = vsub.s32 32, %v3474
        %v3476 = vshll.u32 %v3467, %v3474
        %v3477 = vshrl.u32 %v3459, %v3475
        %v3478 = vor.u32 %v3476, %v3477
        %v3479 = vsub.s32 4294967266, %v3474
        %v3480 = vadd.s32 %v3479, 127
        %v3481 = vshll.u32 %v3480, 23
        %v3482 = vor.u32 4788187, %v3481
        %v3483 = vand.u32 2147483647, %v3482
        %v3485 = vcvt.s32.f32 %v3478
        %v3486 = vmul.f32 %v3485, %v3483
        %v3487 = vxor.u32 %v3486, 2147483648
        %v3488 = vsel %vm3405, %v3487, %v3486
        %v3489 = vsub.s32 4, %v3465
        %v3490 = vsel %vm3405, %v3489, %v3465
        %v3491 = vsel %vm3404, %v674, %v3488
        %v3492 = vsel %vm3404, 0, %v3490
        %v3493 = vcosq.f32.pop %v3491
        %v3494 = vsinq.f32.pop %v3491
        %vm3495 = vweird.f32 %v674
        %v3496 = vadd.s32 %v3492, 3
        %v3497 = vand.u32 %v3496, 3
        %vm3498 = vcmp.lt.s32.totalorder %v3497, 2
        %vm3499 = vcmp.eq.s32.totalorder %v3497, 0
        %v3500 = vxor.u32 %v3494, 2147483648
        %v3501 = vsel %vm3499, %v3493, %v3500
        %vm3502 = vcmp.eq.s32.totalorder %v3497, 2
        %v3503 = vxor.u32 %v3493, 2147483648
        %v3504 = vsel %vm3502, %v3503, %v3494
        %v3505 = vsel %vm3498, %v3501, %v3504
        %v3506 = vsel %vm3495, nan, %v3505
        %v3507 = vand.u32 2147483647, %v677
        %vm3508 = vcmp.le.f32.partialorder %v3507, 0.7853982
        %vm3509 = vcmp.lt.s32.totalorder %v677, 0
        %v3510 = vand.u32 %v677, 2139095040
        %v3511 = vshrl.u32 %v3510, 23
        %v3512 = vsub.s32 %v3511, 127
        %v3513 = vand.u32 2147483647, %v677
        %v3514 = vand.u32 %v3513, 8388607
        %v3515 = vor.u32 %v3514, 8388608
        %v3516 = vsub.s32 0, %v3515
        %v3517 = vadd.s32 %v3512, 1
        %vm3518 = vcmp.gt.s32.totalorder %v3517, 0
        %v3519 = vsel %vm3518, %v3517, 0
        %v3520 = vshrl.u32 %v3519, 5
        %v3521 = vand.u32 %v3519, 31
        %v3522 = vsub.s32 32, %v3521
        %v3523 = vshrl.u32 683565275, %v3522
        %v3524 = vshll.u32 683565275, %v3521
        %v3525 = vshrl.u32 2475754826, %v3522
        %v3526 = vor.u32 %v3524, %v3525
        %v3527 = vshll.u32 2475754826, %v3521
        %v3528 = vshrl.u32 2131351028, %v3522
        %v3529 = vor.u32 %v3527, %v3528
        %v3530 = vshll.u32 2131351028, %v3521
        %v3531 = vshrl.u32 2102212464, %v3522
        %v3532 = vor.u32 %v3530, %v3531
        %v3533 = vshll.u32 2102212464, %v3521
        %v3534 = vshrl.u32 920167782, %v3522
        %v3535 = vor.u32 %v3533, %v3534
        %v3536 = vshll.u32 920167782, %v3521
        %v3537 = vshrl.u32 1326507024, %v3522
        %v3538 = vor.u32 %v3536, %v3537
        %vm3539 = vcmp.lt.s32.totalorder %v3520, 1
        %vm3540 = vcmp.lt.s32.totalorder %v3520, 2
        %vm3541 = vcmp.lt.s32.totalorder %v3520, 3
        %vm3542 = vcmp.lt.s32.totalorder %v3520, 4
        %v3543 = vsel %vm3539, %v3523, %v3526
        %v3544 = vsel %vm3542, %v3532, 2102212464
        %v3545 = vsel %vm3541, %v3529, %v3544
        %v3546 = vsel %vm3540, %v3543, %v3545
        %v3547 = vsel %vm3539, %v3526, %v3529
        %v3548 = vsel %vm3542, %v3535, 920167782
        %v3549 = vsel %vm3541, %v3532, %v3548
        %v3550 = vsel %vm3540, %v3547, %v3549
        %v3551 = vsel %vm3539, %v3529, %v3532
        %v3552 = vsel %vm3542, %v3538, 1326507024
        %v3553 = vsel %vm3541, %v3535, %v3552
        %v3554 = vsel %vm3540, %v3551, %v3553
        %v3555 = vshll.u32 %v3515, 8
        %v3556 = vmul.u32.u64.compose %v3555, %v3554
        %v3557 = vextract.low.u32 %v3556
        %v3558 = vextract.high.u32 %v3556
        %v3559 = vmul.u32.u64.compose %v3555, %v3550
        %v3560 = vextract.low.u32 %v3559
        %v3561 = vextract.high.u32 %v3559
        %v3562 = vmul.u32 %v3555, %v3546
        %v3563 = vadd.s32 %v3558, %v3560
        %vm3564 = vc.u32 %v3558, %v3560
        %v3565 = vadd.s32 %v3561, 1
        %v3566 = vsel %vm3564, %v3565, %v3561
        %v3567 = vadd.s32 %v3562, %v3566
        %v3568 = vadd.s32 %v3567, 536870912
        %v3569 = vshrl.u32 %v3568, 30
        %v3570 = vshll.u32 %v3569, 30
        %v3571 = vsub.s32 %v3567, %v3570
        %vm3572 = vcmp.lt.s32.totalorder %v3571, 0
        %v3573 = vsub.s32 0, %v3571
        %v3574 = vsel %vm3572, %v3573, %v3571
        %v3575 = vclz %v3574
        %v3576 = vsub.s32 %v3575, 2
        %vm3577 = vcmp.gt.s32.totalorder 0, %v3576
        %v3578 = vsel %vm3577, 0, %v3576
        %v3579 = vsub.s32 32, %v3578
        %v3580 = vshll.u32 %v3571, %v3578
        %v3581 = vshrl.u32 %v3563, %v3579
        %v3582 = vor.u32 %v3580, %v3581
        %v3583 = vsub.s32 4294967266, %v3578
        %v3584 = vadd.s32 %v3583, 127
        %v3585 = vshll.u32 %v3584, 23
        %v3586 = vor.u32 4788187, %v3585
        %v3587 = vand.u32 2147483647, %v3586
        %v3589 = vcvt.s32.f32 %v3582
        %v3590 = vmul.f32 %v3589, %v3587
        %v3591 = vxor.u32 %v3590, 2147483648
        %v3592 = vsel %vm3509, %v3591, %v3590
        %v3593 = vsub.s32 4, %v3569
        %v3594 = vsel %vm3509, %v3593, %v3569
        %v3595 = vsel %vm3508, %v677, %v3592
        %v3596 = vsel %vm3508, 0, %v3594
        %v3597 = vcosq.f32.pop %v3595
        %v3598 = vsinq.f32.pop %v3595
        %vm3599 = vweird.f32 %v677
        %v3600 = vadd.s32 %v3596, 3
        %v3601 = vand.u32 %v3600, 3
        %vm3602 = vcmp.lt.s32.totalorder %v3601, 2
        %vm3603 = vcmp.eq.s32.totalorder %v3601, 0
        %v3604 = vxor.u32 %v3598, 2147483648
        %v3605 = vsel %vm3603, %v3597, %v3604
        %vm3606 = vcmp.eq.s32.totalorder %v3601, 2
        %v3607 = vxor.u32 %v3597, 2147483648
        %v3608 = vsel %vm3606, %v3607, %v3598
        %v3609 = vsel %vm3602, %v3605, %v3608
        %v3610 = vsel %vm3599, nan, %v3609
        %v3611 = vand.u32 2147483647, %v682
        %vm3612 = vcmp.le.f32.partialorder %v3611, 0.7853982
        %vm3613 = vcmp.lt.s32.totalorder %v682, 0
        %v3614 = vand.u32 %v682, 2139095040
        %v3615 = vshrl.u32 %v3614, 23
        %v3616 = vsub.s32 %v3615, 127
        %v3617 = vand.u32 2147483647, %v682
        %v3618 = vand.u32 %v3617, 8388607
        %v3619 = vor.u32 %v3618, 8388608
        %v3620 = vsub.s32 0, %v3619
        %v3621 = vadd.s32 %v3616, 1
        %vm3622 = vcmp.gt.s32.totalorder %v3621, 0
        %v3623 = vsel %vm3622, %v3621, 0
        %v3624 = vshrl.u32 %v3623, 5
        %v3625 = vand.u32 %v3623, 31
        %v3626 = vsub.s32 32, %v3625
        %v3627 = vshrl.u32 683565275, %v3626
        %v3628 = vshll.u32 683565275, %v3625
        %v3629 = vshrl.u32 2475754826, %v3626
        %v3630 = vor.u32 %v3628, %v3629
        %v3631 = vshll.u32 2475754826, %v3625
        %v3632 = vshrl.u32 2131351028, %v3626
        %v3633 = vor.u32 %v3631, %v3632
        %v3634 = vshll.u32 2131351028, %v3625
        %v3635 = vshrl.u32 2102212464, %v3626
        %v3636 = vor.u32 %v3634, %v3635
        %v3637 = vshll.u32 2102212464, %v3625
        %v3638 = vshrl.u32 920167782, %v3626
        %v3639 = vor.u32 %v3637, %v3638
        %v3640 = vshll.u32 920167782, %v3625
        %v3641 = vshrl.u32 1326507024, %v3626
        %v3642 = vor.u32 %v3640, %v3641
        %vm3643 = vcmp.lt.s32.totalorder %v3624, 1
        %vm3644 = vcmp.lt.s32.totalorder %v3624, 2
        %vm3645 = vcmp.lt.s32.totalorder %v3624, 3
        %vm3646 = vcmp.lt.s32.totalorder %v3624, 4
        %v3647 = vsel %vm3643, %v3627, %v3630
        %v3648 = vsel %vm3646, %v3636, 2102212464
        %v3649 = vsel %vm3645, %v3633, %v3648
        %v3650 = vsel %vm3644, %v3647, %v3649
        %v3651 = vsel %vm3643, %v3630, %v3633
        %v3652 = vsel %vm3646, %v3639, 920167782
        %v3653 = vsel %vm3645, %v3636, %v3652
        %v3654 = vsel %vm3644, %v3651, %v3653
        %v3655 = vsel %vm3643, %v3633, %v3636
        %v3656 = vsel %vm3646, %v3642, 1326507024
        %v3657 = vsel %vm3645, %v3639, %v3656
        %v3658 = vsel %vm3644, %v3655, %v3657
        %v3659 = vshll.u32 %v3619, 8
        %v3660 = vmul.u32.u64.compose %v3659, %v3658
        %v3661 = vextract.low.u32 %v3660
        %v3662 = vextract.high.u32 %v3660
        %v3663 = vmul.u32.u64.compose %v3659, %v3654
        %v3664 = vextract.low.u32 %v3663
        %v3665 = vextract.high.u32 %v3663
        %v3666 = vmul.u32 %v3659, %v3650
        %v3667 = vadd.s32 %v3662, %v3664
        %vm3668 = vc.u32 %v3662, %v3664
        %v3669 = vadd.s32 %v3665, 1
        %v3670 = vsel %vm3668, %v3669, %v3665
        %v3671 = vadd.s32 %v3666, %v3670
        %v3672 = vadd.s32 %v3671, 536870912
        %v3673 = vshrl.u32 %v3672, 30
        %v3674 = vshll.u32 %v3673, 30
        %v3675 = vsub.s32 %v3671, %v3674
        %vm3676 = vcmp.lt.s32.totalorder %v3675, 0
        %v3677 = vsub.s32 0, %v3675
        %v3678 = vsel %vm3676, %v3677, %v3675
        %v3679 = vclz %v3678
        %v3680 = vsub.s32 %v3679, 2
        %vm3681 = vcmp.gt.s32.totalorder 0, %v3680
        %v3682 = vsel %vm3681, 0, %v3680
        %v3683 = vsub.s32 32, %v3682
        %v3684 = vshll.u32 %v3675, %v3682
        %v3685 = vshrl.u32 %v3667, %v3683
        %v3686 = vor.u32 %v3684, %v3685
        %v3687 = vsub.s32 4294967266, %v3682
        %v3688 = vadd.s32 %v3687, 127
        %v3689 = vshll.u32 %v3688, 23
        %v3690 = vor.u32 4788187, %v3689
        %v3691 = vand.u32 2147483647, %v3690
        %v3693 = vcvt.s32.f32 %v3686
        %v3694 = vmul.f32 %v3693, %v3691
        %v3695 = vxor.u32 %v3694, 2147483648
        %v3696 = vsel %vm3613, %v3695, %v3694
        %v3697 = vsub.s32 4, %v3673
        %v3698 = vsel %vm3613, %v3697, %v3673
        %v3699 = vsel %vm3612, %v682, %v3696
        %v3700 = vsel %vm3612, 0, %v3698
        %v3701 = vcosq.f32.pop %v3699
        %v3702 = vsinq.f32.pop %v3699
        %vm3703 = vweird.f32 %v682
        %v3704 = vadd.s32 %v3700, 3
        %v3705 = vand.u32 %v3704, 3
        %vm3706 = vcmp.lt.s32.totalorder %v3705, 2
        %vm3707 = vcmp.eq.s32.totalorder %v3705, 0
        %v3708 = vxor.u32 %v3702, 2147483648
        %v3709 = vsel %vm3707, %v3701, %v3708
        %vm3710 = vcmp.eq.s32.totalorder %v3705, 2
        %v3711 = vxor.u32 %v3701, 2147483648
        %v3712 = vsel %vm3710, %v3711, %v3702
        %v3713 = vsel %vm3706, %v3709, %v3712
        %v3714 = vsel %vm3703, nan, %v3713
        %v3715 = vand.u32 2147483647, %v685
        %vm3716 = vcmp.le.f32.partialorder %v3715, 0.7853982
        %vm3717 = vcmp.lt.s32.totalorder %v685, 0
        %v3718 = vand.u32 %v685, 2139095040
        %v3719 = vshrl.u32 %v3718, 23
        %v3720 = vsub.s32 %v3719, 127
        %v3721 = vand.u32 2147483647, %v685
        %v3722 = vand.u32 %v3721, 8388607
        %v3723 = vor.u32 %v3722, 8388608
        %v3724 = vsub.s32 0, %v3723
        %v3725 = vadd.s32 %v3720, 1
        %vm3726 = vcmp.gt.s32.totalorder %v3725, 0
        %v3727 = vsel %vm3726, %v3725, 0
        %v3728 = vshrl.u32 %v3727, 5
        %v3729 = vand.u32 %v3727, 31
        %v3730 = vsub.s32 32, %v3729
        %v3731 = vshrl.u32 683565275, %v3730
        %v3732 = vshll.u32 683565275, %v3729
        %v3733 = vshrl.u32 2475754826, %v3730
        %v3734 = vor.u32 %v3732, %v3733
        %v3735 = vshll.u32 2475754826, %v3729
        %v3736 = vshrl.u32 2131351028, %v3730
        %v3737 = vor.u32 %v3735, %v3736
        %v3738 = vshll.u32 2131351028, %v3729
        %v3739 = vshrl.u32 2102212464, %v3730
        %v3740 = vor.u32 %v3738, %v3739
        %v3741 = vshll.u32 2102212464, %v3729
        %v3742 = vshrl.u32 920167782, %v3730
        %v3743 = vor.u32 %v3741, %v3742
        %v3744 = vshll.u32 920167782, %v3729
        %v3745 = vshrl.u32 1326507024, %v3730
        %v3746 = vor.u32 %v3744, %v3745
        %vm3747 = vcmp.lt.s32.totalorder %v3728, 1
        %vm3748 = vcmp.lt.s32.totalorder %v3728, 2
        %vm3749 = vcmp.lt.s32.totalorder %v3728, 3
        %vm3750 = vcmp.lt.s32.totalorder %v3728, 4
        %v3751 = vsel %vm3747, %v3731, %v3734
        %v3752 = vsel %vm3750, %v3740, 2102212464
        %v3753 = vsel %vm3749, %v3737, %v3752
        %v3754 = vsel %vm3748, %v3751, %v3753
        %v3755 = vsel %vm3747, %v3734, %v3737
        %v3756 = vsel %vm3750, %v3743, 920167782
        %v3757 = vsel %vm3749, %v3740, %v3756
        %v3758 = vsel %vm3748, %v3755, %v3757
        %v3759 = vsel %vm3747, %v3737, %v3740
        %v3760 = vsel %vm3750, %v3746, 1326507024
        %v3761 = vsel %vm3749, %v3743, %v3760
        %v3762 = vsel %vm3748, %v3759, %v3761
        %v3763 = vshll.u32 %v3723, 8
        %v3764 = vmul.u32.u64.compose %v3763, %v3762
        %v3765 = vextract.low.u32 %v3764
        %v3766 = vextract.high.u32 %v3764
        %v3767 = vmul.u32.u64.compose %v3763, %v3758
        %v3768 = vextract.low.u32 %v3767
        %v3769 = vextract.high.u32 %v3767
        %v3770 = vmul.u32 %v3763, %v3754
        %v3771 = vadd.s32 %v3766, %v3768
        %vm3772 = vc.u32 %v3766, %v3768
        %v3773 = vadd.s32 %v3769, 1
        %v3774 = vsel %vm3772, %v3773, %v3769
        %v3775 = vadd.s32 %v3770, %v3774
        %v3776 = vadd.s32 %v3775, 536870912
        %v3777 = vshrl.u32 %v3776, 30
        %v3778 = vshll.u32 %v3777, 30
        %v3779 = vsub.s32 %v3775, %v3778
        %vm3780 = vcmp.lt.s32.totalorder %v3779, 0
        %v3781 = vsub.s32 0, %v3779
        %v3782 = vsel %vm3780, %v3781, %v3779
        %v3783 = vclz %v3782
        %v3784 = vsub.s32 %v3783, 2
        %vm3785 = vcmp.gt.s32.totalorder 0, %v3784
        %v3786 = vsel %vm3785, 0, %v3784
        %v3787 = vsub.s32 32, %v3786
        %v3788 = vshll.u32 %v3779, %v3786
        %v3789 = vshrl.u32 %v3771, %v3787
        %v3790 = vor.u32 %v3788, %v3789
        %v3791 = vsub.s32 4294967266, %v3786
        %v3792 = vadd.s32 %v3791, 127
        %v3793 = vshll.u32 %v3792, 23
        %v3794 = vor.u32 4788187, %v3793
        %v3795 = vand.u32 2147483647, %v3794
        %v3797 = vcvt.s32.f32 %v3790
        %v3798 = vmul.f32 %v3797, %v3795
        %v3799 = vxor.u32 %v3798, 2147483648
        %v3800 = vsel %vm3717, %v3799, %v3798
        %v3801 = vsub.s32 4, %v3777
        %v3802 = vsel %vm3717, %v3801, %v3777
        %v3803 = vsel %vm3716, %v685, %v3800
        %v3804 = vsel %vm3716, 0, %v3802
        %v3805 = vcosq.f32.pop %v3803
        %v3806 = vsinq.f32.pop %v3803
        %vm3807 = vweird.f32 %v685
        %v3808 = vadd.s32 %v3804, 3
        %v3809 = vand.u32 %v3808, 3
        %vm3810 = vcmp.lt.s32.totalorder %v3809, 2
        %vm3811 = vcmp.eq.s32.totalorder %v3809, 0
        %v3812 = vxor.u32 %v3806, 2147483648
        %v3813 = vsel %vm3811, %v3805, %v3812
        %vm3814 = vcmp.eq.s32.totalorder %v3809, 2
        %v3815 = vxor.u32 %v3805, 2147483648
        %v3816 = vsel %vm3814, %v3815, %v3806
        %v3817 = vsel %vm3810, %v3813, %v3816
        %v3818 = vsel %vm3807, nan, %v3817
        %v3819 = vand.u32 2147483647, %v690
        %vm3820 = vcmp.le.f32.partialorder %v3819, 0.7853982
        %vm3821 = vcmp.lt.s32.totalorder %v690, 0
        %v3822 = vand.u32 %v690, 2139095040
        %v3823 = vshrl.u32 %v3822, 23
        %v3824 = vsub.s32 %v3823, 127
        %v3825 = vand.u32 2147483647, %v690
        %v3826 = vand.u32 %v3825, 8388607
        %v3827 = vor.u32 %v3826, 8388608
        %v3828 = vsub.s32 0, %v3827
        %v3829 = vadd.s32 %v3824, 1
        %vm3830 = vcmp.gt.s32.totalorder %v3829, 0
        %v3831 = vsel %vm3830, %v3829, 0
        %v3832 = vshrl.u32 %v3831, 5
        %v3833 = vand.u32 %v3831, 31
        %v3834 = vsub.s32 32, %v3833
        %v3835 = vshrl.u32 683565275, %v3834
        %v3836 = vshll.u32 683565275, %v3833
        %v3837 = vshrl.u32 2475754826, %v3834
        %v3838 = vor.u32 %v3836, %v3837
        %v3839 = vshll.u32 2475754826, %v3833
        %v3840 = vshrl.u32 2131351028, %v3834
        %v3841 = vor.u32 %v3839, %v3840
        %v3842 = vshll.u32 2131351028, %v3833
        %v3843 = vshrl.u32 2102212464, %v3834
        %v3844 = vor.u32 %v3842, %v3843
        %v3845 = vshll.u32 2102212464, %v3833
        %v3846 = vshrl.u32 920167782, %v3834
        %v3847 = vor.u32 %v3845, %v3846
        %v3848 = vshll.u32 920167782, %v3833
        %v3849 = vshrl.u32 1326507024, %v3834
        %v3850 = vor.u32 %v3848, %v3849
        %vm3851 = vcmp.lt.s32.totalorder %v3832, 1
        %vm3852 = vcmp.lt.s32.totalorder %v3832, 2
        %vm3853 = vcmp.lt.s32.totalorder %v3832, 3
        %vm3854 = vcmp.lt.s32.totalorder %v3832, 4
        %v3855 = vsel %vm3851, %v3835, %v3838
        %v3856 = vsel %vm3854, %v3844, 2102212464
        %v3857 = vsel %vm3853, %v3841, %v3856
        %v3858 = vsel %vm3852, %v3855, %v3857
        %v3859 = vsel %vm3851, %v3838, %v3841
        %v3860 = vsel %vm3854, %v3847, 920167782
        %v3861 = vsel %vm3853, %v3844, %v3860
        %v3862 = vsel %vm3852, %v3859, %v3861
        %v3863 = vsel %vm3851, %v3841, %v3844
        %v3864 = vsel %vm3854, %v3850, 1326507024
        %v3865 = vsel %vm3853, %v3847, %v3864
        %v3866 = vsel %vm3852, %v3863, %v3865
        %v3867 = vshll.u32 %v3827, 8
        %v3868 = vmul.u32.u64.compose %v3867, %v3866
        %v3869 = vextract.low.u32 %v3868
        %v3870 = vextract.high.u32 %v3868
        %v3871 = vmul.u32.u64.compose %v3867, %v3862
        %v3872 = vextract.low.u32 %v3871
        %v3873 = vextract.high.u32 %v3871
        %v3874 = vmul.u32 %v3867, %v3858
        %v3875 = vadd.s32 %v3870, %v3872
        %vm3876 = vc.u32 %v3870, %v3872
        %v3877 = vadd.s32 %v3873, 1
        %v3878 = vsel %vm3876, %v3877, %v3873
        %v3879 = vadd.s32 %v3874, %v3878
        %v3880 = vadd.s32 %v3879, 536870912
        %v3881 = vshrl.u32 %v3880, 30
        %v3882 = vshll.u32 %v3881, 30
        %v3883 = vsub.s32 %v3879, %v3882
        %vm3884 = vcmp.lt.s32.totalorder %v3883, 0
        %v3885 = vsub.s32 0, %v3883
        %v3886 = vsel %vm3884, %v3885, %v3883
        %v3887 = vclz %v3886
        %v3888 = vsub.s32 %v3887, 2
        %vm3889 = vcmp.gt.s32.totalorder 0, %v3888
        %v3890 = vsel %vm3889, 0, %v3888
        %v3891 = vsub.s32 32, %v3890
        %v3892 = vshll.u32 %v3883, %v3890
        %v3893 = vshrl.u32 %v3875, %v3891
        %v3894 = vor.u32 %v3892, %v3893
        %v3895 = vsub.s32 4294967266, %v3890
        %v3896 = vadd.s32 %v3895, 127
        %v3897 = vshll.u32 %v3896, 23
        %v3898 = vor.u32 4788187, %v3897
        %v3899 = vand.u32 2147483647, %v3898
        %v3901 = vcvt.s32.f32 %v3894
        %v3902 = vmul.f32 %v3901, %v3899
        %v3903 = vxor.u32 %v3902, 2147483648
        %v3904 = vsel %vm3821, %v3903, %v3902
        %v3905 = vsub.s32 4, %v3881
        %v3906 = vsel %vm3821, %v3905, %v3881
        %v3907 = vsel %vm3820, %v690, %v3904
        %v3908 = vsel %vm3820, 0, %v3906
        %v3909 = vcosq.f32.pop %v3907
        %v3910 = vsinq.f32.pop %v3907
        %vm3911 = vweird.f32 %v690
        %v3912 = vadd.s32 %v3908, 3
        %v3913 = vand.u32 %v3912, 3
        %vm3914 = vcmp.lt.s32.totalorder %v3913, 2
        %vm3915 = vcmp.eq.s32.totalorder %v3913, 0
        %v3916 = vxor.u32 %v3910, 2147483648
        %v3917 = vsel %vm3915, %v3909, %v3916
        %vm3918 = vcmp.eq.s32.totalorder %v3913, 2
        %v3919 = vxor.u32 %v3909, 2147483648
        %v3920 = vsel %vm3918, %v3919, %v3910
        %v3921 = vsel %vm3914, %v3917, %v3920
        %v3922 = vsel %vm3911, nan, %v3921
        %v3923 = vand.u32 2147483647, %v693
        %vm3924 = vcmp.le.f32.partialorder %v3923, 0.7853982
        %vm3925 = vcmp.lt.s32.totalorder %v693, 0
        %v3926 = vand.u32 %v693, 2139095040
        %v3927 = vshrl.u32 %v3926, 23
        %v3928 = vsub.s32 %v3927, 127
        %v3929 = vand.u32 2147483647, %v693
        %v3930 = vand.u32 %v3929, 8388607
        %v3931 = vor.u32 %v3930, 8388608
        %v3932 = vsub.s32 0, %v3931
        %v3933 = vadd.s32 %v3928, 1
        %vm3934 = vcmp.gt.s32.totalorder %v3933, 0
        %v3935 = vsel %vm3934, %v3933, 0
        %v3936 = vshrl.u32 %v3935, 5
        %v3937 = vand.u32 %v3935, 31
        %v3938 = vsub.s32 32, %v3937
        %v3939 = vshrl.u32 683565275, %v3938
        %v3940 = vshll.u32 683565275, %v3937
        %v3941 = vshrl.u32 2475754826, %v3938
        %v3942 = vor.u32 %v3940, %v3941
        %v3943 = vshll.u32 2475754826, %v3937
        %v3944 = vshrl.u32 2131351028, %v3938
        %v3945 = vor.u32 %v3943, %v3944
        %v3946 = vshll.u32 2131351028, %v3937
        %v3947 = vshrl.u32 2102212464, %v3938
        %v3948 = vor.u32 %v3946, %v3947
        %v3949 = vshll.u32 2102212464, %v3937
        %v3950 = vshrl.u32 920167782, %v3938
        %v3951 = vor.u32 %v3949, %v3950
        %v3952 = vshll.u32 920167782, %v3937
        %v3953 = vshrl.u32 1326507024, %v3938
        %v3954 = vor.u32 %v3952, %v3953
        %vm3955 = vcmp.lt.s32.totalorder %v3936, 1
        %vm3956 = vcmp.lt.s32.totalorder %v3936, 2
        %vm3957 = vcmp.lt.s32.totalorder %v3936, 3
        %vm3958 = vcmp.lt.s32.totalorder %v3936, 4
        %v3959 = vsel %vm3955, %v3939, %v3942
        %v3960 = vsel %vm3958, %v3948, 2102212464
        %v3961 = vsel %vm3957, %v3945, %v3960
        %v3962 = vsel %vm3956, %v3959, %v3961
        %v3963 = vsel %vm3955, %v3942, %v3945
        %v3964 = vsel %vm3958, %v3951, 920167782
        %v3965 = vsel %vm3957, %v3948, %v3964
        %v3966 = vsel %vm3956, %v3963, %v3965
        %v3967 = vsel %vm3955, %v3945, %v3948
        %v3968 = vsel %vm3958, %v3954, 1326507024
        %v3969 = vsel %vm3957, %v3951, %v3968
        %v3970 = vsel %vm3956, %v3967, %v3969
        %v3971 = vshll.u32 %v3931, 8
        %v3972 = vmul.u32.u64.compose %v3971, %v3970
        %v3973 = vextract.low.u32 %v3972
        %v3974 = vextract.high.u32 %v3972
        %v3975 = vmul.u32.u64.compose %v3971, %v3966
        %v3976 = vextract.low.u32 %v3975
        %v3977 = vextract.high.u32 %v3975
        %v3978 = vmul.u32 %v3971, %v3962
        %v3979 = vadd.s32 %v3974, %v3976
        %vm3980 = vc.u32 %v3974, %v3976
        %v3981 = vadd.s32 %v3977, 1
        %v3982 = vsel %vm3980, %v3981, %v3977
        %v3983 = vadd.s32 %v3978, %v3982
        %v3984 = vadd.s32 %v3983, 536870912
        %v3985 = vshrl.u32 %v3984, 30
        %v3986 = vshll.u32 %v3985, 30
        %v3987 = vsub.s32 %v3983, %v3986
        %vm3988 = vcmp.lt.s32.totalorder %v3987, 0
        %v3989 = vsub.s32 0, %v3987
        %v3990 = vsel %vm3988, %v3989, %v3987
        %v3991 = vclz %v3990
        %v3992 = vsub.s32 %v3991, 2
        %vm3993 = vcmp.gt.s32.totalorder 0, %v3992
        %v3994 = vsel %vm3993, 0, %v3992
        %v3995 = vsub.s32 32, %v3994
        %v3996 = vshll.u32 %v3987, %v3994
        %v3997 = vshrl.u32 %v3979, %v3995
        %v3998 = vor.u32 %v3996, %v3997
        %v3999 = vsub.s32 4294967266, %v3994
        %v4000 = vadd.s32 %v3999, 127
        %v4001 = vshll.u32 %v4000, 23
        %v4002 = vor.u32 4788187, %v4001
        %v4003 = vand.u32 2147483647, %v4002
        %v4005 = vcvt.s32.f32 %v3998
        %v4006 = vmul.f32 %v4005, %v4003
        %v4007 = vxor.u32 %v4006, 2147483648
        %v4008 = vsel %vm3925, %v4007, %v4006
        %v4009 = vsub.s32 4, %v3985
        %v4010 = vsel %vm3925, %v4009, %v3985
        %v4011 = vsel %vm3924, %v693, %v4008
        %v4012 = vsel %vm3924, 0, %v4010
        %v4013 = vcosq.f32.pop %v4011
        %v4014 = vsinq.f32.pop %v4011
        %vm4015 = vweird.f32 %v693
        %v4016 = vadd.s32 %v4012, 3
        %v4017 = vand.u32 %v4016, 3
        %vm4018 = vcmp.lt.s32.totalorder %v4017, 2
        %vm4019 = vcmp.eq.s32.totalorder %v4017, 0
        %v4020 = vxor.u32 %v4014, 2147483648
        %v4021 = vsel %vm4019, %v4013, %v4020
        %vm4022 = vcmp.eq.s32.totalorder %v4017, 2
        %v4023 = vxor.u32 %v4013, 2147483648
        %v4024 = vsel %vm4022, %v4023, %v4014
        %v4025 = vsel %vm4018, %v4021, %v4024
        %v4026 = vsel %vm4015, nan, %v4025
        %v4027 = vand.u32 2147483647, %v570
        %vm4028 = vcmp.le.f32.partialorder %v4027, 0.7853982
        %vm4029 = vcmp.lt.s32.totalorder %v570, 0
        %v4030 = vand.u32 %v570, 2139095040
        %v4031 = vshrl.u32 %v4030, 23
        %v4032 = vsub.s32 %v4031, 127
        %v4033 = vand.u32 2147483647, %v570
        %v4034 = vand.u32 %v4033, 8388607
        %v4035 = vor.u32 %v4034, 8388608
        %v4036 = vsub.s32 0, %v4035
        %v4037 = vadd.s32 %v4032, 1
        %vm4038 = vcmp.gt.s32.totalorder %v4037, 0
        %v4039 = vsel %vm4038, %v4037, 0
        %v4040 = vshrl.u32 %v4039, 5
        %v4041 = vand.u32 %v4039, 31
        %v4042 = vsub.s32 32, %v4041
        %v4043 = vshrl.u32 683565275, %v4042
        %v4044 = vshll.u32 683565275, %v4041
        %v4045 = vshrl.u32 2475754826, %v4042
        %v4046 = vor.u32 %v4044, %v4045
        %v4047 = vshll.u32 2475754826, %v4041
        %v4048 = vshrl.u32 2131351028, %v4042
        %v4049 = vor.u32 %v4047, %v4048
        %v4050 = vshll.u32 2131351028, %v4041
        %v4051 = vshrl.u32 2102212464, %v4042
        %v4052 = vor.u32 %v4050, %v4051
        %v4053 = vshll.u32 2102212464, %v4041
        %v4054 = vshrl.u32 920167782, %v4042
        %v4055 = vor.u32 %v4053, %v4054
        %v4056 = vshll.u32 920167782, %v4041
        %v4057 = vshrl.u32 1326507024, %v4042
        %v4058 = vor.u32 %v4056, %v4057
        %vm4059 = vcmp.lt.s32.totalorder %v4040, 1
        %vm4060 = vcmp.lt.s32.totalorder %v4040, 2
        %vm4061 = vcmp.lt.s32.totalorder %v4040, 3
        %vm4062 = vcmp.lt.s32.totalorder %v4040, 4
        %v4063 = vsel %vm4059, %v4043, %v4046
        %v4064 = vsel %vm4062, %v4052, 2102212464
        %v4065 = vsel %vm4061, %v4049, %v4064
        %v4066 = vsel %vm4060, %v4063, %v4065
        %v4067 = vsel %vm4059, %v4046, %v4049
        %v4068 = vsel %vm4062, %v4055, 920167782
        %v4069 = vsel %vm4061, %v4052, %v4068
        %v4070 = vsel %vm4060, %v4067, %v4069
        %v4071 = vsel %vm4059, %v4049, %v4052
        %v4072 = vsel %vm4062, %v4058, 1326507024
        %v4073 = vsel %vm4061, %v4055, %v4072
        %v4074 = vsel %vm4060, %v4071, %v4073
        %v4075 = vshll.u32 %v4035, 8
        %v4076 = vmul.u32.u64.compose %v4075, %v4074
        %v4077 = vextract.low.u32 %v4076
        %v4078 = vextract.high.u32 %v4076
        %v4079 = vmul.u32.u64.compose %v4075, %v4070
        %v4080 = vextract.low.u32 %v4079
        %v4081 = vextract.high.u32 %v4079
        %v4082 = vmul.u32 %v4075, %v4066
        %v4083 = vadd.s32 %v4078, %v4080
        %vm4084 = vc.u32 %v4078, %v4080
        %v4085 = vadd.s32 %v4081, 1
        %v4086 = vsel %vm4084, %v4085, %v4081
        %v4087 = vadd.s32 %v4082, %v4086
        %v4088 = vadd.s32 %v4087, 536870912
        %v4089 = vshrl.u32 %v4088, 30
        %v4090 = vshll.u32 %v4089, 30
        %v4091 = vsub.s32 %v4087, %v4090
        %vm4092 = vcmp.lt.s32.totalorder %v4091, 0
        %v4093 = vsub.s32 0, %v4091
        %v4094 = vsel %vm4092, %v4093, %v4091
        %v4095 = vclz %v4094
        %v4096 = vsub.s32 %v4095, 2
        %vm4097 = vcmp.gt.s32.totalorder 0, %v4096
        %v4098 = vsel %vm4097, 0, %v4096
        %v4099 = vsub.s32 32, %v4098
        %v4100 = vshll.u32 %v4091, %v4098
        %v4101 = vshrl.u32 %v4083, %v4099
        %v4102 = vor.u32 %v4100, %v4101
        %v4103 = vsub.s32 4294967266, %v4098
        %v4104 = vadd.s32 %v4103, 127
        %v4105 = vshll.u32 %v4104, 23
        %v4106 = vor.u32 4788187, %v4105
        %v4107 = vand.u32 2147483647, %v4106
        %v4109 = vcvt.s32.f32 %v4102
        %v4110 = vmul.f32 %v4109, %v4107
        %v4111 = vxor.u32 %v4110, 2147483648
        %v4112 = vsel %vm4029, %v4111, %v4110
        %v4113 = vsub.s32 4, %v4089
        %v4114 = vsel %vm4029, %v4113, %v4089
        %v4115 = vsel %vm4028, %v570, %v4112
        %v4116 = vsel %vm4028, 0, %v4114
        %v4117 = vcosq.f32.pop %v4115
        %v4118 = vsinq.f32.pop %v4115
        %vm4119 = vweird.f32 %v570
        %v4120 = vand.u32 %v4116, 3
        %vm4121 = vcmp.lt.s32.totalorder %v4120, 2
        %vm4122 = vcmp.eq.s32.totalorder %v4120, 0
        %v4123 = vxor.u32 %v4118, 2147483648
        %v4124 = vsel %vm4122, %v4117, %v4123
        %vm4125 = vcmp.eq.s32.totalorder %v4120, 2
        %v4126 = vxor.u32 %v4117, 2147483648
        %v4127 = vsel %vm4125, %v4126, %v4118
        %v4128 = vsel %vm4121, %v4124, %v4127
        %v4129 = vsel %vm4119, nan, %v4128
        %v4130 = vand.u32 2147483647, %v573
        %vm4131 = vcmp.le.f32.partialorder %v4130, 0.7853982
        %vm4132 = vcmp.lt.s32.totalorder %v573, 0
        %v4133 = vand.u32 %v573, 2139095040
        %v4134 = vshrl.u32 %v4133, 23
        %v4135 = vsub.s32 %v4134, 127
        %v4136 = vand.u32 2147483647, %v573
        %v4137 = vand.u32 %v4136, 8388607
        %v4138 = vor.u32 %v4137, 8388608
        %v4139 = vsub.s32 0, %v4138
        %v4140 = vadd.s32 %v4135, 1
        %vm4141 = vcmp.gt.s32.totalorder %v4140, 0
        %v4142 = vsel %vm4141, %v4140, 0
        %v4143 = vshrl.u32 %v4142, 5
        %v4144 = vand.u32 %v4142, 31
        %v4145 = vsub.s32 32, %v4144
        %v4146 = vshrl.u32 683565275, %v4145
        %v4147 = vshll.u32 683565275, %v4144
        %v4148 = vshrl.u32 2475754826, %v4145
        %v4149 = vor.u32 %v4147, %v4148
        %v4150 = vshll.u32 2475754826, %v4144
        %v4151 = vshrl.u32 2131351028, %v4145
        %v4152 = vor.u32 %v4150, %v4151
        %v4153 = vshll.u32 2131351028, %v4144
        %v4154 = vshrl.u32 2102212464, %v4145
        %v4155 = vor.u32 %v4153, %v4154
        %v4156 = vshll.u32 2102212464, %v4144
        %v4157 = vshrl.u32 920167782, %v4145
        %v4158 = vor.u32 %v4156, %v4157
        %v4159 = vshll.u32 920167782, %v4144
        %v4160 = vshrl.u32 1326507024, %v4145
        %v4161 = vor.u32 %v4159, %v4160
        %vm4162 = vcmp.lt.s32.totalorder %v4143, 1
        %vm4163 = vcmp.lt.s32.totalorder %v4143, 2
        %vm4164 = vcmp.lt.s32.totalorder %v4143, 3
        %vm4165 = vcmp.lt.s32.totalorder %v4143, 4
        %v4166 = vsel %vm4162, %v4146, %v4149
        %v4167 = vsel %vm4165, %v4155, 2102212464
        %v4168 = vsel %vm4164, %v4152, %v4167
        %v4169 = vsel %vm4163, %v4166, %v4168
        %v4170 = vsel %vm4162, %v4149, %v4152
        %v4171 = vsel %vm4165, %v4158, 920167782
        %v4172 = vsel %vm4164, %v4155, %v4171
        %v4173 = vsel %vm4163, %v4170, %v4172
        %v4174 = vsel %vm4162, %v4152, %v4155
        %v4175 = vsel %vm4165, %v4161, 1326507024
        %v4176 = vsel %vm4164, %v4158, %v4175
        %v4177 = vsel %vm4163, %v4174, %v4176
        %v4178 = vshll.u32 %v4138, 8
        %v4179 = vmul.u32.u64.compose %v4178, %v4177
        %v4180 = vextract.low.u32 %v4179
        %v4181 = vextract.high.u32 %v4179
        %v4182 = vmul.u32.u64.compose %v4178, %v4173
        %v4183 = vextract.low.u32 %v4182
        %v4184 = vextract.high.u32 %v4182
        %v4185 = vmul.u32 %v4178, %v4169
        %v4186 = vadd.s32 %v4181, %v4183
        %vm4187 = vc.u32 %v4181, %v4183
        %v4188 = vadd.s32 %v4184, 1
        %v4189 = vsel %vm4187, %v4188, %v4184
        %v4190 = vadd.s32 %v4185, %v4189
        %v4191 = vadd.s32 %v4190, 536870912
        %v4192 = vshrl.u32 %v4191, 30
        %v4193 = vshll.u32 %v4192, 30
        %v4194 = vsub.s32 %v4190, %v4193
        %vm4195 = vcmp.lt.s32.totalorder %v4194, 0
        %v4196 = vsub.s32 0, %v4194
        %v4197 = vsel %vm4195, %v4196, %v4194
        %v4198 = vclz %v4197
        %v4199 = vsub.s32 %v4198, 2
        %vm4200 = vcmp.gt.s32.totalorder 0, %v4199
        %v4201 = vsel %vm4200, 0, %v4199
        %v4202 = vsub.s32 32, %v4201
        %v4203 = vshll.u32 %v4194, %v4201
        %v4204 = vshrl.u32 %v4186, %v4202
        %v4205 = vor.u32 %v4203, %v4204
        %v4206 = vsub.s32 4294967266, %v4201
        %v4207 = vadd.s32 %v4206, 127
        %v4208 = vshll.u32 %v4207, 23
        %v4209 = vor.u32 4788187, %v4208
        %v4210 = vand.u32 2147483647, %v4209
        %v4212 = vcvt.s32.f32 %v4205
        %v4213 = vmul.f32 %v4212, %v4210
        %v4214 = vxor.u32 %v4213, 2147483648
        %v4215 = vsel %vm4132, %v4214, %v4213
        %v4216 = vsub.s32 4, %v4192
        %v4217 = vsel %vm4132, %v4216, %v4192
        %v4218 = vsel %vm4131, %v573, %v4215
        %v4219 = vsel %vm4131, 0, %v4217
        %v4220 = vcosq.f32.pop %v4218
        %v4221 = vsinq.f32.pop %v4218
        %vm4222 = vweird.f32 %v573
        %v4223 = vand.u32 %v4219, 3
        %vm4224 = vcmp.lt.s32.totalorder %v4223, 2
        %vm4225 = vcmp.eq.s32.totalorder %v4223, 0
        %v4226 = vxor.u32 %v4221, 2147483648
        %v4227 = vsel %vm4225, %v4220, %v4226
        %vm4228 = vcmp.eq.s32.totalorder %v4223, 2
        %v4229 = vxor.u32 %v4220, 2147483648
        %v4230 = vsel %vm4228, %v4229, %v4221
        %v4231 = vsel %vm4224, %v4227, %v4230
        %v4232 = vsel %vm4222, nan, %v4231
        %v4233 = vand.u32 2147483647, %v578
        %vm4234 = vcmp.le.f32.partialorder %v4233, 0.7853982
        %vm4235 = vcmp.lt.s32.totalorder %v578, 0
        %v4236 = vand.u32 %v578, 2139095040
        %v4237 = vshrl.u32 %v4236, 23
        %v4238 = vsub.s32 %v4237, 127
        %v4239 = vand.u32 2147483647, %v578
        %v4240 = vand.u32 %v4239, 8388607
        %v4241 = vor.u32 %v4240, 8388608
        %v4242 = vsub.s32 0, %v4241
        %v4243 = vadd.s32 %v4238, 1
        %vm4244 = vcmp.gt.s32.totalorder %v4243, 0
        %v4245 = vsel %vm4244, %v4243, 0
        %v4246 = vshrl.u32 %v4245, 5
        %v4247 = vand.u32 %v4245, 31
        %v4248 = vsub.s32 32, %v4247
        %v4249 = vshrl.u32 683565275, %v4248
        %v4250 = vshll.u32 683565275, %v4247
        %v4251 = vshrl.u32 2475754826, %v4248
        %v4252 = vor.u32 %v4250, %v4251
        %v4253 = vshll.u32 2475754826, %v4247
        %v4254 = vshrl.u32 2131351028, %v4248
        %v4255 = vor.u32 %v4253, %v4254
        %v4256 = vshll.u32 2131351028, %v4247
        %v4257 = vshrl.u32 2102212464, %v4248
        %v4258 = vor.u32 %v4256, %v4257
        %v4259 = vshll.u32 2102212464, %v4247
        %v4260 = vshrl.u32 920167782, %v4248
        %v4261 = vor.u32 %v4259, %v4260
        %v4262 = vshll.u32 920167782, %v4247
        %v4263 = vshrl.u32 1326507024, %v4248
        %v4264 = vor.u32 %v4262, %v4263
        %vm4265 = vcmp.lt.s32.totalorder %v4246, 1
        %vm4266 = vcmp.lt.s32.totalorder %v4246, 2
        %vm4267 = vcmp.lt.s32.totalorder %v4246, 3
        %vm4268 = vcmp.lt.s32.totalorder %v4246, 4
        %v4269 = vsel %vm4265, %v4249, %v4252
        %v4270 = vsel %vm4268, %v4258, 2102212464
        %v4271 = vsel %vm4267, %v4255, %v4270
        %v4272 = vsel %vm4266, %v4269, %v4271
        %v4273 = vsel %vm4265, %v4252, %v4255
        %v4274 = vsel %vm4268, %v4261, 920167782
        %v4275 = vsel %vm4267, %v4258, %v4274
        %v4276 = vsel %vm4266, %v4273, %v4275
        %v4277 = vsel %vm4265, %v4255, %v4258
        %v4278 = vsel %vm4268, %v4264, 1326507024
        %v4279 = vsel %vm4267, %v4261, %v4278
        %v4280 = vsel %vm4266, %v4277, %v4279
        %v4281 = vshll.u32 %v4241, 8
        %v4282 = vmul.u32.u64.compose %v4281, %v4280
        %v4283 = vextract.low.u32 %v4282
        %v4284 = vextract.high.u32 %v4282
        %v4285 = vmul.u32.u64.compose %v4281, %v4276
        %v4286 = vextract.low.u32 %v4285
        %v4287 = vextract.high.u32 %v4285
        %v4288 = vmul.u32 %v4281, %v4272
        %v4289 = vadd.s32 %v4284, %v4286
        %vm4290 = vc.u32 %v4284, %v4286
        %v4291 = vadd.s32 %v4287, 1
        %v4292 = vsel %vm4290, %v4291, %v4287
        %v4293 = vadd.s32 %v4288, %v4292
        %v4294 = vadd.s32 %v4293, 536870912
        %v4295 = vshrl.u32 %v4294, 30
        %v4296 = vshll.u32 %v4295, 30
        %v4297 = vsub.s32 %v4293, %v4296
        %vm4298 = vcmp.lt.s32.totalorder %v4297, 0
        %v4299 = vsub.s32 0, %v4297
        %v4300 = vsel %vm4298, %v4299, %v4297
        %v4301 = vclz %v4300
        %v4302 = vsub.s32 %v4301, 2
        %vm4303 = vcmp.gt.s32.totalorder 0, %v4302
        %v4304 = vsel %vm4303, 0, %v4302
        %v4305 = vsub.s32 32, %v4304
        %v4306 = vshll.u32 %v4297, %v4304
        %v4307 = vshrl.u32 %v4289, %v4305
        %v4308 = vor.u32 %v4306, %v4307
        %v4309 = vsub.s32 4294967266, %v4304
        %v4310 = vadd.s32 %v4309, 127
        %v4311 = vshll.u32 %v4310, 23
        %v4312 = vor.u32 4788187, %v4311
        %v4313 = vand.u32 2147483647, %v4312
        %v4315 = vcvt.s32.f32 %v4308
        %v4316 = vmul.f32 %v4315, %v4313
        %v4317 = vxor.u32 %v4316, 2147483648
        %v4318 = vsel %vm4235, %v4317, %v4316
        %v4319 = vsub.s32 4, %v4295
        %v4320 = vsel %vm4235, %v4319, %v4295
        %v4321 = vsel %vm4234, %v578, %v4318
        %v4322 = vsel %vm4234, 0, %v4320
        %v4323 = vcosq.f32.pop %v4321
        %v4324 = vsinq.f32.pop %v4321
        %vm4325 = vweird.f32 %v578
        %v4326 = vand.u32 %v4322, 3
        %vm4327 = vcmp.lt.s32.totalorder %v4326, 2
        %vm4328 = vcmp.eq.s32.totalorder %v4326, 0
        %v4329 = vxor.u32 %v4324, 2147483648
        %v4330 = vsel %vm4328, %v4323, %v4329
        %vm4331 = vcmp.eq.s32.totalorder %v4326, 2
        %v4332 = vxor.u32 %v4323, 2147483648
        %v4333 = vsel %vm4331, %v4332, %v4324
        %v4334 = vsel %vm4327, %v4330, %v4333
        %v4335 = vsel %vm4325, nan, %v4334
        %v4336 = vand.u32 2147483647, %v581
        %vm4337 = vcmp.le.f32.partialorder %v4336, 0.7853982
        %vm4338 = vcmp.lt.s32.totalorder %v581, 0
        %v4339 = vand.u32 %v581, 2139095040
        %v4340 = vshrl.u32 %v4339, 23
        %v4341 = vsub.s32 %v4340, 127
        %v4342 = vand.u32 2147483647, %v581
        %v4343 = vand.u32 %v4342, 8388607
        %v4344 = vor.u32 %v4343, 8388608
        %v4345 = vsub.s32 0, %v4344
        %v4346 = vadd.s32 %v4341, 1
        %vm4347 = vcmp.gt.s32.totalorder %v4346, 0
        %v4348 = vsel %vm4347, %v4346, 0
        %v4349 = vshrl.u32 %v4348, 5
        %v4350 = vand.u32 %v4348, 31
        %v4351 = vsub.s32 32, %v4350
        %v4352 = vshrl.u32 683565275, %v4351
        %v4353 = vshll.u32 683565275, %v4350
        %v4354 = vshrl.u32 2475754826, %v4351
        %v4355 = vor.u32 %v4353, %v4354
        %v4356 = vshll.u32 2475754826, %v4350
        %v4357 = vshrl.u32 2131351028, %v4351
        %v4358 = vor.u32 %v4356, %v4357
        %v4359 = vshll.u32 2131351028, %v4350
        %v4360 = vshrl.u32 2102212464, %v4351
        %v4361 = vor.u32 %v4359, %v4360
        %v4362 = vshll.u32 2102212464, %v4350
        %v4363 = vshrl.u32 920167782, %v4351
        %v4364 = vor.u32 %v4362, %v4363
        %v4365 = vshll.u32 920167782, %v4350
        %v4366 = vshrl.u32 1326507024, %v4351
        %v4367 = vor.u32 %v4365, %v4366
        %vm4368 = vcmp.lt.s32.totalorder %v4349, 1
        %vm4369 = vcmp.lt.s32.totalorder %v4349, 2
        %vm4370 = vcmp.lt.s32.totalorder %v4349, 3
        %vm4371 = vcmp.lt.s32.totalorder %v4349, 4
        %v4372 = vsel %vm4368, %v4352, %v4355
        %v4373 = vsel %vm4371, %v4361, 2102212464
        %v4374 = vsel %vm4370, %v4358, %v4373
        %v4375 = vsel %vm4369, %v4372, %v4374
        %v4376 = vsel %vm4368, %v4355, %v4358
        %v4377 = vsel %vm4371, %v4364, 920167782
        %v4378 = vsel %vm4370, %v4361, %v4377
        %v4379 = vsel %vm4369, %v4376, %v4378
        %v4380 = vsel %vm4368, %v4358, %v4361
        %v4381 = vsel %vm4371, %v4367, 1326507024
        %v4382 = vsel %vm4370, %v4364, %v4381
        %v4383 = vsel %vm4369, %v4380, %v4382
        %v4384 = vshll.u32 %v4344, 8
        %v4385 = vmul.u32.u64.compose %v4384, %v4383
        %v4386 = vextract.low.u32 %v4385
        %v4387 = vextract.high.u32 %v4385
        %v4388 = vmul.u32.u64.compose %v4384, %v4379
        %v4389 = vextract.low.u32 %v4388
        %v4390 = vextract.high.u32 %v4388
        %v4391 = vmul.u32 %v4384, %v4375
        %v4392 = vadd.s32 %v4387, %v4389
        %vm4393 = vc.u32 %v4387, %v4389
        %v4394 = vadd.s32 %v4390, 1
        %v4395 = vsel %vm4393, %v4394, %v4390
        %v4396 = vadd.s32 %v4391, %v4395
        %v4397 = vadd.s32 %v4396, 536870912
        %v4398 = vshrl.u32 %v4397, 30
        %v4399 = vshll.u32 %v4398, 30
        %v4400 = vsub.s32 %v4396, %v4399
        %vm4401 = vcmp.lt.s32.totalorder %v4400, 0
        %v4402 = vsub.s32 0, %v4400
        %v4403 = vsel %vm4401, %v4402, %v4400
        %v4404 = vclz %v4403
        %v4405 = vsub.s32 %v4404, 2
        %vm4406 = vcmp.gt.s32.totalorder 0, %v4405
        %v4407 = vsel %vm4406, 0, %v4405
        %v4408 = vsub.s32 32, %v4407
        %v4409 = vshll.u32 %v4400, %v4407
        %v4410 = vshrl.u32 %v4392, %v4408
        %v4411 = vor.u32 %v4409, %v4410
        %v4412 = vsub.s32 4294967266, %v4407
        %v4413 = vadd.s32 %v4412, 127
        %v4414 = vshll.u32 %v4413, 23
        %v4415 = vor.u32 4788187, %v4414
        %v4416 = vand.u32 2147483647, %v4415
        %v4418 = vcvt.s32.f32 %v4411
        %v4419 = vmul.f32 %v4418, %v4416
        %v4420 = vxor.u32 %v4419, 2147483648
        %v4421 = vsel %vm4338, %v4420, %v4419
        %v4422 = vsub.s32 4, %v4398
        %v4423 = vsel %vm4338, %v4422, %v4398
        %v4424 = vsel %vm4337, %v581, %v4421
        %v4425 = vsel %vm4337, 0, %v4423
        %v4426 = vcosq.f32.pop %v4424
        %v4427 = vsinq.f32.pop %v4424
        %vm4428 = vweird.f32 %v581
        %v4429 = vand.u32 %v4425, 3
        %vm4430 = vcmp.lt.s32.totalorder %v4429, 2
        %vm4431 = vcmp.eq.s32.totalorder %v4429, 0
        %v4432 = vxor.u32 %v4427, 2147483648
        %v4433 = vsel %vm4431, %v4426, %v4432
        %vm4434 = vcmp.eq.s32.totalorder %v4429, 2
        %v4435 = vxor.u32 %v4426, 2147483648
        %v4436 = vsel %vm4434, %v4435, %v4427
        %v4437 = vsel %vm4430, %v4433, %v4436
        %v4438 = vsel %vm4428, nan, %v4437
        %v4439 = vand.u32 2147483647, %v586
        %vm4440 = vcmp.le.f32.partialorder %v4439, 0.7853982
        %vm4441 = vcmp.lt.s32.totalorder %v586, 0
        %v4442 = vand.u32 %v586, 2139095040
        %v4443 = vshrl.u32 %v4442, 23
        %v4444 = vsub.s32 %v4443, 127
        %v4445 = vand.u32 2147483647, %v586
        %v4446 = vand.u32 %v4445, 8388607
        %v4447 = vor.u32 %v4446, 8388608
        %v4448 = vsub.s32 0, %v4447
        %v4449 = vadd.s32 %v4444, 1
        %vm4450 = vcmp.gt.s32.totalorder %v4449, 0
        %v4451 = vsel %vm4450, %v4449, 0
        %v4452 = vshrl.u32 %v4451, 5
        %v4453 = vand.u32 %v4451, 31
        %v4454 = vsub.s32 32, %v4453
        %v4455 = vshrl.u32 683565275, %v4454
        %v4456 = vshll.u32 683565275, %v4453
        %v4457 = vshrl.u32 2475754826, %v4454
        %v4458 = vor.u32 %v4456, %v4457
        %v4459 = vshll.u32 2475754826, %v4453
        %v4460 = vshrl.u32 2131351028, %v4454
        %v4461 = vor.u32 %v4459, %v4460
        %v4462 = vshll.u32 2131351028, %v4453
        %v4463 = vshrl.u32 2102212464, %v4454
        %v4464 = vor.u32 %v4462, %v4463
        %v4465 = vshll.u32 2102212464, %v4453
        %v4466 = vshrl.u32 920167782, %v4454
        %v4467 = vor.u32 %v4465, %v4466
        %v4468 = vshll.u32 920167782, %v4453
        %v4469 = vshrl.u32 1326507024, %v4454
        %v4470 = vor.u32 %v4468, %v4469
        %vm4471 = vcmp.lt.s32.totalorder %v4452, 1
        %vm4472 = vcmp.lt.s32.totalorder %v4452, 2
        %vm4473 = vcmp.lt.s32.totalorder %v4452, 3
        %vm4474 = vcmp.lt.s32.totalorder %v4452, 4
        %v4475 = vsel %vm4471, %v4455, %v4458
        %v4476 = vsel %vm4474, %v4464, 2102212464
        %v4477 = vsel %vm4473, %v4461, %v4476
        %v4478 = vsel %vm4472, %v4475, %v4477
        %v4479 = vsel %vm4471, %v4458, %v4461
        %v4480 = vsel %vm4474, %v4467, 920167782
        %v4481 = vsel %vm4473, %v4464, %v4480
        %v4482 = vsel %vm4472, %v4479, %v4481
        %v4483 = vsel %vm4471, %v4461, %v4464
        %v4484 = vsel %vm4474, %v4470, 1326507024
        %v4485 = vsel %vm4473, %v4467, %v4484
        %v4486 = vsel %vm4472, %v4483, %v4485
        %v4487 = vshll.u32 %v4447, 8
        %v4488 = vmul.u32.u64.compose %v4487, %v4486
        %v4489 = vextract.low.u32 %v4488
        %v4490 = vextract.high.u32 %v4488
        %v4491 = vmul.u32.u64.compose %v4487, %v4482
        %v4492 = vextract.low.u32 %v4491
        %v4493 = vextract.high.u32 %v4491
        %v4494 = vmul.u32 %v4487, %v4478
        %v4495 = vadd.s32 %v4490, %v4492
        %vm4496 = vc.u32 %v4490, %v4492
        %v4497 = vadd.s32 %v4493, 1
        %v4498 = vsel %vm4496, %v4497, %v4493
        %v4499 = vadd.s32 %v4494, %v4498
        %v4500 = vadd.s32 %v4499, 536870912
        %v4501 = vshrl.u32 %v4500, 30
        %v4502 = vshll.u32 %v4501, 30
        %v4503 = vsub.s32 %v4499, %v4502
        %vm4504 = vcmp.lt.s32.totalorder %v4503, 0
        %v4505 = vsub.s32 0, %v4503
        %v4506 = vsel %vm4504, %v4505, %v4503
        %v4507 = vclz %v4506
        %v4508 = vsub.s32 %v4507, 2
        %vm4509 = vcmp.gt.s32.totalorder 0, %v4508
        %v4510 = vsel %vm4509, 0, %v4508
        %v4511 = vsub.s32 32, %v4510
        %v4512 = vshll.u32 %v4503, %v4510
        %v4513 = vshrl.u32 %v4495, %v4511
        %v4514 = vor.u32 %v4512, %v4513
        %v4515 = vsub.s32 4294967266, %v4510
        %v4516 = vadd.s32 %v4515, 127
        %v4517 = vshll.u32 %v4516, 23
        %v4518 = vor.u32 4788187, %v4517
        %v4519 = vand.u32 2147483647, %v4518
        %v4521 = vcvt.s32.f32 %v4514
        %v4522 = vmul.f32 %v4521, %v4519
        %v4523 = vxor.u32 %v4522, 2147483648
        %v4524 = vsel %vm4441, %v4523, %v4522
        %v4525 = vsub.s32 4, %v4501
        %v4526 = vsel %vm4441, %v4525, %v4501
        %v4527 = vsel %vm4440, %v586, %v4524
        %v4528 = vsel %vm4440, 0, %v4526
        %v4529 = vcosq.f32.pop %v4527
        %v4530 = vsinq.f32.pop %v4527
        %vm4531 = vweird.f32 %v586
        %v4532 = vand.u32 %v4528, 3
        %vm4533 = vcmp.lt.s32.totalorder %v4532, 2
        %vm4534 = vcmp.eq.s32.totalorder %v4532, 0
        %v4535 = vxor.u32 %v4530, 2147483648
        %v4536 = vsel %vm4534, %v4529, %v4535
        %vm4537 = vcmp.eq.s32.totalorder %v4532, 2
        %v4538 = vxor.u32 %v4529, 2147483648
        %v4539 = vsel %vm4537, %v4538, %v4530
        %v4540 = vsel %vm4533, %v4536, %v4539
        %v4541 = vsel %vm4531, nan, %v4540
        %v4542 = vand.u32 2147483647, %v589
        %vm4543 = vcmp.le.f32.partialorder %v4542, 0.7853982
        %vm4544 = vcmp.lt.s32.totalorder %v589, 0
        %v4545 = vand.u32 %v589, 2139095040
        %v4546 = vshrl.u32 %v4545, 23
        %v4547 = vsub.s32 %v4546, 127
        %v4548 = vand.u32 2147483647, %v589
        %v4549 = vand.u32 %v4548, 8388607
        %v4550 = vor.u32 %v4549, 8388608
        %v4551 = vsub.s32 0, %v4550
        %v4552 = vadd.s32 %v4547, 1
        %vm4553 = vcmp.gt.s32.totalorder %v4552, 0
        %v4554 = vsel %vm4553, %v4552, 0
        %v4555 = vshrl.u32 %v4554, 5
        %v4556 = vand.u32 %v4554, 31
        %v4557 = vsub.s32 32, %v4556
        %v4558 = vshrl.u32 683565275, %v4557
        %v4559 = vshll.u32 683565275, %v4556
        %v4560 = vshrl.u32 2475754826, %v4557
        %v4561 = vor.u32 %v4559, %v4560
        %v4562 = vshll.u32 2475754826, %v4556
        %v4563 = vshrl.u32 2131351028, %v4557
        %v4564 = vor.u32 %v4562, %v4563
        %v4565 = vshll.u32 2131351028, %v4556
        %v4566 = vshrl.u32 2102212464, %v4557
        %v4567 = vor.u32 %v4565, %v4566
        %v4568 = vshll.u32 2102212464, %v4556
        %v4569 = vshrl.u32 920167782, %v4557
        %v4570 = vor.u32 %v4568, %v4569
        %v4571 = vshll.u32 920167782, %v4556
        %v4572 = vshrl.u32 1326507024, %v4557
        %v4573 = vor.u32 %v4571, %v4572
        %vm4574 = vcmp.lt.s32.totalorder %v4555, 1
        %vm4575 = vcmp.lt.s32.totalorder %v4555, 2
        %vm4576 = vcmp.lt.s32.totalorder %v4555, 3
        %vm4577 = vcmp.lt.s32.totalorder %v4555, 4
        %v4578 = vsel %vm4574, %v4558, %v4561
        %v4579 = vsel %vm4577, %v4567, 2102212464
        %v4580 = vsel %vm4576, %v4564, %v4579
        %v4581 = vsel %vm4575, %v4578, %v4580
        %v4582 = vsel %vm4574, %v4561, %v4564
        %v4583 = vsel %vm4577, %v4570, 920167782
        %v4584 = vsel %vm4576, %v4567, %v4583
        %v4585 = vsel %vm4575, %v4582, %v4584
        %v4586 = vsel %vm4574, %v4564, %v4567
        %v4587 = vsel %vm4577, %v4573, 1326507024
        %v4588 = vsel %vm4576, %v4570, %v4587
        %v4589 = vsel %vm4575, %v4586, %v4588
        %v4590 = vshll.u32 %v4550, 8
        %v4591 = vmul.u32.u64.compose %v4590, %v4589
        %v4592 = vextract.low.u32 %v4591
        %v4593 = vextract.high.u32 %v4591
        %v4594 = vmul.u32.u64.compose %v4590, %v4585
        %v4595 = vextract.low.u32 %v4594
        %v4596 = vextract.high.u32 %v4594
        %v4597 = vmul.u32 %v4590, %v4581
        %v4598 = vadd.s32 %v4593, %v4595
        %vm4599 = vc.u32 %v4593, %v4595
        %v4600 = vadd.s32 %v4596, 1
        %v4601 = vsel %vm4599, %v4600, %v4596
        %v4602 = vadd.s32 %v4597, %v4601
        %v4603 = vadd.s32 %v4602, 536870912
        %v4604 = vshrl.u32 %v4603, 30
        %v4605 = vshll.u32 %v4604, 30
        %v4606 = vsub.s32 %v4602, %v4605
        %vm4607 = vcmp.lt.s32.totalorder %v4606, 0
        %v4608 = vsub.s32 0, %v4606
        %v4609 = vsel %vm4607, %v4608, %v4606
        %v4610 = vclz %v4609
        %v4611 = vsub.s32 %v4610, 2
        %vm4612 = vcmp.gt.s32.totalorder 0, %v4611
        %v4613 = vsel %vm4612, 0, %v4611
        %v4614 = vsub.s32 32, %v4613
        %v4615 = vshll.u32 %v4606, %v4613
        %v4616 = vshrl.u32 %v4598, %v4614
        %v4617 = vor.u32 %v4615, %v4616
        %v4618 = vsub.s32 4294967266, %v4613
        %v4619 = vadd.s32 %v4618, 127
        %v4620 = vshll.u32 %v4619, 23
        %v4621 = vor.u32 4788187, %v4620
        %v4622 = vand.u32 2147483647, %v4621
        %v4624 = vcvt.s32.f32 %v4617
        %v4625 = vmul.f32 %v4624, %v4622
        %v4626 = vxor.u32 %v4625, 2147483648
        %v4627 = vsel %vm4544, %v4626, %v4625
        %v4628 = vsub.s32 4, %v4604
        %v4629 = vsel %vm4544, %v4628, %v4604
        %v4630 = vsel %vm4543, %v589, %v4627
        %v4631 = vsel %vm4543, 0, %v4629
        %v4632 = vcosq.f32.pop %v4630
        %v4633 = vsinq.f32.pop %v4630
        %vm4634 = vweird.f32 %v589
        %v4635 = vand.u32 %v4631, 3
        %vm4636 = vcmp.lt.s32.totalorder %v4635, 2
        %vm4637 = vcmp.eq.s32.totalorder %v4635, 0
        %v4638 = vxor.u32 %v4633, 2147483648
        %v4639 = vsel %vm4637, %v4632, %v4638
        %vm4640 = vcmp.eq.s32.totalorder %v4635, 2
        %v4641 = vxor.u32 %v4632, 2147483648
        %v4642 = vsel %vm4640, %v4641, %v4633
        %v4643 = vsel %vm4636, %v4639, %v4642
        %v4644 = vsel %vm4634, nan, %v4643
        %v4645 = vand.u32 2147483647, %v594
        %vm4646 = vcmp.le.f32.partialorder %v4645, 0.7853982
        %vm4647 = vcmp.lt.s32.totalorder %v594, 0
        %v4648 = vand.u32 %v594, 2139095040
        %v4649 = vshrl.u32 %v4648, 23
        %v4650 = vsub.s32 %v4649, 127
        %v4651 = vand.u32 2147483647, %v594
        %v4652 = vand.u32 %v4651, 8388607
        %v4653 = vor.u32 %v4652, 8388608
        %v4654 = vsub.s32 0, %v4653
        %v4655 = vadd.s32 %v4650, 1
        %vm4656 = vcmp.gt.s32.totalorder %v4655, 0
        %v4657 = vsel %vm4656, %v4655, 0
        %v4658 = vshrl.u32 %v4657, 5
        %v4659 = vand.u32 %v4657, 31
        %v4660 = vsub.s32 32, %v4659
        %v4661 = vshrl.u32 683565275, %v4660
        %v4662 = vshll.u32 683565275, %v4659
        %v4663 = vshrl.u32 2475754826, %v4660
        %v4664 = vor.u32 %v4662, %v4663
        %v4665 = vshll.u32 2475754826, %v4659
        %v4666 = vshrl.u32 2131351028, %v4660
        %v4667 = vor.u32 %v4665, %v4666
        %v4668 = vshll.u32 2131351028, %v4659
        %v4669 = vshrl.u32 2102212464, %v4660
        %v4670 = vor.u32 %v4668, %v4669
        %v4671 = vshll.u32 2102212464, %v4659
        %v4672 = vshrl.u32 920167782, %v4660
        %v4673 = vor.u32 %v4671, %v4672
        %v4674 = vshll.u32 920167782, %v4659
        %v4675 = vshrl.u32 1326507024, %v4660
        %v4676 = vor.u32 %v4674, %v4675
        %vm4677 = vcmp.lt.s32.totalorder %v4658, 1
        %vm4678 = vcmp.lt.s32.totalorder %v4658, 2
        %vm4679 = vcmp.lt.s32.totalorder %v4658, 3
        %vm4680 = vcmp.lt.s32.totalorder %v4658, 4
        %v4681 = vsel %vm4677, %v4661, %v4664
        %v4682 = vsel %vm4680, %v4670, 2102212464
        %v4683 = vsel %vm4679, %v4667, %v4682
        %v4684 = vsel %vm4678, %v4681, %v4683
        %v4685 = vsel %vm4677, %v4664, %v4667
        %v4686 = vsel %vm4680, %v4673, 920167782
        %v4687 = vsel %vm4679, %v4670, %v4686
        %v4688 = vsel %vm4678, %v4685, %v4687
        %v4689 = vsel %vm4677, %v4667, %v4670
        %v4690 = vsel %vm4680, %v4676, 1326507024
        %v4691 = vsel %vm4679, %v4673, %v4690
        %v4692 = vsel %vm4678, %v4689, %v4691
        %v4693 = vshll.u32 %v4653, 8
        %v4694 = vmul.u32.u64.compose %v4693, %v4692
        %v4695 = vextract.low.u32 %v4694
        %v4696 = vextract.high.u32 %v4694
        %v4697 = vmul.u32.u64.compose %v4693, %v4688
        %v4698 = vextract.low.u32 %v4697
        %v4699 = vextract.high.u32 %v4697
        %v4700 = vmul.u32 %v4693, %v4684
        %v4701 = vadd.s32 %v4696, %v4698
        %vm4702 = vc.u32 %v4696, %v4698
        %v4703 = vadd.s32 %v4699, 1
        %v4704 = vsel %vm4702, %v4703, %v4699
        %v4705 = vadd.s32 %v4700, %v4704
        %v4706 = vadd.s32 %v4705, 536870912
        %v4707 = vshrl.u32 %v4706, 30
        %v4708 = vshll.u32 %v4707, 30
        %v4709 = vsub.s32 %v4705, %v4708
        %vm4710 = vcmp.lt.s32.totalorder %v4709, 0
        %v4711 = vsub.s32 0, %v4709
        %v4712 = vsel %vm4710, %v4711, %v4709
        %v4713 = vclz %v4712
        %v4714 = vsub.s32 %v4713, 2
        %vm4715 = vcmp.gt.s32.totalorder 0, %v4714
        %v4716 = vsel %vm4715, 0, %v4714
        %v4717 = vsub.s32 32, %v4716
        %v4718 = vshll.u32 %v4709, %v4716
        %v4719 = vshrl.u32 %v4701, %v4717
        %v4720 = vor.u32 %v4718, %v4719
        %v4721 = vsub.s32 4294967266, %v4716
        %v4722 = vadd.s32 %v4721, 127
        %v4723 = vshll.u32 %v4722, 23
        %v4724 = vor.u32 4788187, %v4723
        %v4725 = vand.u32 2147483647, %v4724
        %v4727 = vcvt.s32.f32 %v4720
        %v4728 = vmul.f32 %v4727, %v4725
        %v4729 = vxor.u32 %v4728, 2147483648
        %v4730 = vsel %vm4647, %v4729, %v4728
        %v4731 = vsub.s32 4, %v4707
        %v4732 = vsel %vm4647, %v4731, %v4707
        %v4733 = vsel %vm4646, %v594, %v4730
        %v4734 = vsel %vm4646, 0, %v4732
        %v4735 = vcosq.f32.pop %v4733
        %v4736 = vsinq.f32.pop %v4733
        %vm4737 = vweird.f32 %v594
        %v4738 = vand.u32 %v4734, 3
        %vm4739 = vcmp.lt.s32.totalorder %v4738, 2
        %vm4740 = vcmp.eq.s32.totalorder %v4738, 0
        %v4741 = vxor.u32 %v4736, 2147483648
        %v4742 = vsel %vm4740, %v4735, %v4741
        %vm4743 = vcmp.eq.s32.totalorder %v4738, 2
        %v4744 = vxor.u32 %v4735, 2147483648
        %v4745 = vsel %vm4743, %v4744, %v4736
        %v4746 = vsel %vm4739, %v4742, %v4745
        %v4747 = vsel %vm4737, nan, %v4746
        %v4748 = vand.u32 2147483647, %v597
        %vm4749 = vcmp.le.f32.partialorder %v4748, 0.7853982
        %vm4750 = vcmp.lt.s32.totalorder %v597, 0
        %v4751 = vand.u32 %v597, 2139095040
        %v4752 = vshrl.u32 %v4751, 23
        %v4753 = vsub.s32 %v4752, 127
        %v4754 = vand.u32 2147483647, %v597
        %v4755 = vand.u32 %v4754, 8388607
        %v4756 = vor.u32 %v4755, 8388608
        %v4757 = vsub.s32 0, %v4756
        %v4758 = vadd.s32 %v4753, 1
        %vm4759 = vcmp.gt.s32.totalorder %v4758, 0
        %v4760 = vsel %vm4759, %v4758, 0
        %v4761 = vshrl.u32 %v4760, 5
        %v4762 = vand.u32 %v4760, 31
        %v4763 = vsub.s32 32, %v4762
        %v4764 = vshrl.u32 683565275, %v4763
        %v4765 = vshll.u32 683565275, %v4762
        %v4766 = vshrl.u32 2475754826, %v4763
        %v4767 = vor.u32 %v4765, %v4766
        %v4768 = vshll.u32 2475754826, %v4762
        %v4769 = vshrl.u32 2131351028, %v4763
        %v4770 = vor.u32 %v4768, %v4769
        %v4771 = vshll.u32 2131351028, %v4762
        %v4772 = vshrl.u32 2102212464, %v4763
        %v4773 = vor.u32 %v4771, %v4772
        %v4774 = vshll.u32 2102212464, %v4762
        %v4775 = vshrl.u32 920167782, %v4763
        %v4776 = vor.u32 %v4774, %v4775
        %v4777 = vshll.u32 920167782, %v4762
        %v4778 = vshrl.u32 1326507024, %v4763
        %v4779 = vor.u32 %v4777, %v4778
        %vm4780 = vcmp.lt.s32.totalorder %v4761, 1
        %vm4781 = vcmp.lt.s32.totalorder %v4761, 2
        %vm4782 = vcmp.lt.s32.totalorder %v4761, 3
        %vm4783 = vcmp.lt.s32.totalorder %v4761, 4
        %v4784 = vsel %vm4780, %v4764, %v4767
        %v4785 = vsel %vm4783, %v4773, 2102212464
        %v4786 = vsel %vm4782, %v4770, %v4785
        %v4787 = vsel %vm4781, %v4784, %v4786
        %v4788 = vsel %vm4780, %v4767, %v4770
        %v4789 = vsel %vm4783, %v4776, 920167782
        %v4790 = vsel %vm4782, %v4773, %v4789
        %v4791 = vsel %vm4781, %v4788, %v4790
        %v4792 = vsel %vm4780, %v4770, %v4773
        %v4793 = vsel %vm4783, %v4779, 1326507024
        %v4794 = vsel %vm4782, %v4776, %v4793
        %v4795 = vsel %vm4781, %v4792, %v4794
        %v4796 = vshll.u32 %v4756, 8
        %v4797 = vmul.u32.u64.compose %v4796, %v4795
        %v4798 = vextract.low.u32 %v4797
        %v4799 = vextract.high.u32 %v4797
        %v4800 = vmul.u32.u64.compose %v4796, %v4791
        %v4801 = vextract.low.u32 %v4800
        %v4802 = vextract.high.u32 %v4800
        %v4803 = vmul.u32 %v4796, %v4787
        %v4804 = vadd.s32 %v4799, %v4801
        %vm4805 = vc.u32 %v4799, %v4801
        %v4806 = vadd.s32 %v4802, 1
        %v4807 = vsel %vm4805, %v4806, %v4802
        %v4808 = vadd.s32 %v4803, %v4807
        %v4809 = vadd.s32 %v4808, 536870912
        %v4810 = vshrl.u32 %v4809, 30
        %v4811 = vshll.u32 %v4810, 30
        %v4812 = vsub.s32 %v4808, %v4811
        %vm4813 = vcmp.lt.s32.totalorder %v4812, 0
        %v4814 = vsub.s32 0, %v4812
        %v4815 = vsel %vm4813, %v4814, %v4812
        %v4816 = vclz %v4815
        %v4817 = vsub.s32 %v4816, 2
        %vm4818 = vcmp.gt.s32.totalorder 0, %v4817
        %v4819 = vsel %vm4818, 0, %v4817
        %v4820 = vsub.s32 32, %v4819
        %v4821 = vshll.u32 %v4812, %v4819
        %v4822 = vshrl.u32 %v4804, %v4820
        %v4823 = vor.u32 %v4821, %v4822
        %v4824 = vsub.s32 4294967266, %v4819
        %v4825 = vadd.s32 %v4824, 127
        %v4826 = vshll.u32 %v4825, 23
        %v4827 = vor.u32 4788187, %v4826
        %v4828 = vand.u32 2147483647, %v4827
        %v4830 = vcvt.s32.f32 %v4823
        %v4831 = vmul.f32 %v4830, %v4828
        %v4832 = vxor.u32 %v4831, 2147483648
        %v4833 = vsel %vm4750, %v4832, %v4831
        %v4834 = vsub.s32 4, %v4810
        %v4835 = vsel %vm4750, %v4834, %v4810
        %v4836 = vsel %vm4749, %v597, %v4833
        %v4837 = vsel %vm4749, 0, %v4835
        %v4838 = vcosq.f32.pop %v4836
        %v4839 = vsinq.f32.pop %v4836
        %vm4840 = vweird.f32 %v597
        %v4841 = vand.u32 %v4837, 3
        %vm4842 = vcmp.lt.s32.totalorder %v4841, 2
        %vm4843 = vcmp.eq.s32.totalorder %v4841, 0
        %v4844 = vxor.u32 %v4839, 2147483648
        %v4845 = vsel %vm4843, %v4838, %v4844
        %vm4846 = vcmp.eq.s32.totalorder %v4841, 2
        %v4847 = vxor.u32 %v4838, 2147483648
        %v4848 = vsel %vm4846, %v4847, %v4839
        %v4849 = vsel %vm4842, %v4845, %v4848
        %v4850 = vsel %vm4840, nan, %v4849
        %v4851 = vand.u32 2147483647, %v602
        %vm4852 = vcmp.le.f32.partialorder %v4851, 0.7853982
        %vm4853 = vcmp.lt.s32.totalorder %v602, 0
        %v4854 = vand.u32 %v602, 2139095040
        %v4855 = vshrl.u32 %v4854, 23
        %v4856 = vsub.s32 %v4855, 127
        %v4857 = vand.u32 2147483647, %v602
        %v4858 = vand.u32 %v4857, 8388607
        %v4859 = vor.u32 %v4858, 8388608
        %v4860 = vsub.s32 0, %v4859
        %v4861 = vadd.s32 %v4856, 1
        %vm4862 = vcmp.gt.s32.totalorder %v4861, 0
        %v4863 = vsel %vm4862, %v4861, 0
        %v4864 = vshrl.u32 %v4863, 5
        %v4865 = vand.u32 %v4863, 31
        %v4866 = vsub.s32 32, %v4865
        %v4867 = vshrl.u32 683565275, %v4866
        %v4868 = vshll.u32 683565275, %v4865
        %v4869 = vshrl.u32 2475754826, %v4866
        %v4870 = vor.u32 %v4868, %v4869
        %v4871 = vshll.u32 2475754826, %v4865
        %v4872 = vshrl.u32 2131351028, %v4866
        %v4873 = vor.u32 %v4871, %v4872
        %v4874 = vshll.u32 2131351028, %v4865
        %v4875 = vshrl.u32 2102212464, %v4866
        %v4876 = vor.u32 %v4874, %v4875
        %v4877 = vshll.u32 2102212464, %v4865
        %v4878 = vshrl.u32 920167782, %v4866
        %v4879 = vor.u32 %v4877, %v4878
        %v4880 = vshll.u32 920167782, %v4865
        %v4881 = vshrl.u32 1326507024, %v4866
        %v4882 = vor.u32 %v4880, %v4881
        %vm4883 = vcmp.lt.s32.totalorder %v4864, 1
        %vm4884 = vcmp.lt.s32.totalorder %v4864, 2
        %vm4885 = vcmp.lt.s32.totalorder %v4864, 3
        %vm4886 = vcmp.lt.s32.totalorder %v4864, 4
        %v4887 = vsel %vm4883, %v4867, %v4870
        %v4888 = vsel %vm4886, %v4876, 2102212464
        %v4889 = vsel %vm4885, %v4873, %v4888
        %v4890 = vsel %vm4884, %v4887, %v4889
        %v4891 = vsel %vm4883, %v4870, %v4873
        %v4892 = vsel %vm4886, %v4879, 920167782
        %v4893 = vsel %vm4885, %v4876, %v4892
        %v4894 = vsel %vm4884, %v4891, %v4893
        %v4895 = vsel %vm4883, %v4873, %v4876
        %v4896 = vsel %vm4886, %v4882, 1326507024
        %v4897 = vsel %vm4885, %v4879, %v4896
        %v4898 = vsel %vm4884, %v4895, %v4897
        %v4899 = vshll.u32 %v4859, 8
        %v4900 = vmul.u32.u64.compose %v4899, %v4898
        %v4901 = vextract.low.u32 %v4900
        %v4902 = vextract.high.u32 %v4900
        %v4903 = vmul.u32.u64.compose %v4899, %v4894
        %v4904 = vextract.low.u32 %v4903
        %v4905 = vextract.high.u32 %v4903
        %v4906 = vmul.u32 %v4899, %v4890
        %v4907 = vadd.s32 %v4902, %v4904
        %vm4908 = vc.u32 %v4902, %v4904
        %v4909 = vadd.s32 %v4905, 1
        %v4910 = vsel %vm4908, %v4909, %v4905
        %v4911 = vadd.s32 %v4906, %v4910
        %v4912 = vadd.s32 %v4911, 536870912
        %v4913 = vshrl.u32 %v4912, 30
        %v4914 = vshll.u32 %v4913, 30
        %v4915 = vsub.s32 %v4911, %v4914
        %vm4916 = vcmp.lt.s32.totalorder %v4915, 0
        %v4917 = vsub.s32 0, %v4915
        %v4918 = vsel %vm4916, %v4917, %v4915
        %v4919 = vclz %v4918
        %v4920 = vsub.s32 %v4919, 2
        %vm4921 = vcmp.gt.s32.totalorder 0, %v4920
        %v4922 = vsel %vm4921, 0, %v4920
        %v4923 = vsub.s32 32, %v4922
        %v4924 = vshll.u32 %v4915, %v4922
        %v4925 = vshrl.u32 %v4907, %v4923
        %v4926 = vor.u32 %v4924, %v4925
        %v4927 = vsub.s32 4294967266, %v4922
        %v4928 = vadd.s32 %v4927, 127
        %v4929 = vshll.u32 %v4928, 23
        %v4930 = vor.u32 4788187, %v4929
        %v4931 = vand.u32 2147483647, %v4930
        %v4933 = vcvt.s32.f32 %v4926
        %v4934 = vmul.f32 %v4933, %v4931
        %v4935 = vxor.u32 %v4934, 2147483648
        %v4936 = vsel %vm4853, %v4935, %v4934
        %v4937 = vsub.s32 4, %v4913
        %v4938 = vsel %vm4853, %v4937, %v4913
        %v4939 = vsel %vm4852, %v602, %v4936
        %v4940 = vsel %vm4852, 0, %v4938
        %v4941 = vcosq.f32.pop %v4939
        %v4942 = vsinq.f32.pop %v4939
        %vm4943 = vweird.f32 %v602
        %v4944 = vand.u32 %v4940, 3
        %vm4945 = vcmp.lt.s32.totalorder %v4944, 2
        %vm4946 = vcmp.eq.s32.totalorder %v4944, 0
        %v4947 = vxor.u32 %v4942, 2147483648
        %v4948 = vsel %vm4946, %v4941, %v4947
        %vm4949 = vcmp.eq.s32.totalorder %v4944, 2
        %v4950 = vxor.u32 %v4941, 2147483648
        %v4951 = vsel %vm4949, %v4950, %v4942
        %v4952 = vsel %vm4945, %v4948, %v4951
        %v4953 = vsel %vm4943, nan, %v4952
        %v4954 = vand.u32 2147483647, %v605
        %vm4955 = vcmp.le.f32.partialorder %v4954, 0.7853982
        %vm4956 = vcmp.lt.s32.totalorder %v605, 0
        %v4957 = vand.u32 %v605, 2139095040
        %v4958 = vshrl.u32 %v4957, 23
        %v4959 = vsub.s32 %v4958, 127
        %v4960 = vand.u32 2147483647, %v605
        %v4961 = vand.u32 %v4960, 8388607
        %v4962 = vor.u32 %v4961, 8388608
        %v4963 = vsub.s32 0, %v4962
        %v4964 = vadd.s32 %v4959, 1
        %vm4965 = vcmp.gt.s32.totalorder %v4964, 0
        %v4966 = vsel %vm4965, %v4964, 0
        %v4967 = vshrl.u32 %v4966, 5
        %v4968 = vand.u32 %v4966, 31
        %v4969 = vsub.s32 32, %v4968
        %v4970 = vshrl.u32 683565275, %v4969
        %v4971 = vshll.u32 683565275, %v4968
        %v4972 = vshrl.u32 2475754826, %v4969
        %v4973 = vor.u32 %v4971, %v4972
        %v4974 = vshll.u32 2475754826, %v4968
        %v4975 = vshrl.u32 2131351028, %v4969
        %v4976 = vor.u32 %v4974, %v4975
        %v4977 = vshll.u32 2131351028, %v4968
        %v4978 = vshrl.u32 2102212464, %v4969
        %v4979 = vor.u32 %v4977, %v4978
        %v4980 = vshll.u32 2102212464, %v4968
        %v4981 = vshrl.u32 920167782, %v4969
        %v4982 = vor.u32 %v4980, %v4981
        %v4983 = vshll.u32 920167782, %v4968
        %v4984 = vshrl.u32 1326507024, %v4969
        %v4985 = vor.u32 %v4983, %v4984
        %vm4986 = vcmp.lt.s32.totalorder %v4967, 1
        %vm4987 = vcmp.lt.s32.totalorder %v4967, 2
        %vm4988 = vcmp.lt.s32.totalorder %v4967, 3
        %vm4989 = vcmp.lt.s32.totalorder %v4967, 4
        %v4990 = vsel %vm4986, %v4970, %v4973
        %v4991 = vsel %vm4989, %v4979, 2102212464
        %v4992 = vsel %vm4988, %v4976, %v4991
        %v4993 = vsel %vm4987, %v4990, %v4992
        %v4994 = vsel %vm4986, %v4973, %v4976
        %v4995 = vsel %vm4989, %v4982, 920167782
        %v4996 = vsel %vm4988, %v4979, %v4995
        %v4997 = vsel %vm4987, %v4994, %v4996
        %v4998 = vsel %vm4986, %v4976, %v4979
        %v4999 = vsel %vm4989, %v4985, 1326507024
        %v5000 = vsel %vm4988, %v4982, %v4999
        %v5001 = vsel %vm4987, %v4998, %v5000
        %v5002 = vshll.u32 %v4962, 8
        %v5003 = vmul.u32.u64.compose %v5002, %v5001
        %v5004 = vextract.low.u32 %v5003
        %v5005 = vextract.high.u32 %v5003
        %v5006 = vmul.u32.u64.compose %v5002, %v4997
        %v5007 = vextract.low.u32 %v5006
        %v5008 = vextract.high.u32 %v5006
        %v5009 = vmul.u32 %v5002, %v4993
        %v5010 = vadd.s32 %v5005, %v5007
        %vm5011 = vc.u32 %v5005, %v5007
        %v5012 = vadd.s32 %v5008, 1
        %v5013 = vsel %vm5011, %v5012, %v5008
        %v5014 = vadd.s32 %v5009, %v5013
        %v5015 = vadd.s32 %v5014, 536870912
        %v5016 = vshrl.u32 %v5015, 30
        %v5017 = vshll.u32 %v5016, 30
        %v5018 = vsub.s32 %v5014, %v5017
        %vm5019 = vcmp.lt.s32.totalorder %v5018, 0
        %v5020 = vsub.s32 0, %v5018
        %v5021 = vsel %vm5019, %v5020, %v5018
        %v5022 = vclz %v5021
        %v5023 = vsub.s32 %v5022, 2
        %vm5024 = vcmp.gt.s32.totalorder 0, %v5023
        %v5025 = vsel %vm5024, 0, %v5023
        %v5026 = vsub.s32 32, %v5025
        %v5027 = vshll.u32 %v5018, %v5025
        %v5028 = vshrl.u32 %v5010, %v5026
        %v5029 = vor.u32 %v5027, %v5028
        %v5030 = vsub.s32 4294967266, %v5025
        %v5031 = vadd.s32 %v5030, 127
        %v5032 = vshll.u32 %v5031, 23
        %v5033 = vor.u32 4788187, %v5032
        %v5034 = vand.u32 2147483647, %v5033
        %v5036 = vcvt.s32.f32 %v5029
        %v5037 = vmul.f32 %v5036, %v5034
        %v5038 = vxor.u32 %v5037, 2147483648
        %v5039 = vsel %vm4956, %v5038, %v5037
        %v5040 = vsub.s32 4, %v5016
        %v5041 = vsel %vm4956, %v5040, %v5016
        %v5042 = vsel %vm4955, %v605, %v5039
        %v5043 = vsel %vm4955, 0, %v5041
        %v5044 = vcosq.f32.pop %v5042
        %v5045 = vsinq.f32.pop %v5042
        %vm5046 = vweird.f32 %v605
        %v5047 = vand.u32 %v5043, 3
        %vm5048 = vcmp.lt.s32.totalorder %v5047, 2
        %vm5049 = vcmp.eq.s32.totalorder %v5047, 0
        %v5050 = vxor.u32 %v5045, 2147483648
        %v5051 = vsel %vm5049, %v5044, %v5050
        %vm5052 = vcmp.eq.s32.totalorder %v5047, 2
        %v5053 = vxor.u32 %v5044, 2147483648
        %v5054 = vsel %vm5052, %v5053, %v5045
        %v5055 = vsel %vm5048, %v5051, %v5054
        %v5056 = vsel %vm5046, nan, %v5055
        %v5057 = vand.u32 2147483647, %v610
        %vm5058 = vcmp.le.f32.partialorder %v5057, 0.7853982
        %vm5059 = vcmp.lt.s32.totalorder %v610, 0
        %v5060 = vand.u32 %v610, 2139095040
        %v5061 = vshrl.u32 %v5060, 23
        %v5062 = vsub.s32 %v5061, 127
        %v5063 = vand.u32 2147483647, %v610
        %v5064 = vand.u32 %v5063, 8388607
        %v5065 = vor.u32 %v5064, 8388608
        %v5066 = vsub.s32 0, %v5065
        %v5067 = vadd.s32 %v5062, 1
        %vm5068 = vcmp.gt.s32.totalorder %v5067, 0
        %v5069 = vsel %vm5068, %v5067, 0
        %v5070 = vshrl.u32 %v5069, 5
        %v5071 = vand.u32 %v5069, 31
        %v5072 = vsub.s32 32, %v5071
        %v5073 = vshrl.u32 683565275, %v5072
        %v5074 = vshll.u32 683565275, %v5071
        %v5075 = vshrl.u32 2475754826, %v5072
        %v5076 = vor.u32 %v5074, %v5075
        %v5077 = vshll.u32 2475754826, %v5071
        %v5078 = vshrl.u32 2131351028, %v5072
        %v5079 = vor.u32 %v5077, %v5078
        %v5080 = vshll.u32 2131351028, %v5071
        %v5081 = vshrl.u32 2102212464, %v5072
        %v5082 = vor.u32 %v5080, %v5081
        %v5083 = vshll.u32 2102212464, %v5071
        %v5084 = vshrl.u32 920167782, %v5072
        %v5085 = vor.u32 %v5083, %v5084
        %v5086 = vshll.u32 920167782, %v5071
        %v5087 = vshrl.u32 1326507024, %v5072
        %v5088 = vor.u32 %v5086, %v5087
        %vm5089 = vcmp.lt.s32.totalorder %v5070, 1
        %vm5090 = vcmp.lt.s32.totalorder %v5070, 2
        %vm5091 = vcmp.lt.s32.totalorder %v5070, 3
        %vm5092 = vcmp.lt.s32.totalorder %v5070, 4
        %v5093 = vsel %vm5089, %v5073, %v5076
        %v5094 = vsel %vm5092, %v5082, 2102212464
        %v5095 = vsel %vm5091, %v5079, %v5094
        %v5096 = vsel %vm5090, %v5093, %v5095
        %v5097 = vsel %vm5089, %v5076, %v5079
        %v5098 = vsel %vm5092, %v5085, 920167782
        %v5099 = vsel %vm5091, %v5082, %v5098
        %v5100 = vsel %vm5090, %v5097, %v5099
        %v5101 = vsel %vm5089, %v5079, %v5082
        %v5102 = vsel %vm5092, %v5088, 1326507024
        %v5103 = vsel %vm5091, %v5085, %v5102
        %v5104 = vsel %vm5090, %v5101, %v5103
        %v5105 = vshll.u32 %v5065, 8
        %v5106 = vmul.u32.u64.compose %v5105, %v5104
        %v5107 = vextract.low.u32 %v5106
        %v5108 = vextract.high.u32 %v5106
        %v5109 = vmul.u32.u64.compose %v5105, %v5100
        %v5110 = vextract.low.u32 %v5109
        %v5111 = vextract.high.u32 %v5109
        %v5112 = vmul.u32 %v5105, %v5096
        %v5113 = vadd.s32 %v5108, %v5110
        %vm5114 = vc.u32 %v5108, %v5110
        %v5115 = vadd.s32 %v5111, 1
        %v5116 = vsel %vm5114, %v5115, %v5111
        %v5117 = vadd.s32 %v5112, %v5116
        %v5118 = vadd.s32 %v5117, 536870912
        %v5119 = vshrl.u32 %v5118, 30
        %v5120 = vshll.u32 %v5119, 30
        %v5121 = vsub.s32 %v5117, %v5120
        %vm5122 = vcmp.lt.s32.totalorder %v5121, 0
        %v5123 = vsub.s32 0, %v5121
        %v5124 = vsel %vm5122, %v5123, %v5121
        %v5125 = vclz %v5124
        %v5126 = vsub.s32 %v5125, 2
        %vm5127 = vcmp.gt.s32.totalorder 0, %v5126
        %v5128 = vsel %vm5127, 0, %v5126
        %v5129 = vsub.s32 32, %v5128
        %v5130 = vshll.u32 %v5121, %v5128
        %v5131 = vshrl.u32 %v5113, %v5129
        %v5132 = vor.u32 %v5130, %v5131
        %v5133 = vsub.s32 4294967266, %v5128
        %v5134 = vadd.s32 %v5133, 127
        %v5135 = vshll.u32 %v5134, 23
        %v5136 = vor.u32 4788187, %v5135
        %v5137 = vand.u32 2147483647, %v5136
        %v5139 = vcvt.s32.f32 %v5132
        %v5140 = vmul.f32 %v5139, %v5137
        %v5141 = vxor.u32 %v5140, 2147483648
        %v5142 = vsel %vm5059, %v5141, %v5140
        %v5143 = vsub.s32 4, %v5119
        %v5144 = vsel %vm5059, %v5143, %v5119
        %v5145 = vsel %vm5058, %v610, %v5142
        %v5146 = vsel %vm5058, 0, %v5144
        %v5147 = vcosq.f32.pop %v5145
        %v5148 = vsinq.f32.pop %v5145
        %vm5149 = vweird.f32 %v610
        %v5150 = vand.u32 %v5146, 3
        %vm5151 = vcmp.lt.s32.totalorder %v5150, 2
        %vm5152 = vcmp.eq.s32.totalorder %v5150, 0
        %v5153 = vxor.u32 %v5148, 2147483648
        %v5154 = vsel %vm5152, %v5147, %v5153
        %vm5155 = vcmp.eq.s32.totalorder %v5150, 2
        %v5156 = vxor.u32 %v5147, 2147483648
        %v5157 = vsel %vm5155, %v5156, %v5148
        %v5158 = vsel %vm5151, %v5154, %v5157
        %v5159 = vsel %vm5149, nan, %v5158
        %v5160 = vand.u32 2147483647, %v613
        %vm5161 = vcmp.le.f32.partialorder %v5160, 0.7853982
        %vm5162 = vcmp.lt.s32.totalorder %v613, 0
        %v5163 = vand.u32 %v613, 2139095040
        %v5164 = vshrl.u32 %v5163, 23
        %v5165 = vsub.s32 %v5164, 127
        %v5166 = vand.u32 2147483647, %v613
        %v5167 = vand.u32 %v5166, 8388607
        %v5168 = vor.u32 %v5167, 8388608
        %v5169 = vsub.s32 0, %v5168
        %v5170 = vadd.s32 %v5165, 1
        %vm5171 = vcmp.gt.s32.totalorder %v5170, 0
        %v5172 = vsel %vm5171, %v5170, 0
        %v5173 = vshrl.u32 %v5172, 5
        %v5174 = vand.u32 %v5172, 31
        %v5175 = vsub.s32 32, %v5174
        %v5176 = vshrl.u32 683565275, %v5175
        %v5177 = vshll.u32 683565275, %v5174
        %v5178 = vshrl.u32 2475754826, %v5175
        %v5179 = vor.u32 %v5177, %v5178
        %v5180 = vshll.u32 2475754826, %v5174
        %v5181 = vshrl.u32 2131351028, %v5175
        %v5182 = vor.u32 %v5180, %v5181
        %v5183 = vshll.u32 2131351028, %v5174
        %v5184 = vshrl.u32 2102212464, %v5175
        %v5185 = vor.u32 %v5183, %v5184
        %v5186 = vshll.u32 2102212464, %v5174
        %v5187 = vshrl.u32 920167782, %v5175
        %v5188 = vor.u32 %v5186, %v5187
        %v5189 = vshll.u32 920167782, %v5174
        %v5190 = vshrl.u32 1326507024, %v5175
        %v5191 = vor.u32 %v5189, %v5190
        %vm5192 = vcmp.lt.s32.totalorder %v5173, 1
        %vm5193 = vcmp.lt.s32.totalorder %v5173, 2
        %vm5194 = vcmp.lt.s32.totalorder %v5173, 3
        %vm5195 = vcmp.lt.s32.totalorder %v5173, 4
        %v5196 = vsel %vm5192, %v5176, %v5179
        %v5197 = vsel %vm5195, %v5185, 2102212464
        %v5198 = vsel %vm5194, %v5182, %v5197
        %v5199 = vsel %vm5193, %v5196, %v5198
        %v5200 = vsel %vm5192, %v5179, %v5182
        %v5201 = vsel %vm5195, %v5188, 920167782
        %v5202 = vsel %vm5194, %v5185, %v5201
        %v5203 = vsel %vm5193, %v5200, %v5202
        %v5204 = vsel %vm5192, %v5182, %v5185
        %v5205 = vsel %vm5195, %v5191, 1326507024
        %v5206 = vsel %vm5194, %v5188, %v5205
        %v5207 = vsel %vm5193, %v5204, %v5206
        %v5208 = vshll.u32 %v5168, 8
        %v5209 = vmul.u32.u64.compose %v5208, %v5207
        %v5210 = vextract.low.u32 %v5209
        %v5211 = vextract.high.u32 %v5209
        %v5212 = vmul.u32.u64.compose %v5208, %v5203
        %v5213 = vextract.low.u32 %v5212
        %v5214 = vextract.high.u32 %v5212
        %v5215 = vmul.u32 %v5208, %v5199
        %v5216 = vadd.s32 %v5211, %v5213
        %vm5217 = vc.u32 %v5211, %v5213
        %v5218 = vadd.s32 %v5214, 1
        %v5219 = vsel %vm5217, %v5218, %v5214
        %v5220 = vadd.s32 %v5215, %v5219
        %v5221 = vadd.s32 %v5220, 536870912
        %v5222 = vshrl.u32 %v5221, 30
        %v5223 = vshll.u32 %v5222, 30
        %v5224 = vsub.s32 %v5220, %v5223
        %vm5225 = vcmp.lt.s32.totalorder %v5224, 0
        %v5226 = vsub.s32 0, %v5224
        %v5227 = vsel %vm5225, %v5226, %v5224
        %v5228 = vclz %v5227
        %v5229 = vsub.s32 %v5228, 2
        %vm5230 = vcmp.gt.s32.totalorder 0, %v5229
        %v5231 = vsel %vm5230, 0, %v5229
        %v5232 = vsub.s32 32, %v5231
        %v5233 = vshll.u32 %v5224, %v5231
        %v5234 = vshrl.u32 %v5216, %v5232
        %v5235 = vor.u32 %v5233, %v5234
        %v5236 = vsub.s32 4294967266, %v5231
        %v5237 = vadd.s32 %v5236, 127
        %v5238 = vshll.u32 %v5237, 23
        %v5239 = vor.u32 4788187, %v5238
        %v5240 = vand.u32 2147483647, %v5239
        %v5242 = vcvt.s32.f32 %v5235
        %v5243 = vmul.f32 %v5242, %v5240
        %v5244 = vxor.u32 %v5243, 2147483648
        %v5245 = vsel %vm5162, %v5244, %v5243
        %v5246 = vsub.s32 4, %v5222
        %v5247 = vsel %vm5162, %v5246, %v5222
        %v5248 = vsel %vm5161, %v613, %v5245
        %v5249 = vsel %vm5161, 0, %v5247
        %v5250 = vcosq.f32.pop %v5248
        %v5251 = vsinq.f32.pop %v5248
        %vm5252 = vweird.f32 %v613
        %v5253 = vand.u32 %v5249, 3
        %vm5254 = vcmp.lt.s32.totalorder %v5253, 2
        %vm5255 = vcmp.eq.s32.totalorder %v5253, 0
        %v5256 = vxor.u32 %v5251, 2147483648
        %v5257 = vsel %vm5255, %v5250, %v5256
        %vm5258 = vcmp.eq.s32.totalorder %v5253, 2
        %v5259 = vxor.u32 %v5250, 2147483648
        %v5260 = vsel %vm5258, %v5259, %v5251
        %v5261 = vsel %vm5254, %v5257, %v5260
        %v5262 = vsel %vm5252, nan, %v5261
        %v5263 = vand.u32 2147483647, %v618
        %vm5264 = vcmp.le.f32.partialorder %v5263, 0.7853982
        %vm5265 = vcmp.lt.s32.totalorder %v618, 0
        %v5266 = vand.u32 %v618, 2139095040
        %v5267 = vshrl.u32 %v5266, 23
        %v5268 = vsub.s32 %v5267, 127
        %v5269 = vand.u32 2147483647, %v618
        %v5270 = vand.u32 %v5269, 8388607
        %v5271 = vor.u32 %v5270, 8388608
        %v5272 = vsub.s32 0, %v5271
        %v5273 = vadd.s32 %v5268, 1
        %vm5274 = vcmp.gt.s32.totalorder %v5273, 0
        %v5275 = vsel %vm5274, %v5273, 0
        %v5276 = vshrl.u32 %v5275, 5
        %v5277 = vand.u32 %v5275, 31
        %v5278 = vsub.s32 32, %v5277
        %v5279 = vshrl.u32 683565275, %v5278
        %v5280 = vshll.u32 683565275, %v5277
        %v5281 = vshrl.u32 2475754826, %v5278
        %v5282 = vor.u32 %v5280, %v5281
        %v5283 = vshll.u32 2475754826, %v5277
        %v5284 = vshrl.u32 2131351028, %v5278
        %v5285 = vor.u32 %v5283, %v5284
        %v5286 = vshll.u32 2131351028, %v5277
        %v5287 = vshrl.u32 2102212464, %v5278
        %v5288 = vor.u32 %v5286, %v5287
        %v5289 = vshll.u32 2102212464, %v5277
        %v5290 = vshrl.u32 920167782, %v5278
        %v5291 = vor.u32 %v5289, %v5290
        %v5292 = vshll.u32 920167782, %v5277
        %v5293 = vshrl.u32 1326507024, %v5278
        %v5294 = vor.u32 %v5292, %v5293
        %vm5295 = vcmp.lt.s32.totalorder %v5276, 1
        %vm5296 = vcmp.lt.s32.totalorder %v5276, 2
        %vm5297 = vcmp.lt.s32.totalorder %v5276, 3
        %vm5298 = vcmp.lt.s32.totalorder %v5276, 4
        %v5299 = vsel %vm5295, %v5279, %v5282
        %v5300 = vsel %vm5298, %v5288, 2102212464
        %v5301 = vsel %vm5297, %v5285, %v5300
        %v5302 = vsel %vm5296, %v5299, %v5301
        %v5303 = vsel %vm5295, %v5282, %v5285
        %v5304 = vsel %vm5298, %v5291, 920167782
        %v5305 = vsel %vm5297, %v5288, %v5304
        %v5306 = vsel %vm5296, %v5303, %v5305
        %v5307 = vsel %vm5295, %v5285, %v5288
        %v5308 = vsel %vm5298, %v5294, 1326507024
        %v5309 = vsel %vm5297, %v5291, %v5308
        %v5310 = vsel %vm5296, %v5307, %v5309
        %v5311 = vshll.u32 %v5271, 8
        %v5312 = vmul.u32.u64.compose %v5311, %v5310
        %v5313 = vextract.low.u32 %v5312
        %v5314 = vextract.high.u32 %v5312
        %v5315 = vmul.u32.u64.compose %v5311, %v5306
        %v5316 = vextract.low.u32 %v5315
        %v5317 = vextract.high.u32 %v5315
        %v5318 = vmul.u32 %v5311, %v5302
        %v5319 = vadd.s32 %v5314, %v5316
        %vm5320 = vc.u32 %v5314, %v5316
        %v5321 = vadd.s32 %v5317, 1
        %v5322 = vsel %vm5320, %v5321, %v5317
        %v5323 = vadd.s32 %v5318, %v5322
        %v5324 = vadd.s32 %v5323, 536870912
        %v5325 = vshrl.u32 %v5324, 30
        %v5326 = vshll.u32 %v5325, 30
        %v5327 = vsub.s32 %v5323, %v5326
        %vm5328 = vcmp.lt.s32.totalorder %v5327, 0
        %v5329 = vsub.s32 0, %v5327
        %v5330 = vsel %vm5328, %v5329, %v5327
        %v5331 = vclz %v5330
        %v5332 = vsub.s32 %v5331, 2
        %vm5333 = vcmp.gt.s32.totalorder 0, %v5332
        %v5334 = vsel %vm5333, 0, %v5332
        %v5335 = vsub.s32 32, %v5334
        %v5336 = vshll.u32 %v5327, %v5334
        %v5337 = vshrl.u32 %v5319, %v5335
        %v5338 = vor.u32 %v5336, %v5337
        %v5339 = vsub.s32 4294967266, %v5334
        %v5340 = vadd.s32 %v5339, 127
        %v5341 = vshll.u32 %v5340, 23
        %v5342 = vor.u32 4788187, %v5341
        %v5343 = vand.u32 2147483647, %v5342
        %v5345 = vcvt.s32.f32 %v5338
        %v5346 = vmul.f32 %v5345, %v5343
        %v5347 = vxor.u32 %v5346, 2147483648
        %v5348 = vsel %vm5265, %v5347, %v5346
        %v5349 = vsub.s32 4, %v5325
        %v5350 = vsel %vm5265, %v5349, %v5325
        %v5351 = vsel %vm5264, %v618, %v5348
        %v5352 = vsel %vm5264, 0, %v5350
        %v5353 = vcosq.f32.pop %v5351
        %v5354 = vsinq.f32.pop %v5351
        %vm5355 = vweird.f32 %v618
        %v5356 = vand.u32 %v5352, 3
        %vm5357 = vcmp.lt.s32.totalorder %v5356, 2
        %vm5358 = vcmp.eq.s32.totalorder %v5356, 0
        %v5359 = vxor.u32 %v5354, 2147483648
        %v5360 = vsel %vm5358, %v5353, %v5359
        %vm5361 = vcmp.eq.s32.totalorder %v5356, 2
        %v5362 = vxor.u32 %v5353, 2147483648
        %v5363 = vsel %vm5361, %v5362, %v5354
        %v5364 = vsel %vm5357, %v5360, %v5363
        %v5365 = vsel %vm5355, nan, %v5364
        %v5366 = vand.u32 2147483647, %v621
        %vm5367 = vcmp.le.f32.partialorder %v5366, 0.7853982
        %vm5368 = vcmp.lt.s32.totalorder %v621, 0
        %v5369 = vand.u32 %v621, 2139095040
        %v5370 = vshrl.u32 %v5369, 23
        %v5371 = vsub.s32 %v5370, 127
        %v5372 = vand.u32 2147483647, %v621
        %v5373 = vand.u32 %v5372, 8388607
        %v5374 = vor.u32 %v5373, 8388608
        %v5375 = vsub.s32 0, %v5374
        %v5376 = vadd.s32 %v5371, 1
        %vm5377 = vcmp.gt.s32.totalorder %v5376, 0
        %v5378 = vsel %vm5377, %v5376, 0
        %v5379 = vshrl.u32 %v5378, 5
        %v5380 = vand.u32 %v5378, 31
        %v5381 = vsub.s32 32, %v5380
        %v5382 = vshrl.u32 683565275, %v5381
        %v5383 = vshll.u32 683565275, %v5380
        %v5384 = vshrl.u32 2475754826, %v5381
        %v5385 = vor.u32 %v5383, %v5384
        %v5386 = vshll.u32 2475754826, %v5380
        %v5387 = vshrl.u32 2131351028, %v5381
        %v5388 = vor.u32 %v5386, %v5387
        %v5389 = vshll.u32 2131351028, %v5380
        %v5390 = vshrl.u32 2102212464, %v5381
        %v5391 = vor.u32 %v5389, %v5390
        %v5392 = vshll.u32 2102212464, %v5380
        %v5393 = vshrl.u32 920167782, %v5381
        %v5394 = vor.u32 %v5392, %v5393
        %v5395 = vshll.u32 920167782, %v5380
        %v5396 = vshrl.u32 1326507024, %v5381
        %v5397 = vor.u32 %v5395, %v5396
        %vm5398 = vcmp.lt.s32.totalorder %v5379, 1
        %vm5399 = vcmp.lt.s32.totalorder %v5379, 2
        %vm5400 = vcmp.lt.s32.totalorder %v5379, 3
        %vm5401 = vcmp.lt.s32.totalorder %v5379, 4
        %v5402 = vsel %vm5398, %v5382, %v5385
        %v5403 = vsel %vm5401, %v5391, 2102212464
        %v5404 = vsel %vm5400, %v5388, %v5403
        %v5405 = vsel %vm5399, %v5402, %v5404
        %v5406 = vsel %vm5398, %v5385, %v5388
        %v5407 = vsel %vm5401, %v5394, 920167782
        %v5408 = vsel %vm5400, %v5391, %v5407
        %v5409 = vsel %vm5399, %v5406, %v5408
        %v5410 = vsel %vm5398, %v5388, %v5391
        %v5411 = vsel %vm5401, %v5397, 1326507024
        %v5412 = vsel %vm5400, %v5394, %v5411
        %v5413 = vsel %vm5399, %v5410, %v5412
        %v5414 = vshll.u32 %v5374, 8
        %v5415 = vmul.u32.u64.compose %v5414, %v5413
        %v5416 = vextract.low.u32 %v5415
        %v5417 = vextract.high.u32 %v5415
        %v5418 = vmul.u32.u64.compose %v5414, %v5409
        %v5419 = vextract.low.u32 %v5418
        %v5420 = vextract.high.u32 %v5418
        %v5421 = vmul.u32 %v5414, %v5405
        %v5422 = vadd.s32 %v5417, %v5419
        %vm5423 = vc.u32 %v5417, %v5419
        %v5424 = vadd.s32 %v5420, 1
        %v5425 = vsel %vm5423, %v5424, %v5420
        %v5426 = vadd.s32 %v5421, %v5425
        %v5427 = vadd.s32 %v5426, 536870912
        %v5428 = vshrl.u32 %v5427, 30
        %v5429 = vshll.u32 %v5428, 30
        %v5430 = vsub.s32 %v5426, %v5429
        %vm5431 = vcmp.lt.s32.totalorder %v5430, 0
        %v5432 = vsub.s32 0, %v5430
        %v5433 = vsel %vm5431, %v5432, %v5430
        %v5434 = vclz %v5433
        %v5435 = vsub.s32 %v5434, 2
        %vm5436 = vcmp.gt.s32.totalorder 0, %v5435
        %v5437 = vsel %vm5436, 0, %v5435
        %v5438 = vsub.s32 32, %v5437
        %v5439 = vshll.u32 %v5430, %v5437
        %v5440 = vshrl.u32 %v5422, %v5438
        %v5441 = vor.u32 %v5439, %v5440
        %v5442 = vsub.s32 4294967266, %v5437
        %v5443 = vadd.s32 %v5442, 127
        %v5444 = vshll.u32 %v5443, 23
        %v5445 = vor.u32 4788187, %v5444
        %v5446 = vand.u32 2147483647, %v5445
        %v5448 = vcvt.s32.f32 %v5441
        %v5449 = vmul.f32 %v5448, %v5446
        %v5450 = vxor.u32 %v5449, 2147483648
        %v5451 = vsel %vm5368, %v5450, %v5449
        %v5452 = vsub.s32 4, %v5428
        %v5453 = vsel %vm5368, %v5452, %v5428
        %v5454 = vsel %vm5367, %v621, %v5451
        %v5455 = vsel %vm5367, 0, %v5453
        %v5456 = vcosq.f32.pop %v5454
        %v5457 = vsinq.f32.pop %v5454
        %vm5458 = vweird.f32 %v621
        %v5459 = vand.u32 %v5455, 3
        %vm5460 = vcmp.lt.s32.totalorder %v5459, 2
        %vm5461 = vcmp.eq.s32.totalorder %v5459, 0
        %v5462 = vxor.u32 %v5457, 2147483648
        %v5463 = vsel %vm5461, %v5456, %v5462
        %vm5464 = vcmp.eq.s32.totalorder %v5459, 2
        %v5465 = vxor.u32 %v5456, 2147483648
        %v5466 = vsel %vm5464, %v5465, %v5457
        %v5467 = vsel %vm5460, %v5463, %v5466
        %v5468 = vsel %vm5458, nan, %v5467
        %v5469 = vand.u32 2147483647, %v626
        %vm5470 = vcmp.le.f32.partialorder %v5469, 0.7853982
        %vm5471 = vcmp.lt.s32.totalorder %v626, 0
        %v5472 = vand.u32 %v626, 2139095040
        %v5473 = vshrl.u32 %v5472, 23
        %v5474 = vsub.s32 %v5473, 127
        %v5475 = vand.u32 2147483647, %v626
        %v5476 = vand.u32 %v5475, 8388607
        %v5477 = vor.u32 %v5476, 8388608
        %v5478 = vsub.s32 0, %v5477
        %v5479 = vadd.s32 %v5474, 1
        %vm5480 = vcmp.gt.s32.totalorder %v5479, 0
        %v5481 = vsel %vm5480, %v5479, 0
        %v5482 = vshrl.u32 %v5481, 5
        %v5483 = vand.u32 %v5481, 31
        %v5484 = vsub.s32 32, %v5483
        %v5485 = vshrl.u32 683565275, %v5484
        %v5486 = vshll.u32 683565275, %v5483
        %v5487 = vshrl.u32 2475754826, %v5484
        %v5488 = vor.u32 %v5486, %v5487
        %v5489 = vshll.u32 2475754826, %v5483
        %v5490 = vshrl.u32 2131351028, %v5484
        %v5491 = vor.u32 %v5489, %v5490
        %v5492 = vshll.u32 2131351028, %v5483
        %v5493 = vshrl.u32 2102212464, %v5484
        %v5494 = vor.u32 %v5492, %v5493
        %v5495 = vshll.u32 2102212464, %v5483
        %v5496 = vshrl.u32 920167782, %v5484
        %v5497 = vor.u32 %v5495, %v5496
        %v5498 = vshll.u32 920167782, %v5483
        %v5499 = vshrl.u32 1326507024, %v5484
        %v5500 = vor.u32 %v5498, %v5499
        %vm5501 = vcmp.lt.s32.totalorder %v5482, 1
        %vm5502 = vcmp.lt.s32.totalorder %v5482, 2
        %vm5503 = vcmp.lt.s32.totalorder %v5482, 3
        %vm5504 = vcmp.lt.s32.totalorder %v5482, 4
        %v5505 = vsel %vm5501, %v5485, %v5488
        %v5506 = vsel %vm5504, %v5494, 2102212464
        %v5507 = vsel %vm5503, %v5491, %v5506
        %v5508 = vsel %vm5502, %v5505, %v5507
        %v5509 = vsel %vm5501, %v5488, %v5491
        %v5510 = vsel %vm5504, %v5497, 920167782
        %v5511 = vsel %vm5503, %v5494, %v5510
        %v5512 = vsel %vm5502, %v5509, %v5511
        %v5513 = vsel %vm5501, %v5491, %v5494
        %v5514 = vsel %vm5504, %v5500, 1326507024
        %v5515 = vsel %vm5503, %v5497, %v5514
        %v5516 = vsel %vm5502, %v5513, %v5515
        %v5517 = vshll.u32 %v5477, 8
        %v5518 = vmul.u32.u64.compose %v5517, %v5516
        %v5519 = vextract.low.u32 %v5518
        %v5520 = vextract.high.u32 %v5518
        %v5521 = vmul.u32.u64.compose %v5517, %v5512
        %v5522 = vextract.low.u32 %v5521
        %v5523 = vextract.high.u32 %v5521
        %v5524 = vmul.u32 %v5517, %v5508
        %v5525 = vadd.s32 %v5520, %v5522
        %vm5526 = vc.u32 %v5520, %v5522
        %v5527 = vadd.s32 %v5523, 1
        %v5528 = vsel %vm5526, %v5527, %v5523
        %v5529 = vadd.s32 %v5524, %v5528
        %v5530 = vadd.s32 %v5529, 536870912
        %v5531 = vshrl.u32 %v5530, 30
        %v5532 = vshll.u32 %v5531, 30
        %v5533 = vsub.s32 %v5529, %v5532
        %vm5534 = vcmp.lt.s32.totalorder %v5533, 0
        %v5535 = vsub.s32 0, %v5533
        %v5536 = vsel %vm5534, %v5535, %v5533
        %v5537 = vclz %v5536
        %v5538 = vsub.s32 %v5537, 2
        %vm5539 = vcmp.gt.s32.totalorder 0, %v5538
        %v5540 = vsel %vm5539, 0, %v5538
        %v5541 = vsub.s32 32, %v5540
        %v5542 = vshll.u32 %v5533, %v5540
        %v5543 = vshrl.u32 %v5525, %v5541
        %v5544 = vor.u32 %v5542, %v5543
        %v5545 = vsub.s32 4294967266, %v5540
        %v5546 = vadd.s32 %v5545, 127
        %v5547 = vshll.u32 %v5546, 23
        %v5548 = vor.u32 4788187, %v5547
        %v5549 = vand.u32 2147483647, %v5548
        %v5551 = vcvt.s32.f32 %v5544
        %v5552 = vmul.f32 %v5551, %v5549
        %v5553 = vxor.u32 %v5552, 2147483648
        %v5554 = vsel %vm5471, %v5553, %v5552
        %v5555 = vsub.s32 4, %v5531
        %v5556 = vsel %vm5471, %v5555, %v5531
        %v5557 = vsel %vm5470, %v626, %v5554
        %v5558 = vsel %vm5470, 0, %v5556
        %v5559 = vcosq.f32.pop %v5557
        %v5560 = vsinq.f32.pop %v5557
        %vm5561 = vweird.f32 %v626
        %v5562 = vand.u32 %v5558, 3
        %vm5563 = vcmp.lt.s32.totalorder %v5562, 2
        %vm5564 = vcmp.eq.s32.totalorder %v5562, 0
        %v5565 = vxor.u32 %v5560, 2147483648
        %v5566 = vsel %vm5564, %v5559, %v5565
        %vm5567 = vcmp.eq.s32.totalorder %v5562, 2
        %v5568 = vxor.u32 %v5559, 2147483648
        %v5569 = vsel %vm5567, %v5568, %v5560
        %v5570 = vsel %vm5563, %v5566, %v5569
        %v5571 = vsel %vm5561, nan, %v5570
        %v5572 = vand.u32 2147483647, %v629
        %vm5573 = vcmp.le.f32.partialorder %v5572, 0.7853982
        %vm5574 = vcmp.lt.s32.totalorder %v629, 0
        %v5575 = vand.u32 %v629, 2139095040
        %v5576 = vshrl.u32 %v5575, 23
        %v5577 = vsub.s32 %v5576, 127
        %v5578 = vand.u32 2147483647, %v629
        %v5579 = vand.u32 %v5578, 8388607
        %v5580 = vor.u32 %v5579, 8388608
        %v5581 = vsub.s32 0, %v5580
        %v5582 = vadd.s32 %v5577, 1
        %vm5583 = vcmp.gt.s32.totalorder %v5582, 0
        %v5584 = vsel %vm5583, %v5582, 0
        %v5585 = vshrl.u32 %v5584, 5
        %v5586 = vand.u32 %v5584, 31
        %v5587 = vsub.s32 32, %v5586
        %v5588 = vshrl.u32 683565275, %v5587
        %v5589 = vshll.u32 683565275, %v5586
        %v5590 = vshrl.u32 2475754826, %v5587
        %v5591 = vor.u32 %v5589, %v5590
        %v5592 = vshll.u32 2475754826, %v5586
        %v5593 = vshrl.u32 2131351028, %v5587
        %v5594 = vor.u32 %v5592, %v5593
        %v5595 = vshll.u32 2131351028, %v5586
        %v5596 = vshrl.u32 2102212464, %v5587
        %v5597 = vor.u32 %v5595, %v5596
        %v5598 = vshll.u32 2102212464, %v5586
        %v5599 = vshrl.u32 920167782, %v5587
        %v5600 = vor.u32 %v5598, %v5599
        %v5601 = vshll.u32 920167782, %v5586
        %v5602 = vshrl.u32 1326507024, %v5587
        %v5603 = vor.u32 %v5601, %v5602
        %vm5604 = vcmp.lt.s32.totalorder %v5585, 1
        %vm5605 = vcmp.lt.s32.totalorder %v5585, 2
        %vm5606 = vcmp.lt.s32.totalorder %v5585, 3
        %vm5607 = vcmp.lt.s32.totalorder %v5585, 4
        %v5608 = vsel %vm5604, %v5588, %v5591
        %v5609 = vsel %vm5607, %v5597, 2102212464
        %v5610 = vsel %vm5606, %v5594, %v5609
        %v5611 = vsel %vm5605, %v5608, %v5610
        %v5612 = vsel %vm5604, %v5591, %v5594
        %v5613 = vsel %vm5607, %v5600, 920167782
        %v5614 = vsel %vm5606, %v5597, %v5613
        %v5615 = vsel %vm5605, %v5612, %v5614
        %v5616 = vsel %vm5604, %v5594, %v5597
        %v5617 = vsel %vm5607, %v5603, 1326507024
        %v5618 = vsel %vm5606, %v5600, %v5617
        %v5619 = vsel %vm5605, %v5616, %v5618
        %v5620 = vshll.u32 %v5580, 8
        %v5621 = vmul.u32.u64.compose %v5620, %v5619
        %v5622 = vextract.low.u32 %v5621
        %v5623 = vextract.high.u32 %v5621
        %v5624 = vmul.u32.u64.compose %v5620, %v5615
        %v5625 = vextract.low.u32 %v5624
        %v5626 = vextract.high.u32 %v5624
        %v5627 = vmul.u32 %v5620, %v5611
        %v5628 = vadd.s32 %v5623, %v5625
        %vm5629 = vc.u32 %v5623, %v5625
        %v5630 = vadd.s32 %v5626, 1
        %v5631 = vsel %vm5629, %v5630, %v5626
        %v5632 = vadd.s32 %v5627, %v5631
        %v5633 = vadd.s32 %v5632, 536870912
        %v5634 = vshrl.u32 %v5633, 30
        %v5635 = vshll.u32 %v5634, 30
        %v5636 = vsub.s32 %v5632, %v5635
        %vm5637 = vcmp.lt.s32.totalorder %v5636, 0
        %v5638 = vsub.s32 0, %v5636
        %v5639 = vsel %vm5637, %v5638, %v5636
        %v5640 = vclz %v5639
        %v5641 = vsub.s32 %v5640, 2
        %vm5642 = vcmp.gt.s32.totalorder 0, %v5641
        %v5643 = vsel %vm5642, 0, %v5641
        %v5644 = vsub.s32 32, %v5643
        %v5645 = vshll.u32 %v5636, %v5643
        %v5646 = vshrl.u32 %v5628, %v5644
        %v5647 = vor.u32 %v5645, %v5646
        %v5648 = vsub.s32 4294967266, %v5643
        %v5649 = vadd.s32 %v5648, 127
        %v5650 = vshll.u32 %v5649, 23
        %v5651 = vor.u32 4788187, %v5650
        %v5652 = vand.u32 2147483647, %v5651
        %v5654 = vcvt.s32.f32 %v5647
        %v5655 = vmul.f32 %v5654, %v5652
        %v5656 = vxor.u32 %v5655, 2147483648
        %v5657 = vsel %vm5574, %v5656, %v5655
        %v5658 = vsub.s32 4, %v5634
        %v5659 = vsel %vm5574, %v5658, %v5634
        %v5660 = vsel %vm5573, %v629, %v5657
        %v5661 = vsel %vm5573, 0, %v5659
        %v5662 = vcosq.f32.pop %v5660
        %v5663 = vsinq.f32.pop %v5660
        %vm5664 = vweird.f32 %v629
        %v5665 = vand.u32 %v5661, 3
        %vm5666 = vcmp.lt.s32.totalorder %v5665, 2
        %vm5667 = vcmp.eq.s32.totalorder %v5665, 0
        %v5668 = vxor.u32 %v5663, 2147483648
        %v5669 = vsel %vm5667, %v5662, %v5668
        %vm5670 = vcmp.eq.s32.totalorder %v5665, 2
        %v5671 = vxor.u32 %v5662, 2147483648
        %v5672 = vsel %vm5670, %v5671, %v5663
        %v5673 = vsel %vm5666, %v5669, %v5672
        %v5674 = vsel %vm5664, nan, %v5673
        %v5675 = vand.u32 2147483647, %v634
        %vm5676 = vcmp.le.f32.partialorder %v5675, 0.7853982
        %vm5677 = vcmp.lt.s32.totalorder %v634, 0
        %v5678 = vand.u32 %v634, 2139095040
        %v5679 = vshrl.u32 %v5678, 23
        %v5680 = vsub.s32 %v5679, 127
        %v5681 = vand.u32 2147483647, %v634
        %v5682 = vand.u32 %v5681, 8388607
        %v5683 = vor.u32 %v5682, 8388608
        %v5684 = vsub.s32 0, %v5683
        %v5685 = vadd.s32 %v5680, 1
        %vm5686 = vcmp.gt.s32.totalorder %v5685, 0
        %v5687 = vsel %vm5686, %v5685, 0
        %v5688 = vshrl.u32 %v5687, 5
        %v5689 = vand.u32 %v5687, 31
        %v5690 = vsub.s32 32, %v5689
        %v5691 = vshrl.u32 683565275, %v5690
        %v5692 = vshll.u32 683565275, %v5689
        %v5693 = vshrl.u32 2475754826, %v5690
        %v5694 = vor.u32 %v5692, %v5693
        %v5695 = vshll.u32 2475754826, %v5689
        %v5696 = vshrl.u32 2131351028, %v5690
        %v5697 = vor.u32 %v5695, %v5696
        %v5698 = vshll.u32 2131351028, %v5689
        %v5699 = vshrl.u32 2102212464, %v5690
        %v5700 = vor.u32 %v5698, %v5699
        %v5701 = vshll.u32 2102212464, %v5689
        %v5702 = vshrl.u32 920167782, %v5690
        %v5703 = vor.u32 %v5701, %v5702
        %v5704 = vshll.u32 920167782, %v5689
        %v5705 = vshrl.u32 1326507024, %v5690
        %v5706 = vor.u32 %v5704, %v5705
        %vm5707 = vcmp.lt.s32.totalorder %v5688, 1
        %vm5708 = vcmp.lt.s32.totalorder %v5688, 2
        %vm5709 = vcmp.lt.s32.totalorder %v5688, 3
        %vm5710 = vcmp.lt.s32.totalorder %v5688, 4
        %v5711 = vsel %vm5707, %v5691, %v5694
        %v5712 = vsel %vm5710, %v5700, 2102212464
        %v5713 = vsel %vm5709, %v5697, %v5712
        %v5714 = vsel %vm5708, %v5711, %v5713
        %v5715 = vsel %vm5707, %v5694, %v5697
        %v5716 = vsel %vm5710, %v5703, 920167782
        %v5717 = vsel %vm5709, %v5700, %v5716
        %v5718 = vsel %vm5708, %v5715, %v5717
        %v5719 = vsel %vm5707, %v5697, %v5700
        %v5720 = vsel %vm5710, %v5706, 1326507024
        %v5721 = vsel %vm5709, %v5703, %v5720
        %v5722 = vsel %vm5708, %v5719, %v5721
        %v5723 = vshll.u32 %v5683, 8
        %v5724 = vmul.u32.u64.compose %v5723, %v5722
        %v5725 = vextract.low.u32 %v5724
        %v5726 = vextract.high.u32 %v5724
        %v5727 = vmul.u32.u64.compose %v5723, %v5718
        %v5728 = vextract.low.u32 %v5727
        %v5729 = vextract.high.u32 %v5727
        %v5730 = vmul.u32 %v5723, %v5714
        %v5731 = vadd.s32 %v5726, %v5728
        %vm5732 = vc.u32 %v5726, %v5728
        %v5733 = vadd.s32 %v5729, 1
        %v5734 = vsel %vm5732, %v5733, %v5729
        %v5735 = vadd.s32 %v5730, %v5734
        %v5736 = vadd.s32 %v5735, 536870912
        %v5737 = vshrl.u32 %v5736, 30
        %v5738 = vshll.u32 %v5737, 30
        %v5739 = vsub.s32 %v5735, %v5738
        %vm5740 = vcmp.lt.s32.totalorder %v5739, 0
        %v5741 = vsub.s32 0, %v5739
        %v5742 = vsel %vm5740, %v5741, %v5739
        %v5743 = vclz %v5742
        %v5744 = vsub.s32 %v5743, 2
        %vm5745 = vcmp.gt.s32.totalorder 0, %v5744
        %v5746 = vsel %vm5745, 0, %v5744
        %v5747 = vsub.s32 32, %v5746
        %v5748 = vshll.u32 %v5739, %v5746
        %v5749 = vshrl.u32 %v5731, %v5747
        %v5750 = vor.u32 %v5748, %v5749
        %v5751 = vsub.s32 4294967266, %v5746
        %v5752 = vadd.s32 %v5751, 127
        %v5753 = vshll.u32 %v5752, 23
        %v5754 = vor.u32 4788187, %v5753
        %v5755 = vand.u32 2147483647, %v5754
        %v5757 = vcvt.s32.f32 %v5750
        %v5758 = vmul.f32 %v5757, %v5755
        %v5759 = vxor.u32 %v5758, 2147483648
        %v5760 = vsel %vm5677, %v5759, %v5758
        %v5761 = vsub.s32 4, %v5737
        %v5762 = vsel %vm5677, %v5761, %v5737
        %v5763 = vsel %vm5676, %v634, %v5760
        %v5764 = vsel %vm5676, 0, %v5762
        %v5765 = vcosq.f32.pop %v5763
        %v5766 = vsinq.f32.pop %v5763
        %vm5767 = vweird.f32 %v634
        %v5768 = vand.u32 %v5764, 3
        %vm5769 = vcmp.lt.s32.totalorder %v5768, 2
        %vm5770 = vcmp.eq.s32.totalorder %v5768, 0
        %v5771 = vxor.u32 %v5766, 2147483648
        %v5772 = vsel %vm5770, %v5765, %v5771
        %vm5773 = vcmp.eq.s32.totalorder %v5768, 2
        %v5774 = vxor.u32 %v5765, 2147483648
        %v5775 = vsel %vm5773, %v5774, %v5766
        %v5776 = vsel %vm5769, %v5772, %v5775
        %v5777 = vsel %vm5767, nan, %v5776
        %v5778 = vand.u32 2147483647, %v637
        %vm5779 = vcmp.le.f32.partialorder %v5778, 0.7853982
        %vm5780 = vcmp.lt.s32.totalorder %v637, 0
        %v5781 = vand.u32 %v637, 2139095040
        %v5782 = vshrl.u32 %v5781, 23
        %v5783 = vsub.s32 %v5782, 127
        %v5784 = vand.u32 2147483647, %v637
        %v5785 = vand.u32 %v5784, 8388607
        %v5786 = vor.u32 %v5785, 8388608
        %v5787 = vsub.s32 0, %v5786
        %v5788 = vadd.s32 %v5783, 1
        %vm5789 = vcmp.gt.s32.totalorder %v5788, 0
        %v5790 = vsel %vm5789, %v5788, 0
        %v5791 = vshrl.u32 %v5790, 5
        %v5792 = vand.u32 %v5790, 31
        %v5793 = vsub.s32 32, %v5792
        %v5794 = vshrl.u32 683565275, %v5793
        %v5795 = vshll.u32 683565275, %v5792
        %v5796 = vshrl.u32 2475754826, %v5793
        %v5797 = vor.u32 %v5795, %v5796
        %v5798 = vshll.u32 2475754826, %v5792
        %v5799 = vshrl.u32 2131351028, %v5793
        %v5800 = vor.u32 %v5798, %v5799
        %v5801 = vshll.u32 2131351028, %v5792
        %v5802 = vshrl.u32 2102212464, %v5793
        %v5803 = vor.u32 %v5801, %v5802
        %v5804 = vshll.u32 2102212464, %v5792
        %v5805 = vshrl.u32 920167782, %v5793
        %v5806 = vor.u32 %v5804, %v5805
        %v5807 = vshll.u32 920167782, %v5792
        %v5808 = vshrl.u32 1326507024, %v5793
        %v5809 = vor.u32 %v5807, %v5808
        %vm5810 = vcmp.lt.s32.totalorder %v5791, 1
        %vm5811 = vcmp.lt.s32.totalorder %v5791, 2
        %vm5812 = vcmp.lt.s32.totalorder %v5791, 3
        %vm5813 = vcmp.lt.s32.totalorder %v5791, 4
        %v5814 = vsel %vm5810, %v5794, %v5797
        %v5815 = vsel %vm5813, %v5803, 2102212464
        %v5816 = vsel %vm5812, %v5800, %v5815
        %v5817 = vsel %vm5811, %v5814, %v5816
        %v5818 = vsel %vm5810, %v5797, %v5800
        %v5819 = vsel %vm5813, %v5806, 920167782
        %v5820 = vsel %vm5812, %v5803, %v5819
        %v5821 = vsel %vm5811, %v5818, %v5820
        %v5822 = vsel %vm5810, %v5800, %v5803
        %v5823 = vsel %vm5813, %v5809, 1326507024
        %v5824 = vsel %vm5812, %v5806, %v5823
        %v5825 = vsel %vm5811, %v5822, %v5824
        %v5826 = vshll.u32 %v5786, 8
        %v5827 = vmul.u32.u64.compose %v5826, %v5825
        %v5828 = vextract.low.u32 %v5827
        %v5829 = vextract.high.u32 %v5827
        %v5830 = vmul.u32.u64.compose %v5826, %v5821
        %v5831 = vextract.low.u32 %v5830
        %v5832 = vextract.high.u32 %v5830
        %v5833 = vmul.u32 %v5826, %v5817
        %v5834 = vadd.s32 %v5829, %v5831
        %vm5835 = vc.u32 %v5829, %v5831
        %v5836 = vadd.s32 %v5832, 1
        %v5837 = vsel %vm5835, %v5836, %v5832
        %v5838 = vadd.s32 %v5833, %v5837
        %v5839 = vadd.s32 %v5838, 536870912
        %v5840 = vshrl.u32 %v5839, 30
        %v5841 = vshll.u32 %v5840, 30
        %v5842 = vsub.s32 %v5838, %v5841
        %vm5843 = vcmp.lt.s32.totalorder %v5842, 0
        %v5844 = vsub.s32 0, %v5842
        %v5845 = vsel %vm5843, %v5844, %v5842
        %v5846 = vclz %v5845
        %v5847 = vsub.s32 %v5846, 2
        %vm5848 = vcmp.gt.s32.totalorder 0, %v5847
        %v5849 = vsel %vm5848, 0, %v5847
        %v5850 = vsub.s32 32, %v5849
        %v5851 = vshll.u32 %v5842, %v5849
        %v5852 = vshrl.u32 %v5834, %v5850
        %v5853 = vor.u32 %v5851, %v5852
        %v5854 = vsub.s32 4294967266, %v5849
        %v5855 = vadd.s32 %v5854, 127
        %v5856 = vshll.u32 %v5855, 23
        %v5857 = vor.u32 4788187, %v5856
        %v5858 = vand.u32 2147483647, %v5857
        %v5860 = vcvt.s32.f32 %v5853
        %v5861 = vmul.f32 %v5860, %v5858
        %v5862 = vxor.u32 %v5861, 2147483648
        %v5863 = vsel %vm5780, %v5862, %v5861
        %v5864 = vsub.s32 4, %v5840
        %v5865 = vsel %vm5780, %v5864, %v5840
        %v5866 = vsel %vm5779, %v637, %v5863
        %v5867 = vsel %vm5779, 0, %v5865
        %v5868 = vcosq.f32.pop %v5866
        %v5869 = vsinq.f32.pop %v5866
        %vm5870 = vweird.f32 %v637
        %v5871 = vand.u32 %v5867, 3
        %vm5872 = vcmp.lt.s32.totalorder %v5871, 2
        %vm5873 = vcmp.eq.s32.totalorder %v5871, 0
        %v5874 = vxor.u32 %v5869, 2147483648
        %v5875 = vsel %vm5873, %v5868, %v5874
        %vm5876 = vcmp.eq.s32.totalorder %v5871, 2
        %v5877 = vxor.u32 %v5868, 2147483648
        %v5878 = vsel %vm5876, %v5877, %v5869
        %v5879 = vsel %vm5872, %v5875, %v5878
        %v5880 = vsel %vm5870, nan, %v5879
        %v5881 = vand.u32 2147483647, %v642
        %vm5882 = vcmp.le.f32.partialorder %v5881, 0.7853982
        %vm5883 = vcmp.lt.s32.totalorder %v642, 0
        %v5884 = vand.u32 %v642, 2139095040
        %v5885 = vshrl.u32 %v5884, 23
        %v5886 = vsub.s32 %v5885, 127
        %v5887 = vand.u32 2147483647, %v642
        %v5888 = vand.u32 %v5887, 8388607
        %v5889 = vor.u32 %v5888, 8388608
        %v5890 = vsub.s32 0, %v5889
        %v5891 = vadd.s32 %v5886, 1
        %vm5892 = vcmp.gt.s32.totalorder %v5891, 0
        %v5893 = vsel %vm5892, %v5891, 0
        %v5894 = vshrl.u32 %v5893, 5
        %v5895 = vand.u32 %v5893, 31
        %v5896 = vsub.s32 32, %v5895
        %v5897 = vshrl.u32 683565275, %v5896
        %v5898 = vshll.u32 683565275, %v5895
        %v5899 = vshrl.u32 2475754826, %v5896
        %v5900 = vor.u32 %v5898, %v5899
        %v5901 = vshll.u32 2475754826, %v5895
        %v5902 = vshrl.u32 2131351028, %v5896
        %v5903 = vor.u32 %v5901, %v5902
        %v5904 = vshll.u32 2131351028, %v5895
        %v5905 = vshrl.u32 2102212464, %v5896
        %v5906 = vor.u32 %v5904, %v5905
        %v5907 = vshll.u32 2102212464, %v5895
        %v5908 = vshrl.u32 920167782, %v5896
        %v5909 = vor.u32 %v5907, %v5908
        %v5910 = vshll.u32 920167782, %v5895
        %v5911 = vshrl.u32 1326507024, %v5896
        %v5912 = vor.u32 %v5910, %v5911
        %vm5913 = vcmp.lt.s32.totalorder %v5894, 1
        %vm5914 = vcmp.lt.s32.totalorder %v5894, 2
        %vm5915 = vcmp.lt.s32.totalorder %v5894, 3
        %vm5916 = vcmp.lt.s32.totalorder %v5894, 4
        %v5917 = vsel %vm5913, %v5897, %v5900
        %v5918 = vsel %vm5916, %v5906, 2102212464
        %v5919 = vsel %vm5915, %v5903, %v5918
        %v5920 = vsel %vm5914, %v5917, %v5919
        %v5921 = vsel %vm5913, %v5900, %v5903
        %v5922 = vsel %vm5916, %v5909, 920167782
        %v5923 = vsel %vm5915, %v5906, %v5922
        %v5924 = vsel %vm5914, %v5921, %v5923
        %v5925 = vsel %vm5913, %v5903, %v5906
        %v5926 = vsel %vm5916, %v5912, 1326507024
        %v5927 = vsel %vm5915, %v5909, %v5926
        %v5928 = vsel %vm5914, %v5925, %v5927
        %v5929 = vshll.u32 %v5889, 8
        %v5930 = vmul.u32.u64.compose %v5929, %v5928
        %v5931 = vextract.low.u32 %v5930
        %v5932 = vextract.high.u32 %v5930
        %v5933 = vmul.u32.u64.compose %v5929, %v5924
        %v5934 = vextract.low.u32 %v5933
        %v5935 = vextract.high.u32 %v5933
        %v5936 = vmul.u32 %v5929, %v5920
        %v5937 = vadd.s32 %v5932, %v5934
        %vm5938 = vc.u32 %v5932, %v5934
        %v5939 = vadd.s32 %v5935, 1
        %v5940 = vsel %vm5938, %v5939, %v5935
        %v5941 = vadd.s32 %v5936, %v5940
        %v5942 = vadd.s32 %v5941, 536870912
        %v5943 = vshrl.u32 %v5942, 30
        %v5944 = vshll.u32 %v5943, 30
        %v5945 = vsub.s32 %v5941, %v5944
        %vm5946 = vcmp.lt.s32.totalorder %v5945, 0
        %v5947 = vsub.s32 0, %v5945
        %v5948 = vsel %vm5946, %v5947, %v5945
        %v5949 = vclz %v5948
        %v5950 = vsub.s32 %v5949, 2
        %vm5951 = vcmp.gt.s32.totalorder 0, %v5950
        %v5952 = vsel %vm5951, 0, %v5950
        %v5953 = vsub.s32 32, %v5952
        %v5954 = vshll.u32 %v5945, %v5952
        %v5955 = vshrl.u32 %v5937, %v5953
        %v5956 = vor.u32 %v5954, %v5955
        %v5957 = vsub.s32 4294967266, %v5952
        %v5958 = vadd.s32 %v5957, 127
        %v5959 = vshll.u32 %v5958, 23
        %v5960 = vor.u32 4788187, %v5959
        %v5961 = vand.u32 2147483647, %v5960
        %v5963 = vcvt.s32.f32 %v5956
        %v5964 = vmul.f32 %v5963, %v5961
        %v5965 = vxor.u32 %v5964, 2147483648
        %v5966 = vsel %vm5883, %v5965, %v5964
        %v5967 = vsub.s32 4, %v5943
        %v5968 = vsel %vm5883, %v5967, %v5943
        %v5969 = vsel %vm5882, %v642, %v5966
        %v5970 = vsel %vm5882, 0, %v5968
        %v5971 = vcosq.f32.pop %v5969
        %v5972 = vsinq.f32.pop %v5969
        %vm5973 = vweird.f32 %v642
        %v5974 = vand.u32 %v5970, 3
        %vm5975 = vcmp.lt.s32.totalorder %v5974, 2
        %vm5976 = vcmp.eq.s32.totalorder %v5974, 0
        %v5977 = vxor.u32 %v5972, 2147483648
        %v5978 = vsel %vm5976, %v5971, %v5977
        %vm5979 = vcmp.eq.s32.totalorder %v5974, 2
        %v5980 = vxor.u32 %v5971, 2147483648
        %v5981 = vsel %vm5979, %v5980, %v5972
        %v5982 = vsel %vm5975, %v5978, %v5981
        %v5983 = vsel %vm5973, nan, %v5982
        %v5984 = vand.u32 2147483647, %v645
        %vm5985 = vcmp.le.f32.partialorder %v5984, 0.7853982
        %vm5986 = vcmp.lt.s32.totalorder %v645, 0
        %v5987 = vand.u32 %v645, 2139095040
        %v5988 = vshrl.u32 %v5987, 23
        %v5989 = vsub.s32 %v5988, 127
        %v5990 = vand.u32 2147483647, %v645
        %v5991 = vand.u32 %v5990, 8388607
        %v5992 = vor.u32 %v5991, 8388608
        %v5993 = vsub.s32 0, %v5992
        %v5994 = vadd.s32 %v5989, 1
        %vm5995 = vcmp.gt.s32.totalorder %v5994, 0
        %v5996 = vsel %vm5995, %v5994, 0
        %v5997 = vshrl.u32 %v5996, 5
        %v5998 = vand.u32 %v5996, 31
        %v5999 = vsub.s32 32, %v5998
        %v6000 = vshrl.u32 683565275, %v5999
        %v6001 = vshll.u32 683565275, %v5998
        %v6002 = vshrl.u32 2475754826, %v5999
        %v6003 = vor.u32 %v6001, %v6002
        %v6004 = vshll.u32 2475754826, %v5998
        %v6005 = vshrl.u32 2131351028, %v5999
        %v6006 = vor.u32 %v6004, %v6005
        %v6007 = vshll.u32 2131351028, %v5998
        %v6008 = vshrl.u32 2102212464, %v5999
        %v6009 = vor.u32 %v6007, %v6008
        %v6010 = vshll.u32 2102212464, %v5998
        %v6011 = vshrl.u32 920167782, %v5999
        %v6012 = vor.u32 %v6010, %v6011
        %v6013 = vshll.u32 920167782, %v5998
        %v6014 = vshrl.u32 1326507024, %v5999
        %v6015 = vor.u32 %v6013, %v6014
        %vm6016 = vcmp.lt.s32.totalorder %v5997, 1
        %vm6017 = vcmp.lt.s32.totalorder %v5997, 2
        %vm6018 = vcmp.lt.s32.totalorder %v5997, 3
        %vm6019 = vcmp.lt.s32.totalorder %v5997, 4
        %v6020 = vsel %vm6016, %v6000, %v6003
        %v6021 = vsel %vm6019, %v6009, 2102212464
        %v6022 = vsel %vm6018, %v6006, %v6021
        %v6023 = vsel %vm6017, %v6020, %v6022
        %v6024 = vsel %vm6016, %v6003, %v6006
        %v6025 = vsel %vm6019, %v6012, 920167782
        %v6026 = vsel %vm6018, %v6009, %v6025
        %v6027 = vsel %vm6017, %v6024, %v6026
        %v6028 = vsel %vm6016, %v6006, %v6009
        %v6029 = vsel %vm6019, %v6015, 1326507024
        %v6030 = vsel %vm6018, %v6012, %v6029
        %v6031 = vsel %vm6017, %v6028, %v6030
        %v6032 = vshll.u32 %v5992, 8
        %v6033 = vmul.u32.u64.compose %v6032, %v6031
        %v6034 = vextract.low.u32 %v6033
        %v6035 = vextract.high.u32 %v6033
        %v6036 = vmul.u32.u64.compose %v6032, %v6027
        %v6037 = vextract.low.u32 %v6036
        %v6038 = vextract.high.u32 %v6036
        %v6039 = vmul.u32 %v6032, %v6023
        %v6040 = vadd.s32 %v6035, %v6037
        %vm6041 = vc.u32 %v6035, %v6037
        %v6042 = vadd.s32 %v6038, 1
        %v6043 = vsel %vm6041, %v6042, %v6038
        %v6044 = vadd.s32 %v6039, %v6043
        %v6045 = vadd.s32 %v6044, 536870912
        %v6046 = vshrl.u32 %v6045, 30
        %v6047 = vshll.u32 %v6046, 30
        %v6048 = vsub.s32 %v6044, %v6047
        %vm6049 = vcmp.lt.s32.totalorder %v6048, 0
        %v6050 = vsub.s32 0, %v6048
        %v6051 = vsel %vm6049, %v6050, %v6048
        %v6052 = vclz %v6051
        %v6053 = vsub.s32 %v6052, 2
        %vm6054 = vcmp.gt.s32.totalorder 0, %v6053
        %v6055 = vsel %vm6054, 0, %v6053
        %v6056 = vsub.s32 32, %v6055
        %v6057 = vshll.u32 %v6048, %v6055
        %v6058 = vshrl.u32 %v6040, %v6056
        %v6059 = vor.u32 %v6057, %v6058
        %v6060 = vsub.s32 4294967266, %v6055
        %v6061 = vadd.s32 %v6060, 127
        %v6062 = vshll.u32 %v6061, 23
        %v6063 = vor.u32 4788187, %v6062
        %v6064 = vand.u32 2147483647, %v6063
        %v6066 = vcvt.s32.f32 %v6059
        %v6067 = vmul.f32 %v6066, %v6064
        %v6068 = vxor.u32 %v6067, 2147483648
        %v6069 = vsel %vm5986, %v6068, %v6067
        %v6070 = vsub.s32 4, %v6046
        %v6071 = vsel %vm5986, %v6070, %v6046
        %v6072 = vsel %vm5985, %v645, %v6069
        %v6073 = vsel %vm5985, 0, %v6071
        %v6074 = vcosq.f32.pop %v6072
        %v6075 = vsinq.f32.pop %v6072
        %vm6076 = vweird.f32 %v645
        %v6077 = vand.u32 %v6073, 3
        %vm6078 = vcmp.lt.s32.totalorder %v6077, 2
        %vm6079 = vcmp.eq.s32.totalorder %v6077, 0
        %v6080 = vxor.u32 %v6075, 2147483648
        %v6081 = vsel %vm6079, %v6074, %v6080
        %vm6082 = vcmp.eq.s32.totalorder %v6077, 2
        %v6083 = vxor.u32 %v6074, 2147483648
        %v6084 = vsel %vm6082, %v6083, %v6075
        %v6085 = vsel %vm6078, %v6081, %v6084
        %v6086 = vsel %vm6076, nan, %v6085
        %v6087 = vand.u32 2147483647, %v650
        %vm6088 = vcmp.le.f32.partialorder %v6087, 0.7853982
        %vm6089 = vcmp.lt.s32.totalorder %v650, 0
        %v6090 = vand.u32 %v650, 2139095040
        %v6091 = vshrl.u32 %v6090, 23
        %v6092 = vsub.s32 %v6091, 127
        %v6093 = vand.u32 2147483647, %v650
        %v6094 = vand.u32 %v6093, 8388607
        %v6095 = vor.u32 %v6094, 8388608
        %v6096 = vsub.s32 0, %v6095
        %v6097 = vadd.s32 %v6092, 1
        %vm6098 = vcmp.gt.s32.totalorder %v6097, 0
        %v6099 = vsel %vm6098, %v6097, 0
        %v6100 = vshrl.u32 %v6099, 5
        %v6101 = vand.u32 %v6099, 31
        %v6102 = vsub.s32 32, %v6101
        %v6103 = vshrl.u32 683565275, %v6102
        %v6104 = vshll.u32 683565275, %v6101
        %v6105 = vshrl.u32 2475754826, %v6102
        %v6106 = vor.u32 %v6104, %v6105
        %v6107 = vshll.u32 2475754826, %v6101
        %v6108 = vshrl.u32 2131351028, %v6102
        %v6109 = vor.u32 %v6107, %v6108
        %v6110 = vshll.u32 2131351028, %v6101
        %v6111 = vshrl.u32 2102212464, %v6102
        %v6112 = vor.u32 %v6110, %v6111
        %v6113 = vshll.u32 2102212464, %v6101
        %v6114 = vshrl.u32 920167782, %v6102
        %v6115 = vor.u32 %v6113, %v6114
        %v6116 = vshll.u32 920167782, %v6101
        %v6117 = vshrl.u32 1326507024, %v6102
        %v6118 = vor.u32 %v6116, %v6117
        %vm6119 = vcmp.lt.s32.totalorder %v6100, 1
        %vm6120 = vcmp.lt.s32.totalorder %v6100, 2
        %vm6121 = vcmp.lt.s32.totalorder %v6100, 3
        %vm6122 = vcmp.lt.s32.totalorder %v6100, 4
        %v6123 = vsel %vm6119, %v6103, %v6106
        %v6124 = vsel %vm6122, %v6112, 2102212464
        %v6125 = vsel %vm6121, %v6109, %v6124
        %v6126 = vsel %vm6120, %v6123, %v6125
        %v6127 = vsel %vm6119, %v6106, %v6109
        %v6128 = vsel %vm6122, %v6115, 920167782
        %v6129 = vsel %vm6121, %v6112, %v6128
        %v6130 = vsel %vm6120, %v6127, %v6129
        %v6131 = vsel %vm6119, %v6109, %v6112
        %v6132 = vsel %vm6122, %v6118, 1326507024
        %v6133 = vsel %vm6121, %v6115, %v6132
        %v6134 = vsel %vm6120, %v6131, %v6133
        %v6135 = vshll.u32 %v6095, 8
        %v6136 = vmul.u32.u64.compose %v6135, %v6134
        %v6137 = vextract.low.u32 %v6136
        %v6138 = vextract.high.u32 %v6136
        %v6139 = vmul.u32.u64.compose %v6135, %v6130
        %v6140 = vextract.low.u32 %v6139
        %v6141 = vextract.high.u32 %v6139
        %v6142 = vmul.u32 %v6135, %v6126
        %v6143 = vadd.s32 %v6138, %v6140
        %vm6144 = vc.u32 %v6138, %v6140
        %v6145 = vadd.s32 %v6141, 1
        %v6146 = vsel %vm6144, %v6145, %v6141
        %v6147 = vadd.s32 %v6142, %v6146
        %v6148 = vadd.s32 %v6147, 536870912
        %v6149 = vshrl.u32 %v6148, 30
        %v6150 = vshll.u32 %v6149, 30
        %v6151 = vsub.s32 %v6147, %v6150
        %vm6152 = vcmp.lt.s32.totalorder %v6151, 0
        %v6153 = vsub.s32 0, %v6151
        %v6154 = vsel %vm6152, %v6153, %v6151
        %v6155 = vclz %v6154
        %v6156 = vsub.s32 %v6155, 2
        %vm6157 = vcmp.gt.s32.totalorder 0, %v6156
        %v6158 = vsel %vm6157, 0, %v6156
        %v6159 = vsub.s32 32, %v6158
        %v6160 = vshll.u32 %v6151, %v6158
        %v6161 = vshrl.u32 %v6143, %v6159
        %v6162 = vor.u32 %v6160, %v6161
        %v6163 = vsub.s32 4294967266, %v6158
        %v6164 = vadd.s32 %v6163, 127
        %v6165 = vshll.u32 %v6164, 23
        %v6166 = vor.u32 4788187, %v6165
        %v6167 = vand.u32 2147483647, %v6166
        %v6169 = vcvt.s32.f32 %v6162
        %v6170 = vmul.f32 %v6169, %v6167
        %v6171 = vxor.u32 %v6170, 2147483648
        %v6172 = vsel %vm6089, %v6171, %v6170
        %v6173 = vsub.s32 4, %v6149
        %v6174 = vsel %vm6089, %v6173, %v6149
        %v6175 = vsel %vm6088, %v650, %v6172
        %v6176 = vsel %vm6088, 0, %v6174
        %v6177 = vcosq.f32.pop %v6175
        %v6178 = vsinq.f32.pop %v6175
        %vm6179 = vweird.f32 %v650
        %v6180 = vand.u32 %v6176, 3
        %vm6181 = vcmp.lt.s32.totalorder %v6180, 2
        %vm6182 = vcmp.eq.s32.totalorder %v6180, 0
        %v6183 = vxor.u32 %v6178, 2147483648
        %v6184 = vsel %vm6182, %v6177, %v6183
        %vm6185 = vcmp.eq.s32.totalorder %v6180, 2
        %v6186 = vxor.u32 %v6177, 2147483648
        %v6187 = vsel %vm6185, %v6186, %v6178
        %v6188 = vsel %vm6181, %v6184, %v6187
        %v6189 = vsel %vm6179, nan, %v6188
        %v6190 = vand.u32 2147483647, %v653
        %vm6191 = vcmp.le.f32.partialorder %v6190, 0.7853982
        %vm6192 = vcmp.lt.s32.totalorder %v653, 0
        %v6193 = vand.u32 %v653, 2139095040
        %v6194 = vshrl.u32 %v6193, 23
        %v6195 = vsub.s32 %v6194, 127
        %v6196 = vand.u32 2147483647, %v653
        %v6197 = vand.u32 %v6196, 8388607
        %v6198 = vor.u32 %v6197, 8388608
        %v6199 = vsub.s32 0, %v6198
        %v6200 = vadd.s32 %v6195, 1
        %vm6201 = vcmp.gt.s32.totalorder %v6200, 0
        %v6202 = vsel %vm6201, %v6200, 0
        %v6203 = vshrl.u32 %v6202, 5
        %v6204 = vand.u32 %v6202, 31
        %v6205 = vsub.s32 32, %v6204
        %v6206 = vshrl.u32 683565275, %v6205
        %v6207 = vshll.u32 683565275, %v6204
        %v6208 = vshrl.u32 2475754826, %v6205
        %v6209 = vor.u32 %v6207, %v6208
        %v6210 = vshll.u32 2475754826, %v6204
        %v6211 = vshrl.u32 2131351028, %v6205
        %v6212 = vor.u32 %v6210, %v6211
        %v6213 = vshll.u32 2131351028, %v6204
        %v6214 = vshrl.u32 2102212464, %v6205
        %v6215 = vor.u32 %v6213, %v6214
        %v6216 = vshll.u32 2102212464, %v6204
        %v6217 = vshrl.u32 920167782, %v6205
        %v6218 = vor.u32 %v6216, %v6217
        %v6219 = vshll.u32 920167782, %v6204
        %v6220 = vshrl.u32 1326507024, %v6205
        %v6221 = vor.u32 %v6219, %v6220
        %vm6222 = vcmp.lt.s32.totalorder %v6203, 1
        %vm6223 = vcmp.lt.s32.totalorder %v6203, 2
        %vm6224 = vcmp.lt.s32.totalorder %v6203, 3
        %vm6225 = vcmp.lt.s32.totalorder %v6203, 4
        %v6226 = vsel %vm6222, %v6206, %v6209
        %v6227 = vsel %vm6225, %v6215, 2102212464
        %v6228 = vsel %vm6224, %v6212, %v6227
        %v6229 = vsel %vm6223, %v6226, %v6228
        %v6230 = vsel %vm6222, %v6209, %v6212
        %v6231 = vsel %vm6225, %v6218, 920167782
        %v6232 = vsel %vm6224, %v6215, %v6231
        %v6233 = vsel %vm6223, %v6230, %v6232
        %v6234 = vsel %vm6222, %v6212, %v6215
        %v6235 = vsel %vm6225, %v6221, 1326507024
        %v6236 = vsel %vm6224, %v6218, %v6235
        %v6237 = vsel %vm6223, %v6234, %v6236
        %v6238 = vshll.u32 %v6198, 8
        %v6239 = vmul.u32.u64.compose %v6238, %v6237
        %v6240 = vextract.low.u32 %v6239
        %v6241 = vextract.high.u32 %v6239
        %v6242 = vmul.u32.u64.compose %v6238, %v6233
        %v6243 = vextract.low.u32 %v6242
        %v6244 = vextract.high.u32 %v6242
        %v6245 = vmul.u32 %v6238, %v6229
        %v6246 = vadd.s32 %v6241, %v6243
        %vm6247 = vc.u32 %v6241, %v6243
        %v6248 = vadd.s32 %v6244, 1
        %v6249 = vsel %vm6247, %v6248, %v6244
        %v6250 = vadd.s32 %v6245, %v6249
        %v6251 = vadd.s32 %v6250, 536870912
        %v6252 = vshrl.u32 %v6251, 30
        %v6253 = vshll.u32 %v6252, 30
        %v6254 = vsub.s32 %v6250, %v6253
        %vm6255 = vcmp.lt.s32.totalorder %v6254, 0
        %v6256 = vsub.s32 0, %v6254
        %v6257 = vsel %vm6255, %v6256, %v6254
        %v6258 = vclz %v6257
        %v6259 = vsub.s32 %v6258, 2
        %vm6260 = vcmp.gt.s32.totalorder 0, %v6259
        %v6261 = vsel %vm6260, 0, %v6259
        %v6262 = vsub.s32 32, %v6261
        %v6263 = vshll.u32 %v6254, %v6261
        %v6264 = vshrl.u32 %v6246, %v6262
        %v6265 = vor.u32 %v6263, %v6264
        %v6266 = vsub.s32 4294967266, %v6261
        %v6267 = vadd.s32 %v6266, 127
        %v6268 = vshll.u32 %v6267, 23
        %v6269 = vor.u32 4788187, %v6268
        %v6270 = vand.u32 2147483647, %v6269
        %v6272 = vcvt.s32.f32 %v6265
        %v6273 = vmul.f32 %v6272, %v6270
        %v6274 = vxor.u32 %v6273, 2147483648
        %v6275 = vsel %vm6192, %v6274, %v6273
        %v6276 = vsub.s32 4, %v6252
        %v6277 = vsel %vm6192, %v6276, %v6252
        %v6278 = vsel %vm6191, %v653, %v6275
        %v6279 = vsel %vm6191, 0, %v6277
        %v6280 = vcosq.f32.pop %v6278
        %v6281 = vsinq.f32.pop %v6278
        %vm6282 = vweird.f32 %v653
        %v6283 = vand.u32 %v6279, 3
        %vm6284 = vcmp.lt.s32.totalorder %v6283, 2
        %vm6285 = vcmp.eq.s32.totalorder %v6283, 0
        %v6286 = vxor.u32 %v6281, 2147483648
        %v6287 = vsel %vm6285, %v6280, %v6286
        %vm6288 = vcmp.eq.s32.totalorder %v6283, 2
        %v6289 = vxor.u32 %v6280, 2147483648
        %v6290 = vsel %vm6288, %v6289, %v6281
        %v6291 = vsel %vm6284, %v6287, %v6290
        %v6292 = vsel %vm6282, nan, %v6291
        %v6293 = vand.u32 2147483647, %v658
        %vm6294 = vcmp.le.f32.partialorder %v6293, 0.7853982
        %vm6295 = vcmp.lt.s32.totalorder %v658, 0
        %v6296 = vand.u32 %v658, 2139095040
        %v6297 = vshrl.u32 %v6296, 23
        %v6298 = vsub.s32 %v6297, 127
        %v6299 = vand.u32 2147483647, %v658
        %v6300 = vand.u32 %v6299, 8388607
        %v6301 = vor.u32 %v6300, 8388608
        %v6302 = vsub.s32 0, %v6301
        %v6303 = vadd.s32 %v6298, 1
        %vm6304 = vcmp.gt.s32.totalorder %v6303, 0
        %v6305 = vsel %vm6304, %v6303, 0
        %v6306 = vshrl.u32 %v6305, 5
        %v6307 = vand.u32 %v6305, 31
        %v6308 = vsub.s32 32, %v6307
        %v6309 = vshrl.u32 683565275, %v6308
        %v6310 = vshll.u32 683565275, %v6307
        %v6311 = vshrl.u32 2475754826, %v6308
        %v6312 = vor.u32 %v6310, %v6311
        %v6313 = vshll.u32 2475754826, %v6307
        %v6314 = vshrl.u32 2131351028, %v6308
        %v6315 = vor.u32 %v6313, %v6314
        %v6316 = vshll.u32 2131351028, %v6307
        %v6317 = vshrl.u32 2102212464, %v6308
        %v6318 = vor.u32 %v6316, %v6317
        %v6319 = vshll.u32 2102212464, %v6307
        %v6320 = vshrl.u32 920167782, %v6308
        %v6321 = vor.u32 %v6319, %v6320
        %v6322 = vshll.u32 920167782, %v6307
        %v6323 = vshrl.u32 1326507024, %v6308
        %v6324 = vor.u32 %v6322, %v6323
        %vm6325 = vcmp.lt.s32.totalorder %v6306, 1
        %vm6326 = vcmp.lt.s32.totalorder %v6306, 2
        %vm6327 = vcmp.lt.s32.totalorder %v6306, 3
        %vm6328 = vcmp.lt.s32.totalorder %v6306, 4
        %v6329 = vsel %vm6325, %v6309, %v6312
        %v6330 = vsel %vm6328, %v6318, 2102212464
        %v6331 = vsel %vm6327, %v6315, %v6330
        %v6332 = vsel %vm6326, %v6329, %v6331
        %v6333 = vsel %vm6325, %v6312, %v6315
        %v6334 = vsel %vm6328, %v6321, 920167782
        %v6335 = vsel %vm6327, %v6318, %v6334
        %v6336 = vsel %vm6326, %v6333, %v6335
        %v6337 = vsel %vm6325, %v6315, %v6318
        %v6338 = vsel %vm6328, %v6324, 1326507024
        %v6339 = vsel %vm6327, %v6321, %v6338
        %v6340 = vsel %vm6326, %v6337, %v6339
        %v6341 = vshll.u32 %v6301, 8
        %v6342 = vmul.u32.u64.compose %v6341, %v6340
        %v6343 = vextract.low.u32 %v6342
        %v6344 = vextract.high.u32 %v6342
        %v6345 = vmul.u32.u64.compose %v6341, %v6336
        %v6346 = vextract.low.u32 %v6345
        %v6347 = vextract.high.u32 %v6345
        %v6348 = vmul.u32 %v6341, %v6332
        %v6349 = vadd.s32 %v6344, %v6346
        %vm6350 = vc.u32 %v6344, %v6346
        %v6351 = vadd.s32 %v6347, 1
        %v6352 = vsel %vm6350, %v6351, %v6347
        %v6353 = vadd.s32 %v6348, %v6352
        %v6354 = vadd.s32 %v6353, 536870912
        %v6355 = vshrl.u32 %v6354, 30
        %v6356 = vshll.u32 %v6355, 30
        %v6357 = vsub.s32 %v6353, %v6356
        %vm6358 = vcmp.lt.s32.totalorder %v6357, 0
        %v6359 = vsub.s32 0, %v6357
        %v6360 = vsel %vm6358, %v6359, %v6357
        %v6361 = vclz %v6360
        %v6362 = vsub.s32 %v6361, 2
        %vm6363 = vcmp.gt.s32.totalorder 0, %v6362
        %v6364 = vsel %vm6363, 0, %v6362
        %v6365 = vsub.s32 32, %v6364
        %v6366 = vshll.u32 %v6357, %v6364
        %v6367 = vshrl.u32 %v6349, %v6365
        %v6368 = vor.u32 %v6366, %v6367
        %v6369 = vsub.s32 4294967266, %v6364
        %v6370 = vadd.s32 %v6369, 127
        %v6371 = vshll.u32 %v6370, 23
        %v6372 = vor.u32 4788187, %v6371
        %v6373 = vand.u32 2147483647, %v6372
        %v6375 = vcvt.s32.f32 %v6368
        %v6376 = vmul.f32 %v6375, %v6373
        %v6377 = vxor.u32 %v6376, 2147483648
        %v6378 = vsel %vm6295, %v6377, %v6376
        %v6379 = vsub.s32 4, %v6355
        %v6380 = vsel %vm6295, %v6379, %v6355
        %v6381 = vsel %vm6294, %v658, %v6378
        %v6382 = vsel %vm6294, 0, %v6380
        %v6383 = vcosq.f32.pop %v6381
        %v6384 = vsinq.f32.pop %v6381
        %vm6385 = vweird.f32 %v658
        %v6386 = vand.u32 %v6382, 3
        %vm6387 = vcmp.lt.s32.totalorder %v6386, 2
        %vm6388 = vcmp.eq.s32.totalorder %v6386, 0
        %v6389 = vxor.u32 %v6384, 2147483648
        %v6390 = vsel %vm6388, %v6383, %v6389
        %vm6391 = vcmp.eq.s32.totalorder %v6386, 2
        %v6392 = vxor.u32 %v6383, 2147483648
        %v6393 = vsel %vm6391, %v6392, %v6384
        %v6394 = vsel %vm6387, %v6390, %v6393
        %v6395 = vsel %vm6385, nan, %v6394
        %v6396 = vand.u32 2147483647, %v661
        %vm6397 = vcmp.le.f32.partialorder %v6396, 0.7853982
        %vm6398 = vcmp.lt.s32.totalorder %v661, 0
        %v6399 = vand.u32 %v661, 2139095040
        %v6400 = vshrl.u32 %v6399, 23
        %v6401 = vsub.s32 %v6400, 127
        %v6402 = vand.u32 2147483647, %v661
        %v6403 = vand.u32 %v6402, 8388607
        %v6404 = vor.u32 %v6403, 8388608
        %v6405 = vsub.s32 0, %v6404
        %v6406 = vadd.s32 %v6401, 1
        %vm6407 = vcmp.gt.s32.totalorder %v6406, 0
        %v6408 = vsel %vm6407, %v6406, 0
        %v6409 = vshrl.u32 %v6408, 5
        %v6410 = vand.u32 %v6408, 31
        %v6411 = vsub.s32 32, %v6410
        %v6412 = vshrl.u32 683565275, %v6411
        %v6413 = vshll.u32 683565275, %v6410
        %v6414 = vshrl.u32 2475754826, %v6411
        %v6415 = vor.u32 %v6413, %v6414
        %v6416 = vshll.u32 2475754826, %v6410
        %v6417 = vshrl.u32 2131351028, %v6411
        %v6418 = vor.u32 %v6416, %v6417
        %v6419 = vshll.u32 2131351028, %v6410
        %v6420 = vshrl.u32 2102212464, %v6411
        %v6421 = vor.u32 %v6419, %v6420
        %v6422 = vshll.u32 2102212464, %v6410
        %v6423 = vshrl.u32 920167782, %v6411
        %v6424 = vor.u32 %v6422, %v6423
        %v6425 = vshll.u32 920167782, %v6410
        %v6426 = vshrl.u32 1326507024, %v6411
        %v6427 = vor.u32 %v6425, %v6426
        %vm6428 = vcmp.lt.s32.totalorder %v6409, 1
        %vm6429 = vcmp.lt.s32.totalorder %v6409, 2
        %vm6430 = vcmp.lt.s32.totalorder %v6409, 3
        %vm6431 = vcmp.lt.s32.totalorder %v6409, 4
        %v6432 = vsel %vm6428, %v6412, %v6415
        %v6433 = vsel %vm6431, %v6421, 2102212464
        %v6434 = vsel %vm6430, %v6418, %v6433
        %v6435 = vsel %vm6429, %v6432, %v6434
        %v6436 = vsel %vm6428, %v6415, %v6418
        %v6437 = vsel %vm6431, %v6424, 920167782
        %v6438 = vsel %vm6430, %v6421, %v6437
        %v6439 = vsel %vm6429, %v6436, %v6438
        %v6440 = vsel %vm6428, %v6418, %v6421
        %v6441 = vsel %vm6431, %v6427, 1326507024
        %v6442 = vsel %vm6430, %v6424, %v6441
        %v6443 = vsel %vm6429, %v6440, %v6442
        %v6444 = vshll.u32 %v6404, 8
        %v6445 = vmul.u32.u64.compose %v6444, %v6443
        %v6446 = vextract.low.u32 %v6445
        %v6447 = vextract.high.u32 %v6445
        %v6448 = vmul.u32.u64.compose %v6444, %v6439
        %v6449 = vextract.low.u32 %v6448
        %v6450 = vextract.high.u32 %v6448
        %v6451 = vmul.u32 %v6444, %v6435
        %v6452 = vadd.s32 %v6447, %v6449
        %vm6453 = vc.u32 %v6447, %v6449
        %v6454 = vadd.s32 %v6450, 1
        %v6455 = vsel %vm6453, %v6454, %v6450
        %v6456 = vadd.s32 %v6451, %v6455
        %v6457 = vadd.s32 %v6456, 536870912
        %v6458 = vshrl.u32 %v6457, 30
        %v6459 = vshll.u32 %v6458, 30
        %v6460 = vsub.s32 %v6456, %v6459
        %vm6461 = vcmp.lt.s32.totalorder %v6460, 0
        %v6462 = vsub.s32 0, %v6460
        %v6463 = vsel %vm6461, %v6462, %v6460
        %v6464 = vclz %v6463
        %v6465 = vsub.s32 %v6464, 2
        %vm6466 = vcmp.gt.s32.totalorder 0, %v6465
        %v6467 = vsel %vm6466, 0, %v6465
        %v6468 = vsub.s32 32, %v6467
        %v6469 = vshll.u32 %v6460, %v6467
        %v6470 = vshrl.u32 %v6452, %v6468
        %v6471 = vor.u32 %v6469, %v6470
        %v6472 = vsub.s32 4294967266, %v6467
        %v6473 = vadd.s32 %v6472, 127
        %v6474 = vshll.u32 %v6473, 23
        %v6475 = vor.u32 4788187, %v6474
        %v6476 = vand.u32 2147483647, %v6475
        %v6478 = vcvt.s32.f32 %v6471
        %v6479 = vmul.f32 %v6478, %v6476
        %v6480 = vxor.u32 %v6479, 2147483648
        %v6481 = vsel %vm6398, %v6480, %v6479
        %v6482 = vsub.s32 4, %v6458
        %v6483 = vsel %vm6398, %v6482, %v6458
        %v6484 = vsel %vm6397, %v661, %v6481
        %v6485 = vsel %vm6397, 0, %v6483
        %v6486 = vcosq.f32.pop %v6484
        %v6487 = vsinq.f32.pop %v6484
        %vm6488 = vweird.f32 %v661
        %v6489 = vand.u32 %v6485, 3
        %vm6490 = vcmp.lt.s32.totalorder %v6489, 2
        %vm6491 = vcmp.eq.s32.totalorder %v6489, 0
        %v6492 = vxor.u32 %v6487, 2147483648
        %v6493 = vsel %vm6491, %v6486, %v6492
        %vm6494 = vcmp.eq.s32.totalorder %v6489, 2
        %v6495 = vxor.u32 %v6486, 2147483648
        %v6496 = vsel %vm6494, %v6495, %v6487
        %v6497 = vsel %vm6490, %v6493, %v6496
        %v6498 = vsel %vm6488, nan, %v6497
        %v6499 = vand.u32 2147483647, %v666
        %vm6500 = vcmp.le.f32.partialorder %v6499, 0.7853982
        %vm6501 = vcmp.lt.s32.totalorder %v666, 0
        %v6502 = vand.u32 %v666, 2139095040
        %v6503 = vshrl.u32 %v6502, 23
        %v6504 = vsub.s32 %v6503, 127
        %v6505 = vand.u32 2147483647, %v666
        %v6506 = vand.u32 %v6505, 8388607
        %v6507 = vor.u32 %v6506, 8388608
        %v6508 = vsub.s32 0, %v6507
        %v6509 = vadd.s32 %v6504, 1
        %vm6510 = vcmp.gt.s32.totalorder %v6509, 0
        %v6511 = vsel %vm6510, %v6509, 0
        %v6512 = vshrl.u32 %v6511, 5
        %v6513 = vand.u32 %v6511, 31
        %v6514 = vsub.s32 32, %v6513
        %v6515 = vshrl.u32 683565275, %v6514
        %v6516 = vshll.u32 683565275, %v6513
        %v6517 = vshrl.u32 2475754826, %v6514
        %v6518 = vor.u32 %v6516, %v6517
        %v6519 = vshll.u32 2475754826, %v6513
        %v6520 = vshrl.u32 2131351028, %v6514
        %v6521 = vor.u32 %v6519, %v6520
        %v6522 = vshll.u32 2131351028, %v6513
        %v6523 = vshrl.u32 2102212464, %v6514
        %v6524 = vor.u32 %v6522, %v6523
        %v6525 = vshll.u32 2102212464, %v6513
        %v6526 = vshrl.u32 920167782, %v6514
        %v6527 = vor.u32 %v6525, %v6526
        %v6528 = vshll.u32 920167782, %v6513
        %v6529 = vshrl.u32 1326507024, %v6514
        %v6530 = vor.u32 %v6528, %v6529
        %vm6531 = vcmp.lt.s32.totalorder %v6512, 1
        %vm6532 = vcmp.lt.s32.totalorder %v6512, 2
        %vm6533 = vcmp.lt.s32.totalorder %v6512, 3
        %vm6534 = vcmp.lt.s32.totalorder %v6512, 4
        %v6535 = vsel %vm6531, %v6515, %v6518
        %v6536 = vsel %vm6534, %v6524, 2102212464
        %v6537 = vsel %vm6533, %v6521, %v6536
        %v6538 = vsel %vm6532, %v6535, %v6537
        %v6539 = vsel %vm6531, %v6518, %v6521
        %v6540 = vsel %vm6534, %v6527, 920167782
        %v6541 = vsel %vm6533, %v6524, %v6540
        %v6542 = vsel %vm6532, %v6539, %v6541
        %v6543 = vsel %vm6531, %v6521, %v6524
        %v6544 = vsel %vm6534, %v6530, 1326507024
        %v6545 = vsel %vm6533, %v6527, %v6544
        %v6546 = vsel %vm6532, %v6543, %v6545
        %v6547 = vshll.u32 %v6507, 8
        %v6548 = vmul.u32.u64.compose %v6547, %v6546
        %v6549 = vextract.low.u32 %v6548
        %v6550 = vextract.high.u32 %v6548
        %v6551 = vmul.u32.u64.compose %v6547, %v6542
        %v6552 = vextract.low.u32 %v6551
        %v6553 = vextract.high.u32 %v6551
        %v6554 = vmul.u32 %v6547, %v6538
        %v6555 = vadd.s32 %v6550, %v6552
        %vm6556 = vc.u32 %v6550, %v6552
        %v6557 = vadd.s32 %v6553, 1
        %v6558 = vsel %vm6556, %v6557, %v6553
        %v6559 = vadd.s32 %v6554, %v6558
        %v6560 = vadd.s32 %v6559, 536870912
        %v6561 = vshrl.u32 %v6560, 30
        %v6562 = vshll.u32 %v6561, 30
        %v6563 = vsub.s32 %v6559, %v6562
        %vm6564 = vcmp.lt.s32.totalorder %v6563, 0
        %v6565 = vsub.s32 0, %v6563
        %v6566 = vsel %vm6564, %v6565, %v6563
        %v6567 = vclz %v6566
        %v6568 = vsub.s32 %v6567, 2
        %vm6569 = vcmp.gt.s32.totalorder 0, %v6568
        %v6570 = vsel %vm6569, 0, %v6568
        %v6571 = vsub.s32 32, %v6570
        %v6572 = vshll.u32 %v6563, %v6570
        %v6573 = vshrl.u32 %v6555, %v6571
        %v6574 = vor.u32 %v6572, %v6573
        %v6575 = vsub.s32 4294967266, %v6570
        %v6576 = vadd.s32 %v6575, 127
        %v6577 = vshll.u32 %v6576, 23
        %v6578 = vor.u32 4788187, %v6577
        %v6579 = vand.u32 2147483647, %v6578
        %v6581 = vcvt.s32.f32 %v6574
        %v6582 = vmul.f32 %v6581, %v6579
        %v6583 = vxor.u32 %v6582, 2147483648
        %v6584 = vsel %vm6501, %v6583, %v6582
        %v6585 = vsub.s32 4, %v6561
        %v6586 = vsel %vm6501, %v6585, %v6561
        %v6587 = vsel %vm6500, %v666, %v6584
        %v6588 = vsel %vm6500, 0, %v6586
        %v6589 = vcosq.f32.pop %v6587
        %v6590 = vsinq.f32.pop %v6587
        %vm6591 = vweird.f32 %v666
        %v6592 = vand.u32 %v6588, 3
        %vm6593 = vcmp.lt.s32.totalorder %v6592, 2
        %vm6594 = vcmp.eq.s32.totalorder %v6592, 0
        %v6595 = vxor.u32 %v6590, 2147483648
        %v6596 = vsel %vm6594, %v6589, %v6595
        %vm6597 = vcmp.eq.s32.totalorder %v6592, 2
        %v6598 = vxor.u32 %v6589, 2147483648
        %v6599 = vsel %vm6597, %v6598, %v6590
        %v6600 = vsel %vm6593, %v6596, %v6599
        %v6601 = vsel %vm6591, nan, %v6600
        %v6602 = vand.u32 2147483647, %v669
        %vm6603 = vcmp.le.f32.partialorder %v6602, 0.7853982
        %vm6604 = vcmp.lt.s32.totalorder %v669, 0
        %v6605 = vand.u32 %v669, 2139095040
        %v6606 = vshrl.u32 %v6605, 23
        %v6607 = vsub.s32 %v6606, 127
        %v6608 = vand.u32 2147483647, %v669
        %v6609 = vand.u32 %v6608, 8388607
        %v6610 = vor.u32 %v6609, 8388608
        %v6611 = vsub.s32 0, %v6610
        %v6612 = vadd.s32 %v6607, 1
        %vm6613 = vcmp.gt.s32.totalorder %v6612, 0
        %v6614 = vsel %vm6613, %v6612, 0
        %v6615 = vshrl.u32 %v6614, 5
        %v6616 = vand.u32 %v6614, 31
        %v6617 = vsub.s32 32, %v6616
        %v6618 = vshrl.u32 683565275, %v6617
        %v6619 = vshll.u32 683565275, %v6616
        %v6620 = vshrl.u32 2475754826, %v6617
        %v6621 = vor.u32 %v6619, %v6620
        %v6622 = vshll.u32 2475754826, %v6616
        %v6623 = vshrl.u32 2131351028, %v6617
        %v6624 = vor.u32 %v6622, %v6623
        %v6625 = vshll.u32 2131351028, %v6616
        %v6626 = vshrl.u32 2102212464, %v6617
        %v6627 = vor.u32 %v6625, %v6626
        %v6628 = vshll.u32 2102212464, %v6616
        %v6629 = vshrl.u32 920167782, %v6617
        %v6630 = vor.u32 %v6628, %v6629
        %v6631 = vshll.u32 920167782, %v6616
        %v6632 = vshrl.u32 1326507024, %v6617
        %v6633 = vor.u32 %v6631, %v6632
        %vm6634 = vcmp.lt.s32.totalorder %v6615, 1
        %vm6635 = vcmp.lt.s32.totalorder %v6615, 2
        %vm6636 = vcmp.lt.s32.totalorder %v6615, 3
        %vm6637 = vcmp.lt.s32.totalorder %v6615, 4
        %v6638 = vsel %vm6634, %v6618, %v6621
        %v6639 = vsel %vm6637, %v6627, 2102212464
        %v6640 = vsel %vm6636, %v6624, %v6639
        %v6641 = vsel %vm6635, %v6638, %v6640
        %v6642 = vsel %vm6634, %v6621, %v6624
        %v6643 = vsel %vm6637, %v6630, 920167782
        %v6644 = vsel %vm6636, %v6627, %v6643
        %v6645 = vsel %vm6635, %v6642, %v6644
        %v6646 = vsel %vm6634, %v6624, %v6627
        %v6647 = vsel %vm6637, %v6633, 1326507024
        %v6648 = vsel %vm6636, %v6630, %v6647
        %v6649 = vsel %vm6635, %v6646, %v6648
        %v6650 = vshll.u32 %v6610, 8
        %v6651 = vmul.u32.u64.compose %v6650, %v6649
        %v6652 = vextract.low.u32 %v6651
        %v6653 = vextract.high.u32 %v6651
        %v6654 = vmul.u32.u64.compose %v6650, %v6645
        %v6655 = vextract.low.u32 %v6654
        %v6656 = vextract.high.u32 %v6654
        %v6657 = vmul.u32 %v6650, %v6641
        %v6658 = vadd.s32 %v6653, %v6655
        %vm6659 = vc.u32 %v6653, %v6655
        %v6660 = vadd.s32 %v6656, 1
        %v6661 = vsel %vm6659, %v6660, %v6656
        %v6662 = vadd.s32 %v6657, %v6661
        %v6663 = vadd.s32 %v6662, 536870912
        %v6664 = vshrl.u32 %v6663, 30
        %v6665 = vshll.u32 %v6664, 30
        %v6666 = vsub.s32 %v6662, %v6665
        %vm6667 = vcmp.lt.s32.totalorder %v6666, 0
        %v6668 = vsub.s32 0, %v6666
        %v6669 = vsel %vm6667, %v6668, %v6666
        %v6670 = vclz %v6669
        %v6671 = vsub.s32 %v6670, 2
        %vm6672 = vcmp.gt.s32.totalorder 0, %v6671
        %v6673 = vsel %vm6672, 0, %v6671
        %v6674 = vsub.s32 32, %v6673
        %v6675 = vshll.u32 %v6666, %v6673
        %v6676 = vshrl.u32 %v6658, %v6674
        %v6677 = vor.u32 %v6675, %v6676
        %v6678 = vsub.s32 4294967266, %v6673
        %v6679 = vadd.s32 %v6678, 127
        %v6680 = vshll.u32 %v6679, 23
        %v6681 = vor.u32 4788187, %v6680
        %v6682 = vand.u32 2147483647, %v6681
        %v6684 = vcvt.s32.f32 %v6677
        %v6685 = vmul.f32 %v6684, %v6682
        %v6686 = vxor.u32 %v6685, 2147483648
        %v6687 = vsel %vm6604, %v6686, %v6685
        %v6688 = vsub.s32 4, %v6664
        %v6689 = vsel %vm6604, %v6688, %v6664
        %v6690 = vsel %vm6603, %v669, %v6687
        %v6691 = vsel %vm6603, 0, %v6689
        %v6692 = vcosq.f32.pop %v6690
        %v6693 = vsinq.f32.pop %v6690
        %vm6694 = vweird.f32 %v669
        %v6695 = vand.u32 %v6691, 3
        %vm6696 = vcmp.lt.s32.totalorder %v6695, 2
        %vm6697 = vcmp.eq.s32.totalorder %v6695, 0
        %v6698 = vxor.u32 %v6693, 2147483648
        %v6699 = vsel %vm6697, %v6692, %v6698
        %vm6700 = vcmp.eq.s32.totalorder %v6695, 2
        %v6701 = vxor.u32 %v6692, 2147483648
        %v6702 = vsel %vm6700, %v6701, %v6693
        %v6703 = vsel %vm6696, %v6699, %v6702
        %v6704 = vsel %vm6694, nan, %v6703
        %v6705 = vand.u32 2147483647, %v674
        %vm6706 = vcmp.le.f32.partialorder %v6705, 0.7853982
        %vm6707 = vcmp.lt.s32.totalorder %v674, 0
        %v6708 = vand.u32 %v674, 2139095040
        %v6709 = vshrl.u32 %v6708, 23
        %v6710 = vsub.s32 %v6709, 127
        %v6711 = vand.u32 2147483647, %v674
        %v6712 = vand.u32 %v6711, 8388607
        %v6713 = vor.u32 %v6712, 8388608
        %v6714 = vsub.s32 0, %v6713
        %v6715 = vadd.s32 %v6710, 1
        %vm6716 = vcmp.gt.s32.totalorder %v6715, 0
        %v6717 = vsel %vm6716, %v6715, 0
        %v6718 = vshrl.u32 %v6717, 5
        %v6719 = vand.u32 %v6717, 31
        %v6720 = vsub.s32 32, %v6719
        %v6721 = vshrl.u32 683565275, %v6720
        %v6722 = vshll.u32 683565275, %v6719
        %v6723 = vshrl.u32 2475754826, %v6720
        %v6724 = vor.u32 %v6722, %v6723
        %v6725 = vshll.u32 2475754826, %v6719
        %v6726 = vshrl.u32 2131351028, %v6720
        %v6727 = vor.u32 %v6725, %v6726
        %v6728 = vshll.u32 2131351028, %v6719
        %v6729 = vshrl.u32 2102212464, %v6720
        %v6730 = vor.u32 %v6728, %v6729
        %v6731 = vshll.u32 2102212464, %v6719
        %v6732 = vshrl.u32 920167782, %v6720
        %v6733 = vor.u32 %v6731, %v6732
        %v6734 = vshll.u32 920167782, %v6719
        %v6735 = vshrl.u32 1326507024, %v6720
        %v6736 = vor.u32 %v6734, %v6735
        %vm6737 = vcmp.lt.s32.totalorder %v6718, 1
        %vm6738 = vcmp.lt.s32.totalorder %v6718, 2
        %vm6739 = vcmp.lt.s32.totalorder %v6718, 3
        %vm6740 = vcmp.lt.s32.totalorder %v6718, 4
        %v6741 = vsel %vm6737, %v6721, %v6724
        %v6742 = vsel %vm6740, %v6730, 2102212464
        %v6743 = vsel %vm6739, %v6727, %v6742
        %v6744 = vsel %vm6738, %v6741, %v6743
        %v6745 = vsel %vm6737, %v6724, %v6727
        %v6746 = vsel %vm6740, %v6733, 920167782
        %v6747 = vsel %vm6739, %v6730, %v6746
        %v6748 = vsel %vm6738, %v6745, %v6747
        %v6749 = vsel %vm6737, %v6727, %v6730
        %v6750 = vsel %vm6740, %v6736, 1326507024
        %v6751 = vsel %vm6739, %v6733, %v6750
        %v6752 = vsel %vm6738, %v6749, %v6751
        %v6753 = vshll.u32 %v6713, 8
        %v6754 = vmul.u32.u64.compose %v6753, %v6752
        %v6755 = vextract.low.u32 %v6754
        %v6756 = vextract.high.u32 %v6754
        %v6757 = vmul.u32.u64.compose %v6753, %v6748
        %v6758 = vextract.low.u32 %v6757
        %v6759 = vextract.high.u32 %v6757
        %v6760 = vmul.u32 %v6753, %v6744
        %v6761 = vadd.s32 %v6756, %v6758
        %vm6762 = vc.u32 %v6756, %v6758
        %v6763 = vadd.s32 %v6759, 1
        %v6764 = vsel %vm6762, %v6763, %v6759
        %v6765 = vadd.s32 %v6760, %v6764
        %v6766 = vadd.s32 %v6765, 536870912
        %v6767 = vshrl.u32 %v6766, 30
        %v6768 = vshll.u32 %v6767, 30
        %v6769 = vsub.s32 %v6765, %v6768
        %vm6770 = vcmp.lt.s32.totalorder %v6769, 0
        %v6771 = vsub.s32 0, %v6769
        %v6772 = vsel %vm6770, %v6771, %v6769
        %v6773 = vclz %v6772
        %v6774 = vsub.s32 %v6773, 2
        %vm6775 = vcmp.gt.s32.totalorder 0, %v6774
        %v6776 = vsel %vm6775, 0, %v6774
        %v6777 = vsub.s32 32, %v6776
        %v6778 = vshll.u32 %v6769, %v6776
        %v6779 = vshrl.u32 %v6761, %v6777
        %v6780 = vor.u32 %v6778, %v6779
        %v6781 = vsub.s32 4294967266, %v6776
        %v6782 = vadd.s32 %v6781, 127
        %v6783 = vshll.u32 %v6782, 23
        %v6784 = vor.u32 4788187, %v6783
        %v6785 = vand.u32 2147483647, %v6784
        %v6787 = vcvt.s32.f32 %v6780
        %v6788 = vmul.f32 %v6787, %v6785
        %v6789 = vxor.u32 %v6788, 2147483648
        %v6790 = vsel %vm6707, %v6789, %v6788
        %v6791 = vsub.s32 4, %v6767
        %v6792 = vsel %vm6707, %v6791, %v6767
        %v6793 = vsel %vm6706, %v674, %v6790
        %v6794 = vsel %vm6706, 0, %v6792
        %v6795 = vcosq.f32.pop %v6793
        %v6796 = vsinq.f32.pop %v6793
        %vm6797 = vweird.f32 %v674
        %v6798 = vand.u32 %v6794, 3
        %vm6799 = vcmp.lt.s32.totalorder %v6798, 2
        %vm6800 = vcmp.eq.s32.totalorder %v6798, 0
        %v6801 = vxor.u32 %v6796, 2147483648
        %v6802 = vsel %vm6800, %v6795, %v6801
        %vm6803 = vcmp.eq.s32.totalorder %v6798, 2
        %v6804 = vxor.u32 %v6795, 2147483648
        %v6805 = vsel %vm6803, %v6804, %v6796
        %v6806 = vsel %vm6799, %v6802, %v6805
        %v6807 = vsel %vm6797, nan, %v6806
        %v6808 = vand.u32 2147483647, %v677
        %vm6809 = vcmp.le.f32.partialorder %v6808, 0.7853982
        %vm6810 = vcmp.lt.s32.totalorder %v677, 0
        %v6811 = vand.u32 %v677, 2139095040
        %v6812 = vshrl.u32 %v6811, 23
        %v6813 = vsub.s32 %v6812, 127
        %v6814 = vand.u32 2147483647, %v677
        %v6815 = vand.u32 %v6814, 8388607
        %v6816 = vor.u32 %v6815, 8388608
        %v6817 = vsub.s32 0, %v6816
        %v6818 = vadd.s32 %v6813, 1
        %vm6819 = vcmp.gt.s32.totalorder %v6818, 0
        %v6820 = vsel %vm6819, %v6818, 0
        %v6821 = vshrl.u32 %v6820, 5
        %v6822 = vand.u32 %v6820, 31
        %v6823 = vsub.s32 32, %v6822
        %v6824 = vshrl.u32 683565275, %v6823
        %v6825 = vshll.u32 683565275, %v6822
        %v6826 = vshrl.u32 2475754826, %v6823
        %v6827 = vor.u32 %v6825, %v6826
        %v6828 = vshll.u32 2475754826, %v6822
        %v6829 = vshrl.u32 2131351028, %v6823
        %v6830 = vor.u32 %v6828, %v6829
        %v6831 = vshll.u32 2131351028, %v6822
        %v6832 = vshrl.u32 2102212464, %v6823
        %v6833 = vor.u32 %v6831, %v6832
        %v6834 = vshll.u32 2102212464, %v6822
        %v6835 = vshrl.u32 920167782, %v6823
        %v6836 = vor.u32 %v6834, %v6835
        %v6837 = vshll.u32 920167782, %v6822
        %v6838 = vshrl.u32 1326507024, %v6823
        %v6839 = vor.u32 %v6837, %v6838
        %vm6840 = vcmp.lt.s32.totalorder %v6821, 1
        %vm6841 = vcmp.lt.s32.totalorder %v6821, 2
        %vm6842 = vcmp.lt.s32.totalorder %v6821, 3
        %vm6843 = vcmp.lt.s32.totalorder %v6821, 4
        %v6844 = vsel %vm6840, %v6824, %v6827
        %v6845 = vsel %vm6843, %v6833, 2102212464
        %v6846 = vsel %vm6842, %v6830, %v6845
        %v6847 = vsel %vm6841, %v6844, %v6846
        %v6848 = vsel %vm6840, %v6827, %v6830
        %v6849 = vsel %vm6843, %v6836, 920167782
        %v6850 = vsel %vm6842, %v6833, %v6849
        %v6851 = vsel %vm6841, %v6848, %v6850
        %v6852 = vsel %vm6840, %v6830, %v6833
        %v6853 = vsel %vm6843, %v6839, 1326507024
        %v6854 = vsel %vm6842, %v6836, %v6853
        %v6855 = vsel %vm6841, %v6852, %v6854
        %v6856 = vshll.u32 %v6816, 8
        %v6857 = vmul.u32.u64.compose %v6856, %v6855
        %v6858 = vextract.low.u32 %v6857
        %v6859 = vextract.high.u32 %v6857
        %v6860 = vmul.u32.u64.compose %v6856, %v6851
        %v6861 = vextract.low.u32 %v6860
        %v6862 = vextract.high.u32 %v6860
        %v6863 = vmul.u32 %v6856, %v6847
        %v6864 = vadd.s32 %v6859, %v6861
        %vm6865 = vc.u32 %v6859, %v6861
        %v6866 = vadd.s32 %v6862, 1
        %v6867 = vsel %vm6865, %v6866, %v6862
        %v6868 = vadd.s32 %v6863, %v6867
        %v6869 = vadd.s32 %v6868, 536870912
        %v6870 = vshrl.u32 %v6869, 30
        %v6871 = vshll.u32 %v6870, 30
        %v6872 = vsub.s32 %v6868, %v6871
        %vm6873 = vcmp.lt.s32.totalorder %v6872, 0
        %v6874 = vsub.s32 0, %v6872
        %v6875 = vsel %vm6873, %v6874, %v6872
        %v6876 = vclz %v6875
        %v6877 = vsub.s32 %v6876, 2
        %vm6878 = vcmp.gt.s32.totalorder 0, %v6877
        %v6879 = vsel %vm6878, 0, %v6877
        %v6880 = vsub.s32 32, %v6879
        %v6881 = vshll.u32 %v6872, %v6879
        %v6882 = vshrl.u32 %v6864, %v6880
        %v6883 = vor.u32 %v6881, %v6882
        %v6884 = vsub.s32 4294967266, %v6879
        %v6885 = vadd.s32 %v6884, 127
        %v6886 = vshll.u32 %v6885, 23
        %v6887 = vor.u32 4788187, %v6886
        %v6888 = vand.u32 2147483647, %v6887
        %v6890 = vcvt.s32.f32 %v6883
        %v6891 = vmul.f32 %v6890, %v6888
        %v6892 = vxor.u32 %v6891, 2147483648
        %v6893 = vsel %vm6810, %v6892, %v6891
        %v6894 = vsub.s32 4, %v6870
        %v6895 = vsel %vm6810, %v6894, %v6870
        %v6896 = vsel %vm6809, %v677, %v6893
        %v6897 = vsel %vm6809, 0, %v6895
        %v6898 = vcosq.f32.pop %v6896
        %v6899 = vsinq.f32.pop %v6896
        %vm6900 = vweird.f32 %v677
        %v6901 = vand.u32 %v6897, 3
        %vm6902 = vcmp.lt.s32.totalorder %v6901, 2
        %vm6903 = vcmp.eq.s32.totalorder %v6901, 0
        %v6904 = vxor.u32 %v6899, 2147483648
        %v6905 = vsel %vm6903, %v6898, %v6904
        %vm6906 = vcmp.eq.s32.totalorder %v6901, 2
        %v6907 = vxor.u32 %v6898, 2147483648
        %v6908 = vsel %vm6906, %v6907, %v6899
        %v6909 = vsel %vm6902, %v6905, %v6908
        %v6910 = vsel %vm6900, nan, %v6909
        %v6911 = vand.u32 2147483647, %v682
        %vm6912 = vcmp.le.f32.partialorder %v6911, 0.7853982
        %vm6913 = vcmp.lt.s32.totalorder %v682, 0
        %v6914 = vand.u32 %v682, 2139095040
        %v6915 = vshrl.u32 %v6914, 23
        %v6916 = vsub.s32 %v6915, 127
        %v6917 = vand.u32 2147483647, %v682
        %v6918 = vand.u32 %v6917, 8388607
        %v6919 = vor.u32 %v6918, 8388608
        %v6920 = vsub.s32 0, %v6919
        %v6921 = vadd.s32 %v6916, 1
        %vm6922 = vcmp.gt.s32.totalorder %v6921, 0
        %v6923 = vsel %vm6922, %v6921, 0
        %v6924 = vshrl.u32 %v6923, 5
        %v6925 = vand.u32 %v6923, 31
        %v6926 = vsub.s32 32, %v6925
        %v6927 = vshrl.u32 683565275, %v6926
        %v6928 = vshll.u32 683565275, %v6925
        %v6929 = vshrl.u32 2475754826, %v6926
        %v6930 = vor.u32 %v6928, %v6929
        %v6931 = vshll.u32 2475754826, %v6925
        %v6932 = vshrl.u32 2131351028, %v6926
        %v6933 = vor.u32 %v6931, %v6932
        %v6934 = vshll.u32 2131351028, %v6925
        %v6935 = vshrl.u32 2102212464, %v6926
        %v6936 = vor.u32 %v6934, %v6935
        %v6937 = vshll.u32 2102212464, %v6925
        %v6938 = vshrl.u32 920167782, %v6926
        %v6939 = vor.u32 %v6937, %v6938
        %v6940 = vshll.u32 920167782, %v6925
        %v6941 = vshrl.u32 1326507024, %v6926
        %v6942 = vor.u32 %v6940, %v6941
        %vm6943 = vcmp.lt.s32.totalorder %v6924, 1
        %vm6944 = vcmp.lt.s32.totalorder %v6924, 2
        %vm6945 = vcmp.lt.s32.totalorder %v6924, 3
        %vm6946 = vcmp.lt.s32.totalorder %v6924, 4
        %v6947 = vsel %vm6943, %v6927, %v6930
        %v6948 = vsel %vm6946, %v6936, 2102212464
        %v6949 = vsel %vm6945, %v6933, %v6948
        %v6950 = vsel %vm6944, %v6947, %v6949
        %v6951 = vsel %vm6943, %v6930, %v6933
        %v6952 = vsel %vm6946, %v6939, 920167782
        %v6953 = vsel %vm6945, %v6936, %v6952
        %v6954 = vsel %vm6944, %v6951, %v6953
        %v6955 = vsel %vm6943, %v6933, %v6936
        %v6956 = vsel %vm6946, %v6942, 1326507024
        %v6957 = vsel %vm6945, %v6939, %v6956
        %v6958 = vsel %vm6944, %v6955, %v6957
        %v6959 = vshll.u32 %v6919, 8
        %v6960 = vmul.u32.u64.compose %v6959, %v6958
        %v6961 = vextract.low.u32 %v6960
        %v6962 = vextract.high.u32 %v6960
        %v6963 = vmul.u32.u64.compose %v6959, %v6954
        %v6964 = vextract.low.u32 %v6963
        %v6965 = vextract.high.u32 %v6963
        %v6966 = vmul.u32 %v6959, %v6950
        %v6967 = vadd.s32 %v6962, %v6964
        %vm6968 = vc.u32 %v6962, %v6964
        %v6969 = vadd.s32 %v6965, 1
        %v6970 = vsel %vm6968, %v6969, %v6965
        %v6971 = vadd.s32 %v6966, %v6970
        %v6972 = vadd.s32 %v6971, 536870912
        %v6973 = vshrl.u32 %v6972, 30
        %v6974 = vshll.u32 %v6973, 30
        %v6975 = vsub.s32 %v6971, %v6974
        %vm6976 = vcmp.lt.s32.totalorder %v6975, 0
        %v6977 = vsub.s32 0, %v6975
        %v6978 = vsel %vm6976, %v6977, %v6975
        %v6979 = vclz %v6978
        %v6980 = vsub.s32 %v6979, 2
        %vm6981 = vcmp.gt.s32.totalorder 0, %v6980
        %v6982 = vsel %vm6981, 0, %v6980
        %v6983 = vsub.s32 32, %v6982
        %v6984 = vshll.u32 %v6975, %v6982
        %v6985 = vshrl.u32 %v6967, %v6983
        %v6986 = vor.u32 %v6984, %v6985
        %v6987 = vsub.s32 4294967266, %v6982
        %v6988 = vadd.s32 %v6987, 127
        %v6989 = vshll.u32 %v6988, 23
        %v6990 = vor.u32 4788187, %v6989
        %v6991 = vand.u32 2147483647, %v6990
        %v6993 = vcvt.s32.f32 %v6986
        %v6994 = vmul.f32 %v6993, %v6991
        %v6995 = vxor.u32 %v6994, 2147483648
        %v6996 = vsel %vm6913, %v6995, %v6994
        %v6997 = vsub.s32 4, %v6973
        %v6998 = vsel %vm6913, %v6997, %v6973
        %v6999 = vsel %vm6912, %v682, %v6996
        %v7000 = vsel %vm6912, 0, %v6998
        %v7001 = vcosq.f32.pop %v6999
        %v7002 = vsinq.f32.pop %v6999
        %vm7003 = vweird.f32 %v682
        %v7004 = vand.u32 %v7000, 3
        %vm7005 = vcmp.lt.s32.totalorder %v7004, 2
        %vm7006 = vcmp.eq.s32.totalorder %v7004, 0
        %v7007 = vxor.u32 %v7002, 2147483648
        %v7008 = vsel %vm7006, %v7001, %v7007
        %vm7009 = vcmp.eq.s32.totalorder %v7004, 2
        %v7010 = vxor.u32 %v7001, 2147483648
        %v7011 = vsel %vm7009, %v7010, %v7002
        %v7012 = vsel %vm7005, %v7008, %v7011
        %v7013 = vsel %vm7003, nan, %v7012
        %v7014 = vand.u32 2147483647, %v685
        %vm7015 = vcmp.le.f32.partialorder %v7014, 0.7853982
        %vm7016 = vcmp.lt.s32.totalorder %v685, 0
        %v7017 = vand.u32 %v685, 2139095040
        %v7018 = vshrl.u32 %v7017, 23
        %v7019 = vsub.s32 %v7018, 127
        %v7020 = vand.u32 2147483647, %v685
        %v7021 = vand.u32 %v7020, 8388607
        %v7022 = vor.u32 %v7021, 8388608
        %v7023 = vsub.s32 0, %v7022
        %v7024 = vadd.s32 %v7019, 1
        %vm7025 = vcmp.gt.s32.totalorder %v7024, 0
        %v7026 = vsel %vm7025, %v7024, 0
        %v7027 = vshrl.u32 %v7026, 5
        %v7028 = vand.u32 %v7026, 31
        %v7029 = vsub.s32 32, %v7028
        %v7030 = vshrl.u32 683565275, %v7029
        %v7031 = vshll.u32 683565275, %v7028
        %v7032 = vshrl.u32 2475754826, %v7029
        %v7033 = vor.u32 %v7031, %v7032
        %v7034 = vshll.u32 2475754826, %v7028
        %v7035 = vshrl.u32 2131351028, %v7029
        %v7036 = vor.u32 %v7034, %v7035
        %v7037 = vshll.u32 2131351028, %v7028
        %v7038 = vshrl.u32 2102212464, %v7029
        %v7039 = vor.u32 %v7037, %v7038
        %v7040 = vshll.u32 2102212464, %v7028
        %v7041 = vshrl.u32 920167782, %v7029
        %v7042 = vor.u32 %v7040, %v7041
        %v7043 = vshll.u32 920167782, %v7028
        %v7044 = vshrl.u32 1326507024, %v7029
        %v7045 = vor.u32 %v7043, %v7044
        %vm7046 = vcmp.lt.s32.totalorder %v7027, 1
        %vm7047 = vcmp.lt.s32.totalorder %v7027, 2
        %vm7048 = vcmp.lt.s32.totalorder %v7027, 3
        %vm7049 = vcmp.lt.s32.totalorder %v7027, 4
        %v7050 = vsel %vm7046, %v7030, %v7033
        %v7051 = vsel %vm7049, %v7039, 2102212464
        %v7052 = vsel %vm7048, %v7036, %v7051
        %v7053 = vsel %vm7047, %v7050, %v7052
        %v7054 = vsel %vm7046, %v7033, %v7036
        %v7055 = vsel %vm7049, %v7042, 920167782
        %v7056 = vsel %vm7048, %v7039, %v7055
        %v7057 = vsel %vm7047, %v7054, %v7056
        %v7058 = vsel %vm7046, %v7036, %v7039
        %v7059 = vsel %vm7049, %v7045, 1326507024
        %v7060 = vsel %vm7048, %v7042, %v7059
        %v7061 = vsel %vm7047, %v7058, %v7060
        %v7062 = vshll.u32 %v7022, 8
        %v7063 = vmul.u32.u64.compose %v7062, %v7061
        %v7064 = vextract.low.u32 %v7063
        %v7065 = vextract.high.u32 %v7063
        %v7066 = vmul.u32.u64.compose %v7062, %v7057
        %v7067 = vextract.low.u32 %v7066
        %v7068 = vextract.high.u32 %v7066
        %v7069 = vmul.u32 %v7062, %v7053
        %v7070 = vadd.s32 %v7065, %v7067
        %vm7071 = vc.u32 %v7065, %v7067
        %v7072 = vadd.s32 %v7068, 1
        %v7073 = vsel %vm7071, %v7072, %v7068
        %v7074 = vadd.s32 %v7069, %v7073
        %v7075 = vadd.s32 %v7074, 536870912
        %v7076 = vshrl.u32 %v7075, 30
        %v7077 = vshll.u32 %v7076, 30
        %v7078 = vsub.s32 %v7074, %v7077
        %vm7079 = vcmp.lt.s32.totalorder %v7078, 0
        %v7080 = vsub.s32 0, %v7078
        %v7081 = vsel %vm7079, %v7080, %v7078
        %v7082 = vclz %v7081
        %v7083 = vsub.s32 %v7082, 2
        %vm7084 = vcmp.gt.s32.totalorder 0, %v7083
        %v7085 = vsel %vm7084, 0, %v7083
        %v7086 = vsub.s32 32, %v7085
        %v7087 = vshll.u32 %v7078, %v7085
        %v7088 = vshrl.u32 %v7070, %v7086
        %v7089 = vor.u32 %v7087, %v7088
        %v7090 = vsub.s32 4294967266, %v7085
        %v7091 = vadd.s32 %v7090, 127
        %v7092 = vshll.u32 %v7091, 23
        %v7093 = vor.u32 4788187, %v7092
        %v7094 = vand.u32 2147483647, %v7093
        %v7096 = vcvt.s32.f32 %v7089
        %v7097 = vmul.f32 %v7096, %v7094
        %v7098 = vxor.u32 %v7097, 2147483648
        %v7099 = vsel %vm7016, %v7098, %v7097
        %v7100 = vsub.s32 4, %v7076
        %v7101 = vsel %vm7016, %v7100, %v7076
        %v7102 = vsel %vm7015, %v685, %v7099
        %v7103 = vsel %vm7015, 0, %v7101
        %v7104 = vcosq.f32.pop %v7102
        %v7105 = vsinq.f32.pop %v7102
        %vm7106 = vweird.f32 %v685
        %v7107 = vand.u32 %v7103, 3
        %vm7108 = vcmp.lt.s32.totalorder %v7107, 2
        %vm7109 = vcmp.eq.s32.totalorder %v7107, 0
        %v7110 = vxor.u32 %v7105, 2147483648
        %v7111 = vsel %vm7109, %v7104, %v7110
        %vm7112 = vcmp.eq.s32.totalorder %v7107, 2
        %v7113 = vxor.u32 %v7104, 2147483648
        %v7114 = vsel %vm7112, %v7113, %v7105
        %v7115 = vsel %vm7108, %v7111, %v7114
        %v7116 = vsel %vm7106, nan, %v7115
        %v7117 = vand.u32 2147483647, %v690
        %vm7118 = vcmp.le.f32.partialorder %v7117, 0.7853982
        %vm7119 = vcmp.lt.s32.totalorder %v690, 0
        %v7120 = vand.u32 %v690, 2139095040
        %v7121 = vshrl.u32 %v7120, 23
        %v7122 = vsub.s32 %v7121, 127
        %v7123 = vand.u32 2147483647, %v690
        %v7124 = vand.u32 %v7123, 8388607
        %v7125 = vor.u32 %v7124, 8388608
        %v7126 = vsub.s32 0, %v7125
        %v7127 = vadd.s32 %v7122, 1
        %vm7128 = vcmp.gt.s32.totalorder %v7127, 0
        %v7129 = vsel %vm7128, %v7127, 0
        %v7130 = vshrl.u32 %v7129, 5
        %v7131 = vand.u32 %v7129, 31
        %v7132 = vsub.s32 32, %v7131
        %v7133 = vshrl.u32 683565275, %v7132
        %v7134 = vshll.u32 683565275, %v7131
        %v7135 = vshrl.u32 2475754826, %v7132
        %v7136 = vor.u32 %v7134, %v7135
        %v7137 = vshll.u32 2475754826, %v7131
        %v7138 = vshrl.u32 2131351028, %v7132
        %v7139 = vor.u32 %v7137, %v7138
        %v7140 = vshll.u32 2131351028, %v7131
        %v7141 = vshrl.u32 2102212464, %v7132
        %v7142 = vor.u32 %v7140, %v7141
        %v7143 = vshll.u32 2102212464, %v7131
        %v7144 = vshrl.u32 920167782, %v7132
        %v7145 = vor.u32 %v7143, %v7144
        %v7146 = vshll.u32 920167782, %v7131
        %v7147 = vshrl.u32 1326507024, %v7132
        %v7148 = vor.u32 %v7146, %v7147
        %vm7149 = vcmp.lt.s32.totalorder %v7130, 1
        %vm7150 = vcmp.lt.s32.totalorder %v7130, 2
        %vm7151 = vcmp.lt.s32.totalorder %v7130, 3
        %vm7152 = vcmp.lt.s32.totalorder %v7130, 4
        %v7153 = vsel %vm7149, %v7133, %v7136
        %v7154 = vsel %vm7152, %v7142, 2102212464
        %v7155 = vsel %vm7151, %v7139, %v7154
        %v7156 = vsel %vm7150, %v7153, %v7155
        %v7157 = vsel %vm7149, %v7136, %v7139
        %v7158 = vsel %vm7152, %v7145, 920167782
        %v7159 = vsel %vm7151, %v7142, %v7158
        %v7160 = vsel %vm7150, %v7157, %v7159
        %v7161 = vsel %vm7149, %v7139, %v7142
        %v7162 = vsel %vm7152, %v7148, 1326507024
        %v7163 = vsel %vm7151, %v7145, %v7162
        %v7164 = vsel %vm7150, %v7161, %v7163
        %v7165 = vshll.u32 %v7125, 8
        %v7166 = vmul.u32.u64.compose %v7165, %v7164
        %v7167 = vextract.low.u32 %v7166
        %v7168 = vextract.high.u32 %v7166
        %v7169 = vmul.u32.u64.compose %v7165, %v7160
        %v7170 = vextract.low.u32 %v7169
        %v7171 = vextract.high.u32 %v7169
        %v7172 = vmul.u32 %v7165, %v7156
        %v7173 = vadd.s32 %v7168, %v7170
        %vm7174 = vc.u32 %v7168, %v7170
        %v7175 = vadd.s32 %v7171, 1
        %v7176 = vsel %vm7174, %v7175, %v7171
        %v7177 = vadd.s32 %v7172, %v7176
        %v7178 = vadd.s32 %v7177, 536870912
        %v7179 = vshrl.u32 %v7178, 30
        %v7180 = vshll.u32 %v7179, 30
        %v7181 = vsub.s32 %v7177, %v7180
        %vm7182 = vcmp.lt.s32.totalorder %v7181, 0
        %v7183 = vsub.s32 0, %v7181
        %v7184 = vsel %vm7182, %v7183, %v7181
        %v7185 = vclz %v7184
        %v7186 = vsub.s32 %v7185, 2
        %vm7187 = vcmp.gt.s32.totalorder 0, %v7186
        %v7188 = vsel %vm7187, 0, %v7186
        %v7189 = vsub.s32 32, %v7188
        %v7190 = vshll.u32 %v7181, %v7188
        %v7191 = vshrl.u32 %v7173, %v7189
        %v7192 = vor.u32 %v7190, %v7191
        %v7193 = vsub.s32 4294967266, %v7188
        %v7194 = vadd.s32 %v7193, 127
        %v7195 = vshll.u32 %v7194, 23
        %v7196 = vor.u32 4788187, %v7195
        %v7197 = vand.u32 2147483647, %v7196
        %v7199 = vcvt.s32.f32 %v7192
        %v7200 = vmul.f32 %v7199, %v7197
        %v7201 = vxor.u32 %v7200, 2147483648
        %v7202 = vsel %vm7119, %v7201, %v7200
        %v7203 = vsub.s32 4, %v7179
        %v7204 = vsel %vm7119, %v7203, %v7179
        %v7205 = vsel %vm7118, %v690, %v7202
        %v7206 = vsel %vm7118, 0, %v7204
        %v7207 = vcosq.f32.pop %v7205
        %v7208 = vsinq.f32.pop %v7205
        %vm7209 = vweird.f32 %v690
        %v7210 = vand.u32 %v7206, 3
        %vm7211 = vcmp.lt.s32.totalorder %v7210, 2
        %vm7212 = vcmp.eq.s32.totalorder %v7210, 0
        %v7213 = vxor.u32 %v7208, 2147483648
        %v7214 = vsel %vm7212, %v7207, %v7213
        %vm7215 = vcmp.eq.s32.totalorder %v7210, 2
        %v7216 = vxor.u32 %v7207, 2147483648
        %v7217 = vsel %vm7215, %v7216, %v7208
        %v7218 = vsel %vm7211, %v7214, %v7217
        %v7219 = vsel %vm7209, nan, %v7218
        %v7220 = vand.u32 2147483647, %v693
        %vm7221 = vcmp.le.f32.partialorder %v7220, 0.7853982
        %vm7222 = vcmp.lt.s32.totalorder %v693, 0
        %v7223 = vand.u32 %v693, 2139095040
        %v7224 = vshrl.u32 %v7223, 23
        %v7225 = vsub.s32 %v7224, 127
        %v7226 = vand.u32 2147483647, %v693
        %v7227 = vand.u32 %v7226, 8388607
        %v7228 = vor.u32 %v7227, 8388608
        %v7229 = vsub.s32 0, %v7228
        %v7230 = vadd.s32 %v7225, 1
        %vm7231 = vcmp.gt.s32.totalorder %v7230, 0
        %v7232 = vsel %vm7231, %v7230, 0
        %v7233 = vshrl.u32 %v7232, 5
        %v7234 = vand.u32 %v7232, 31
        %v7235 = vsub.s32 32, %v7234
        %v7236 = vshrl.u32 683565275, %v7235
        %v7237 = vshll.u32 683565275, %v7234
        %v7238 = vshrl.u32 2475754826, %v7235
        %v7239 = vor.u32 %v7237, %v7238
        %v7240 = vshll.u32 2475754826, %v7234
        %v7241 = vshrl.u32 2131351028, %v7235
        %v7242 = vor.u32 %v7240, %v7241
        %v7243 = vshll.u32 2131351028, %v7234
        %v7244 = vshrl.u32 2102212464, %v7235
        %v7245 = vor.u32 %v7243, %v7244
        %v7246 = vshll.u32 2102212464, %v7234
        %v7247 = vshrl.u32 920167782, %v7235
        %v7248 = vor.u32 %v7246, %v7247
        %v7249 = vshll.u32 920167782, %v7234
        %v7250 = vshrl.u32 1326507024, %v7235
        %v7251 = vor.u32 %v7249, %v7250
        %vm7252 = vcmp.lt.s32.totalorder %v7233, 1
        %vm7253 = vcmp.lt.s32.totalorder %v7233, 2
        %vm7254 = vcmp.lt.s32.totalorder %v7233, 3
        %vm7255 = vcmp.lt.s32.totalorder %v7233, 4
        %v7256 = vsel %vm7252, %v7236, %v7239
        %v7257 = vsel %vm7255, %v7245, 2102212464
        %v7258 = vsel %vm7254, %v7242, %v7257
        %v7259 = vsel %vm7253, %v7256, %v7258
        %v7260 = vsel %vm7252, %v7239, %v7242
        %v7261 = vsel %vm7255, %v7248, 920167782
        %v7262 = vsel %vm7254, %v7245, %v7261
        %v7263 = vsel %vm7253, %v7260, %v7262
        %v7264 = vsel %vm7252, %v7242, %v7245
        %v7265 = vsel %vm7255, %v7251, 1326507024
        %v7266 = vsel %vm7254, %v7248, %v7265
        %v7267 = vsel %vm7253, %v7264, %v7266
        %v7268 = vshll.u32 %v7228, 8
        %v7269 = vmul.u32.u64.compose %v7268, %v7267
        %v7270 = vextract.low.u32 %v7269
        %v7271 = vextract.high.u32 %v7269
        %v7272 = vmul.u32.u64.compose %v7268, %v7263
        %v7273 = vextract.low.u32 %v7272
        %v7274 = vextract.high.u32 %v7272
        %v7275 = vmul.u32 %v7268, %v7259
        %v7276 = vadd.s32 %v7271, %v7273
        %vm7277 = vc.u32 %v7271, %v7273
        %v7278 = vadd.s32 %v7274, 1
        %v7279 = vsel %vm7277, %v7278, %v7274
        %v7280 = vadd.s32 %v7275, %v7279
        %v7281 = vadd.s32 %v7280, 536870912
        %v7282 = vshrl.u32 %v7281, 30
        %v7283 = vshll.u32 %v7282, 30
        %v7284 = vsub.s32 %v7280, %v7283
        %vm7285 = vcmp.lt.s32.totalorder %v7284, 0
        %v7286 = vsub.s32 0, %v7284
        %v7287 = vsel %vm7285, %v7286, %v7284
        %v7288 = vclz %v7287
        %v7289 = vsub.s32 %v7288, 2
        %vm7290 = vcmp.gt.s32.totalorder 0, %v7289
        %v7291 = vsel %vm7290, 0, %v7289
        %v7292 = vsub.s32 32, %v7291
        %v7293 = vshll.u32 %v7284, %v7291
        %v7294 = vshrl.u32 %v7276, %v7292
        %v7295 = vor.u32 %v7293, %v7294
        %v7296 = vsub.s32 4294967266, %v7291
        %v7297 = vadd.s32 %v7296, 127
        %v7298 = vshll.u32 %v7297, 23
        %v7299 = vor.u32 4788187, %v7298
        %v7300 = vand.u32 2147483647, %v7299
        %v7302 = vcvt.s32.f32 %v7295
        %v7303 = vmul.f32 %v7302, %v7300
        %v7304 = vxor.u32 %v7303, 2147483648
        %v7305 = vsel %vm7222, %v7304, %v7303
        %v7306 = vsub.s32 4, %v7282
        %v7307 = vsel %vm7222, %v7306, %v7282
        %v7308 = vsel %vm7221, %v693, %v7305
        %v7309 = vsel %vm7221, 0, %v7307
        %v7310 = vcosq.f32.pop %v7308
        %v7311 = vsinq.f32.pop %v7308
        %vm7312 = vweird.f32 %v693
        %v7313 = vand.u32 %v7309, 3
        %vm7314 = vcmp.lt.s32.totalorder %v7313, 2
        %vm7315 = vcmp.eq.s32.totalorder %v7313, 0
        %v7316 = vxor.u32 %v7311, 2147483648
        %v7317 = vsel %vm7315, %v7310, %v7316
        %vm7318 = vcmp.eq.s32.totalorder %v7313, 2
        %v7319 = vxor.u32 %v7310, 2147483648
        %v7320 = vsel %vm7318, %v7319, %v7311
        %v7321 = vsel %vm7314, %v7317, %v7320
        %v7322 = vsel %vm7312, nan, %v7321
        %v7323 = vsel %vm698, %v802, %v4129
        %v7324 = vsel %vm698, %v906, %v4232
        %v7325 = vsel %vm698, %v1010, %v4335
        %v7326 = vsel %vm698, %v1114, %v4438
        %v7327 = vsel %vm698, %v1218, %v4541
        %v7328 = vsel %vm698, %v1322, %v4644
        %v7329 = vsel %vm698, %v1426, %v4747
        %v7330 = vsel %vm698, %v1530, %v4850
        %v7331 = vsel %vm698, %v1634, %v4953
        %v7332 = vsel %vm698, %v1738, %v5056
        %v7333 = vsel %vm698, %v1842, %v5159
        %v7334 = vsel %vm698, %v1946, %v5262
        %v7335 = vsel %vm698, %v2050, %v5365
        %v7336 = vsel %vm698, %v2154, %v5468
        %v7337 = vsel %vm698, %v2258, %v5571
        %v7338 = vsel %vm698, %v2362, %v5674
        %v7339 = vsel %vm698, %v2466, %v5777
        %v7340 = vsel %vm698, %v2570, %v5880
        %v7341 = vsel %vm698, %v2674, %v5983
        %v7342 = vsel %vm698, %v2778, %v6086
        %v7343 = vsel %vm698, %v2882, %v6189
        %v7344 = vsel %vm698, %v2986, %v6292
        %v7345 = vsel %vm698, %v3090, %v6395
        %v7346 = vsel %vm698, %v3194, %v6498
        %v7347 = vsel %vm698, %v3298, %v6601
        %v7348 = vsel %vm698, %v3402, %v6704
        %v7349 = vsel %vm698, %v3506, %v6807
        %v7350 = vsel %vm698, %v3610, %v6910
        %v7351 = vsel %vm698, %v3714, %v7013
        %v7352 = vsel %vm698, %v3818, %v7116
        %v7353 = vsel %vm698, %v3922, %v7219
        %v7354 = vsel %vm698, %v4026, %v7322
        %v7355 = vld [vmem:[%s2] sm:$0xf]
        %v7356 = vld [vmem:[%s2 + $0x4] sm:$0xf]
        %v7357 = vld [vmem:[%s2 + $0x8] sm:$0xf]
        %v7358 = vld [vmem:[%s2 + $0xc] sm:$0x7]
        %v7359 = vpack.c.bf16 %v7324, %v7323
        %v7360 = vpack.c.bf16 %v7326, %v7325
        %v7361 = vpack.c.bf16 %v7328, %v7327
        %v7362 = vpack.c.bf16 %v7330, %v7329
        %v7363 = vpack.c.bf16 %v7332, %v7331
        %v7364 = vpack.c.bf16 %v7334, %v7333
        %v7365 = vpack.c.bf16 %v7336, %v7335
        %v7366 = vpack.c.bf16 %v7338, %v7337
        %v7367 = vpack.c.bf16 %v7340, %v7339
        %v7368 = vpack.c.bf16 %v7342, %v7341
        %v7369 = vpack.c.bf16 %v7344, %v7343
        %v7370 = vpack.c.bf16 %v7346, %v7345
        %v7371 = vpack.c.bf16 %v7348, %v7347
        %v7372 = vpack.c.bf16 %v7350, %v7349
        %v7373 = vpack.c.bf16 %v7352, %v7351
        %v7374 = vpack.c.bf16 %v7354, %v7353
        %v7375 = vld [vmem:[%s3] sm:$0xf]
        %v7376 = vld [vmem:[%s3 + $0x4] sm:$0xf]
        %v7377 = vld [vmem:[%s3 + $0x8] sm:$0xf]
        %v7378 = vld [vmem:[%s3 + $0xc] sm:$0xf]
        %v7379 = vld [vmem:[%s3 + $0x10] sm:$0x3]
        %v7385 = vunpack.c.l.b16 %v7375
        %v7386 = vunpack.c.l.b16 %v7376
        %v7387 = vunpack.c.l.b16 %v7377
        %v7388 = vunpack.c.l.b16 %v7378
        %v7389 = vunpack.c.l.b16 %v7379
        %v7390 = vpack.c.b16 %v7386, %v7385
        %v7391 = vpack.c.b16 %v7388, %v7387
        %v7392 = vpack.c.b16 %v7389, %v7389
        %vm7395 = vcmask 293888
        %v7397 = vsel %vm7395, %v7359, 0
        %v7400 = vsel %vm7395, %v7360, 0
        %v7403 = vsel %vm7395, %v7361, 0
        %v7406 = vsel %vm7395, %v7362, 0
        %v7409 = vsel %vm7395, %v7363, 0
        %v7412 = vsel %vm7395, %v7364, 0
        %v7415 = vsel %vm7395, %v7365, 0
        %v7418 = vsel %vm7395, %v7366, 0
        %v7421 = vsel %vm7395, %v7367, 0
        %v7424 = vsel %vm7395, %v7368, 0
        %v7427 = vsel %vm7395, %v7369, 0
        %v7430 = vsel %vm7395, %v7370, 0
        %v7433 = vsel %vm7395, %v7371, 0
        %v7436 = vsel %vm7395, %v7372, 0
        %v7439 = vsel %vm7395, %v7373, 0
        %v7442 = vsel %vm7395, %v7374, 0
        %vm7444 = vcmask 1041408
        %v7446 = vsel %vm7444, %v7392, 0
        %7448 = vmatprep.subr.bf16.mxu0 0
        %7449 = vmatpush1.bf16.msra.mxu0 %v7390
        %7450 = vmatprep.subr.bf16.mxu0 0
        %7451 = vmatpush1.bf16.msra.mxu0 %v7391
        %7452 = vmatprep.subr.bf16.mxu0 0
        %7453 = vmatpush1.bf16.msra.mxu0 %v7446
        %7454 = vmatprep.subr.bf16.mxu0 0
        %7455 = vmatpush1.bf16.msra.mxu0 0
        %7456 = vmatprep.subr.bf16.mxu0 0
        %7457 = vmatpush1.bf16.msra.mxu0 0
        %7458 = vmatprep.subr.bf16.mxu0 0
        %7459 = vmatpush1.bf16.msra.mxu0 0
        %7460 = vmatprep.subr.bf16.mxu0 0
        %7461 = vmatpush1.bf16.msra.mxu0 0
        %7462 = vmatprep.subr.bf16.mxu0 0
        %7463 = vmatpush1.bf16.msra.mxu0 0
        %7464 = vmatprep.subr.bf16.mxu0 0
        %7465 = vmatpush1.bf16.msra.mxu0 0
        %7466 = vmatprep.subr.bf16.mxu0 0
        %7467 = vmatpush1.bf16.msra.mxu0 0
        %7468 = vmatprep.subr.bf16.mxu0 0
        %7469 = vmatpush1.bf16.msra.mxu0 0
        %7470 = vmatprep.subr.bf16.mxu0 0
        %7471 = vmatpush1.bf16.msra.mxu0 0
        %7472 = vmatprep.subr.bf16.mxu0 0
        %7473 = vmatpush1.bf16.msra.mxu0 0
        %7474 = vmatprep.subr.bf16.mxu0 0
        %7475 = vmatpush1.bf16.msra.mxu0 0
        %7476 = vmatprep.subr.bf16.mxu0 0
        %7477 = vmatpush1.bf16.msra.mxu0 0
        %7478 = vmatprep.subr.bf16.mxu0 0
        %7479 = vmatpush1.bf16.msra.mxu0 0
        %7480 = vmatprep.mubr.bf16.mxu0 0
        %7481 = vmatmul.mubr.bf16.gmra.mrb[0].mxu0 %v7397
        %v7482 = vpop.f32.mrb[0].mxu0
        %v7483 = vadd.f32 0.0, %v7482
        %v7484 = vpop.f32.mrb[0].mxu0
        %v7485 = vpop.f32.mrb[0].mxu0
        %v7486 = vadd.f32 0.0, %v7485
        %v7487 = vpop.f32.mrb[0].mxu0
        %7488 = vmatprep.mubr.bf16.mxu0 0
        %7489 = vmatmul.mubr.bf16.gmra.mrb[0].mxu0 %v7400
        %v7490 = vpop.f32.mrb[0].mxu0
        %v7491 = vadd.f32 0.0, %v7490
        %v7492 = vpop.f32.mrb[0].mxu0
        %v7493 = vpop.f32.mrb[0].mxu0
        %v7494 = vadd.f32 0.0, %v7493
        %v7495 = vpop.f32.mrb[0].mxu0
        %7496 = vmatprep.mubr.bf16.mxu0 0
        %7497 = vmatmul.mubr.bf16.gmra.mrb[0].mxu0 %v7403
        %v7498 = vpop.f32.mrb[0].mxu0
        %v7499 = vadd.f32 0.0, %v7498
        %v7500 = vpop.f32.mrb[0].mxu0
        %v7501 = vpop.f32.mrb[0].mxu0
        %v7502 = vadd.f32 0.0, %v7501
        %v7503 = vpop.f32.mrb[0].mxu0
        %7504 = vmatprep.mubr.bf16.mxu0 0
        %7505 = vmatmul.mubr.bf16.gmra.mrb[0].mxu0 %v7406
        %v7506 = vpop.f32.mrb[0].mxu0
        %v7507 = vadd.f32 0.0, %v7506
        %v7508 = vpop.f32.mrb[0].mxu0
        %v7509 = vpop.f32.mrb[0].mxu0
        %v7510 = vadd.f32 0.0, %v7509
        %v7511 = vpop.f32.mrb[0].mxu0
        %7512 = vmatprep.mubr.bf16.mxu0 0
        %7513 = vmatmul.mubr.bf16.gmra.mrb[0].mxu0 %v7409
        %v7514 = vpop.f32.mrb[0].mxu0
        %v7515 = vadd.f32 0.0, %v7514
        %v7516 = vpop.f32.mrb[0].mxu0
        %v7517 = vpop.f32.mrb[0].mxu0
        %v7518 = vadd.f32 0.0, %v7517
        %v7519 = vpop.f32.mrb[0].mxu0
        %7520 = vmatprep.mubr.bf16.mxu0 0
        %7521 = vmatmul.mubr.bf16.gmra.mrb[0].mxu0 %v7412
        %v7522 = vpop.f32.mrb[0].mxu0
        %v7523 = vadd.f32 0.0, %v7522
        %v7524 = vpop.f32.mrb[0].mxu0
        %v7525 = vpop.f32.mrb[0].mxu0
        %v7526 = vadd.f32 0.0, %v7525
        %v7527 = vpop.f32.mrb[0].mxu0
        %7528 = vmatprep.mubr.bf16.mxu0 0
        %7529 = vmatmul.mubr.bf16.gmra.mrb[0].mxu0 %v7415
        %v7530 = vpop.f32.mrb[0].mxu0
        %v7531 = vadd.f32 0.0, %v7530
        %v7532 = vpop.f32.mrb[0].mxu0
        %v7533 = vpop.f32.mrb[0].mxu0
        %v7534 = vadd.f32 0.0, %v7533
        %v7535 = vpop.f32.mrb[0].mxu0
        %7536 = vmatprep.mubr.bf16.mxu0 0
        %7537 = vmatmul.mubr.bf16.gmra.mrb[0].mxu0 %v7418
        %v7538 = vpop.f32.mrb[0].mxu0
        %v7539 = vadd.f32 0.0, %v7538
        %v7540 = vpop.f32.mrb[0].mxu0
        %v7541 = vpop.f32.mrb[0].mxu0
        %v7542 = vadd.f32 0.0, %v7541
        %v7543 = vpop.f32.mrb[0].mxu0
        %7544 = vmatprep.mubr.bf16.mxu0 0
        %7545 = vmatmul.mubr.bf16.gmra.mrb[0].mxu0 %v7421
        %v7546 = vpop.f32.mrb[0].mxu0
        %v7547 = vadd.f32 0.0, %v7546
        %v7548 = vpop.f32.mrb[0].mxu0
        %v7549 = vpop.f32.mrb[0].mxu0
        %v7550 = vadd.f32 0.0, %v7549
        %v7551 = vpop.f32.mrb[0].mxu0
        %7552 = vmatprep.mubr.bf16.mxu0 0
        %7553 = vmatmul.mubr.bf16.gmra.mrb[0].mxu0 %v7424
        %v7554 = vpop.f32.mrb[0].mxu0
        %v7555 = vadd.f32 0.0, %v7554
        %v7556 = vpop.f32.mrb[0].mxu0
        %v7557 = vpop.f32.mrb[0].mxu0
        %v7558 = vadd.f32 0.0, %v7557
        %v7559 = vpop.f32.mrb[0].mxu0
        %7560 = vmatprep.mubr.bf16.mxu0 0
        %7561 = vmatmul.mubr.bf16.gmra.mrb[0].mxu0 %v7427
        %v7562 = vpop.f32.mrb[0].mxu0
        %v7563 = vadd.f32 0.0, %v7562
        %v7564 = vpop.f32.mrb[0].mxu0
        %v7565 = vpop.f32.mrb[0].mxu0
        %v7566 = vadd.f32 0.0, %v7565
        %v7567 = vpop.f32.mrb[0].mxu0
        %7568 = vmatprep.mubr.bf16.mxu0 0
        %7569 = vmatmul.mubr.bf16.gmra.mrb[0].mxu0 %v7430
        %v7570 = vpop.f32.mrb[0].mxu0
        %v7571 = vadd.f32 0.0, %v7570
        %v7572 = vpop.f32.mrb[0].mxu0
        %v7573 = vpop.f32.mrb[0].mxu0
        %v7574 = vadd.f32 0.0, %v7573
        %v7575 = vpop.f32.mrb[0].mxu0
        %7576 = vmatprep.mubr.bf16.mxu0 0
        %7577 = vmatmul.mubr.bf16.gmra.mrb[0].mxu0 %v7433
        %v7578 = vpop.f32.mrb[0].mxu0
        %v7579 = vadd.f32 0.0, %v7578
        %v7580 = vpop.f32.mrb[0].mxu0
        %v7581 = vpop.f32.mrb[0].mxu0
        %v7582 = vadd.f32 0.0, %v7581
        %v7583 = vpop.f32.mrb[0].mxu0
        %7584 = vmatprep.mubr.bf16.mxu0 0
        %7585 = vmatmul.mubr.bf16.gmra.mrb[0].mxu0 %v7436
        %v7586 = vpop.f32.mrb[0].mxu0
        %v7587 = vadd.f32 0.0, %v7586
        %v7588 = vpop.f32.mrb[0].mxu0
        %v7589 = vpop.f32.mrb[0].mxu0
        %v7590 = vadd.f32 0.0, %v7589
        %v7591 = vpop.f32.mrb[0].mxu0
        %7592 = vmatprep.mubr.bf16.mxu0 0
        %7593 = vmatmul.mubr.bf16.gmra.mrb[0].mxu0 %v7439
        %v7594 = vpop.f32.mrb[0].mxu0
        %v7595 = vadd.f32 0.0, %v7594
        %v7596 = vpop.f32.mrb[0].mxu0
        %v7597 = vpop.f32.mrb[0].mxu0
        %v7598 = vadd.f32 0.0, %v7597
        %v7599 = vpop.f32.mrb[0].mxu0
        %7600 = vmatprep.mubr.bf16.mxu0 0
        %7601 = vmatmul.mubr.bf16.gmra.mrb[0].mxu0 %v7442
        %v7602 = vpop.f32.mrb[0].mxu0
        %v7603 = vadd.f32 0.0, %v7602
        %v7604 = vpop.f32.mrb[0].mxu0
        %v7605 = vpop.f32.mrb[0].mxu0
        %v7606 = vadd.f32 0.0, %v7605
        %v7607 = vpop.f32.mrb[0].mxu0
        %7608 = vdwg.mxu0
        %v7613 = vunpack.c.l.b16 %v7355
        %v7614 = vunpack.c.l.b16 %v7356
        %v7615 = vunpack.c.l.b16 %v7357
        %v7616 = vunpack.c.l.b16 %v7358
        %v7617 = vpack.c.b16 %v7614, %v7613
        %v7618 = vpack.c.b16 %v7616, %v7615
        %v7621 = vsel %vm531, %v7618, 0
        %7623 = vmatprep.subr.bf16.mxu0 0
        %7624 = vmatpush1.bf16.msra.mxu0 %v7617
        %7625 = vmatprep.subr.bf16.mxu0 0
        %7626 = vmatpush1.bf16.msra.mxu0 %v7621
        %7627 = vmatprep.subr.bf16.mxu0 0
        %7628 = vmatpush1.bf16.msra.mxu0 0
        %7629 = vmatprep.subr.bf16.mxu0 0
        %7630 = vmatpush1.bf16.msra.mxu0 0
        %7631 = vmatprep.subr.bf16.mxu0 0
        %7632 = vmatpush1.bf16.msra.mxu0 0
        %7633 = vmatprep.subr.bf16.mxu0 0
        %7634 = vmatpush1.bf16.msra.mxu0 0
        %7635 = vmatprep.subr.bf16.mxu0 0
        %7636 = vmatpush1.bf16.msra.mxu0 0
        %7637 = vmatprep.subr.bf16.mxu0 0
        %7638 = vmatpush1.bf16.msra.mxu0 0
        %7639 = vmatprep.subr.bf16.mxu0 0
        %7640 = vmatpush1.bf16.msra.mxu0 0
        %7641 = vmatprep.subr.bf16.mxu0 0
        %7642 = vmatpush1.bf16.msra.mxu0 0
        %7643 = vmatprep.subr.bf16.mxu0 0
        %7644 = vmatpush1.bf16.msra.mxu0 0
        %7645 = vmatprep.subr.bf16.mxu0 0
        %7646 = vmatpush1.bf16.msra.mxu0 0
        %7647 = vmatprep.subr.bf16.mxu0 0
        %7648 = vmatpush1.bf16.msra.mxu0 0
        %7649 = vmatprep.subr.bf16.mxu0 0
        %7650 = vmatpush1.bf16.msra.mxu0 0
        %7651 = vmatprep.subr.bf16.mxu0 0
        %7652 = vmatpush1.bf16.msra.mxu0 0
        %7653 = vmatprep.subr.bf16.mxu0 0
        %7654 = vmatpush1.bf16.msra.mxu0 0
        %7655 = vmatprep.mubr.bf16.mxu0 0
        %7656 = vmatmul.mubr.bf16.gmra.mrb[0].mxu0 %v484
        %v7657 = vpop.f32.mrb[0].mxu0
        %v7658 = vadd.f32 %v7483, %v7657
        %v7659 = vpop.f32.mrb[0].mxu0
        %v7660 = vpop.f32.mrb[0].mxu0
        %v7661 = vadd.f32 %v7486, %v7660
        %v7662 = vpop.f32.mrb[0].mxu0
        %7663 = vmatprep.mubr.bf16.mxu0 0
        %7664 = vmatmul.mubr.bf16.gmra.mrb[0].mxu0 %v487
        %v7665 = vpop.f32.mrb[0].mxu0
        %v7666 = vadd.f32 %v7491, %v7665
        %v7667 = vpop.f32.mrb[0].mxu0
        %v7668 = vpop.f32.mrb[0].mxu0
        %v7669 = vadd.f32 %v7494, %v7668
        %v7670 = vpop.f32.mrb[0].mxu0
        %7671 = vmatprep.mubr.bf16.mxu0 0
        %7672 = vmatmul.mubr.bf16.gmra.mrb[0].mxu0 %v490
        %v7673 = vpop.f32.mrb[0].mxu0
        %v7674 = vadd.f32 %v7499, %v7673
        %v7675 = vpop.f32.mrb[0].mxu0
        %v7676 = vpop.f32.mrb[0].mxu0
        %v7677 = vadd.f32 %v7502, %v7676
        %v7678 = vpop.f32.mrb[0].mxu0
        %7679 = vmatprep.mubr.bf16.mxu0 0
        %7680 = vmatmul.mubr.bf16.gmra.mrb[0].mxu0 %v493
        %v7681 = vpop.f32.mrb[0].mxu0
        %v7682 = vadd.f32 %v7507, %v7681
        %v7683 = vpop.f32.mrb[0].mxu0
        %v7684 = vpop.f32.mrb[0].mxu0
        %v7685 = vadd.f32 %v7510, %v7684
        %v7686 = vpop.f32.mrb[0].mxu0
        %7687 = vmatprep.mubr.bf16.mxu0 0
        %7688 = vmatmul.mubr.bf16.gmra.mrb[0].mxu0 %v496
        %v7689 = vpop.f32.mrb[0].mxu0
        %v7690 = vadd.f32 %v7515, %v7689
        %v7691 = vpop.f32.mrb[0].mxu0
        %v7692 = vpop.f32.mrb[0].mxu0
        %v7693 = vadd.f32 %v7518, %v7692
        %v7694 = vpop.f32.mrb[0].mxu0
        %7695 = vmatprep.mubr.bf16.mxu0 0
        %7696 = vmatmul.mubr.bf16.gmra.mrb[0].mxu0 %v499
        %v7697 = vpop.f32.mrb[0].mxu0
        %v7698 = vadd.f32 %v7523, %v7697
        %v7699 = vpop.f32.mrb[0].mxu0
        %v7700 = vpop.f32.mrb[0].mxu0
        %v7701 = vadd.f32 %v7526, %v7700
        %v7702 = vpop.f32.mrb[0].mxu0
        %7703 = vmatprep.mubr.bf16.mxu0 0
        %7704 = vmatmul.mubr.bf16.gmra.mrb[0].mxu0 %v502
        %v7705 = vpop.f32.mrb[0].mxu0
        %v7706 = vadd.f32 %v7531, %v7705
        %v7707 = vpop.f32.mrb[0].mxu0
        %v7708 = vpop.f32.mrb[0].mxu0
        %v7709 = vadd.f32 %v7534, %v7708
        %v7710 = vpop.f32.mrb[0].mxu0
        %7711 = vmatprep.mubr.bf16.mxu0 0
        %7712 = vmatmul.mubr.bf16.gmra.mrb[0].mxu0 %v505
        %v7713 = vpop.f32.mrb[0].mxu0
        %v7714 = vadd.f32 %v7539, %v7713
        %v7715 = vpop.f32.mrb[0].mxu0
        %v7716 = vpop.f32.mrb[0].mxu0
        %v7717 = vadd.f32 %v7542, %v7716
        %v7718 = vpop.f32.mrb[0].mxu0
        %7719 = vmatprep.mubr.bf16.mxu0 0
        %7720 = vmatmul.mubr.bf16.gmra.mrb[0].mxu0 %v508
        %v7721 = vpop.f32.mrb[0].mxu0
        %v7722 = vadd.f32 %v7547, %v7721
        %v7723 = vpop.f32.mrb[0].mxu0
        %v7724 = vpop.f32.mrb[0].mxu0
        %v7725 = vadd.f32 %v7550, %v7724
        %v7726 = vpop.f32.mrb[0].mxu0
        %7727 = vmatprep.mubr.bf16.mxu0 0
        %7728 = vmatmul.mubr.bf16.gmra.mrb[0].mxu0 %v511
        %v7729 = vpop.f32.mrb[0].mxu0
        %v7730 = vadd.f32 %v7555, %v7729
        %v7731 = vpop.f32.mrb[0].mxu0
        %v7732 = vpop.f32.mrb[0].mxu0
        %v7733 = vadd.f32 %v7558, %v7732
        %v7734 = vpop.f32.mrb[0].mxu0
        %7735 = vmatprep.mubr.bf16.mxu0 0
        %7736 = vmatmul.mubr.bf16.gmra.mrb[0].mxu0 %v514
        %v7737 = vpop.f32.mrb[0].mxu0
        %v7738 = vadd.f32 %v7563, %v7737
        %v7739 = vpop.f32.mrb[0].mxu0
        %v7740 = vpop.f32.mrb[0].mxu0
        %v7741 = vadd.f32 %v7566, %v7740
        %v7742 = vpop.f32.mrb[0].mxu0
        %7743 = vmatprep.mubr.bf16.mxu0 0
        %7744 = vmatmul.mubr.bf16.gmra.mrb[0].mxu0 %v517
        %v7745 = vpop.f32.mrb[0].mxu0
        %v7746 = vadd.f32 %v7571, %v7745
        %v7747 = vpop.f32.mrb[0].mxu0
        %v7748 = vpop.f32.mrb[0].mxu0
        %v7749 = vadd.f32 %v7574, %v7748
        %v7750 = vpop.f32.mrb[0].mxu0
        %7751 = vmatprep.mubr.bf16.mxu0 0
        %7752 = vmatmul.mubr.bf16.gmra.mrb[0].mxu0 %v520
        %v7753 = vpop.f32.mrb[0].mxu0
        %v7754 = vadd.f32 %v7579, %v7753
        %v7755 = vpop.f32.mrb[0].mxu0
        %v7756 = vpop.f32.mrb[0].mxu0
        %v7757 = vadd.f32 %v7582, %v7756
        %v7758 = vpop.f32.mrb[0].mxu0
        %7759 = vmatprep.mubr.bf16.mxu0 0
        %7760 = vmatmul.mubr.bf16.gmra.mrb[0].mxu0 %v523
        %v7761 = vpop.f32.mrb[0].mxu0
        %v7762 = vadd.f32 %v7587, %v7761
        %v7763 = vpop.f32.mrb[0].mxu0
        %v7764 = vpop.f32.mrb[0].mxu0
        %v7765 = vadd.f32 %v7590, %v7764
        %v7766 = vpop.f32.mrb[0].mxu0
        %7767 = vmatprep.mubr.bf16.mxu0 0
        %7768 = vmatmul.mubr.bf16.gmra.mrb[0].mxu0 %v526
        %v7769 = vpop.f32.mrb[0].mxu0
        %v7770 = vadd.f32 %v7595, %v7769
        %v7771 = vpop.f32.mrb[0].mxu0
        %v7772 = vpop.f32.mrb[0].mxu0
        %v7773 = vadd.f32 %v7598, %v7772
        %v7774 = vpop.f32.mrb[0].mxu0
        %7775 = vmatprep.mubr.bf16.mxu0 0
        %7776 = vmatmul.mubr.bf16.gmra.mrb[0].mxu0 %v529
        %v7777 = vpop.f32.mrb[0].mxu0
        %v7778 = vadd.f32 %v7603, %v7777
        %v7779 = vpop.f32.mrb[0].mxu0
        %v7780 = vpop.f32.mrb[0].mxu0
        %v7781 = vadd.f32 %v7606, %v7780
        %v7782 = vpop.f32.mrb[0].mxu0
        %7783 = vdwg.mxu0
        %v7784 = vld [vmem:[%s4] sm:$0x1]
        %v7786 = vlaneseq
        %v7787 = vshrl.u32 %v7786, 7
        %v7788 = vsub.s32 0, %v7787
        %v7789 = vrot.slane %v7784, %v7788
        %v7791 = vadd.f32 %v7658, %v7789
        %v7792 = vadd.f32 %v7661, %v7789
        %v7793 = vadd.f32 %v7666, %v7789
        %v7794 = vadd.f32 %v7669, %v7789
        %v7795 = vadd.f32 %v7674, %v7789
        %v7796 = vadd.f32 %v7677, %v7789
        %v7797 = vadd.f32 %v7682, %v7789
        %v7798 = vadd.f32 %v7685, %v7789
        %v7799 = vadd.f32 %v7690, %v7789
        %v7800 = vadd.f32 %v7693, %v7789
        %v7801 = vadd.f32 %v7698, %v7789
        %v7802 = vadd.f32 %v7701, %v7789
        %v7803 = vadd.f32 %v7706, %v7789
        %v7804 = vadd.f32 %v7709, %v7789
        %v7805 = vadd.f32 %v7714, %v7789
        %v7806 = vadd.f32 %v7717, %v7789
        %v7807 = vadd.f32 %v7722, %v7789
        %v7808 = vadd.f32 %v7725, %v7789
        %v7809 = vadd.f32 %v7730, %v7789
        %v7810 = vadd.f32 %v7733, %v7789
        %v7811 = vadd.f32 %v7738, %v7789
        %v7812 = vadd.f32 %v7741, %v7789
        %v7813 = vadd.f32 %v7746, %v7789
        %v7814 = vadd.f32 %v7749, %v7789
        %v7815 = vadd.f32 %v7754, %v7789
        %v7816 = vadd.f32 %v7757, %v7789
        %v7817 = vadd.f32 %v7762, %v7789
        %v7818 = vadd.f32 %v7765, %v7789
        %v7819 = vadd.f32 %v7770, %v7789
        %v7820 = vadd.f32 %v7773, %v7789
        %v7821 = vadd.f32 %v7778, %v7789
        %v7822 = vadd.f32 %v7781, %v7789
        %v7823 = vmax.f32 %v7791, 0.0
        %v7824 = vmax.f32 %v7792, 0.0
        %v7825 = vmax.f32 %v7793, 0.0
        %v7826 = vmax.f32 %v7794, 0.0
        %v7827 = vmax.f32 %v7795, 0.0
        %v7828 = vmax.f32 %v7796, 0.0
        %v7829 = vmax.f32 %v7797, 0.0
        %v7830 = vmax.f32 %v7798, 0.0
        %v7831 = vmax.f32 %v7799, 0.0
        %v7832 = vmax.f32 %v7800, 0.0
        %v7833 = vmax.f32 %v7801, 0.0
        %v7834 = vmax.f32 %v7802, 0.0
        %v7835 = vmax.f32 %v7803, 0.0
        %v7836 = vmax.f32 %v7804, 0.0
        %v7837 = vmax.f32 %v7805, 0.0
        %v7838 = vmax.f32 %v7806, 0.0
        %v7839 = vmax.f32 %v7807, 0.0
        %v7840 = vmax.f32 %v7808, 0.0
        %v7841 = vmax.f32 %v7809, 0.0
        %v7842 = vmax.f32 %v7810, 0.0
        %v7843 = vmax.f32 %v7811, 0.0
        %v7844 = vmax.f32 %v7812, 0.0
        %v7845 = vmax.f32 %v7813, 0.0
        %v7846 = vmax.f32 %v7814, 0.0
        %v7847 = vmax.f32 %v7815, 0.0
        %v7848 = vmax.f32 %v7816, 0.0
        %v7849 = vmax.f32 %v7817, 0.0
        %v7850 = vmax.f32 %v7818, 0.0
        %v7851 = vmax.f32 %v7819, 0.0
        %v7852 = vmax.f32 %v7820, 0.0
        %v7853 = vmax.f32 %v7821, 0.0
        %v7854 = vmax.f32 %v7822, 0.0
        %v7855 = vpack.c.bf16 %v7824, %v7823
        %v7856 = vpack.c.bf16 %v7826, %v7825
        %v7857 = vpack.c.bf16 %v7828, %v7827
        %v7858 = vpack.c.bf16 %v7830, %v7829
        %v7859 = vpack.c.bf16 %v7832, %v7831
        %v7860 = vpack.c.bf16 %v7834, %v7833
        %v7861 = vpack.c.bf16 %v7836, %v7835
        %v7862 = vpack.c.bf16 %v7838, %v7837
        %v7863 = vpack.c.bf16 %v7840, %v7839
        %v7864 = vpack.c.bf16 %v7842, %v7841
        %v7865 = vpack.c.bf16 %v7844, %v7843
        %v7866 = vpack.c.bf16 %v7846, %v7845
        %v7867 = vpack.c.bf16 %v7848, %v7847
        %v7868 = vpack.c.bf16 %v7850, %v7849
        %v7869 = vpack.c.bf16 %v7852, %v7851
        %v7870 = vpack.c.bf16 %v7854, %v7853
        %v7871 = vld [vmem:[%s5] sm:$0xf]
        %v7872 = vld [vmem:[%s5 + $0x4] sm:$0xf]
        %v7873 = vld [vmem:[%s5 + $0x8] sm:$0xf]
        %v7874 = vld [vmem:[%s5 + $0xc] sm:$0xf]
        %v7875 = vld [vmem:[%s5 + $0x10] sm:$0xf]
        %v7876 = vld [vmem:[%s5 + $0x14] sm:$0xf]
        %v7877 = vld [vmem:[%s5 + $0x18] sm:$0xf]
        %v7878 = vld [vmem:[%s5 + $0x1c] sm:$0xf]
        %v7879 = vld [vmem:[%s5 + $0x20] sm:$0xf]
        %v7880 = vld [vmem:[%s5 + $0x24] sm:$0xf]
        %v7881 = vld [vmem:[%s5 + $0x28] sm:$0xf]
        %v7882 = vld [vmem:[%s5 + $0x2c] sm:$0xf]
        %v7883 = vld [vmem:[%s5 + $0x30] sm:$0xf]
        %v7884 = vld [vmem:[%s5 + $0x34] sm:$0xf]
        %v7885 = vld [vmem:[%s5 + $0x38] sm:$0xf]
        %v7886 = vld [vmem:[%s5 + $0x3c] sm:$0xf]
        %v7887 = vld [vmem:[%s6] sm:$0x1]
        %v7889 = vlaneseq
        %v7890 = vshrl.u32 %v7889, 7
        %v7891 = vsub.s32 0, %v7890
        %v7892 = vrot.slane %v7887, %v7891
        %v7910 = vunpack.c.l.b16 %v7871
        %v7911 = vunpack.c.l.b16 %v7872
        %v7912 = vunpack.c.l.b16 %v7873
        %v7913 = vunpack.c.l.b16 %v7874
        %v7914 = vunpack.c.l.b16 %v7875
        %v7915 = vunpack.c.l.b16 %v7876
        %v7916 = vunpack.c.l.b16 %v7877
        %v7917 = vunpack.c.l.b16 %v7878
        %v7918 = vunpack.c.l.b16 %v7879
        %v7919 = vunpack.c.l.b16 %v7880
        %v7920 = vunpack.c.l.b16 %v7881
        %v7921 = vunpack.c.l.b16 %v7882
        %v7922 = vunpack.c.l.b16 %v7883
        %v7923 = vunpack.c.l.b16 %v7884
        %v7924 = vunpack.c.l.b16 %v7885
        %v7925 = vunpack.c.l.b16 %v7886
        %v7926 = vpack.c.b16 %v7911, %v7910
        %v7927 = vpack.c.b16 %v7913, %v7912
        %v7928 = vpack.c.b16 %v7915, %v7914
        %v7929 = vpack.c.b16 %v7917, %v7916
        %v7930 = vpack.c.b16 %v7919, %v7918
        %v7931 = vpack.c.b16 %v7921, %v7920
        %v7932 = vpack.c.b16 %v7923, %v7922
        %v7933 = vpack.c.b16 %v7925, %v7924
        %7942 = vmatprep.subr.bf16.mxu0 0
        %7943 = vmatpush1.bf16.msra.mxu0 %v7926
        %7944 = vmatprep.subr.bf16.mxu0 0
        %7945 = vmatpush1.bf16.msra.mxu0 %v7927
        %7946 = vmatprep.subr.bf16.mxu0 0
        %7947 = vmatpush1.bf16.msra.mxu0 %v7928
        %7948 = vmatprep.subr.bf16.mxu0 0
        %7949 = vmatpush1.bf16.msra.mxu0 %v7929
        %7950 = vmatprep.subr.bf16.mxu0 0
        %7951 = vmatpush1.bf16.msra.mxu0 %v7930
        %7952 = vmatprep.subr.bf16.mxu0 0
        %7953 = vmatpush1.bf16.msra.mxu0 %v7931
        %7954 = vmatprep.subr.bf16.mxu0 0
        %7955 = vmatpush1.bf16.msra.mxu0 %v7932
        %7956 = vmatprep.subr.bf16.mxu0 0
        %7957 = vmatpush1.bf16.msra.mxu0 %v7933
        %7958 = vmatprep.subr.bf16.mxu0 0
        %7959 = vmatpush1.bf16.msra.mxu0 0
        %7960 = vmatprep.subr.bf16.mxu0 0
        %7961 = vmatpush1.bf16.msra.mxu0 0
        %7962 = vmatprep.subr.bf16.mxu0 0
        %7963 = vmatpush1.bf16.msra.mxu0 0
        %7964 = vmatprep.subr.bf16.mxu0 0
        %7965 = vmatpush1.bf16.msra.mxu0 0
        %7966 = vmatprep.subr.bf16.mxu0 0
        %7967 = vmatpush1.bf16.msra.mxu0 0
        %7968 = vmatprep.subr.bf16.mxu0 0
        %7969 = vmatpush1.bf16.msra.mxu0 0
        %7970 = vmatprep.subr.bf16.mxu0 0
        %7971 = vmatpush1.bf16.msra.mxu0 0
        %7972 = vmatprep.subr.bf16.mxu0 0
        %7973 = vmatpush1.bf16.msra.mxu0 0
        %7974 = vmatprep.mubr.bf16.mxu0 0
        %7975 = vmatmul.mubr.bf16.gmra.mrb[0].mxu0 %v7855
        %v7976 = vpop.f32.mrb[0].mxu0
        %v7977 = vadd.f32 %v7892, %v7976
        %v7978 = vpop.f32.mrb[0].mxu0
        %v7979 = vpop.f32.mrb[0].mxu0
        %v7980 = vadd.f32 %v7892, %v7979
        %v7981 = vpop.f32.mrb[0].mxu0
        %7982 = vmatprep.mubr.bf16.mxu0 0
        %7983 = vmatmul.mubr.bf16.gmra.mrb[0].mxu0 %v7856
        %v7984 = vpop.f32.mrb[0].mxu0
        %v7985 = vadd.f32 %v7892, %v7984
        %v7986 = vpop.f32.mrb[0].mxu0
        %v7987 = vpop.f32.mrb[0].mxu0
        %v7988 = vadd.f32 %v7892, %v7987
        %v7989 = vpop.f32.mrb[0].mxu0
        %7990 = vmatprep.mubr.bf16.mxu0 0
        %7991 = vmatmul.mubr.bf16.gmra.mrb[0].mxu0 %v7857
        %v7992 = vpop.f32.mrb[0].mxu0
        %v7993 = vadd.f32 %v7892, %v7992
        %v7994 = vpop.f32.mrb[0].mxu0
        %v7995 = vpop.f32.mrb[0].mxu0
        %v7996 = vadd.f32 %v7892, %v7995
        %v7997 = vpop.f32.mrb[0].mxu0
        %7998 = vmatprep.mubr.bf16.mxu0 0
        %7999 = vmatmul.mubr.bf16.gmra.mrb[0].mxu0 %v7858
        %v8000 = vpop.f32.mrb[0].mxu0
        %v8001 = vadd.f32 %v7892, %v8000
        %v8002 = vpop.f32.mrb[0].mxu0
        %v8003 = vpop.f32.mrb[0].mxu0
        %v8004 = vadd.f32 %v7892, %v8003
        %v8005 = vpop.f32.mrb[0].mxu0
        %8006 = vmatprep.mubr.bf16.mxu0 0
        %8007 = vmatmul.mubr.bf16.gmra.mrb[0].mxu0 %v7859
        %v8008 = vpop.f32.mrb[0].mxu0
        %v8009 = vadd.f32 %v7892, %v8008
        %v8010 = vpop.f32.mrb[0].mxu0
        %v8011 = vpop.f32.mrb[0].mxu0
        %v8012 = vadd.f32 %v7892, %v8011
        %v8013 = vpop.f32.mrb[0].mxu0
        %8014 = vmatprep.mubr.bf16.mxu0 0
        %8015 = vmatmul.mubr.bf16.gmra.mrb[0].mxu0 %v7860
        %v8016 = vpop.f32.mrb[0].mxu0
        %v8017 = vadd.f32 %v7892, %v8016
        %v8018 = vpop.f32.mrb[0].mxu0
        %v8019 = vpop.f32.mrb[0].mxu0
        %v8020 = vadd.f32 %v7892, %v8019
        %v8021 = vpop.f32.mrb[0].mxu0
        %8022 = vmatprep.mubr.bf16.mxu0 0
        %8023 = vmatmul.mubr.bf16.gmra.mrb[0].mxu0 %v7861
        %v8024 = vpop.f32.mrb[0].mxu0
        %v8025 = vadd.f32 %v7892, %v8024
        %v8026 = vpop.f32.mrb[0].mxu0
        %v8027 = vpop.f32.mrb[0].mxu0
        %v8028 = vadd.f32 %v7892, %v8027
        %v8029 = vpop.f32.mrb[0].mxu0
        %8030 = vmatprep.mubr.bf16.mxu0 0
        %8031 = vmatmul.mubr.bf16.gmra.mrb[0].mxu0 %v7862
        %v8032 = vpop.f32.mrb[0].mxu0
        %v8033 = vadd.f32 %v7892, %v8032
        %v8034 = vpop.f32.mrb[0].mxu0
        %v8035 = vpop.f32.mrb[0].mxu0
        %v8036 = vadd.f32 %v7892, %v8035
        %v8037 = vpop.f32.mrb[0].mxu0
        %8038 = vmatprep.mubr.bf16.mxu0 0
        %8039 = vmatmul.mubr.bf16.gmra.mrb[0].mxu0 %v7863
        %v8040 = vpop.f32.mrb[0].mxu0
        %v8041 = vadd.f32 %v7892, %v8040
        %v8042 = vpop.f32.mrb[0].mxu0
        %v8043 = vpop.f32.mrb[0].mxu0
        %v8044 = vadd.f32 %v7892, %v8043
        %v8045 = vpop.f32.mrb[0].mxu0
        %8046 = vmatprep.mubr.bf16.mxu0 0
        %8047 = vmatmul.mubr.bf16.gmra.mrb[0].mxu0 %v7864
        %v8048 = vpop.f32.mrb[0].mxu0
        %v8049 = vadd.f32 %v7892, %v8048
        %v8050 = vpop.f32.mrb[0].mxu0
        %v8051 = vpop.f32.mrb[0].mxu0
        %v8052 = vadd.f32 %v7892, %v8051
        %v8053 = vpop.f32.mrb[0].mxu0
        %8054 = vmatprep.mubr.bf16.mxu0 0
        %8055 = vmatmul.mubr.bf16.gmra.mrb[0].mxu0 %v7865
        %v8056 = vpop.f32.mrb[0].mxu0
        %v8057 = vadd.f32 %v7892, %v8056
        %v8058 = vpop.f32.mrb[0].mxu0
        %v8059 = vpop.f32.mrb[0].mxu0
        %v8060 = vadd.f32 %v7892, %v8059
        %v8061 = vpop.f32.mrb[0].mxu0
        %8062 = vmatprep.mubr.bf16.mxu0 0
        %8063 = vmatmul.mubr.bf16.gmra.mrb[0].mxu0 %v7866
        %v8064 = vpop.f32.mrb[0].mxu0
        %v8065 = vadd.f32 %v7892, %v8064
        %v8066 = vpop.f32.mrb[0].mxu0
        %v8067 = vpop.f32.mrb[0].mxu0
        %v8068 = vadd.f32 %v7892, %v8067
        %v8069 = vpop.f32.mrb[0].mxu0
        %8070 = vmatprep.mubr.bf16.mxu0 0
        %8071 = vmatmul.mubr.bf16.gmra.mrb[0].mxu0 %v7867
        %v8072 = vpop.f32.mrb[0].mxu0
        %v8073 = vadd.f32 %v7892, %v8072
        %v8074 = vpop.f32.mrb[0].mxu0
        %v8075 = vpop.f32.mrb[0].mxu0
        %v8076 = vadd.f32 %v7892, %v8075
        %v8077 = vpop.f32.mrb[0].mxu0
        %8078 = vmatprep.mubr.bf16.mxu0 0
        %8079 = vmatmul.mubr.bf16.gmra.mrb[0].mxu0 %v7868
        %v8080 = vpop.f32.mrb[0].mxu0
        %v8081 = vadd.f32 %v7892, %v8080
        %v8082 = vpop.f32.mrb[0].mxu0
        %v8083 = vpop.f32.mrb[0].mxu0
        %v8084 = vadd.f32 %v7892, %v8083
        %v8085 = vpop.f32.mrb[0].mxu0
        %8086 = vmatprep.mubr.bf16.mxu0 0
        %8087 = vmatmul.mubr.bf16.gmra.mrb[0].mxu0 %v7869
        %v8088 = vpop.f32.mrb[0].mxu0
        %v8089 = vadd.f32 %v7892, %v8088
        %v8090 = vpop.f32.mrb[0].mxu0
        %v8091 = vpop.f32.mrb[0].mxu0
        %v8092 = vadd.f32 %v7892, %v8091
        %v8093 = vpop.f32.mrb[0].mxu0
        %8094 = vmatprep.mubr.bf16.mxu0 0
        %8095 = vmatmul.mubr.bf16.gmra.mrb[0].mxu0 %v7870
        %v8096 = vpop.f32.mrb[0].mxu0
        %v8097 = vadd.f32 %v7892, %v8096
        %v8098 = vpop.f32.mrb[0].mxu0
        %v8099 = vpop.f32.mrb[0].mxu0
        %v8100 = vadd.f32 %v7892, %v8099
        %v8101 = vpop.f32.mrb[0].mxu0
        %8102 = vdwg.mxu0
        %v8103 = vmax.f32 %v7977, 0.0
        %v8104 = vmax.f32 %v7980, 0.0
        %v8105 = vmax.f32 %v7985, 0.0
        %v8106 = vmax.f32 %v7988, 0.0
        %v8107 = vmax.f32 %v7993, 0.0
        %v8108 = vmax.f32 %v7996, 0.0
        %v8109 = vmax.f32 %v8001, 0.0
        %v8110 = vmax.f32 %v8004, 0.0
        %v8111 = vmax.f32 %v8009, 0.0
        %v8112 = vmax.f32 %v8012, 0.0
        %v8113 = vmax.f32 %v8017, 0.0
        %v8114 = vmax.f32 %v8020, 0.0
        %v8115 = vmax.f32 %v8025, 0.0
        %v8116 = vmax.f32 %v8028, 0.0
        %v8117 = vmax.f32 %v8033, 0.0
        %v8118 = vmax.f32 %v8036, 0.0
        %v8119 = vmax.f32 %v8041, 0.0
        %v8120 = vmax.f32 %v8044, 0.0
        %v8121 = vmax.f32 %v8049, 0.0
        %v8122 = vmax.f32 %v8052, 0.0
        %v8123 = vmax.f32 %v8057, 0.0
        %v8124 = vmax.f32 %v8060, 0.0
        %v8125 = vmax.f32 %v8065, 0.0
        %v8126 = vmax.f32 %v8068, 0.0
        %v8127 = vmax.f32 %v8073, 0.0
        %v8128 = vmax.f32 %v8076, 0.0
        %v8129 = vmax.f32 %v8081, 0.0
        %v8130 = vmax.f32 %v8084, 0.0
        %v8131 = vmax.f32 %v8089, 0.0
        %v8132 = vmax.f32 %v8092, 0.0
        %v8133 = vmax.f32 %v8097, 0.0
        %v8134 = vmax.f32 %v8100, 0.0
        %v8135 = vpack.c.bf16 %v8104, %v8103
        %v8136 = vpack.c.bf16 %v8106, %v8105
        %v8137 = vpack.c.bf16 %v8108, %v8107
        %v8138 = vpack.c.bf16 %v8110, %v8109
        %v8139 = vpack.c.bf16 %v8112, %v8111
        %v8140 = vpack.c.bf16 %v8114, %v8113
        %v8141 = vpack.c.bf16 %v8116, %v8115
        %v8142 = vpack.c.bf16 %v8118, %v8117
        %v8143 = vpack.c.bf16 %v8120, %v8119
        %v8144 = vpack.c.bf16 %v8122, %v8121
        %v8145 = vpack.c.bf16 %v8124, %v8123
        %v8146 = vpack.c.bf16 %v8126, %v8125
        %v8147 = vpack.c.bf16 %v8128, %v8127
        %v8148 = vpack.c.bf16 %v8130, %v8129
        %v8149 = vpack.c.bf16 %v8132, %v8131
        %v8150 = vpack.c.bf16 %v8134, %v8133
        %v8151 = vld [vmem:[%s7] sm:$0xf]
        %v8152 = vld [vmem:[%s7 + $0x4] sm:$0xf]
        %v8153 = vld [vmem:[%s7 + $0x8] sm:$0xf]
        %v8154 = vld [vmem:[%s7 + $0xc] sm:$0xf]
        %v8155 = vld [vmem:[%s7 + $0x10] sm:$0xf]
        %v8156 = vld [vmem:[%s7 + $0x14] sm:$0xf]
        %v8157 = vld [vmem:[%s7 + $0x18] sm:$0xf]
        %v8158 = vld [vmem:[%s7 + $0x1c] sm:$0xf]
        %v8159 = vld [vmem:[%s7 + $0x20] sm:$0xf]
        %v8160 = vld [vmem:[%s7 + $0x24] sm:$0xf]
        %v8161 = vld [vmem:[%s7 + $0x28] sm:$0xf]
        %v8162 = vld [vmem:[%s7 + $0x2c] sm:$0xf]
        %v8163 = vld [vmem:[%s7 + $0x30] sm:$0xf]
        %v8164 = vld [vmem:[%s7 + $0x34] sm:$0xf]
        %v8165 = vld [vmem:[%s7 + $0x38] sm:$0xf]
        %v8166 = vld [vmem:[%s7 + $0x3c] sm:$0xf]
        %v8167 = vld [vmem:[%s8] sm:$0x1]
        %v8169 = vlaneseq
        %v8170 = vshrl.u32 %v8169, 7
        %v8171 = vsub.s32 0, %v8170
        %v8172 = vrot.slane %v8167, %v8171
        %v8190 = vunpack.c.l.b16 %v8151
        %v8191 = vunpack.c.l.b16 %v8152
        %v8192 = vunpack.c.l.b16 %v8153
        %v8193 = vunpack.c.l.b16 %v8154
        %v8194 = vunpack.c.l.b16 %v8155
        %v8195 = vunpack.c.l.b16 %v8156
        %v8196 = vunpack.c.l.b16 %v8157
        %v8197 = vunpack.c.l.b16 %v8158
        %v8198 = vunpack.c.l.b16 %v8159
        %v8199 = vunpack.c.l.b16 %v8160
        %v8200 = vunpack.c.l.b16 %v8161
        %v8201 = vunpack.c.l.b16 %v8162
        %v8202 = vunpack.c.l.b16 %v8163
        %v8203 = vunpack.c.l.b16 %v8164
        %v8204 = vunpack.c.l.b16 %v8165
        %v8205 = vunpack.c.l.b16 %v8166
        %v8206 = vpack.c.b16 %v8191, %v8190
        %v8207 = vpack.c.b16 %v8193, %v8192
        %v8208 = vpack.c.b16 %v8195, %v8194
        %v8209 = vpack.c.b16 %v8197, %v8196
        %v8210 = vpack.c.b16 %v8199, %v8198
        %v8211 = vpack.c.b16 %v8201, %v8200
        %v8212 = vpack.c.b16 %v8203, %v8202
        %v8213 = vpack.c.b16 %v8205, %v8204
        %8222 = vmatprep.subr.bf16.mxu0 0
        %8223 = vmatpush1.bf16.msra.mxu0 %v8206
        %8224 = vmatprep.subr.bf16.mxu0 0
        %8225 = vmatpush1.bf16.msra.mxu0 %v8207
        %8226 = vmatprep.subr.bf16.mxu0 0
        %8227 = vmatpush1.bf16.msra.mxu0 %v8208
        %8228 = vmatprep.subr.bf16.mxu0 0
        %8229 = vmatpush1.bf16.msra.mxu0 %v8209
        %8230 = vmatprep.subr.bf16.mxu0 0
        %8231 = vmatpush1.bf16.msra.mxu0 %v8210
        %8232 = vmatprep.subr.bf16.mxu0 0
        %8233 = vmatpush1.bf16.msra.mxu0 %v8211
        %8234 = vmatprep.subr.bf16.mxu0 0
        %8235 = vmatpush1.bf16.msra.mxu0 %v8212
        %8236 = vmatprep.subr.bf16.mxu0 0
        %8237 = vmatpush1.bf16.msra.mxu0 %v8213
        %8238 = vmatprep.subr.bf16.mxu0 0
        %8239 = vmatpush1.bf16.msra.mxu0 0
        %8240 = vmatprep.subr.bf16.mxu0 0
        %8241 = vmatpush1.bf16.msra.mxu0 0
        %8242 = vmatprep.subr.bf16.mxu0 0
        %8243 = vmatpush1.bf16.msra.mxu0 0
        %8244 = vmatprep.subr.bf16.mxu0 0
        %8245 = vmatpush1.bf16.msra.mxu0 0
        %8246 = vmatprep.subr.bf16.mxu0 0
        %8247 = vmatpush1.bf16.msra.mxu0 0
        %8248 = vmatprep.subr.bf16.mxu0 0
        %8249 = vmatpush1.bf16.msra.mxu0 0
        %8250 = vmatprep.subr.bf16.mxu0 0
        %8251 = vmatpush1.bf16.msra.mxu0 0
        %8252 = vmatprep.subr.bf16.mxu0 0
        %8253 = vmatpush1.bf16.msra.mxu0 0
        %8254 = vmatprep.mubr.bf16.mxu0 0
        %8255 = vmatmul.mubr.bf16.gmra.mrb[0].mxu0 %v8135
        %v8256 = vpop.f32.mrb[0].mxu0
        %v8257 = vadd.f32 %v8172, %v8256
        %v8258 = vpop.f32.mrb[0].mxu0
        %v8259 = vpop.f32.mrb[0].mxu0
        %v8260 = vadd.f32 %v8172, %v8259
        %v8261 = vpop.f32.mrb[0].mxu0
        %8262 = vmatprep.mubr.bf16.mxu0 0
        %8263 = vmatmul.mubr.bf16.gmra.mrb[0].mxu0 %v8136
        %v8264 = vpop.f32.mrb[0].mxu0
        %v8265 = vadd.f32 %v8172, %v8264
        %v8266 = vpop.f32.mrb[0].mxu0
        %v8267 = vpop.f32.mrb[0].mxu0
        %v8268 = vadd.f32 %v8172, %v8267
        %v8269 = vpop.f32.mrb[0].mxu0
        %8270 = vmatprep.mubr.bf16.mxu0 0
        %8271 = vmatmul.mubr.bf16.gmra.mrb[0].mxu0 %v8137
        %v8272 = vpop.f32.mrb[0].mxu0
        %v8273 = vadd.f32 %v8172, %v8272
        %v8274 = vpop.f32.mrb[0].mxu0
        %v8275 = vpop.f32.mrb[0].mxu0
        %v8276 = vadd.f32 %v8172, %v8275
        %v8277 = vpop.f32.mrb[0].mxu0
        %8278 = vmatprep.mubr.bf16.mxu0 0
        %8279 = vmatmul.mubr.bf16.gmra.mrb[0].mxu0 %v8138
        %v8280 = vpop.f32.mrb[0].mxu0
        %v8281 = vadd.f32 %v8172, %v8280
        %v8282 = vpop.f32.mrb[0].mxu0
        %v8283 = vpop.f32.mrb[0].mxu0
        %v8284 = vadd.f32 %v8172, %v8283
        %v8285 = vpop.f32.mrb[0].mxu0
        %8286 = vmatprep.mubr.bf16.mxu0 0
        %8287 = vmatmul.mubr.bf16.gmra.mrb[0].mxu0 %v8139
        %v8288 = vpop.f32.mrb[0].mxu0
        %v8289 = vadd.f32 %v8172, %v8288
        %v8290 = vpop.f32.mrb[0].mxu0
        %v8291 = vpop.f32.mrb[0].mxu0
        %v8292 = vadd.f32 %v8172, %v8291
        %v8293 = vpop.f32.mrb[0].mxu0
        %8294 = vmatprep.mubr.bf16.mxu0 0
        %8295 = vmatmul.mubr.bf16.gmra.mrb[0].mxu0 %v8140
        %v8296 = vpop.f32.mrb[0].mxu0
        %v8297 = vadd.f32 %v8172, %v8296
        %v8298 = vpop.f32.mrb[0].mxu0
        %v8299 = vpop.f32.mrb[0].mxu0
        %v8300 = vadd.f32 %v8172, %v8299
        %v8301 = vpop.f32.mrb[0].mxu0
        %8302 = vmatprep.mubr.bf16.mxu0 0
        %8303 = vmatmul.mubr.bf16.gmra.mrb[0].mxu0 %v8141
        %v8304 = vpop.f32.mrb[0].mxu0
        %v8305 = vadd.f32 %v8172, %v8304
        %v8306 = vpop.f32.mrb[0].mxu0
        %v8307 = vpop.f32.mrb[0].mxu0
        %v8308 = vadd.f32 %v8172, %v8307
        %v8309 = vpop.f32.mrb[0].mxu0
        %8310 = vmatprep.mubr.bf16.mxu0 0
        %8311 = vmatmul.mubr.bf16.gmra.mrb[0].mxu0 %v8142
        %v8312 = vpop.f32.mrb[0].mxu0
        %v8313 = vadd.f32 %v8172, %v8312
        %v8314 = vpop.f32.mrb[0].mxu0
        %v8315 = vpop.f32.mrb[0].mxu0
        %v8316 = vadd.f32 %v8172, %v8315
        %v8317 = vpop.f32.mrb[0].mxu0
        %8318 = vmatprep.mubr.bf16.mxu0 0
        %8319 = vmatmul.mubr.bf16.gmra.mrb[0].mxu0 %v8143
        %v8320 = vpop.f32.mrb[0].mxu0
        %v8321 = vadd.f32 %v8172, %v8320
        %v8322 = vpop.f32.mrb[0].mxu0
        %v8323 = vpop.f32.mrb[0].mxu0
        %v8324 = vadd.f32 %v8172, %v8323
        %v8325 = vpop.f32.mrb[0].mxu0
        %8326 = vmatprep.mubr.bf16.mxu0 0
        %8327 = vmatmul.mubr.bf16.gmra.mrb[0].mxu0 %v8144
        %v8328 = vpop.f32.mrb[0].mxu0
        %v8329 = vadd.f32 %v8172, %v8328
        %v8330 = vpop.f32.mrb[0].mxu0
        %v8331 = vpop.f32.mrb[0].mxu0
        %v8332 = vadd.f32 %v8172, %v8331
        %v8333 = vpop.f32.mrb[0].mxu0
        %8334 = vmatprep.mubr.bf16.mxu0 0
        %8335 = vmatmul.mubr.bf16.gmra.mrb[0].mxu0 %v8145
        %v8336 = vpop.f32.mrb[0].mxu0
        %v8337 = vadd.f32 %v8172, %v8336
        %v8338 = vpop.f32.mrb[0].mxu0
        %v8339 = vpop.f32.mrb[0].mxu0
        %v8340 = vadd.f32 %v8172, %v8339
        %v8341 = vpop.f32.mrb[0].mxu0
        %8342 = vmatprep.mubr.bf16.mxu0 0
        %8343 = vmatmul.mubr.bf16.gmra.mrb[0].mxu0 %v8146
        %v8344 = vpop.f32.mrb[0].mxu0
        %v8345 = vadd.f32 %v8172, %v8344
        %v8346 = vpop.f32.mrb[0].mxu0
        %v8347 = vpop.f32.mrb[0].mxu0
        %v8348 = vadd.f32 %v8172, %v8347
        %v8349 = vpop.f32.mrb[0].mxu0
        %8350 = vmatprep.mubr.bf16.mxu0 0
        %8351 = vmatmul.mubr.bf16.gmra.mrb[0].mxu0 %v8147
        %v8352 = vpop.f32.mrb[0].mxu0
        %v8353 = vadd.f32 %v8172, %v8352
        %v8354 = vpop.f32.mrb[0].mxu0
        %v8355 = vpop.f32.mrb[0].mxu0
        %v8356 = vadd.f32 %v8172, %v8355
        %v8357 = vpop.f32.mrb[0].mxu0
        %8358 = vmatprep.mubr.bf16.mxu0 0
        %8359 = vmatmul.mubr.bf16.gmra.mrb[0].mxu0 %v8148
        %v8360 = vpop.f32.mrb[0].mxu0
        %v8361 = vadd.f32 %v8172, %v8360
        %v8362 = vpop.f32.mrb[0].mxu0
        %v8363 = vpop.f32.mrb[0].mxu0
        %v8364 = vadd.f32 %v8172, %v8363
        %v8365 = vpop.f32.mrb[0].mxu0
        %8366 = vmatprep.mubr.bf16.mxu0 0
        %8367 = vmatmul.mubr.bf16.gmra.mrb[0].mxu0 %v8149
        %v8368 = vpop.f32.mrb[0].mxu0
        %v8369 = vadd.f32 %v8172, %v8368
        %v8370 = vpop.f32.mrb[0].mxu0
        %v8371 = vpop.f32.mrb[0].mxu0
        %v8372 = vadd.f32 %v8172, %v8371
        %v8373 = vpop.f32.mrb[0].mxu0
        %8374 = vmatprep.mubr.bf16.mxu0 0
        %8375 = vmatmul.mubr.bf16.gmra.mrb[0].mxu0 %v8150
        %v8376 = vpop.f32.mrb[0].mxu0
        %v8377 = vadd.f32 %v8172, %v8376
        %v8378 = vpop.f32.mrb[0].mxu0
        %v8379 = vpop.f32.mrb[0].mxu0
        %v8380 = vadd.f32 %v8172, %v8379
        %v8381 = vpop.f32.mrb[0].mxu0
        %8382 = vdwg.mxu0
        %v8383 = vxor.u32 %v8257, 2147483648
        %v8384 = vxor.u32 %v8260, 2147483648
        %v8385 = vxor.u32 %v8265, 2147483648
        %v8386 = vxor.u32 %v8268, 2147483648
        %v8387 = vxor.u32 %v8273, 2147483648
        %v8388 = vxor.u32 %v8276, 2147483648
        %v8389 = vxor.u32 %v8281, 2147483648
        %v8390 = vxor.u32 %v8284, 2147483648
        %v8391 = vxor.u32 %v8289, 2147483648
        %v8392 = vxor.u32 %v8292, 2147483648
        %v8393 = vxor.u32 %v8297, 2147483648
        %v8394 = vxor.u32 %v8300, 2147483648
        %v8395 = vxor.u32 %v8305, 2147483648
        %v8396 = vxor.u32 %v8308, 2147483648
        %v8397 = vxor.u32 %v8313, 2147483648
        %v8398 = vxor.u32 %v8316, 2147483648
        %v8399 = vxor.u32 %v8321, 2147483648
        %v8400 = vxor.u32 %v8324, 2147483648
        %v8401 = vxor.u32 %v8329, 2147483648
        %v8402 = vxor.u32 %v8332, 2147483648
        %v8403 = vxor.u32 %v8337, 2147483648
        %v8404 = vxor.u32 %v8340, 2147483648
        %v8405 = vxor.u32 %v8345, 2147483648
        %v8406 = vxor.u32 %v8348, 2147483648
        %v8407 = vxor.u32 %v8353, 2147483648
        %v8408 = vxor.u32 %v8356, 2147483648
        %v8409 = vxor.u32 %v8361, 2147483648
        %v8410 = vxor.u32 %v8364, 2147483648
        %v8411 = vxor.u32 %v8369, 2147483648
        %v8412 = vxor.u32 %v8372, 2147483648
        %v8413 = vxor.u32 %v8377, 2147483648
        %v8414 = vxor.u32 %v8380, 2147483648
        %v8415 = vmul.f32 %v8383, 1.442695
        %v8416 = vpow.pop %v8415
        %v8417 = vmul.f32 %v8384, 1.442695
        %v8418 = vpow.pop %v8417
        %v8419 = vmul.f32 %v8385, 1.442695
        %v8420 = vpow.pop %v8419
        %v8421 = vmul.f32 %v8386, 1.442695
        %v8422 = vpow.pop %v8421
        %v8423 = vmul.f32 %v8387, 1.442695
        %v8424 = vpow.pop %v8423
        %v8425 = vmul.f32 %v8388, 1.442695
        %v8426 = vpow.pop %v8425
        %v8427 = vmul.f32 %v8389, 1.442695
        %v8428 = vpow.pop %v8427
        %v8429 = vmul.f32 %v8390, 1.442695
        %v8430 = vpow.pop %v8429
        %v8431 = vmul.f32 %v8391, 1.442695
        %v8432 = vpow.pop %v8431
        %v8433 = vmul.f32 %v8392, 1.442695
        %v8434 = vpow.pop %v8433
        %v8435 = vmul.f32 %v8393, 1.442695
        %v8436 = vpow.pop %v8435
        %v8437 = vmul.f32 %v8394, 1.442695
        %v8438 = vpow.pop %v8437
        %v8439 = vmul.f32 %v8395, 1.442695
        %v8440 = vpow.pop %v8439
        %v8441 = vmul.f32 %v8396, 1.442695
        %v8442 = vpow.pop %v8441
        %v8443 = vmul.f32 %v8397, 1.442695
        %v8444 = vpow.pop %v8443
        %v8445 = vmul.f32 %v8398, 1.442695
        %v8446 = vpow.pop %v8445
        %v8447 = vmul.f32 %v8399, 1.442695
        %v8448 = vpow.pop %v8447
        %v8449 = vmul.f32 %v8400, 1.442695
        %v8450 = vpow.pop %v8449
        %v8451 = vmul.f32 %v8401, 1.442695
        %v8452 = vpow.pop %v8451
        %v8453 = vmul.f32 %v8402, 1.442695
        %v8454 = vpow.pop %v8453
        %v8455 = vmul.f32 %v8403, 1.442695
        %v8456 = vpow.pop %v8455
        %v8457 = vmul.f32 %v8404, 1.442695
        %v8458 = vpow.pop %v8457
        %v8459 = vmul.f32 %v8405, 1.442695
        %v8460 = vpow.pop %v8459
        %v8461 = vmul.f32 %v8406, 1.442695
        %v8462 = vpow.pop %v8461
        %v8463 = vmul.f32 %v8407, 1.442695
        %v8464 = vpow.pop %v8463
        %v8465 = vmul.f32 %v8408, 1.442695
        %v8466 = vpow.pop %v8465
        %v8467 = vmul.f32 %v8409, 1.442695
        %v8468 = vpow.pop %v8467
        %v8469 = vmul.f32 %v8410, 1.442695
        %v8470 = vpow.pop %v8469
        %v8471 = vmul.f32 %v8411, 1.442695
        %v8472 = vpow.pop %v8471
        %v8473 = vmul.f32 %v8412, 1.442695
        %v8474 = vpow.pop %v8473
        %v8475 = vmul.f32 %v8413, 1.442695
        %v8476 = vpow.pop %v8475
        %v8477 = vmul.f32 %v8414, 1.442695
        %v8478 = vpow.pop %v8477
        %v8479 = vadd.f32 %v8416, 1.0
        %v8480 = vadd.f32 %v8418, 1.0
        %v8481 = vadd.f32 %v8420, 1.0
        %v8482 = vadd.f32 %v8422, 1.0
        %v8483 = vadd.f32 %v8424, 1.0
        %v8484 = vadd.f32 %v8426, 1.0
        %v8485 = vadd.f32 %v8428, 1.0
        %v8486 = vadd.f32 %v8430, 1.0
        %v8487 = vadd.f32 %v8432, 1.0
        %v8488 = vadd.f32 %v8434, 1.0
        %v8489 = vadd.f32 %v8436, 1.0
        %v8490 = vadd.f32 %v8438, 1.0
        %v8491 = vadd.f32 %v8440, 1.0
        %v8492 = vadd.f32 %v8442, 1.0
        %v8493 = vadd.f32 %v8444, 1.0
        %v8494 = vadd.f32 %v8446, 1.0
        %v8495 = vadd.f32 %v8448, 1.0
        %v8496 = vadd.f32 %v8450, 1.0
        %v8497 = vadd.f32 %v8452, 1.0
        %v8498 = vadd.f32 %v8454, 1.0
        %v8499 = vadd.f32 %v8456, 1.0
        %v8500 = vadd.f32 %v8458, 1.0
        %v8501 = vadd.f32 %v8460, 1.0
        %v8502 = vadd.f32 %v8462, 1.0
        %v8503 = vadd.f32 %v8464, 1.0
        %v8504 = vadd.f32 %v8466, 1.0
        %v8505 = vadd.f32 %v8468, 1.0
        %v8506 = vadd.f32 %v8470, 1.0
        %v8507 = vadd.f32 %v8472, 1.0
        %v8508 = vadd.f32 %v8474, 1.0
        %v8509 = vadd.f32 %v8476, 1.0
        %v8510 = vadd.f32 %v8478, 1.0
        %v8511 = vrcp.pop %v8479
        %v8512 = vmul.f32 1.0, %v8511
        %v8513 = vrcp.pop %v8480
        %v8514 = vmul.f32 1.0, %v8513
        %v8515 = vrcp.pop %v8481
        %v8516 = vmul.f32 1.0, %v8515
        %v8517 = vrcp.pop %v8482
        %v8518 = vmul.f32 1.0, %v8517
        %v8519 = vrcp.pop %v8483
        %v8520 = vmul.f32 1.0, %v8519
        %v8521 = vrcp.pop %v8484
        %v8522 = vmul.f32 1.0, %v8521
        %v8523 = vrcp.pop %v8485
        %v8524 = vmul.f32 1.0, %v8523
        %v8525 = vrcp.pop %v8486
        %v8526 = vmul.f32 1.0, %v8525
        %v8527 = vrcp.pop %v8487
        %v8528 = vmul.f32 1.0, %v8527
        %v8529 = vrcp.pop %v8488
        %v8530 = vmul.f32 1.0, %v8529
        %v8531 = vrcp.pop %v8489
        %v8532 = vmul.f32 1.0, %v8531
        %v8533 = vrcp.pop %v8490
        %v8534 = vmul.f32 1.0, %v8533
        %v8535 = vrcp.pop %v8491
        %v8536 = vmul.f32 1.0, %v8535
        %v8537 = vrcp.pop %v8492
        %v8538 = vmul.f32 1.0, %v8537
        %v8539 = vrcp.pop %v8493
        %v8540 = vmul.f32 1.0, %v8539
        %v8541 = vrcp.pop %v8494
        %v8542 = vmul.f32 1.0, %v8541
        %v8543 = vrcp.pop %v8495
        %v8544 = vmul.f32 1.0, %v8543
        %v8545 = vrcp.pop %v8496
        %v8546 = vmul.f32 1.0, %v8545
        %v8547 = vrcp.pop %v8497
        %v8548 = vmul.f32 1.0, %v8547
        %v8549 = vrcp.pop %v8498
        %v8550 = vmul.f32 1.0, %v8549
        %v8551 = vrcp.pop %v8499
        %v8552 = vmul.f32 1.0, %v8551
        %v8553 = vrcp.pop %v8500
        %v8554 = vmul.f32 1.0, %v8553
        %v8555 = vrcp.pop %v8501
        %v8556 = vmul.f32 1.0, %v8555
        %v8557 = vrcp.pop %v8502
        %v8558 = vmul.f32 1.0, %v8557
        %v8559 = vrcp.pop %v8503
        %v8560 = vmul.f32 1.0, %v8559
        %v8561 = vrcp.pop %v8504
        %v8562 = vmul.f32 1.0, %v8561
        %v8563 = vrcp.pop %v8505
        %v8564 = vmul.f32 1.0, %v8563
        %v8565 = vrcp.pop %v8506
        %v8566 = vmul.f32 1.0, %v8565
        %v8567 = vrcp.pop %v8507
        %v8568 = vmul.f32 1.0, %v8567
        %v8569 = vrcp.pop %v8508
        %v8570 = vmul.f32 1.0, %v8569
        %v8571 = vrcp.pop %v8509
        %v8572 = vmul.f32 1.0, %v8571
        %v8573 = vrcp.pop %v8510
        %v8574 = vmul.f32 1.0, %v8573
        %vm8575 = vcmask 23552
        %8576 = vst.msk [vmem:[%s334] sm:$0xff] %vm8575, %v8512
        %8577 = vst.msk [vmem:[%s334 + $0x8] sm:$0xff] %vm8575, %v8514
        %8578 = vst.msk [vmem:[%s334 + $0x10] sm:$0xff] %vm8575, %v8516
        %8579 = vst.msk [vmem:[%s334 + $0x18] sm:$0xff] %vm8575, %v8518
        %8580 = vst.msk [vmem:[%s334 + $0x20] sm:$0xff] %vm8575, %v8520
        %8581 = vst.msk [vmem:[%s334 + $0x28] sm:$0xff] %vm8575, %v8522
        %8582 = vst.msk [vmem:[%s334 + $0x30] sm:$0xff] %vm8575, %v8524
        %8583 = vst.msk [vmem:[%s334 + $0x38] sm:$0xff] %vm8575, %v8526
        %8584 = vst.msk [vmem:[%s334 + $0x40] sm:$0xff] %vm8575, %v8528
        %8585 = vst.msk [vmem:[%s334 + $0x48] sm:$0xff] %vm8575, %v8530
        %8586 = vst.msk [vmem:[%s334 + $0x50] sm:$0xff] %vm8575, %v8532
        %8587 = vst.msk [vmem:[%s334 + $0x58] sm:$0xff] %vm8575, %v8534
        %8588 = vst.msk [vmem:[%s334 + $0x60] sm:$0xff] %vm8575, %v8536
        %8589 = vst.msk [vmem:[%s334 + $0x68] sm:$0xff] %vm8575, %v8538
        %8590 = vst.msk [vmem:[%s334 + $0x70] sm:$0xff] %vm8575, %v8540
        %8591 = vst.msk [vmem:[%s334 + $0x78] sm:$0xff] %vm8575, %v8542
        %8592 = vst.msk [vmem:[%s334 + $0x80] sm:$0xff] %vm8575, %v8544
        %8593 = vst.msk [vmem:[%s334 + $0x88] sm:$0xff] %vm8575, %v8546
        %8594 = vst.msk [vmem:[%s334 + $0x90] sm:$0xff] %vm8575, %v8548
        %8595 = vst.msk [vmem:[%s334 + $0x98] sm:$0xff] %vm8575, %v8550
        %8596 = vst.msk [vmem:[%s334 + $0xa0] sm:$0xff] %vm8575, %v8552
        %8597 = vst.msk [vmem:[%s334 + $0xa8] sm:$0xff] %vm8575, %v8554
        %8598 = vst.msk [vmem:[%s334 + $0xb0] sm:$0xff] %vm8575, %v8556
        %8599 = vst.msk [vmem:[%s334 + $0xb8] sm:$0xff] %vm8575, %v8558
        %8600 = vst.msk [vmem:[%s334 + $0xc0] sm:$0xff] %vm8575, %v8560
        %8601 = vst.msk [vmem:[%s334 + $0xc8] sm:$0xff] %vm8575, %v8562
        %8602 = vst.msk [vmem:[%s334 + $0xd0] sm:$0xff] %vm8575, %v8564
        %8603 = vst.msk [vmem:[%s334 + $0xd8] sm:$0xff] %vm8575, %v8566
        %8604 = vst.msk [vmem:[%s334 + $0xe0] sm:$0xff] %vm8575, %v8568
        %8605 = vst.msk [vmem:[%s334 + $0xe8] sm:$0xff] %vm8575, %v8570
        %8606 = vst.msk [vmem:[%s334 + $0xf0] sm:$0xff] %vm8575, %v8572
        %8607 = vst.msk [vmem:[%s334 + $0xf8] sm:$0xff] %vm8575, %v8574
        %s8608 = sand.u32 %s222, 1
        %s8609 = sand.u32 %s222, 1
        %s8610 = smul.addr %s8609, 256
        %s8611 = scalar_lea.vmem [#allocation2], %s8610
        // Predicated region
        $region57: #{_lambda_.1} parent=55 // pred_check
          %p8612 = pneg %p232
        $region58: #{_lambda_.1} parent=55 // pred_check_branch
          %8614 = sbr.rel (%p8612) target = $region60
        $region59: #{_lambda_.1} parent=55 // pred_region
          %s8615 = smul.u32 32, %s20
          %s8616 = ssub.s32 125, %s8615
          %p8617 = scmp.lt.s32.totalorder %s8616, 32
          %s8618 = scalar_select %p8617, %s8616, 32
          %s8619 = smul.u32 128, %s8618
          %p8620 = scmp.ne.s32.totalorder 0, %s8619
          %s8621 = smul.addr %s8615, 8
          %s8622 = scalar_lea.vmem %s9, %s8621
          // Predicated region
          $region61: #{_lambda_.1} parent=59 // pred_check
            %p8623 = pneg %p8620
          $region62: #{_lambda_.1} parent=59 // pred_check_branch
            %8625 = sbr.rel (%p8623) target = $region64
          $region63: #{_lambda_.1} parent=59 // pred_region
            // Predicated region
            $region65: #{_lambda_.1} parent=63 // pred_check
              _
            $region66: #{_lambda_.1} parent=63 // pred_check_branch
              %8627 = sbr.rel (0) target = $region68
            $region67: #{_lambda_.1} parent=63 // pred_region
              // Predicated region
              $region87: #{_lambda_.1} parent=67 // pred_check
                _
              $region88: #{_lambda_.1} parent=67 // pred_check_branch
                %8738 = sbr.rel (0) target = $region90
              $region89: #{_lambda_.1} parent=67 // pred_region
                %s8739 = sshrl.u32 %s8618, 5
                // While loop
                $region91: #{_lambda_.1} parent=89 // loop_pre_header
                  _
                $region92: #{_lambda_.1} parent=89 // loop_header
                  %s8741 = sphi 0, %s8743
                  %p8742 = scmp.ge.s32.totalorder %s8741, %s8739
                  %s8746 = sphi 0, %s8815
                  %s8747 = sphi %s8611, %s8818
                  %s8748 = sphi %s8622, %s8819
                $region93: #{_lambda_.1} parent=89 // loop_header_branch
                  %8745 = sbr.rel (%p8742) target = $region97
                $region94: #{_lambda_.1} parent=89 // loop_body
                  %v8749 = vld [vmem:[%s8747] sm:$0xff]
                  %8750 = vst [vmem:[%s8748] sm:$0xff] %v8749
                  %v8751 = vld [vmem:[%s8747 + $0x8] sm:$0xff]
                  %8752 = vst [vmem:[%s8748 + $0x8] sm:$0xff] %v8751
                  %v8753 = vld [vmem:[%s8747 + $0x10] sm:$0xff]
                  %8754 = vst [vmem:[%s8748 + $0x10] sm:$0xff] %v8753
                  %v8755 = vld [vmem:[%s8747 + $0x18] sm:$0xff]
                  %8756 = vst [vmem:[%s8748 + $0x18] sm:$0xff] %v8755
                  %v8757 = vld [vmem:[%s8747 + $0x20] sm:$0xff]
                  %8758 = vst [vmem:[%s8748 + $0x20] sm:$0xff] %v8757
                  %v8759 = vld [vmem:[%s8747 + $0x28] sm:$0xff]
                  %8760 = vst [vmem:[%s8748 + $0x28] sm:$0xff] %v8759
                  %v8761 = vld [vmem:[%s8747 + $0x30] sm:$0xff]
                  %8762 = vst [vmem:[%s8748 + $0x30] sm:$0xff] %v8761
                  %v8763 = vld [vmem:[%s8747 + $0x38] sm:$0xff]
                  %8764 = vst [vmem:[%s8748 + $0x38] sm:$0xff] %v8763
                  %v8765 = vld [vmem:[%s8747 + $0x40] sm:$0xff]
                  %8766 = vst [vmem:[%s8748 + $0x40] sm:$0xff] %v8765
                  %v8767 = vld [vmem:[%s8747 + $0x48] sm:$0xff]
                  %8768 = vst [vmem:[%s8748 + $0x48] sm:$0xff] %v8767
                  %v8769 = vld [vmem:[%s8747 + $0x50] sm:$0xff]
                  %8770 = vst [vmem:[%s8748 + $0x50] sm:$0xff] %v8769
                  %v8771 = vld [vmem:[%s8747 + $0x58] sm:$0xff]
                  %8772 = vst [vmem:[%s8748 + $0x58] sm:$0xff] %v8771
                  %v8773 = vld [vmem:[%s8747 + $0x60] sm:$0xff]
                  %8774 = vst [vmem:[%s8748 + $0x60] sm:$0xff] %v8773
                  %v8775 = vld [vmem:[%s8747 + $0x68] sm:$0xff]
                  %8776 = vst [vmem:[%s8748 + $0x68] sm:$0xff] %v8775
                  %v8777 = vld [vmem:[%s8747 + $0x70] sm:$0xff]
                  %8778 = vst [vmem:[%s8748 + $0x70] sm:$0xff] %v8777
                  %v8779 = vld [vmem:[%s8747 + $0x78] sm:$0xff]
                  %8780 = vst [vmem:[%s8748 + $0x78] sm:$0xff] %v8779
                  %v8781 = vld [vmem:[%s8747 + $0x80] sm:$0xff]
                  %8782 = vst [vmem:[%s8748 + $0x80] sm:$0xff] %v8781
                  %v8783 = vld [vmem:[%s8747 + $0x88] sm:$0xff]
                  %8784 = vst [vmem:[%s8748 + $0x88] sm:$0xff] %v8783
                  %v8785 = vld [vmem:[%s8747 + $0x90] sm:$0xff]
                  %8786 = vst [vmem:[%s8748 + $0x90] sm:$0xff] %v8785
                  %v8787 = vld [vmem:[%s8747 + $0x98] sm:$0xff]
                  %8788 = vst [vmem:[%s8748 + $0x98] sm:$0xff] %v8787
                  %v8789 = vld [vmem:[%s8747 + $0xa0] sm:$0xff]
                  %8790 = vst [vmem:[%s8748 + $0xa0] sm:$0xff] %v8789
                  %v8791 = vld [vmem:[%s8747 + $0xa8] sm:$0xff]
                  %8792 = vst [vmem:[%s8748 + $0xa8] sm:$0xff] %v8791
                  %v8793 = vld [vmem:[%s8747 + $0xb0] sm:$0xff]
                  %8794 = vst [vmem:[%s8748 + $0xb0] sm:$0xff] %v8793
                  %v8795 = vld [vmem:[%s8747 + $0xb8] sm:$0xff]
                  %8796 = vst [vmem:[%s8748 + $0xb8] sm:$0xff] %v8795
                  %v8797 = vld [vmem:[%s8747 + $0xc0] sm:$0xff]
                  %8798 = vst [vmem:[%s8748 + $0xc0] sm:$0xff] %v8797
                  %v8799 = vld [vmem:[%s8747 + $0xc8] sm:$0xff]
                  %8800 = vst [vmem:[%s8748 + $0xc8] sm:$0xff] %v8799
                  %v8801 = vld [vmem:[%s8747 + $0xd0] sm:$0xff]
                  %8802 = vst [vmem:[%s8748 + $0xd0] sm:$0xff] %v8801
                  %v8803 = vld [vmem:[%s8747 + $0xd8] sm:$0xff]
                  %8804 = vst [vmem:[%s8748 + $0xd8] sm:$0xff] %v8803
                  %v8805 = vld [vmem:[%s8747 + $0xe0] sm:$0xff]
                  %8806 = vst [vmem:[%s8748 + $0xe0] sm:$0xff] %v8805
                  %v8807 = vld [vmem:[%s8747 + $0xe8] sm:$0xff]
                  %8808 = vst [vmem:[%s8748 + $0xe8] sm:$0xff] %v8807
                  %v8809 = vld [vmem:[%s8747 + $0xf0] sm:$0xff]
                  %8810 = vst [vmem:[%s8748 + $0xf0] sm:$0xff] %v8809
                  %v8811 = vld [vmem:[%s8747 + $0xf8] sm:$0xff]
                  %8812 = vst [vmem:[%s8748 + $0xf8] sm:$0xff] %v8811
                  %s8813 = sadd.s32 1, %s8746
                  %p8814 = scmp.ge.s32.totalorder %s8813, %s8739
                  %s8815 = scalar_select %p8814, 0, %s8813
                  %s8816 = smul.u32 %s8815, 256
                  %s8817 = smul.u32 %s8815, 256
                  %s8818 = scalar_lea.vmem %s8611, %s8816 [#allocation2]
                  %s8819 = scalar_lea.vmem %s8622, %s8817
                $region95: #{_lambda_.1} parent=89 // loop_footer
                  %s8743 = sadd.s32 %s8741, 1
                $region96: #{_lambda_.1} parent=89 // loop_footer_branch
                  %8740 = sbr.rel target = $region92
                $region97: #{_lambda_.1} parent=89 // loop_exit
                  _
                %s8820 = sshrl.u32 %s8618, 5
                %s8821 = sand.u32 %s8618, 31
                %s8822 = smul.u32 %s8820, 32
                %s8823 = smul.u32 8, %s8822
                %s8824 = scalar_lea.vmem %s8611, %s8823 [#allocation2]
                %s8825 = smul.u32 8, %s8822
                %s8826 = scalar_lea.vmem %s8622, %s8825
                // While loop
                $region98: #{_lambda_.1} parent=89 // loop_pre_header
                  _
                $region99: #{_lambda_.1} parent=89 // loop_header
                  %s8828 = sphi 0, %s8830
                  %p8829 = scmp.ge.s32.totalorder %s8828, %s8821
                  %s8833 = sphi 0, %s8840
                  %s8834 = sphi %s8824, %s8843
                  %s8835 = sphi %s8826, %s8844
                $region100: #{_lambda_.1} parent=89 // loop_header_branch
                  %8832 = sbr.rel (%p8829) target = $region104
                $region101: #{_lambda_.1} parent=89 // loop_body
                  %v8836 = vld [vmem:[%s8834] sm:$0xff]
                  %8837 = vst [vmem:[%s8835] sm:$0xff] %v8836
                  %s8838 = sadd.s32 1, %s8833
                  %p8839 = scmp.ge.s32.totalorder %s8838, %s8821
                  %s8840 = scalar_select %p8839, 0, %s8838
                  %s8841 = smul.u32 %s8840, 8
                  %s8842 = smul.u32 %s8840, 8
                  %s8843 = scalar_lea.vmem %s8824, %s8841 [#allocation2]
                  %s8844 = scalar_lea.vmem %s8826, %s8842
                $region102: #{_lambda_.1} parent=89 // loop_footer
                  %s8830 = sadd.s32 %s8828, 1
                $region103: #{_lambda_.1} parent=89 // loop_footer_branch
                  %8827 = sbr.rel target = $region99
                $region104: #{_lambda_.1} parent=89 // loop_exit
                  _
              $region90: #{_lambda_.1} parent=67 // pred_fallthru
                _
              // Predicated region
              $region105: #{_lambda_.1} parent=67 // pred_check
                _
              $region106: #{_lambda_.1} parent=67 // pred_check_branch
                %8846 = sbr.rel target = $region108
              $region107: #{_lambda_.1} parent=67 // pred_region
                _
              $region108: #{_lambda_.1} parent=67 // pred_fallthru
                _
            $region68: #{_lambda_.1} parent=63 // pred_fallthru
              _
            // Predicated region
            $region69: #{_lambda_.1} parent=63 // pred_check
              _
            $region70: #{_lambda_.1} parent=63 // pred_check_branch
              %8629 = sbr.rel target = $region72
            $region71: #{_lambda_.1} parent=63 // pred_region
              %s8631 = sshrl.u32 %s8618, 5
              // While loop
              $region73: #{_lambda_.1} parent=71 // loop_pre_header
                _
              $region74: #{_lambda_.1} parent=71 // loop_header
                %s8633 = sphi 0, %s8635
                %p8634 = scmp.ge.s32.totalorder %s8633, %s8631
                %s8638 = sphi 0, %s8707
                %s8639 = sphi %s8611, %s8710
                %s8640 = sphi %s8622, %s8711
              $region75: #{_lambda_.1} parent=71 // loop_header_branch
                %8637 = sbr.rel (%p8634) target = $region79
              $region76: #{_lambda_.1} parent=71 // loop_body
                %v8641 = vld [vmem:[%s8639] sm:$0xff]
                %8642 = vst [vmem:[%s8640] sm:$0xff] %v8641
                %v8643 = vld [vmem:[%s8639 + $0x8] sm:$0xff]
                %8644 = vst [vmem:[%s8640 + $0x8] sm:$0xff] %v8643
                %v8645 = vld [vmem:[%s8639 + $0x10] sm:$0xff]
                %8646 = vst [vmem:[%s8640 + $0x10] sm:$0xff] %v8645
                %v8647 = vld [vmem:[%s8639 + $0x18] sm:$0xff]
                %8648 = vst [vmem:[%s8640 + $0x18] sm:$0xff] %v8647
                %v8649 = vld [vmem:[%s8639 + $0x20] sm:$0xff]
                %8650 = vst [vmem:[%s8640 + $0x20] sm:$0xff] %v8649
                %v8651 = vld [vmem:[%s8639 + $0x28] sm:$0xff]
                %8652 = vst [vmem:[%s8640 + $0x28] sm:$0xff] %v8651
                %v8653 = vld [vmem:[%s8639 + $0x30] sm:$0xff]
                %8654 = vst [vmem:[%s8640 + $0x30] sm:$0xff] %v8653
                %v8655 = vld [vmem:[%s8639 + $0x38] sm:$0xff]
                %8656 = vst [vmem:[%s8640 + $0x38] sm:$0xff] %v8655
                %v8657 = vld [vmem:[%s8639 + $0x40] sm:$0xff]
                %8658 = vst [vmem:[%s8640 + $0x40] sm:$0xff] %v8657
                %v8659 = vld [vmem:[%s8639 + $0x48] sm:$0xff]
                %8660 = vst [vmem:[%s8640 + $0x48] sm:$0xff] %v8659
                %v8661 = vld [vmem:[%s8639 + $0x50] sm:$0xff]
                %8662 = vst [vmem:[%s8640 + $0x50] sm:$0xff] %v8661
                %v8663 = vld [vmem:[%s8639 + $0x58] sm:$0xff]
                %8664 = vst [vmem:[%s8640 + $0x58] sm:$0xff] %v8663
                %v8665 = vld [vmem:[%s8639 + $0x60] sm:$0xff]
                %8666 = vst [vmem:[%s8640 + $0x60] sm:$0xff] %v8665
                %v8667 = vld [vmem:[%s8639 + $0x68] sm:$0xff]
                %8668 = vst [vmem:[%s8640 + $0x68] sm:$0xff] %v8667
                %v8669 = vld [vmem:[%s8639 + $0x70] sm:$0xff]
                %8670 = vst [vmem:[%s8640 + $0x70] sm:$0xff] %v8669
                %v8671 = vld [vmem:[%s8639 + $0x78] sm:$0xff]
                %8672 = vst [vmem:[%s8640 + $0x78] sm:$0xff] %v8671
                %v8673 = vld [vmem:[%s8639 + $0x80] sm:$0xff]
                %8674 = vst [vmem:[%s8640 + $0x80] sm:$0xff] %v8673
                %v8675 = vld [vmem:[%s8639 + $0x88] sm:$0xff]
                %8676 = vst [vmem:[%s8640 + $0x88] sm:$0xff] %v8675
                %v8677 = vld [vmem:[%s8639 + $0x90] sm:$0xff]
                %8678 = vst [vmem:[%s8640 + $0x90] sm:$0xff] %v8677
                %v8679 = vld [vmem:[%s8639 + $0x98] sm:$0xff]
                %8680 = vst [vmem:[%s8640 + $0x98] sm:$0xff] %v8679
                %v8681 = vld [vmem:[%s8639 + $0xa0] sm:$0xff]
                %8682 = vst [vmem:[%s8640 + $0xa0] sm:$0xff] %v8681
                %v8683 = vld [vmem:[%s8639 + $0xa8] sm:$0xff]
                %8684 = vst [vmem:[%s8640 + $0xa8] sm:$0xff] %v8683
                %v8685 = vld [vmem:[%s8639 + $0xb0] sm:$0xff]
                %8686 = vst [vmem:[%s8640 + $0xb0] sm:$0xff] %v8685
                %v8687 = vld [vmem:[%s8639 + $0xb8] sm:$0xff]
                %8688 = vst [vmem:[%s8640 + $0xb8] sm:$0xff] %v8687
                %v8689 = vld [vmem:[%s8639 + $0xc0] sm:$0xff]
                %8690 = vst [vmem:[%s8640 + $0xc0] sm:$0xff] %v8689
                %v8691 = vld [vmem:[%s8639 + $0xc8] sm:$0xff]
                %8692 = vst [vmem:[%s8640 + $0xc8] sm:$0xff] %v8691
                %v8693 = vld [vmem:[%s8639 + $0xd0] sm:$0xff]
                %8694 = vst [vmem:[%s8640 + $0xd0] sm:$0xff] %v8693
                %v8695 = vld [vmem:[%s8639 + $0xd8] sm:$0xff]
                %8696 = vst [vmem:[%s8640 + $0xd8] sm:$0xff] %v8695
                %v8697 = vld [vmem:[%s8639 + $0xe0] sm:$0xff]
                %8698 = vst [vmem:[%s8640 + $0xe0] sm:$0xff] %v8697
                %v8699 = vld [vmem:[%s8639 + $0xe8] sm:$0xff]
                %8700 = vst [vmem:[%s8640 + $0xe8] sm:$0xff] %v8699
                %v8701 = vld [vmem:[%s8639 + $0xf0] sm:$0xff]
                %8702 = vst [vmem:[%s8640 + $0xf0] sm:$0xff] %v8701
                %v8703 = vld [vmem:[%s8639 + $0xf8] sm:$0xff]
                %8704 = vst [vmem:[%s8640 + $0xf8] sm:$0xff] %v8703
                %s8705 = sadd.s32 1, %s8638
                %p8706 = scmp.ge.s32.totalorder %s8705, %s8631
                %s8707 = scalar_select %p8706, 0, %s8705
                %s8708 = smul.u32 %s8707, 256
                %s8709 = smul.u32 %s8707, 256
                %s8710 = scalar_lea.vmem %s8611, %s8708 [#allocation2]
                %s8711 = scalar_lea.vmem %s8622, %s8709
              $region77: #{_lambda_.1} parent=71 // loop_footer
                %s8635 = sadd.s32 %s8633, 1
              $region78: #{_lambda_.1} parent=71 // loop_footer_branch
                %8632 = sbr.rel target = $region74
              $region79: #{_lambda_.1} parent=71 // loop_exit
                _
              %s8712 = sshrl.u32 %s8618, 5
              %s8713 = sand.u32 %s8618, 31
              %s8714 = smul.u32 %s8712, 32
              %s8715 = smul.u32 8, %s8714
              %s8716 = scalar_lea.vmem %s8611, %s8715 [#allocation2]
              %s8717 = smul.u32 8, %s8714
              %s8718 = scalar_lea.vmem %s8622, %s8717
              // While loop
              $region80: #{_lambda_.1} parent=71 // loop_pre_header
                _
              $region81: #{_lambda_.1} parent=71 // loop_header
                %s8720 = sphi 0, %s8722
                %p8721 = scmp.ge.s32.totalorder %s8720, %s8713
                %s8725 = sphi 0, %s8732
                %s8726 = sphi %s8716, %s8735
                %s8727 = sphi %s8718, %s8736
              $region82: #{_lambda_.1} parent=71 // loop_header_branch
                %8724 = sbr.rel (%p8721) target = $region86
              $region83: #{_lambda_.1} parent=71 // loop_body
                %v8728 = vld [vmem:[%s8726] sm:$0xff]
                %8729 = vst [vmem:[%s8727] sm:$0xff] %v8728
                %s8730 = sadd.s32 1, %s8725
                %p8731 = scmp.ge.s32.totalorder %s8730, %s8713
                %s8732 = scalar_select %p8731, 0, %s8730
                %s8733 = smul.u32 %s8732, 8
                %s8734 = smul.u32 %s8732, 8
                %s8735 = scalar_lea.vmem %s8716, %s8733 [#allocation2]
                %s8736 = scalar_lea.vmem %s8718, %s8734
              $region84: #{_lambda_.1} parent=71 // loop_footer
                %s8722 = sadd.s32 %s8720, 1
              $region85: #{_lambda_.1} parent=71 // loop_footer_branch
                %8719 = sbr.rel target = $region81
              $region86: #{_lambda_.1} parent=71 // loop_exit
                _
            $region72: #{_lambda_.1} parent=63 // pred_fallthru
              _
          $region64: #{_lambda_.1} parent=59 // pred_fallthru
            _
          %8847 = vnop
        $region60: #{_lambda_.1} parent=55 // pred_fallthru
          _
      $region56: #{_lambda_.1} parent=5 // pred_fallthru
        _
      %p8848 = scmp.le.s32.totalorder 2, %s15
      // Predicated region
      $region109: #{_lambda_.1} parent=5 // pred_check
        %p8849 = pneg %p8848
      $region110: #{_lambda_.1} parent=5 // pred_check_branch
        %8851 = sbr.rel (%p8849) target = $region112
      $region111: #{_lambda_.1} parent=5 // pred_region
        %s8852 = ssub.s32 %s15, 2
        // Predicated region
        $region113: #{_lambda_.1} parent=111 // pred_check
          %p8853 = pneg %p238
        $region114: #{_lambda_.1} parent=111 // pred_check_branch
          %8855 = sbr.rel (%p8853) target = $region116
        $region115: #{_lambda_.1} parent=111 // pred_region
          %s8856 = sand.u32 %s223, 1
          %s8857 = sand.u32 %s223, 1
          %s8858 = smul.addr %s8857, 256
          %s8859 = scalar_lea.vmem [#allocation2], %s8858
        $region116: #{_lambda_.1} parent=111 // pred_fallthru
          _
      $region112: #{_lambda_.1} parent=5 // pred_fallthru
        _
    $region6: #{_lambda_.1} parent=1 // loop_footer
      %s19 = sadd.s32 1, %s15
    $region7: #{_lambda_.1} parent=1 // loop_footer_branch
      %14 = sbr.rel target = $region3
    $region8: #{_lambda_.1} parent=1 // loop_exit
      _

</llo_original>
